<compile_context>
chip_gen: v7x
topology: tpu7x:2x2x1
jax: 0.10.0
libtpu: 0.0.40
codegen_flags: <defaults>
</compile_context>

<pallas_src>
import jax
import jax.numpy as jnp
from jax import lax
from jax.experimental import pallas as pl
from jax.experimental.pallas import tpu as pltpu

C_IN = 256
C_MID = 128
LANE = 128
BN_EPS = 1e-5


def coarse_seg_kernel(x_ref, w1_ref, b1_ref, w2_ref, b2_ref, w3_ref, b3_ref,
                      out_ref, xp_ref, h1_ref):
    # x_ref : (1, H, W, 256)  bf16 unpadded input tile (one batch element)
    # w1_ref: (3, 3, 256, 128) bf16 (BN1 scale folded in)
    # w2_ref: (3, 3, 128, 128) bf16 (BN2 scale folded in)
    # b1/b2 : (1, 128) f32 folded BN shifts
    # w3_ref: (128, NCP) bf16, b3_ref: (1, NCP) f32   (NCP = padded classes)
    # out_ref: (1, H, W, NCP) f32
    # xp_ref : (H+2, W+2, 256) bf16 scratch (zero-halo padded input)
    # h1_ref : (H+2, W+2, 128) bf16 scratch (zero-halo padded conv1 output)
    H = out_ref.shape[1]
    W = out_ref.shape[2]

    # Zero only the 1-element halo border of the padded scratches; the (H, W)
    # interior is fully overwritten every grid step.
    def zero_border(ref):
        c = ref.shape[-1]
        row = jnp.zeros((1, W + 2, c), ref.dtype)
        col = jnp.zeros((H + 2, 1, c), ref.dtype)
        ref[0:1, :, :] = row
        ref[H + 1:H + 2, :, :] = row
        ref[:, 0:1, :] = col
        ref[:, W + 1:W + 2, :] = col

    zero_border(xp_ref)
    zero_border(h1_ref)

    # Stage the unpadded input into the interior of the padded scratch
    # (replaces the wrapper-side jnp.pad HBM round trip).
    xp_ref[1:H + 1, 1:W + 1, :] = x_ref[0]

    # ---- conv1 (+ folded BN1 scale): 3x3, pad=1 as 9 shifted MXU matmuls ----
    acc1 = jnp.zeros((H * W, C_MID), jnp.float32)
    for dy in range(3):
        for dx in range(3):
            patch = xp_ref[dy:dy + H, dx:dx + W, :].reshape(H * W, C_IN)
            acc1 = acc1 + jnp.dot(patch, w1_ref[dy, dx],
                                  preferred_element_type=jnp.float32)
    # BN shift + ReLU   (Dropout(0.5): identity at inference)
    y1 = jnp.maximum(acc1 + b1_ref[...], 0.0)
    h1_ref[1:H + 1, 1:W + 1, :] = y1.reshape(H, W, C_MID).astype(h1_ref.dtype)

    # ---- conv2 (+ folded BN2 scale): 3x3, pad=1 ----
    acc2 = jnp.zeros((H * W, C_MID), jnp.float32)
    for dy in range(3):
        for dx in range(3):
            patch = h1_ref[dy:dy + H, dx:dx + W, :].reshape(H * W, C_MID)
            acc2 = acc2 + jnp.dot(patch, w2_ref[dy, dx],
                                  preferred_element_type=jnp.float32)
    # BN shift + ReLU   (Dropout(0.1): identity at inference)
    y2 = jnp.maximum(acc2 + b2_ref[...], 0.0)

    # ---- conv3: 1x1 with bias; lane-dense (padded-to-128) output ----
    y3 = jnp.dot(y2.astype(w3_ref.dtype), w3_ref[...],
                 preferred_element_type=jnp.float32) + b3_ref[...]
    out_ref[...] = y3.reshape(1, H, W, -1).astype(out_ref.dtype)


def coarse_seg_forward(x_nhwc, kparams, num_classes):
    """x_nhwc: (N, H, W, 256) float32 -> (N, H, W, num_classes) float32."""
    (w1, b1, w2, b2, w3, b3) = kparams
    N, H, W, Cin = x_nhwc.shape
    assert Cin == C_IN
    NCP = w3.shape[-1]  # padded class count (multiple of 128)

    x_bf16 = x_nhwc.astype(jnp.bfloat16)  # halves input DMA bytes

    grid_spec = pltpu.PrefetchScalarGridSpec(
        num_scalar_prefetch=0,
        grid=(N,),
        in_specs=[
            pl.BlockSpec((1, H, W, C_IN), lambda n: (n, 0, 0, 0)),
            pl.BlockSpec((3, 3, C_IN, C_MID), lambda n: (0, 0, 0, 0)),
            pl.BlockSpec((1, C_MID), lambda n: (0, 0)),
            pl.BlockSpec((3, 3, C_MID, C_MID), lambda n: (0, 0, 0, 0)),
            pl.BlockSpec((1, C_MID), lambda n: (0, 0)),
            pl.BlockSpec((C_MID, NCP), lambda n: (0, 0)),
            pl.BlockSpec((1, NCP), lambda n: (0, 0)),
        ],
        out_specs=pl.BlockSpec((1, H, W, NCP), lambda n: (n, 0, 0, 0)),
        scratch_shapes=[
            pltpu.VMEM((H + 2, W + 2, C_IN), jnp.bfloat16),
            pltpu.VMEM((H + 2, W + 2, C_MID), jnp.bfloat16),
        ],
    )

    out = pl.pallas_call(
        coarse_seg_kernel,
        out_shape=jax.ShapeDtypeStruct((N, H, W, NCP), jnp.float32),
        grid_spec=grid_spec,
        compiler_params=pltpu.CompilerParams(
            dimension_semantics=("parallel",)),
    )(x_bf16, w1, b1, w2, b2, w3, b3)

    return out[..., :num_classes]


def make_params(key, num_classes):
    """Raw module parameters (kaiming-normal convs; BN gamma=1, beta=0, with
    mildly perturbed running stats to exercise the inference-mode folding)."""
    k1, k2, k3, k4, k5, k6 = jax.random.split(key, 6)

    def kaiming(k, shape):  # shape = (kh, kw, Cin, Cout), fan_in = kh*kw*Cin
        fan_in = shape[0] * shape[1] * shape[2]
        std = (2.0 / fan_in) ** 0.5
        return std * jax.random.normal(k, shape, jnp.float32)

    w1 = kaiming(k1, (3, 3, C_IN, C_MID))
    w2 = kaiming(k2, (3, 3, C_MID, C_MID))
    w3 = kaiming(k3, (1, 1, C_MID, num_classes))
    bound = 1.0 / (C_MID ** 0.5)
    b3 = jax.random.uniform(k4, (num_classes,), jnp.float32, -bound, bound)

    def bn(k):
        ka, kb = jax.random.split(k)
        gamma = jnp.ones((C_MID,), jnp.float32)
        beta = jnp.zeros((C_MID,), jnp.float32)
        mean = 0.1 * jax.random.normal(ka, (C_MID,), jnp.float32)
        var = 1.0 + 0.2 * jax.random.uniform(kb, (C_MID,), jnp.float32)
        return (gamma, beta, mean, var)

    return (w1, bn(k5), w2, bn(k6), w3, b3)


def fold_params(raw, num_classes):
    """Fold inference-mode BN into the conv weights, cast conv weights to
    bf16, and pad the 1x1 conv to a lane-dense (multiple-of-128) width."""
    w1, bn1, w2, bn2, w3, b3 = raw

    def bn_scale_shift(bn):
        gamma, beta, mean, var = bn
        s = gamma / jnp.sqrt(var + BN_EPS)
        return s, beta - mean * s

    s1, sh1 = bn_scale_shift(bn1)
    s2, sh2 = bn_scale_shift(bn2)

    w1f = (w1 * s1[None, None, None, :]).astype(jnp.bfloat16)
    w2f = (w2 * s2[None, None, None, :]).astype(jnp.bfloat16)
    b1 = sh1.reshape(1, C_MID).astype(jnp.float32)
    b2 = sh2.reshape(1, C_MID).astype(jnp.float32)

    ncp = ((num_classes + LANE - 1) // LANE) * LANE
    w3m = w3.reshape(C_MID, num_classes)
    w3p = jnp.zeros((C_MID, ncp), jnp.float32).at[:, :num_classes].set(w3m)
    b3p = jnp.zeros((1, ncp), jnp.float32).at[0, :num_classes].set(b3)

    return (w1f, b1, w2f, b2, w3p.astype(jnp.bfloat16), b3p)


def reference_forward(x_nhwc, raw):
    """Pure-JAX f32 reference (unfolded BN, full-precision convs)."""
    w1, bn1, w2, bn2, w3, b3 = raw
    dn = ('NHWC', 'HWIO', 'NHWC')
    hi = lax.Precision.HIGHEST

    def bn_relu(y, bn):
        gamma, beta, mean, var = bn
        return jnp.maximum((y - mean) / jnp.sqrt(var + BN_EPS) * gamma + beta,
                           0.0)

    y = lax.conv_general_dilated(x_nhwc, w1, (1, 1), 'SAME',
                                 dimension_numbers=dn, precision=hi)
    y = bn_relu(y, bn1)
    y = lax.conv_general_dilated(y, w2, (1, 1), 'SAME',
                                 dimension_numbers=dn, precision=hi)
    y = bn_relu(y, bn2)
    y = lax.conv_general_dilated(y, w3, (1, 1), 'SAME',
                                 dimension_numbers=dn, precision=hi)
    return y + b3.reshape(1, 1, 1, -1)


if __name__ == "__main__":
    key = jax.random.PRNGKey(0)
    kx, kp = jax.random.split(key)

    N, H, W = 2, 16, 16
    num_classes = 4

    # PyTorch-style NCHW input, transposed to NHWC for the kernel (glue).
    x_nchw = jax.random.normal(kx, (N, C_IN, H, W), jnp.float32)
    x_nhwc = jnp.transpose(x_nchw, (0, 2, 3, 1))

    raw = make_params(kp, num_classes)
    kparams = fold_params(raw, num_classes)

    out = jax.block_until_ready(coarse_seg_forward(x_nhwc, kparams, num_classes))
    ref = jax.block_until_ready(reference_forward(x_nhwc, raw))

    assert out.shape == (N, H, W, num_classes)
    max_err = float(jnp.max(jnp.abs(out - ref)))
    ref_scale = float(jnp.max(jnp.abs(ref)))
    assert max_err <= 5e-2 * ref_scale + 1e-3, (max_err, ref_scale)

    print("KERNEL_OK")
</pallas_src>

<mosaic_0001>
module attributes {stable_mosaic.version = 11 : i64} {
  func.func @coarse_seg_kernel(%arg0: i32, %arg1: memref<1x16x16x256xbf16, #tpu.memory_space<vmem>>, %arg2: memref<3x3x256x128xbf16, #tpu.memory_space<vmem>>, %arg3: memref<1x128xf32, #tpu.memory_space<vmem>>, %arg4: memref<3x3x128x128xbf16, #tpu.memory_space<vmem>>, %arg5: memref<1x128xf32, #tpu.memory_space<vmem>>, %arg6: memref<128x128xbf16, #tpu.memory_space<vmem>>, %arg7: memref<1x128xf32, #tpu.memory_space<vmem>>, %arg8: memref<1x16x16x128xf32, #tpu.memory_space<vmem>>, %arg9: memref<18x18x256xbf16, #tpu.memory_space<vmem>>, %arg10: memref<18x18x128xbf16, #tpu.memory_space<vmem>>) attributes {dimension_semantics = [#tpu.dimension_semantics<parallel>], iteration_bounds = array<i64: 2>, scalar_prefetch = 0 : i64, scratch_operands = 2 : i64, tpu.core_type = #tpu.core_type<tc>, window_params = [{transform_indices = @transform_0, window_bounds = array<i64: 1, 16, 16, 256>}, {pipeline_mode = #tpu.pipeline_mode<synchronous>, transform_indices = @transform_1, window_bounds = array<i64: 3, 3, 256, 128>}, {pipeline_mode = #tpu.pipeline_mode<synchronous>, transform_indices = @transform_2, window_bounds = array<i64: 1, 128>}, {pipeline_mode = #tpu.pipeline_mode<synchronous>, transform_indices = @transform_3, window_bounds = array<i64: 3, 3, 128, 128>}, {pipeline_mode = #tpu.pipeline_mode<synchronous>, transform_indices = @transform_4, window_bounds = array<i64: 1, 128>}, {pipeline_mode = #tpu.pipeline_mode<synchronous>, transform_indices = @transform_5, window_bounds = array<i64: 128, 128>}, {pipeline_mode = #tpu.pipeline_mode<synchronous>, transform_indices = @transform_6, window_bounds = array<i64: 1, 128>}, {transform_indices = @transform_7, window_bounds = array<i64: 1, 16, 16, 128>}]} {
    %cst = arith.constant 0.000000e+00 : bf16
    %0 = vector.broadcast %cst : bf16 to vector<1x18x256xbf16>
    %cst_0 = arith.constant 0.000000e+00 : bf16
    %1 = vector.broadcast %cst_0 : bf16 to vector<18x1x256xbf16>
    %c0 = arith.constant 0 : index
    %c0_1 = arith.constant 0 : index
    %c0_2 = arith.constant 0 : index
    %2 = vector.load %arg9[%c0, %c0_1, %c0_2] : memref<18x18x256xbf16, #tpu.memory_space<vmem>>, vector<1x18x256xbf16>
    tpu.vector_store %arg9[%c0, %c0_1, %c0_2], %0 {strides = array<i32>} : memref<18x18x256xbf16, #tpu.memory_space<vmem>>, vector<1x18x256xbf16>,
    %c17 = arith.constant 17 : index
    %c0_3 = arith.constant 0 : index
    %c0_4 = arith.constant 0 : index
    %3 = vector.load %arg9[%c17, %c0_3, %c0_4] : memref<18x18x256xbf16, #tpu.memory_space<vmem>>, vector<1x18x256xbf16>
    tpu.vector_store %arg9[%c17, %c0_3, %c0_4], %0 {strides = array<i32>} : memref<18x18x256xbf16, #tpu.memory_space<vmem>>, vector<1x18x256xbf16>,
    %c0_5 = arith.constant 0 : index
    %c0_6 = arith.constant 0 : index
    %c0_7 = arith.constant 0 : index
    %4 = vector.load %arg9[%c0_5, %c0_6, %c0_7] : memref<18x18x256xbf16, #tpu.memory_space<vmem>>, vector<18x1x256xbf16>
    tpu.vector_store %arg9[%c0_5, %c0_6, %c0_7], %1 {strides = array<i32>} : memref<18x18x256xbf16, #tpu.memory_space<vmem>>, vector<18x1x256xbf16>,
    %c0_8 = arith.constant 0 : index
    %c17_9 = arith.constant 17 : index
    %c0_10 = arith.constant 0 : index
    %5 = vector.load %arg9[%c0_8, %c17_9, %c0_10] : memref<18x18x256xbf16, #tpu.memory_space<vmem>>, vector<18x1x256xbf16>
    tpu.vector_store %arg9[%c0_8, %c17_9, %c0_10], %1 {strides = array<i32>} : memref<18x18x256xbf16, #tpu.memory_space<vmem>>, vector<18x1x256xbf16>,
    %cst_11 = arith.constant 0.000000e+00 : bf16
    %6 = vector.broadcast %cst_11 : bf16 to vector<1x18x128xbf16>
    %cst_12 = arith.constant 0.000000e+00 : bf16
    %7 = vector.broadcast %cst_12 : bf16 to vector<18x1x128xbf16>
    %c0_13 = arith.constant 0 : index
    %c0_14 = arith.constant 0 : index
    %c0_15 = arith.constant 0 : index
    %8 = vector.load %arg10[%c0_13, %c0_14, %c0_15] : memref<18x18x128xbf16, #tpu.memory_space<vmem>>, vector<1x18x128xbf16>
    tpu.vector_store %arg10[%c0_13, %c0_14, %c0_15], %6 {strides = array<i32>} : memref<18x18x128xbf16, #tpu.memory_space<vmem>>, vector<1x18x128xbf16>,
    %c17_16 = arith.constant 17 : index
    %c0_17 = arith.constant 0 : index
    %c0_18 = arith.constant 0 : index
    %9 = vector.load %arg10[%c17_16, %c0_17, %c0_18] : memref<18x18x128xbf16, #tpu.memory_space<vmem>>, vector<1x18x128xbf16>
    tpu.vector_store %arg10[%c17_16, %c0_17, %c0_18], %6 {strides = array<i32>} : memref<18x18x128xbf16, #tpu.memory_space<vmem>>, vector<1x18x128xbf16>,
    %c0_19 = arith.constant 0 : index
    %c0_20 = arith.constant 0 : index
    %c0_21 = arith.constant 0 : index
    %10 = vector.load %arg10[%c0_19, %c0_20, %c0_21] : memref<18x18x128xbf16, #tpu.memory_space<vmem>>, vector<18x1x128xbf16>
    tpu.vector_store %arg10[%c0_19, %c0_20, %c0_21], %7 {strides = array<i32>} : memref<18x18x128xbf16, #tpu.memory_space<vmem>>, vector<18x1x128xbf16>,
    %c0_22 = arith.constant 0 : index
    %c17_23 = arith.constant 17 : index
    %c0_24 = arith.constant 0 : index
    %11 = vector.load %arg10[%c0_22, %c17_23, %c0_24] : memref<18x18x128xbf16, #tpu.memory_space<vmem>>, vector<18x1x128xbf16>
    tpu.vector_store %arg10[%c0_22, %c17_23, %c0_24], %7 {strides = array<i32>} : memref<18x18x128xbf16, #tpu.memory_space<vmem>>, vector<18x1x128xbf16>,
    %c0_25 = arith.constant 0 : index
    %c0_26 = arith.constant 0 : index
    %c0_27 = arith.constant 0 : index
    %c0_28 = arith.constant 0 : index
    %12 = vector.load %arg1[%c0_25, %c0_26, %c0_27, %c0_28] : memref<1x16x16x256xbf16, #tpu.memory_space<vmem>>, vector<1x16x16x256xbf16>
    %13 = vector.shape_cast %12 : vector<1x16x16x256xbf16> to vector<16x16x256xbf16>
    %c1 = arith.constant 1 : index
    %c1_29 = arith.constant 1 : index
    %c0_30 = arith.constant 0 : index
    %14 = vector.load %arg9[%c1, %c1_29, %c0_30] : memref<18x18x256xbf16, #tpu.memory_space<vmem>>, vector<16x16x256xbf16>
    tpu.vector_store %arg9[%c1, %c1_29, %c0_30], %13 {strides = array<i32>} : memref<18x18x256xbf16, #tpu.memory_space<vmem>>, vector<16x16x256xbf16>,
    %cst_31 = arith.constant 0.000000e+00 : f32
    %15 = vector.broadcast %cst_31 : f32 to vector<256x128xf32>
    %c0_32 = arith.constant 0 : index
    %c0_33 = arith.constant 0 : index
    %c0_34 = arith.constant 0 : index
    %16 = vector.load %arg9[%c0_32, %c0_33, %c0_34] : memref<18x18x256xbf16, #tpu.memory_space<vmem>>, vector<16x16x256xbf16>
    %17 = vector.shape_cast %16 : vector<16x16x256xbf16> to vector<256x256xbf16>
    %c0_35 = arith.constant 0 : index
    %c0_36 = arith.constant 0 : index
    %c0_37 = arith.constant 0 : index
    %c0_38 = arith.constant 0 : index
    %18 = vector.load %arg2[%c0_35, %c0_36, %c0_37, %c0_38] : memref<3x3x256x128xbf16, #tpu.memory_space<vmem>>, vector<1x1x256x128xbf16>
    %19 = vector.shape_cast %18 : vector<1x1x256x128xbf16> to vector<256x128xbf16>
    %cst_39 = arith.constant dense<0.000000e+00> : vector<256x128xf32>
    %20 = tpu.matmul %17, %19, %cst_39 {dimension_numbers = #tpu.dot_dimension_numbers<[1], [0], [0], [1], [0, 0, 1, 1], [], []>} : vector<256x256xbf16>, vector<256x128xbf16>, vector<256x128xf32> -> vector<256x128xf32>
    %21 = arith.addf %15, %20 : vector<256x128xf32>
    %c0_40 = arith.constant 0 : index
    %c1_41 = arith.constant 1 : index
    %c0_42 = arith.constant 0 : index
    %22 = vector.load %arg9[%c0_40, %c1_41, %c0_42] : memref<18x18x256xbf16, #tpu.memory_space<vmem>>, vector<16x16x256xbf16>
    %23 = vector.shape_cast %22 : vector<16x16x256xbf16> to vector<256x256xbf16>
    %c0_43 = arith.constant 0 : index
    %c1_44 = arith.constant 1 : index
    %c0_45 = arith.constant 0 : index
    %c0_46 = arith.constant 0 : index
    %24 = vector.load %arg2[%c0_43, %c1_44, %c0_45, %c0_46] : memref<3x3x256x128xbf16, #tpu.memory_space<vmem>>, vector<1x1x256x128xbf16>
    %25 = vector.shape_cast %24 : vector<1x1x256x128xbf16> to vector<256x128xbf16>
    %cst_47 = arith.constant dense<0.000000e+00> : vector<256x128xf32>
    %26 = tpu.matmul %23, %25, %cst_47 {dimension_numbers = #tpu.dot_dimension_numbers<[1], [0], [0], [1], [0, 0, 1, 1], [], []>} : vector<256x256xbf16>, vector<256x128xbf16>, vector<256x128xf32> -> vector<256x128xf32>
    %27 = arith.addf %21, %26 : vector<256x128xf32>
    %c0_48 = arith.constant 0 : index
    %c2 = arith.constant 2 : index
    %c0_49 = arith.constant 0 : index
    %28 = vector.load %arg9[%c0_48, %c2, %c0_49] : memref<18x18x256xbf16, #tpu.memory_space<vmem>>, vector<16x16x256xbf16>
    %29 = vector.shape_cast %28 : vector<16x16x256xbf16> to vector<256x256xbf16>
    %c0_50 = arith.constant 0 : index
    %c2_51 = arith.constant 2 : index
    %c0_52 = arith.constant 0 : index
    %c0_53 = arith.constant 0 : index
    %30 = vector.load %arg2[%c0_50, %c2_51, %c0_52, %c0_53] : memref<3x3x256x128xbf16, #tpu.memory_space<vmem>>, vector<1x1x256x128xbf16>
    %31 = vector.shape_cast %30 : vector<1x1x256x128xbf16> to vector<256x128xbf16>
    %cst_54 = arith.constant dense<0.000000e+00> : vector<256x128xf32>
    %32 = tpu.matmul %29, %31, %cst_54 {dimension_numbers = #tpu.dot_dimension_numbers<[1], [0], [0], [1], [0, 0, 1, 1], [], []>} : vector<256x256xbf16>, vector<256x128xbf16>, vector<256x128xf32> -> vector<256x128xf32>
    %33 = arith.addf %27, %32 : vector<256x128xf32>
    %c1_55 = arith.constant 1 : index
    %c0_56 = arith.constant 0 : index
    %c0_57 = arith.constant 0 : index
    %34 = vector.load %arg9[%c1_55, %c0_56, %c0_57] : memref<18x18x256xbf16, #tpu.memory_space<vmem>>, vector<16x16x256xbf16>
    %35 = vector.shape_cast %34 : vector<16x16x256xbf16> to vector<256x256xbf16>
    %c1_58 = arith.constant 1 : index
    %c0_59 = arith.constant 0 : index
    %c0_60 = arith.constant 0 : index
    %c0_61 = arith.constant 0 : index
    %36 = vector.load %arg2[%c1_58, %c0_59, %c0_60, %c0_61] : memref<3x3x256x128xbf16, #tpu.memory_space<vmem>>, vector<1x1x256x128xbf16>
    %37 = vector.shape_cast %36 : vector<1x1x256x128xbf16> to vector<256x128xbf16>
    %cst_62 = arith.constant dense<0.000000e+00> : vector<256x128xf32>
    %38 = tpu.matmul %35, %37, %cst_62 {dimension_numbers = #tpu.dot_dimension_numbers<[1], [0], [0], [1], [0, 0, 1, 1], [], []>} : vector<256x256xbf16>, vector<256x128xbf16>, vector<256x128xf32> -> vector<256x128xf32>
    %39 = arith.addf %33, %38 : vector<256x128xf32>
    %c1_63 = arith.constant 1 : index
    %c1_64 = arith.constant 1 : index
    %c0_65 = arith.constant 0 : index
    %40 = vector.load %arg9[%c1_63, %c1_64, %c0_65] : memref<18x18x256xbf16, #tpu.memory_space<vmem>>, vector<16x16x256xbf16>
    %41 = vector.shape_cast %40 : vector<16x16x256xbf16> to vector<256x256xbf16>
    %c1_66 = arith.constant 1 : index
    %c1_67 = arith.constant 1 : index
    %c0_68 = arith.constant 0 : index
    %c0_69 = arith.constant 0 : index
    %42 = vector.load %arg2[%c1_66, %c1_67, %c0_68, %c0_69] : memref<3x3x256x128xbf16, #tpu.memory_space<vmem>>, vector<1x1x256x128xbf16>
    %43 = vector.shape_cast %42 : vector<1x1x256x128xbf16> to vector<256x128xbf16>
    %cst_70 = arith.constant dense<0.000000e+00> : vector<256x128xf32>
    %44 = tpu.matmul %41, %43, %cst_70 {dimension_numbers = #tpu.dot_dimension_numbers<[1], [0], [0], [1], [0, 0, 1, 1], [], []>} : vector<256x256xbf16>, vector<256x128xbf16>, vector<256x128xf32> -> vector<256x128xf32>
    %45 = arith.addf %39, %44 : vector<256x128xf32>
    %c1_71 = arith.constant 1 : index
    %c2_72 = arith.constant 2 : index
    %c0_73 = arith.constant 0 : index
    %46 = vector.load %arg9[%c1_71, %c2_72, %c0_73] : memref<18x18x256xbf16, #tpu.memory_space<vmem>>, vector<16x16x256xbf16>
    %47 = vector.shape_cast %46 : vector<16x16x256xbf16> to vector<256x256xbf16>
    %c1_74 = arith.constant 1 : index
    %c2_75 = arith.constant 2 : index
    %c0_76 = arith.constant 0 : index
    %c0_77 = arith.constant 0 : index
    %48 = vector.load %arg2[%c1_74, %c2_75, %c0_76, %c0_77] : memref<3x3x256x128xbf16, #tpu.memory_space<vmem>>, vector<1x1x256x128xbf16>
    %49 = vector.shape_cast %48 : vector<1x1x256x128xbf16> to vector<256x128xbf16>
    %cst_78 = arith.constant dense<0.000000e+00> : vector<256x128xf32>
    %50 = tpu.matmul %47, %49, %cst_78 {dimension_numbers = #tpu.dot_dimension_numbers<[1], [0], [0], [1], [0, 0, 1, 1], [], []>} : vector<256x256xbf16>, vector<256x128xbf16>, vector<256x128xf32> -> vector<256x128xf32>
    %51 = arith.addf %45, %50 : vector<256x128xf32>
    %c2_79 = arith.constant 2 : index
    %c0_80 = arith.constant 0 : index
    %c0_81 = arith.constant 0 : index
    %52 = vector.load %arg9[%c2_79, %c0_80, %c0_81] : memref<18x18x256xbf16, #tpu.memory_space<vmem>>, vector<16x16x256xbf16>
    %53 = vector.shape_cast %52 : vector<16x16x256xbf16> to vector<256x256xbf16>
    %c2_82 = arith.constant 2 : index
    %c0_83 = arith.constant 0 : index
    %c0_84 = arith.constant 0 : index
    %c0_85 = arith.constant 0 : index
    %54 = vector.load %arg2[%c2_82, %c0_83, %c0_84, %c0_85] : memref<3x3x256x128xbf16, #tpu.memory_space<vmem>>, vector<1x1x256x128xbf16>
    %55 = vector.shape_cast %54 : vector<1x1x256x128xbf16> to vector<256x128xbf16>
    %cst_86 = arith.constant dense<0.000000e+00> : vector<256x128xf32>
    %56 = tpu.matmul %53, %55, %cst_86 {dimension_numbers = #tpu.dot_dimension_numbers<[1], [0], [0], [1], [0, 0, 1, 1], [], []>} : vector<256x256xbf16>, vector<256x128xbf16>, vector<256x128xf32> -> vector<256x128xf32>
    %57 = arith.addf %51, %56 : vector<256x128xf32>
    %c2_87 = arith.constant 2 : index
    %c1_88 = arith.constant 1 : index
    %c0_89 = arith.constant 0 : index
    %58 = vector.load %arg9[%c2_87, %c1_88, %c0_89] : memref<18x18x256xbf16, #tpu.memory_space<vmem>>, vector<16x16x256xbf16>
    %59 = vector.shape_cast %58 : vector<16x16x256xbf16> to vector<256x256xbf16>
    %c2_90 = arith.constant 2 : index
    %c1_91 = arith.constant 1 : index
    %c0_92 = arith.constant 0 : index
    %c0_93 = arith.constant 0 : index
    %60 = vector.load %arg2[%c2_90, %c1_91, %c0_92, %c0_93] : memref<3x3x256x128xbf16, #tpu.memory_space<vmem>>, vector<1x1x256x128xbf16>
    %61 = vector.shape_cast %60 : vector<1x1x256x128xbf16> to vector<256x128xbf16>
    %cst_94 = arith.constant dense<0.000000e+00> : vector<256x128xf32>
    %62 = tpu.matmul %59, %61, %cst_94 {dimension_numbers = #tpu.dot_dimension_numbers<[1], [0], [0], [1], [0, 0, 1, 1], [], []>} : vector<256x256xbf16>, vector<256x128xbf16>, vector<256x128xf32> -> vector<256x128xf32>
    %63 = arith.addf %57, %62 : vector<256x128xf32>
    %c2_95 = arith.constant 2 : index
    %c2_96 = arith.constant 2 : index
    %c0_97 = arith.constant 0 : index
    %64 = vector.load %arg9[%c2_95, %c2_96, %c0_97] : memref<18x18x256xbf16, #tpu.memory_space<vmem>>, vector<16x16x256xbf16>
    %65 = vector.shape_cast %64 : vector<16x16x256xbf16> to vector<256x256xbf16>
    %c2_98 = arith.constant 2 : index
    %c2_99 = arith.constant 2 : index
    %c0_100 = arith.constant 0 : index
    %c0_101 = arith.constant 0 : index
    %66 = vector.load %arg2[%c2_98, %c2_99, %c0_100, %c0_101] : memref<3x3x256x128xbf16, #tpu.memory_space<vmem>>, vector<1x1x256x128xbf16>
    %67 = vector.shape_cast %66 : vector<1x1x256x128xbf16> to vector<256x128xbf16>
    %cst_102 = arith.constant dense<0.000000e+00> : vector<256x128xf32>
    %68 = tpu.matmul %65, %67, %cst_102 {dimension_numbers = #tpu.dot_dimension_numbers<[1], [0], [0], [1], [0, 0, 1, 1], [], []>} : vector<256x256xbf16>, vector<256x128xbf16>, vector<256x128xf32> -> vector<256x128xf32>
    %69 = arith.addf %63, %68 : vector<256x128xf32>
    %c0_103 = arith.constant 0 : index
    %c0_104 = arith.constant 0 : index
    %70 = vector.load %arg3[%c0_103, %c0_104] : memref<1x128xf32, #tpu.memory_space<vmem>>, vector<1x128xf32>
    %71 = vector.broadcast %70 : vector<1x128xf32> to vector<256x128xf32>
    %72 = arith.addf %69, %71 : vector<256x128xf32>
    %cst_105 = arith.constant 0.000000e+00 : f32
    %73 = vector.broadcast %cst_105 : f32 to vector<256x128xf32>
    %74 = arith.maximumf %72, %73 : vector<256x128xf32>
    %75 = vector.shape_cast %74 : vector<256x128xf32> to vector<16x16x128xf32>
    %76 = arith.truncf %75 : vector<16x16x128xf32> to vector<16x16x128xbf16>
    %c1_106 = arith.constant 1 : index
    %c1_107 = arith.constant 1 : index
    %c0_108 = arith.constant 0 : index
    %77 = vector.load %arg10[%c1_106, %c1_107, %c0_108] : memref<18x18x128xbf16, #tpu.memory_space<vmem>>, vector<16x16x128xbf16>
    tpu.vector_store %arg10[%c1_106, %c1_107, %c0_108], %76 {strides = array<i32>} : memref<18x18x128xbf16, #tpu.memory_space<vmem>>, vector<16x16x128xbf16>,
    %cst_109 = arith.constant 0.000000e+00 : f32
    %78 = vector.broadcast %cst_109 : f32 to vector<256x128xf32>
    %c0_110 = arith.constant 0 : index
    %c0_111 = arith.constant 0 : index
    %c0_112 = arith.constant 0 : index
    %79 = vector.load %arg10[%c0_110, %c0_111, %c0_112] : memref<18x18x128xbf16, #tpu.memory_space<vmem>>, vector<16x16x128xbf16>
    %80 = vector.shape_cast %79 : vector<16x16x128xbf16> to vector<256x128xbf16>
    %c0_113 = arith.constant 0 : index
    %c0_114 = arith.constant 0 : index
    %c0_115 = arith.constant 0 : index
    %c0_116 = arith.constant 0 : index
    %81 = vector.load %arg4[%c0_113, %c0_114, %c0_115, %c0_116] : memref<3x3x128x128xbf16, #tpu.memory_space<vmem>>, vector<1x1x128x128xbf16>
    %82 = vector.shape_cast %81 : vector<1x1x128x128xbf16> to vector<128x128xbf16>
    %cst_117 = arith.constant dense<0.000000e+00> : vector<256x128xf32>
    %83 = tpu.matmul %80, %82, %cst_117 {dimension_numbers = #tpu.dot_dimension_numbers<[1], [0], [0], [1], [0, 0, 1, 1], [], []>} : vector<256x128xbf16>, vector<128x128xbf16>, vector<256x128xf32> -> vector<256x128xf32>
    %84 = arith.addf %78, %83 : vector<256x128xf32>
    %c0_118 = arith.constant 0 : index
    %c1_119 = arith.constant 1 : index
    %c0_120 = arith.constant 0 : index
    %85 = vector.load %arg10[%c0_118, %c1_119, %c0_120] : memref<18x18x128xbf16, #tpu.memory_space<vmem>>, vector<16x16x128xbf16>
    %86 = vector.shape_cast %85 : vector<16x16x128xbf16> to vector<256x128xbf16>
    %c0_121 = arith.constant 0 : index
    %c1_122 = arith.constant 1 : index
    %c0_123 = arith.constant 0 : index
    %c0_124 = arith.constant 0 : index
    %87 = vector.load %arg4[%c0_121, %c1_122, %c0_123, %c0_124] : memref<3x3x128x128xbf16, #tpu.memory_space<vmem>>, vector<1x1x128x128xbf16>
    %88 = vector.shape_cast %87 : vector<1x1x128x128xbf16> to vector<128x128xbf16>
    %cst_125 = arith.constant dense<0.000000e+00> : vector<256x128xf32>
    %89 = tpu.matmul %86, %88, %cst_125 {dimension_numbers = #tpu.dot_dimension_numbers<[1], [0], [0], [1], [0, 0, 1, 1], [], []>} : vector<256x128xbf16>, vector<128x128xbf16>, vector<256x128xf32> -> vector<256x128xf32>
    %90 = arith.addf %84, %89 : vector<256x128xf32>
    %c0_126 = arith.constant 0 : index
    %c2_127 = arith.constant 2 : index
    %c0_128 = arith.constant 0 : index
    %91 = vector.load %arg10[%c0_126, %c2_127, %c0_128] : memref<18x18x128xbf16, #tpu.memory_space<vmem>>, vector<16x16x128xbf16>
    %92 = vector.shape_cast %91 : vector<16x16x128xbf16> to vector<256x128xbf16>
    %c0_129 = arith.constant 0 : index
    %c2_130 = arith.constant 2 : index
    %c0_131 = arith.constant 0 : index
    %c0_132 = arith.constant 0 : index
    %93 = vector.load %arg4[%c0_129, %c2_130, %c0_131, %c0_132] : memref<3x3x128x128xbf16, #tpu.memory_space<vmem>>, vector<1x1x128x128xbf16>
    %94 = vector.shape_cast %93 : vector<1x1x128x128xbf16> to vector<128x128xbf16>
    %cst_133 = arith.constant dense<0.000000e+00> : vector<256x128xf32>
    %95 = tpu.matmul %92, %94, %cst_133 {dimension_numbers = #tpu.dot_dimension_numbers<[1], [0], [0], [1], [0, 0, 1, 1], [], []>} : vector<256x128xbf16>, vector<128x128xbf16>, vector<256x128xf32> -> vector<256x128xf32>
    %96 = arith.addf %90, %95 : vector<256x128xf32>
    %c1_134 = arith.constant 1 : index
    %c0_135 = arith.constant 0 : index
    %c0_136 = arith.constant 0 : index
    %97 = vector.load %arg10[%c1_134, %c0_135, %c0_136] : memref<18x18x128xbf16, #tpu.memory_space<vmem>>, vector<16x16x128xbf16>
    %98 = vector.shape_cast %97 : vector<16x16x128xbf16> to vector<256x128xbf16>
    %c1_137 = arith.constant 1 : index
    %c0_138 = arith.constant 0 : index
    %c0_139 = arith.constant 0 : index
    %c0_140 = arith.constant 0 : index
    %99 = vector.load %arg4[%c1_137, %c0_138, %c0_139, %c0_140] : memref<3x3x128x128xbf16, #tpu.memory_space<vmem>>, vector<1x1x128x128xbf16>
    %100 = vector.shape_cast %99 : vector<1x1x128x128xbf16> to vector<128x128xbf16>
    %cst_141 = arith.constant dense<0.000000e+00> : vector<256x128xf32>
    %101 = tpu.matmul %98, %100, %cst_141 {dimension_numbers = #tpu.dot_dimension_numbers<[1], [0], [0], [1], [0, 0, 1, 1], [], []>} : vector<256x128xbf16>, vector<128x128xbf16>, vector<256x128xf32> -> vector<256x128xf32>
    %102 = arith.addf %96, %101 : vector<256x128xf32>
    %c1_142 = arith.constant 1 : index
    %c1_143 = arith.constant 1 : index
    %c0_144 = arith.constant 0 : index
    %103 = vector.load %arg10[%c1_142, %c1_143, %c0_144] : memref<18x18x128xbf16, #tpu.memory_space<vmem>>, vector<16x16x128xbf16>
    %104 = vector.shape_cast %103 : vector<16x16x128xbf16> to vector<256x128xbf16>
    %c1_145 = arith.constant 1 : index
    %c1_146 = arith.constant 1 : index
    %c0_147 = arith.constant 0 : index
    %c0_148 = arith.constant 0 : index
    %105 = vector.load %arg4[%c1_145, %c1_146, %c0_147, %c0_148] : memref<3x3x128x128xbf16, #tpu.memory_space<vmem>>, vector<1x1x128x128xbf16>
    %106 = vector.shape_cast %105 : vector<1x1x128x128xbf16> to vector<128x128xbf16>
    %cst_149 = arith.constant dense<0.000000e+00> : vector<256x128xf32>
    %107 = tpu.matmul %104, %106, %cst_149 {dimension_numbers = #tpu.dot_dimension_numbers<[1], [0], [0], [1], [0, 0, 1, 1], [], []>} : vector<256x128xbf16>, vector<128x128xbf16>, vector<256x128xf32> -> vector<256x128xf32>
    %108 = arith.addf %102, %107 : vector<256x128xf32>
    %c1_150 = arith.constant 1 : index
    %c2_151 = arith.constant 2 : index
    %c0_152 = arith.constant 0 : index
    %109 = vector.load %arg10[%c1_150, %c2_151, %c0_152] : memref<18x18x128xbf16, #tpu.memory_space<vmem>>, vector<16x16x128xbf16>
    %110 = vector.shape_cast %109 : vector<16x16x128xbf16> to vector<256x128xbf16>
    %c1_153 = arith.constant 1 : index
    %c2_154 = arith.constant 2 : index
    %c0_155 = arith.constant 0 : index
    %c0_156 = arith.constant 0 : index
    %111 = vector.load %arg4[%c1_153, %c2_154, %c0_155, %c0_156] : memref<3x3x128x128xbf16, #tpu.memory_space<vmem>>, vector<1x1x128x128xbf16>
    %112 = vector.shape_cast %111 : vector<1x1x128x128xbf16> to vector<128x128xbf16>
    %cst_157 = arith.constant dense<0.000000e+00> : vector<256x128xf32>
    %113 = tpu.matmul %110, %112, %cst_157 {dimension_numbers = #tpu.dot_dimension_numbers<[1], [0], [0], [1], [0, 0, 1, 1], [], []>} : vector<256x128xbf16>, vector<128x128xbf16>, vector<256x128xf32> -> vector<256x128xf32>
    %114 = arith.addf %108, %113 : vector<256x128xf32>
    %c2_158 = arith.constant 2 : index
    %c0_159 = arith.constant 0 : index
    %c0_160 = arith.constant 0 : index
    %115 = vector.load %arg10[%c2_158, %c0_159, %c0_160] : memref<18x18x128xbf16, #tpu.memory_space<vmem>>, vector<16x16x128xbf16>
    %116 = vector.shape_cast %115 : vector<16x16x128xbf16> to vector<256x128xbf16>
    %c2_161 = arith.constant 2 : index
    %c0_162 = arith.constant 0 : index
    %c0_163 = arith.constant 0 : index
    %c0_164 = arith.constant 0 : index
    %117 = vector.load %arg4[%c2_161, %c0_162, %c0_163, %c0_164] : memref<3x3x128x128xbf16, #tpu.memory_space<vmem>>, vector<1x1x128x128xbf16>
    %118 = vector.shape_cast %117 : vector<1x1x128x128xbf16> to vector<128x128xbf16>
    %cst_165 = arith.constant dense<0.000000e+00> : vector<256x128xf32>
    %119 = tpu.matmul %116, %118, %cst_165 {dimension_numbers = #tpu.dot_dimension_numbers<[1], [0], [0], [1], [0, 0, 1, 1], [], []>} : vector<256x128xbf16>, vector<128x128xbf16>, vector<256x128xf32> -> vector<256x128xf32>
    %120 = arith.addf %114, %119 : vector<256x128xf32>
    %c2_166 = arith.constant 2 : index
    %c1_167 = arith.constant 1 : index
    %c0_168 = arith.constant 0 : index
    %121 = vector.load %arg10[%c2_166, %c1_167, %c0_168] : memref<18x18x128xbf16, #tpu.memory_space<vmem>>, vector<16x16x128xbf16>
    %122 = vector.shape_cast %121 : vector<16x16x128xbf16> to vector<256x128xbf16>
    %c2_169 = arith.constant 2 : index
    %c1_170 = arith.constant 1 : index
    %c0_171 = arith.constant 0 : index
    %c0_172 = arith.constant 0 : index
    %123 = vector.load %arg4[%c2_169, %c1_170, %c0_171, %c0_172] : memref<3x3x128x128xbf16, #tpu.memory_space<vmem>>, vector<1x1x128x128xbf16>
    %124 = vector.shape_cast %123 : vector<1x1x128x128xbf16> to vector<128x128xbf16>
    %cst_173 = arith.constant dense<0.000000e+00> : vector<256x128xf32>
    %125 = tpu.matmul %122, %124, %cst_173 {dimension_numbers = #tpu.dot_dimension_numbers<[1], [0], [0], [1], [0, 0, 1, 1], [], []>} : vector<256x128xbf16>, vector<128x128xbf16>, vector<256x128xf32> -> vector<256x128xf32>
    %126 = arith.addf %120, %125 : vector<256x128xf32>
    %c2_174 = arith.constant 2 : index
    %c2_175 = arith.constant 2 : index
    %c0_176 = arith.constant 0 : index
    %127 = vector.load %arg10[%c2_174, %c2_175, %c0_176] : memref<18x18x128xbf16, #tpu.memory_space<vmem>>, vector<16x16x128xbf16>
    %128 = vector.shape_cast %127 : vector<16x16x128xbf16> to vector<256x128xbf16>
    %c2_177 = arith.constant 2 : index
    %c2_178 = arith.constant 2 : index
    %c0_179 = arith.constant 0 : index
    %c0_180 = arith.constant 0 : index
    %129 = vector.load %arg4[%c2_177, %c2_178, %c0_179, %c0_180] : memref<3x3x128x128xbf16, #tpu.memory_space<vmem>>, vector<1x1x128x128xbf16>
    %130 = vector.shape_cast %129 : vector<1x1x128x128xbf16> to vector<128x128xbf16>
    %cst_181 = arith.constant dense<0.000000e+00> : vector<256x128xf32>
    %131 = tpu.matmul %128, %130, %cst_181 {dimension_numbers = #tpu.dot_dimension_numbers<[1], [0], [0], [1], [0, 0, 1, 1], [], []>} : vector<256x128xbf16>, vector<128x128xbf16>, vector<256x128xf32> -> vector<256x128xf32>
    %132 = arith.addf %126, %131 : vector<256x128xf32>
    %c0_182 = arith.constant 0 : index
    %c0_183 = arith.constant 0 : index
    %133 = vector.load %arg5[%c0_182, %c0_183] : memref<1x128xf32, #tpu.memory_space<vmem>>, vector<1x128xf32>
    %134 = vector.broadcast %133 : vector<1x128xf32> to vector<256x128xf32>
    %135 = arith.addf %132, %134 : vector<256x128xf32>
    %cst_184 = arith.constant 0.000000e+00 : f32
    %136 = vector.broadcast %cst_184 : f32 to vector<256x128xf32>
    %137 = arith.maximumf %135, %136 : vector<256x128xf32>
    %138 = arith.truncf %137 : vector<256x128xf32> to vector<256x128xbf16>
    %c0_185 = arith.constant 0 : index
    %c0_186 = arith.constant 0 : index
    %139 = vector.load %arg6[%c0_185, %c0_186] : memref<128x128xbf16, #tpu.memory_space<vmem>>, vector<128x128xbf16>
    %cst_187 = arith.constant dense<0.000000e+00> : vector<256x128xf32>
    %140 = tpu.matmul %138, %139, %cst_187 {dimension_numbers = #tpu.dot_dimension_numbers<[1], [0], [0], [1], [0, 0, 1, 1], [], []>} : vector<256x128xbf16>, vector<128x128xbf16>, vector<256x128xf32> -> vector<256x128xf32>
    %c0_188 = arith.constant 0 : index
    %c0_189 = arith.constant 0 : index
    %141 = vector.load %arg7[%c0_188, %c0_189] : memref<1x128xf32, #tpu.memory_space<vmem>>, vector<1x128xf32>
    %142 = vector.broadcast %141 : vector<1x128xf32> to vector<256x128xf32>
    %143 = arith.addf %140, %142 : vector<256x128xf32>
    %144 = vector.shape_cast %143 : vector<256x128xf32> to vector<1x16x16x128xf32>
    %c0_190 = arith.constant 0 : index
    %c0_191 = arith.constant 0 : index
    %c0_192 = arith.constant 0 : index
    %c0_193 = arith.constant 0 : index
    %145 = vector.load %arg8[%c0_190, %c0_191, %c0_192, %c0_193] : memref<1x16x16x128xf32, #tpu.memory_space<vmem>>, vector<1x16x16x128xf32>
    tpu.vector_store %arg8[%c0_190, %c0_191, %c0_192, %c0_193], %144 {strides = array<i32>} : memref<1x16x16x128xf32, #tpu.memory_space<vmem>>, vector<1x16x16x128xf32>,
    return
  }
  func.func @transform_0(%arg0: i32) -> (i32, i32, i32, i32) {
    %c0_i32 = arith.constant 0 : i32
    %c0_i32_0 = arith.constant 0 : i32
    %c0_i32_1 = arith.constant 0 : i32
    %c0_i32_2 = arith.constant 0 : i32
    return %arg0, %c0_i32, %c0_i32_0, %c0_i32_1 : i32, i32, i32, i32
  }
  func.func @transform_1(%arg0: i32) -> (i32, i32, i32, i32) {
    %c0_i32 = arith.constant 0 : i32
    %c0_i32_0 = arith.constant 0 : i32
    %c0_i32_1 = arith.constant 0 : i32
    %c0_i32_2 = arith.constant 0 : i32
    %c0_i32_3 = arith.constant 0 : i32
    return %c0_i32, %c0_i32_0, %c0_i32_1, %c0_i32_2 : i32, i32, i32, i32
  }
  func.func @transform_2(%arg0: i32) -> (i32, i32) {
    %c0_i32 = arith.constant 0 : i32
    %c0_i32_0 = arith.constant 0 : i32
    %c0_i32_1 = arith.constant 0 : i32
    return %c0_i32, %c0_i32_0 : i32, i32
  }
  func.func @transform_3(%arg0: i32) -> (i32, i32, i32, i32) {
    %c0_i32 = arith.constant 0 : i32
    %c0_i32_0 = arith.constant 0 : i32
    %c0_i32_1 = arith.constant 0 : i32
    %c0_i32_2 = arith.constant 0 : i32
    %c0_i32_3 = arith.constant 0 : i32
    return %c0_i32, %c0_i32_0, %c0_i32_1, %c0_i32_2 : i32, i32, i32, i32
  }
  func.func @transform_4(%arg0: i32) -> (i32, i32) {
    %c0_i32 = arith.constant 0 : i32
    %c0_i32_0 = arith.constant 0 : i32
    %c0_i32_1 = arith.constant 0 : i32
    return %c0_i32, %c0_i32_0 : i32, i32
  }
  func.func @transform_5(%arg0: i32) -> (i32, i32) {
    %c0_i32 = arith.constant 0 : i32
    %c0_i32_0 = arith.constant 0 : i32
    %c0_i32_1 = arith.constant 0 : i32
    return %c0_i32, %c0_i32_0 : i32, i32
  }
  func.func @transform_6(%arg0: i32) -> (i32, i32) {
    %c0_i32 = arith.constant 0 : i32
    %c0_i32_0 = arith.constant 0 : i32
    %c0_i32_1 = arith.constant 0 : i32
    return %c0_i32, %c0_i32_0 : i32, i32
  }
  func.func @transform_7(%arg0: i32) -> (i32, i32, i32, i32) {
    %c0_i32 = arith.constant 0 : i32
    %c0_i32_0 = arith.constant 0 : i32
    %c0_i32_1 = arith.constant 0 : i32
    %c0_i32_2 = arith.constant 0 : i32
    return %arg0, %c0_i32, %c0_i32_0, %c0_i32_1 : i32, i32, i32, i32
  }
}

</mosaic_0001>

<llo_original>
// kernel: tpu_custom_call.1
$region0: #{tpu_custom_call.1}
  #allocation0 [shape = 'u32[]', space=smem, size = 0x4, offset = 0x4, fixed_abs, tag = 'smem constant byte address 0x4 - core index']
  #allocation1 [shape = 'u32[144,128]{1,0:T(1,128)}', space=vmem, size = 0x12000, scoped, tag = 'internal scratch']
  #allocation2 [shape = 'bf16[18,18,256]{2,1,0:T(8,128)(2,1)}', space=vmem, size = 0x36000, scoped, tag = 'scratch operand']
  #allocation3 [shape = 'bf16[18,18,128]{2,1,0:T(8,128)(2,1)}', space=vmem, size = 0x1b000, scoped, tag = 'scratch operand']
  %s0 = inlined_call_operand.hbm [shape: bf16[2,16,16,256], index: 0, kind: input, shape index: {}]
  %s1 = inlined_call_operand.hbm [shape: bf16[3,3,256,128], index: 1, kind: input, shape index: {}]
  %s2 = inlined_call_operand.vmem [shape: f32[1,128], index: 2, kind: input, shape index: {}]
  %s3 = inlined_call_operand.hbm [shape: bf16[3,3,128,128], index: 3, kind: input, shape index: {}]
  %s4 = inlined_call_operand.vmem [shape: f32[1,128], index: 4, kind: input, shape index: {}]
  %s5 = inlined_call_operand.hbm [shape: bf16[128,128], index: 5, kind: input, shape index: {}]
  %s6 = inlined_call_operand.vmem [shape: f32[1,128], index: 6, kind: input, shape index: {}]
  %s7 = inlined_call_operand.hbm [shape: f32[2,16,16,128], index: 7, kind: output, shape index: {}]
  %s8 = sld [smem:[#allocation0]]
  $region77: #{tpu_custom_call.1} parent=0
    _
  %s10 = ssub.s32 1, %s8
  %s11 = scalar_select 0, %s10, %s8
  $region1: #{tpu_custom_call.1} parent=0
    #allocation4 [shape = 'u8[262144]{0}', space=vmem, size = 0x40000, scoped, tag = 'input window, operand 0']
    #allocation5 [shape = 's32[2]{0}', space=sflag, size = 0x8, scoped, tag = 'scoped memory for tpu_custom_call.1']
    #allocation6 [shape = 's32[2]{0}', space=sflag, size = 0x8, scoped, tag = 'scoped memory for tpu_custom_call.1']
    #allocation7 [shape = 'u8[589824]{0}', space=vmem, size = 0x90000, scoped, tag = 'input window, operand 1, single buffered']
    #allocation8 [shape = 's32[1]{0}', space=sflag, size = 0x4, scoped, tag = 'scoped memory for tpu_custom_call.1']
    #allocation9 [shape = 'u8[294912]{0}', space=vmem, size = 0x48000, scoped, tag = 'input window, operand 3, single buffered']
    #allocation10 [shape = 'u8[32768]{0}', space=vmem, size = 0x8000, scoped, tag = 'input window, operand 5, single buffered']
    #allocation11 [shape = 's32[1]{0}', space=sflag, size = 0x4, scoped, tag = 'scoped memory for tpu_custom_call.1']
    #allocation12 [shape = 'u8[262144]{0}', space=vmem, size = 0x40000, scoped, tag = 'output window, operand 0']
    %12 = vsyncpa [#allocation5], 0
    %s13 = scalar_lea.sflag [#allocation5], 1
    %14 = vsyncpa %s13, 0
    %15 = vsyncpa [#allocation8], 0
    %16 = vsyncpa [#allocation11], 0
    %17 = vsyncpa [#allocation6], 0
    %s18 = scalar_lea.sflag [#allocation6], 1
    %19 = vsyncpa %s18, 0
    loop: start=0, step=1, limit=4
    $region2: #{tpu_custom_call.1} parent=1 // loop_pre_header
      _
    $region3: #{tpu_custom_call.1} parent=1 // loop_header
      %s21 = sphi 0, %s25
      %p22 = scmp.ge.s32.totalorder %s21, 4
      %s31 = sphi 0, %s33
      %s34 = sphi 0, %s31
      %s35 = sphi 0, %s34
      %s51 = sphi 0, %s35
      %s55 = sphi 0, %s55
      %s57 = sphi 0, %s55
      %s58 = sphi 0, %s57
      %s72 = sphi 0, %s58
      %s76 = sphi 0, %s76
      %s78 = sphi 0, %s76
      %s79 = sphi 0, %s78
      %s93 = sphi 0, %s79
      %s97 = sphi 0, %s97
      %s99 = sphi 0, %s97
      %s100 = sphi 0, %s99
      %s114 = sphi 0, %s100
      %s118 = sphi 0, %s118
      %s120 = sphi 0, %s118
      %s121 = sphi 0, %s120
      %s135 = sphi 0, %s121
      %s139 = sphi 0, %s139
      %s141 = sphi 0, %s139
      %s142 = sphi 0, %s141
      %s156 = sphi 0, %s142
      %s160 = sphi 0, %s160
      %s162 = sphi 0, %s160
      %s163 = sphi 0, %s162
      %s177 = sphi 0, %s163
      %s183 = sphi 0, %s185
      %s186 = sphi 0, %s183
      %s187 = sphi 0, %s186
      %s203 = sphi 0, %s187
    $region4: #{tpu_custom_call.1} parent=1 // loop_header_branch
      %24 = sbr.rel (%p22) target = $region8
    $region5: #{tpu_custom_call.1} parent=1 // loop_body
      %s26 = ssub.s32 %s21, 1
      %s27 = ssub.s32 %s21, 2
      %s28 = sadd.s32 %s21, 1
      %s29 = ssub.s32 %s21, %s28
      %p30 = scmp.eq.s32.totalorder %s29, 0
      %s32 = sadd.s32 %s31, 1
      %s33 = scalar_select %p30, %s31, %s32
      %p36 = pneg %p30
      %p37 = scmp.eq.s32.totalorder %s21, 1
      %p38 = por %p36, %p37
      %p39 = scmp.ne.s32.totalorder %s31, %s34
      %p40 = scmp.eq.s32.totalorder %s21, 0
      %p41 = por %p39, %p40
      %p42 = scmp.ne.s32.totalorder %s31, %s34
      %p43 = scmp.eq.s32.totalorder %s26, 1
      %p44 = por %p42, %p43
      %p45 = scmp.ne.s32.totalorder %s34, %s35
      %p46 = scmp.eq.s32.totalorder %s26, 0
      %p47 = por %p45, %p46
      %p48 = scmp.ne.s32.totalorder %s34, %s35
      %p49 = scmp.eq.s32.totalorder %s27, 1
      %p50 = por %p48, %p49
      %p52 = scmp.ne.s32.totalorder %s35, %s51
      %p53 = scmp.eq.s32.totalorder %s27, 0
      %p54 = por %p52, %p53
      %s56 = sadd.s32 %s55, 1
      %p59 = scmp.eq.s32.totalorder %s21, 1
      %p60 = scmp.ne.s32.totalorder %s55, %s57
      %p61 = scmp.eq.s32.totalorder %s21, 0
      %p62 = por %p60, %p61
      %p63 = scmp.ne.s32.totalorder %s55, %s57
      %p64 = scmp.eq.s32.totalorder %s26, 1
      %p65 = por %p63, %p64
      %p66 = scmp.ne.s32.totalorder %s57, %s58
      %p67 = scmp.eq.s32.totalorder %s26, 0
      %p68 = por %p66, %p67
      %p69 = scmp.ne.s32.totalorder %s57, %s58
      %p70 = scmp.eq.s32.totalorder %s27, 1
      %p71 = por %p69, %p70
      %p73 = scmp.ne.s32.totalorder %s58, %s72
      %p74 = scmp.eq.s32.totalorder %s27, 0
      %p75 = por %p73, %p74
      %s77 = sadd.s32 %s76, 1
      %p80 = scmp.eq.s32.totalorder %s21, 1
      %p81 = scmp.ne.s32.totalorder %s76, %s78
      %p82 = scmp.eq.s32.totalorder %s21, 0
      %p83 = por %p81, %p82
      %p84 = scmp.ne.s32.totalorder %s76, %s78
      %p85 = scmp.eq.s32.totalorder %s26, 1
      %p86 = por %p84, %p85
      %p87 = scmp.ne.s32.totalorder %s78, %s79
      %p88 = scmp.eq.s32.totalorder %s26, 0
      %p89 = por %p87, %p88
      %p90 = scmp.ne.s32.totalorder %s78, %s79
      %p91 = scmp.eq.s32.totalorder %s27, 1
      %p92 = por %p90, %p91
      %p94 = scmp.ne.s32.totalorder %s79, %s93
      %p95 = scmp.eq.s32.totalorder %s27, 0
      %p96 = por %p94, %p95
      %s98 = sadd.s32 %s97, 1
      %p101 = scmp.eq.s32.totalorder %s21, 1
      %p102 = scmp.ne.s32.totalorder %s97, %s99
      %p103 = scmp.eq.s32.totalorder %s21, 0
      %p104 = por %p102, %p103
      %p105 = scmp.ne.s32.totalorder %s97, %s99
      %p106 = scmp.eq.s32.totalorder %s26, 1
      %p107 = por %p105, %p106
      %p108 = scmp.ne.s32.totalorder %s99, %s100
      %p109 = scmp.eq.s32.totalorder %s26, 0
      %p110 = por %p108, %p109
      %p111 = scmp.ne.s32.totalorder %s99, %s100
      %p112 = scmp.eq.s32.totalorder %s27, 1
      %p113 = por %p111, %p112
      %p115 = scmp.ne.s32.totalorder %s100, %s114
      %p116 = scmp.eq.s32.totalorder %s27, 0
      %p117 = por %p115, %p116
      %s119 = sadd.s32 %s118, 1
      %p122 = scmp.eq.s32.totalorder %s21, 1
      %p123 = scmp.ne.s32.totalorder %s118, %s120
      %p124 = scmp.eq.s32.totalorder %s21, 0
      %p125 = por %p123, %p124
      %p126 = scmp.ne.s32.totalorder %s118, %s120
      %p127 = scmp.eq.s32.totalorder %s26, 1
      %p128 = por %p126, %p127
      %p129 = scmp.ne.s32.totalorder %s120, %s121
      %p130 = scmp.eq.s32.totalorder %s26, 0
      %p131 = por %p129, %p130
      %p132 = scmp.ne.s32.totalorder %s120, %s121
      %p133 = scmp.eq.s32.totalorder %s27, 1
      %p134 = por %p132, %p133
      %p136 = scmp.ne.s32.totalorder %s121, %s135
      %p137 = scmp.eq.s32.totalorder %s27, 0
      %p138 = por %p136, %p137
      %s140 = sadd.s32 %s139, 1
      %p143 = scmp.eq.s32.totalorder %s21, 1
      %p144 = scmp.ne.s32.totalorder %s139, %s141
      %p145 = scmp.eq.s32.totalorder %s21, 0
      %p146 = por %p144, %p145
      %p147 = scmp.ne.s32.totalorder %s139, %s141
      %p148 = scmp.eq.s32.totalorder %s26, 1
      %p149 = por %p147, %p148
      %p150 = scmp.ne.s32.totalorder %s141, %s142
      %p151 = scmp.eq.s32.totalorder %s26, 0
      %p152 = por %p150, %p151
      %p153 = scmp.ne.s32.totalorder %s141, %s142
      %p154 = scmp.eq.s32.totalorder %s27, 1
      %p155 = por %p153, %p154
      %p157 = scmp.ne.s32.totalorder %s142, %s156
      %p158 = scmp.eq.s32.totalorder %s27, 0
      %p159 = por %p157, %p158
      %s161 = sadd.s32 %s160, 1
      %p164 = scmp.eq.s32.totalorder %s21, 1
      %p165 = scmp.ne.s32.totalorder %s160, %s162
      %p166 = scmp.eq.s32.totalorder %s21, 0
      %p167 = por %p165, %p166
      %p168 = scmp.ne.s32.totalorder %s160, %s162
      %p169 = scmp.eq.s32.totalorder %s26, 1
      %p170 = por %p168, %p169
      %p171 = scmp.ne.s32.totalorder %s162, %s163
      %p172 = scmp.eq.s32.totalorder %s26, 0
      %p173 = por %p171, %p172
      %p174 = scmp.ne.s32.totalorder %s162, %s163
      %p175 = scmp.eq.s32.totalorder %s27, 1
      %p176 = por %p174, %p175
      %p178 = scmp.ne.s32.totalorder %s163, %s177
      %p179 = scmp.eq.s32.totalorder %s27, 0
      %p180 = por %p178, %p179
      %s181 = ssub.s32 %s21, %s28
      %p182 = scmp.eq.s32.totalorder %s181, 0
      %s184 = sadd.s32 %s183, 1
      %s185 = scalar_select %p182, %s183, %s184
      %p188 = pneg %p182
      %p189 = scmp.eq.s32.totalorder %s21, 1
      %p190 = por %p188, %p189
      %p191 = scmp.ne.s32.totalorder %s183, %s186
      %p192 = scmp.eq.s32.totalorder %s21, 0
      %p193 = por %p191, %p192
      %p194 = scmp.ne.s32.totalorder %s183, %s186
      %p195 = scmp.eq.s32.totalorder %s26, 1
      %p196 = por %p194, %p195
      %p197 = scmp.ne.s32.totalorder %s186, %s187
      %p198 = scmp.eq.s32.totalorder %s26, 0
      %p199 = por %p197, %p198
      %p200 = scmp.ne.s32.totalorder %s186, %s187
      %p201 = scmp.eq.s32.totalorder %s27, 1
      %p202 = por %p200, %p201
      %p204 = scmp.ne.s32.totalorder %s187, %s203
      %p205 = scmp.eq.s32.totalorder %s27, 0
      %p206 = por %p204, %p205
      %p207 = scmp.le.s32.totalorder 1, %s21
      %p208 = scmp.lt.s32.totalorder %s21, 3
      %p209 = pnand %p207, %p208
      %p210 = pneg %p209
      // Predicated region
      $region9: #{tpu_custom_call.1} parent=5 // pred_check
        _
      $region10: #{tpu_custom_call.1} parent=5 // pred_check_branch
        %212 = sbr.rel (%p209) target = $region12
      $region11: #{tpu_custom_call.1} parent=5 // pred_region
        %s213 = ssub.s32 %s21, 1
        // Predicated region
        $region13: #{tpu_custom_call.1} parent=11 // pred_check
          %p214 = pneg %p68
        $region14: #{tpu_custom_call.1} parent=11 // pred_check_branch
          %216 = sbr.rel (%p214) target = $region16
        $region15: #{tpu_custom_call.1} parent=11 // pred_region
          %s218 = ssub.s32 18432, 18432
          %219 = vsyncadd [#allocation8], %s218
          %s220 = sshll.u32 [#allocation7], 4
          %s221 = int_to_ptr.vmem [resolvable:$true] %s220
          %226 = dma.hbm_to_vmem [thread:$0]  %s1, 18432, %s221, [#allocation8], 64, 64, 4
        $region16: #{tpu_custom_call.1} parent=11 // pred_fallthru
          _
        // Predicated region
        $region17: #{tpu_custom_call.1} parent=11 // pred_check
          %p227 = pneg %p89
        $region18: #{tpu_custom_call.1} parent=11 // pred_check_branch
          %229 = sbr.rel (%p227) target = $region20
        $region19: #{tpu_custom_call.1} parent=11 // pred_region
          _
        $region20: #{tpu_custom_call.1} parent=11 // pred_fallthru
          _
        // Predicated region
        $region21: #{tpu_custom_call.1} parent=11 // pred_check
          %p230 = pneg %p110
        $region22: #{tpu_custom_call.1} parent=11 // pred_check_branch
          %232 = sbr.rel (%p230) target = $region24
        $region23: #{tpu_custom_call.1} parent=11 // pred_region
          %s234 = ssub.s32 9216, 9216
          %235 = vsyncadd [#allocation8], %s234
          %s236 = sshll.u32 [#allocation9], 4
          %s237 = int_to_ptr.vmem [resolvable:$true] %s236
          %242 = dma.hbm_to_vmem [thread:$0]  %s3, 9216, %s237, [#allocation8], 64, 64, 4
        $region24: #{tpu_custom_call.1} parent=11 // pred_fallthru
          _
        // Predicated region
        $region25: #{tpu_custom_call.1} parent=11 // pred_check
          %p243 = pneg %p131
        $region26: #{tpu_custom_call.1} parent=11 // pred_check_branch
          %245 = sbr.rel (%p243) target = $region28
        $region27: #{tpu_custom_call.1} parent=11 // pred_region
          _
        $region28: #{tpu_custom_call.1} parent=11 // pred_fallthru
          _
        // Predicated region
        $region29: #{tpu_custom_call.1} parent=11 // pred_check
          %p246 = pneg %p152
        $region30: #{tpu_custom_call.1} parent=11 // pred_check_branch
          %248 = sbr.rel (%p246) target = $region32
        $region31: #{tpu_custom_call.1} parent=11 // pred_region
          %s250 = ssub.s32 1024, 1024
          %251 = vsyncadd [#allocation11], %s250
          %s252 = sshll.u32 [#allocation10], 4
          %s253 = int_to_ptr.vmem [resolvable:$true] %s252
          %258 = dma.hbm_to_vmem [thread:$0]  %s5, 1024, %s253, [#allocation11], 64, 64, 4
        $region32: #{tpu_custom_call.1} parent=11 // pred_fallthru
          _
        // Predicated region
        $region33: #{tpu_custom_call.1} parent=11 // pred_check
          %p259 = pneg %p173
        $region34: #{tpu_custom_call.1} parent=11 // pred_check_branch
          %261 = sbr.rel (%p259) target = $region36
        $region35: #{tpu_custom_call.1} parent=11 // pred_region
          _
        $region36: #{tpu_custom_call.1} parent=11 // pred_fallthru
          _
      $region12: #{tpu_custom_call.1} parent=5 // pred_fallthru
        _
      %p262 = scmp.lt.s32.totalorder %s21, 2
      // Predicated region
      $region37: #{tpu_custom_call.1} parent=5 // pred_check
        %p263 = pneg %p262
      $region38: #{tpu_custom_call.1} parent=5 // pred_check_branch
        %265 = sbr.rel (%p263) target = $region40
      $region39: #{tpu_custom_call.1} parent=5 // pred_region
        // Predicated region
        $region41: #{tpu_custom_call.1} parent=39 // pred_check
          %p266 = pneg %p41
        $region42: #{tpu_custom_call.1} parent=39 // pred_check_branch
          %268 = sbr.rel (%p266) target = $region44
        $region43: #{tpu_custom_call.1} parent=39 // pred_region
          %s269 = sand.u32 %s31, 1
          %s270 = scalar_lea.sflag [#allocation5], %s269
          %s271 = sand.u32 %s31, 1
          %s272 = smul.addr %s271, 256
          %s273 = scalar_lea.vmem [#allocation4], %s272
          %s275 = ssub.s32 4096, 4096
          %276 = vsyncadd %s270, %s275
          %s277 = smul.addr %s21, 64
          %s278 = smul.addr %s277, 64
          %s279 = scalar_lea.hbm %s0, %s278
          %s280 = sshll.u32 %s273, 4
          %s281 = int_to_ptr.vmem [resolvable:$true] %s280
          %286 = dma.hbm_to_vmem [thread:$0]  %s279, 4096, %s281, %s270, 128, 128, 8
        $region44: #{tpu_custom_call.1} parent=39 // pred_fallthru
          _
      $region40: #{tpu_custom_call.1} parent=5 // pred_fallthru
        _
      %p287 = scmp.le.s32.totalorder 1, %s21
      %p288 = scmp.lt.s32.totalorder %s21, 3
      %p289 = pnand %p287, %p288
      %p290 = pneg %p289
      // Predicated region
      $region45: #{tpu_custom_call.1} parent=5 // pred_check
        _
      $region46: #{tpu_custom_call.1} parent=5 // pred_check_branch
        %292 = sbr.rel (%p289) target = $region48
      $region47: #{tpu_custom_call.1} parent=5 // pred_region
        %s293 = ssub.s32 %s21, 1
        %s294 = sand.u32 %s34, 1
        %s295 = scalar_lea.sflag [#allocation5], %s294
        %s296 = sand.u32 %s34, 1
        %s297 = smul.addr %s296, 256
        %s298 = scalar_lea.vmem [#allocation4], %s297
        // Predicated region
        $region49: #{tpu_custom_call.1} parent=47 // pred_check
          %p299 = pneg %p47
        $region50: #{tpu_custom_call.1} parent=47 // pred_check_branch
          %301 = sbr.rel (%p299) target = $region52
        $region51: #{tpu_custom_call.1} parent=47 // pred_region
          %302 = dma.done %s295, 4096
        $region52: #{tpu_custom_call.1} parent=47 // pred_fallthru
          _
        // Predicated region
        $region53: #{tpu_custom_call.1} parent=47 // pred_check
          %p303 = pneg %p68
        $region54: #{tpu_custom_call.1} parent=47 // pred_check_branch
          %305 = sbr.rel (%p303) target = $region56
        $region55: #{tpu_custom_call.1} parent=47 // pred_region
          %306 = dma.done [#allocation8], 18432
        $region56: #{tpu_custom_call.1} parent=47 // pred_fallthru
          _
        // Predicated region
        $region57: #{tpu_custom_call.1} parent=47 // pred_check
          %p307 = pneg %p110
        $region58: #{tpu_custom_call.1} parent=47 // pred_check_branch
          %309 = sbr.rel (%p307) target = $region60
        $region59: #{tpu_custom_call.1} parent=47 // pred_region
          %310 = dma.done [#allocation8], 9216
        $region60: #{tpu_custom_call.1} parent=47 // pred_fallthru
          _
        // Predicated region
        $region61: #{tpu_custom_call.1} parent=47 // pred_check
          %p311 = pneg %p152
        $region62: #{tpu_custom_call.1} parent=47 // pred_check_branch
          %313 = sbr.rel (%p311) target = $region64
        $region63: #{tpu_custom_call.1} parent=47 // pred_region
          %314 = dma.done [#allocation11], 1024
        $region64: #{tpu_custom_call.1} parent=47 // pred_fallthru
          _
        %s315 = sand.u32 %s34, 1
        %s316 = scalar_lea.sflag [#allocation5], %s315
        %s317 = sand.u32 %s34, 1
        %s318 = smul.addr %s317, 256
        %s319 = scalar_lea.vmem [#allocation4], %s318
        %p320 = pneg %p47
        %p321 = pneg %p44
        %p322 = pneg %p68
        %p323 = pneg %p65
        %p324 = pneg %p89
        %p325 = pneg %p86
        %p326 = pneg %p110
        %p327 = pneg %p107
        %p328 = pneg %p131
        %p329 = pneg %p128
        %p330 = pneg %p152
        %p331 = pneg %p149
        %p332 = pneg %p173
        %p333 = pneg %p170
        %p334 = pneg %p199
        %p335 = pneg %p196
        %s336 = sand.u32 %s186, 1
        %s337 = scalar_lea.sflag [#allocation6], %s336
        %s338 = sand.u32 %s186, 1
        %s339 = smul.addr %s338, 256
        %s340 = scalar_lea.vmem [#allocation12], %s339
        %342 = vst [vmem:[#allocation2] sm:$0xff] 0
        %343 = vst [vmem:[#allocation2 + $0x8] sm:$0xff] 0
        %344 = vst [vmem:[#allocation2 + $0x10] sm:$0x11] 0
        %s345 = scalar_lea.vmem [#allocation2], 408
        %346 = vst [vmem:[%s345] sm:$0xff] 0
        %347 = vst [vmem:[%s345 + $0x8] sm:$0xff] 0
        %348 = vst [vmem:[%s345 + $0x10] sm:$0x11] 0
        %vm349 = vcmask 1040384
        %vm350 = vsmask.f32 256
        %vm351 = vmand %vm349, %vm350
        %vm352 = vcmask 1044484
        %vm353 = vsmask.f32 4352
        %vm354 = vmand %vm352, %vm353
        %vm355 = vmor %vm354, %vm351
        %v356 = vld [vmem:[#allocation2] sm:$0x11]
        %v357 = vsel %vm355, 0, %v356
        %358 = vst [vmem:[#allocation2] sm:$0x11] %v357
        %v359 = vld [vmem:[#allocation2 + $0x18] sm:$0x11]
        %v360 = vsel %vm355, 0, %v359
        %361 = vst [vmem:[#allocation2 + $0x18] sm:$0x11] %v360
        %v362 = vld [vmem:[#allocation2 + $0x30] sm:$0x11]
        %v363 = vsel %vm355, 0, %v362
        %364 = vst [vmem:[#allocation2 + $0x30] sm:$0x11] %v363
        %v365 = vld [vmem:[#allocation2 + $0x48] sm:$0x11]
        %v366 = vsel %vm355, 0, %v365
        %367 = vst [vmem:[#allocation2 + $0x48] sm:$0x11] %v366
        %v368 = vld [vmem:[#allocation2 + $0x60] sm:$0x11]
        %v369 = vsel %vm355, 0, %v368
        %370 = vst [vmem:[#allocation2 + $0x60] sm:$0x11] %v369
        %v371 = vld [vmem:[#allocation2 + $0x78] sm:$0x11]
        %v372 = vsel %vm355, 0, %v371
        %373 = vst [vmem:[#allocation2 + $0x78] sm:$0x11] %v372
        %v374 = vld [vmem:[#allocation2 + $0x90] sm:$0x11]
        %v375 = vsel %vm355, 0, %v374
        %376 = vst [vmem:[#allocation2 + $0x90] sm:$0x11] %v375
        %v377 = vld [vmem:[#allocation2 + $0xa8] sm:$0x11]
        %v378 = vsel %vm355, 0, %v377
        %379 = vst [vmem:[#allocation2 + $0xa8] sm:$0x11] %v378
        %v380 = vld [vmem:[#allocation2 + $0xc0] sm:$0x11]
        %v381 = vsel %vm355, 0, %v380
        %382 = vst [vmem:[#allocation2 + $0xc0] sm:$0x11] %v381
        %v383 = vld [vmem:[#allocation2 + $0xd8] sm:$0x11]
        %v384 = vsel %vm355, 0, %v383
        %385 = vst [vmem:[#allocation2 + $0xd8] sm:$0x11] %v384
        %v386 = vld [vmem:[#allocation2 + $0xf0] sm:$0x11]
        %v387 = vsel %vm355, 0, %v386
        %388 = vst [vmem:[#allocation2 + $0xf0] sm:$0x11] %v387
        %v389 = vld [vmem:[#allocation2 + $0x108] sm:$0x11]
        %v390 = vsel %vm355, 0, %v389
        %391 = vst [vmem:[#allocation2 + $0x108] sm:$0x11] %v390
        %v392 = vld [vmem:[#allocation2 + $0x120] sm:$0x11]
        %v393 = vsel %vm355, 0, %v392
        %394 = vst [vmem:[#allocation2 + $0x120] sm:$0x11] %v393
        %v395 = vld [vmem:[#allocation2 + $0x138] sm:$0x11]
        %v396 = vsel %vm355, 0, %v395
        %397 = vst [vmem:[#allocation2 + $0x138] sm:$0x11] %v396
        %v398 = vld [vmem:[#allocation2 + $0x150] sm:$0x11]
        %v399 = vsel %vm355, 0, %v398
        %400 = vst [vmem:[#allocation2 + $0x150] sm:$0x11] %v399
        %v401 = vld [vmem:[#allocation2 + $0x168] sm:$0x11]
        %v402 = vsel %vm355, 0, %v401
        %403 = vst [vmem:[#allocation2 + $0x168] sm:$0x11] %v402
        %v404 = vld [vmem:[#allocation2 + $0x180] sm:$0x11]
        %v405 = vsel %vm355, 0, %v404
        %406 = vst [vmem:[#allocation2 + $0x180] sm:$0x11] %v405
        %v407 = vld [vmem:[#allocation2 + $0x198] sm:$0x11]
        %v408 = vsel %vm355, 0, %v407
        %409 = vst [vmem:[#allocation2 + $0x198] sm:$0x11] %v408
        %vm410 = vsmask.f32 7938
        %vm411 = vmand %vm349, %vm410
        %vm412 = vsmask.f32 7954
        %vm413 = vmand %vm352, %vm412
        %vm414 = vmor %vm413, %vm411
        %v415 = vld [vmem:[#allocation2 + $0x10] sm:$0x11]
        %v416 = vsel %vm414, 0, %v415
        %417 = vst [vmem:[#allocation2 + $0x10] sm:$0x11] %v416
        %v418 = vld [vmem:[#allocation2 + $0x28] sm:$0x11]
        %v419 = vsel %vm414, 0, %v418
        %420 = vst [vmem:[#allocation2 + $0x28] sm:$0x11] %v419
        %v421 = vld [vmem:[#allocation2 + $0x40] sm:$0x11]
        %v422 = vsel %vm414, 0, %v421
        %423 = vst [vmem:[#allocation2 + $0x40] sm:$0x11] %v422
        %v424 = vld [vmem:[#allocation2 + $0x58] sm:$0x11]
        %v425 = vsel %vm414, 0, %v424
        %426 = vst [vmem:[#allocation2 + $0x58] sm:$0x11] %v425
        %v427 = vld [vmem:[#allocation2 + $0x70] sm:$0x11]
        %v428 = vsel %vm414, 0, %v427
        %429 = vst [vmem:[#allocation2 + $0x70] sm:$0x11] %v428
        %v430 = vld [vmem:[#allocation2 + $0x88] sm:$0x11]
        %v431 = vsel %vm414, 0, %v430
        %432 = vst [vmem:[#allocation2 + $0x88] sm:$0x11] %v431
        %v433 = vld [vmem:[#allocation2 + $0xa0] sm:$0x11]
        %v434 = vsel %vm414, 0, %v433
        %435 = vst [vmem:[#allocation2 + $0xa0] sm:$0x11] %v434
        %v436 = vld [vmem:[#allocation2 + $0xb8] sm:$0x11]
        %v437 = vsel %vm414, 0, %v436
        %438 = vst [vmem:[#allocation2 + $0xb8] sm:$0x11] %v437
        %v439 = vld [vmem:[#allocation2 + $0xd0] sm:$0x11]
        %v440 = vsel %vm414, 0, %v439
        %441 = vst [vmem:[#allocation2 + $0xd0] sm:$0x11] %v440
        %v442 = vld [vmem:[#allocation2 + $0xe8] sm:$0x11]
        %v443 = vsel %vm414, 0, %v442
        %444 = vst [vmem:[#allocation2 + $0xe8] sm:$0x11] %v443
        %v445 = vld [vmem:[#allocation2 + $0x100] sm:$0x11]
        %v446 = vsel %vm414, 0, %v445
        %447 = vst [vmem:[#allocation2 + $0x100] sm:$0x11] %v446
        %v448 = vld [vmem:[#allocation2 + $0x118] sm:$0x11]
        %v449 = vsel %vm414, 0, %v448
        %450 = vst [vmem:[#allocation2 + $0x118] sm:$0x11] %v449
        %v451 = vld [vmem:[#allocation2 + $0x130] sm:$0x11]
        %v452 = vsel %vm414, 0, %v451
        %453 = vst [vmem:[#allocation2 + $0x130] sm:$0x11] %v452
        %v454 = vld [vmem:[#allocation2 + $0x148] sm:$0x11]
        %v455 = vsel %vm414, 0, %v454
        %456 = vst [vmem:[#allocation2 + $0x148] sm:$0x11] %v455
        %v457 = vld [vmem:[#allocation2 + $0x160] sm:$0x11]
        %v458 = vsel %vm414, 0, %v457
        %459 = vst [vmem:[#allocation2 + $0x160] sm:$0x11] %v458
        %v460 = vld [vmem:[#allocation2 + $0x178] sm:$0x11]
        %v461 = vsel %vm414, 0, %v460
        %462 = vst [vmem:[#allocation2 + $0x178] sm:$0x11] %v461
        %v463 = vld [vmem:[#allocation2 + $0x190] sm:$0x11]
        %v464 = vsel %vm414, 0, %v463
        %465 = vst [vmem:[#allocation2 + $0x190] sm:$0x11] %v464
        %v466 = vld [vmem:[#allocation2 + $0x1a8] sm:$0x11]
        %v467 = vsel %vm414, 0, %v466
        %468 = vst [vmem:[#allocation2 + $0x1a8] sm:$0x11] %v467
        %469 = vst [vmem:[#allocation3] sm:$0xf] 0
        %470 = vst [vmem:[#allocation3 + $0x4] sm:$0xf] 0
        %471 = vst [vmem:[#allocation3 + $0x8] sm:$0x1] 0
        %s472 = scalar_lea.vmem [#allocation3], 204
        %473 = vst [vmem:[%s472] sm:$0xf] 0
        %474 = vst [vmem:[%s472 + $0x4] sm:$0xf] 0
        %475 = vst [vmem:[%s472 + $0x8] sm:$0x1] 0
        %v476 = vld [vmem:[#allocation3] sm:$0x1]
        %v477 = vsel %vm351, 0, %v476
        %478 = vst [vmem:[#allocation3] sm:$0x1] %v477
        %v479 = vld [vmem:[#allocation3 + $0xc] sm:$0x1]
        %v480 = vsel %vm351, 0, %v479
        %481 = vst [vmem:[#allocation3 + $0xc] sm:$0x1] %v480
        %v482 = vld [vmem:[#allocation3 + $0x18] sm:$0x1]
        %v483 = vsel %vm351, 0, %v482
        %484 = vst [vmem:[#allocation3 + $0x18] sm:$0x1] %v483
        %v485 = vld [vmem:[#allocation3 + $0x24] sm:$0x1]
        %v486 = vsel %vm351, 0, %v485
        %487 = vst [vmem:[#allocation3 + $0x24] sm:$0x1] %v486
        %v488 = vld [vmem:[#allocation3 + $0x30] sm:$0x1]
        %v489 = vsel %vm351, 0, %v488
        %490 = vst [vmem:[#allocation3 + $0x30] sm:$0x1] %v489
        %v491 = vld [vmem:[#allocation3 + $0x3c] sm:$0x1]
        %v492 = vsel %vm351, 0, %v491
        %493 = vst [vmem:[#allocation3 + $0x3c] sm:$0x1] %v492
        %v494 = vld [vmem:[#allocation3 + $0x48] sm:$0x1]
        %v495 = vsel %vm351, 0, %v494
        %496 = vst [vmem:[#allocation3 + $0x48] sm:$0x1] %v495
        %v497 = vld [vmem:[#allocation3 + $0x54] sm:$0x1]
        %v498 = vsel %vm351, 0, %v497
        %499 = vst [vmem:[#allocation3 + $0x54] sm:$0x1] %v498
        %v500 = vld [vmem:[#allocation3 + $0x60] sm:$0x1]
        %v501 = vsel %vm351, 0, %v500
        %502 = vst [vmem:[#allocation3 + $0x60] sm:$0x1] %v501
        %v503 = vld [vmem:[#allocation3 + $0x6c] sm:$0x1]
        %v504 = vsel %vm351, 0, %v503
        %505 = vst [vmem:[#allocation3 + $0x6c] sm:$0x1] %v504
        %v506 = vld [vmem:[#allocation3 + $0x78] sm:$0x1]
        %v507 = vsel %vm351, 0, %v506
        %508 = vst [vmem:[#allocation3 + $0x78] sm:$0x1] %v507
        %v509 = vld [vmem:[#allocation3 + $0x84] sm:$0x1]
        %v510 = vsel %vm351, 0, %v509
        %511 = vst [vmem:[#allocation3 + $0x84] sm:$0x1] %v510
        %v512 = vld [vmem:[#allocation3 + $0x90] sm:$0x1]
        %v513 = vsel %vm351, 0, %v512
        %514 = vst [vmem:[#allocation3 + $0x90] sm:$0x1] %v513
        %v515 = vld [vmem:[#allocation3 + $0x9c] sm:$0x1]
        %v516 = vsel %vm351, 0, %v515
        %517 = vst [vmem:[#allocation3 + $0x9c] sm:$0x1] %v516
        %v518 = vld [vmem:[#allocation3 + $0xa8] sm:$0x1]
        %v519 = vsel %vm351, 0, %v518
        %520 = vst [vmem:[#allocation3 + $0xa8] sm:$0x1] %v519
        %v521 = vld [vmem:[#allocation3 + $0xb4] sm:$0x1]
        %v522 = vsel %vm351, 0, %v521
        %523 = vst [vmem:[#allocation3 + $0xb4] sm:$0x1] %v522
        %v524 = vld [vmem:[#allocation3 + $0xc0] sm:$0x1]
        %v525 = vsel %vm351, 0, %v524
        %526 = vst [vmem:[#allocation3 + $0xc0] sm:$0x1] %v525
        %v527 = vld [vmem:[#allocation3 + $0xcc] sm:$0x1]
        %v528 = vsel %vm351, 0, %v527
        %529 = vst [vmem:[#allocation3 + $0xcc] sm:$0x1] %v528
        %v530 = vld [vmem:[#allocation3 + $0x8] sm:$0x1]
        %v531 = vsel %vm411, 0, %v530
        %532 = vst [vmem:[#allocation3 + $0x8] sm:$0x1] %v531
        %v533 = vld [vmem:[#allocation3 + $0x14] sm:$0x1]
        %v534 = vsel %vm411, 0, %v533
        %535 = vst [vmem:[#allocation3 + $0x14] sm:$0x1] %v534
        %v536 = vld [vmem:[#allocation3 + $0x20] sm:$0x1]
        %v537 = vsel %vm411, 0, %v536
        %538 = vst [vmem:[#allocation3 + $0x20] sm:$0x1] %v537
        %v539 = vld [vmem:[#allocation3 + $0x2c] sm:$0x1]
        %v540 = vsel %vm411, 0, %v539
        %541 = vst [vmem:[#allocation3 + $0x2c] sm:$0x1] %v540
        %v542 = vld [vmem:[#allocation3 + $0x38] sm:$0x1]
        %v543 = vsel %vm411, 0, %v542
        %544 = vst [vmem:[#allocation3 + $0x38] sm:$0x1] %v543
        %v545 = vld [vmem:[#allocation3 + $0x44] sm:$0x1]
        %v546 = vsel %vm411, 0, %v545
        %547 = vst [vmem:[#allocation3 + $0x44] sm:$0x1] %v546
        %v548 = vld [vmem:[#allocation3 + $0x50] sm:$0x1]
        %v549 = vsel %vm411, 0, %v548
        %550 = vst [vmem:[#allocation3 + $0x50] sm:$0x1] %v549
        %v551 = vld [vmem:[#allocation3 + $0x5c] sm:$0x1]
        %v552 = vsel %vm411, 0, %v551
        %553 = vst [vmem:[#allocation3 + $0x5c] sm:$0x1] %v552
        %v554 = vld [vmem:[#allocation3 + $0x68] sm:$0x1]
        %v555 = vsel %vm411, 0, %v554
        %556 = vst [vmem:[#allocation3 + $0x68] sm:$0x1] %v555
        %v557 = vld [vmem:[#allocation3 + $0x74] sm:$0x1]
        %v558 = vsel %vm411, 0, %v557
        %559 = vst [vmem:[#allocation3 + $0x74] sm:$0x1] %v558
        %v560 = vld [vmem:[#allocation3 + $0x80] sm:$0x1]
        %v561 = vsel %vm411, 0, %v560
        %562 = vst [vmem:[#allocation3 + $0x80] sm:$0x1] %v561
        %v563 = vld [vmem:[#allocation3 + $0x8c] sm:$0x1]
        %v564 = vsel %vm411, 0, %v563
        %565 = vst [vmem:[#allocation3 + $0x8c] sm:$0x1] %v564
        %v566 = vld [vmem:[#allocation3 + $0x98] sm:$0x1]
        %v567 = vsel %vm411, 0, %v566
        %568 = vst [vmem:[#allocation3 + $0x98] sm:$0x1] %v567
        %v569 = vld [vmem:[#allocation3 + $0xa4] sm:$0x1]
        %v570 = vsel %vm411, 0, %v569
        %571 = vst [vmem:[#allocation3 + $0xa4] sm:$0x1] %v570
        %v572 = vld [vmem:[#allocation3 + $0xb0] sm:$0x1]
        %v573 = vsel %vm411, 0, %v572
        %574 = vst [vmem:[#allocation3 + $0xb0] sm:$0x1] %v573
        %v575 = vld [vmem:[#allocation3 + $0xbc] sm:$0x1]
        %v576 = vsel %vm411, 0, %v575
        %577 = vst [vmem:[#allocation3 + $0xbc] sm:$0x1] %v576
        %v578 = vld [vmem:[#allocation3 + $0xc8] sm:$0x1]
        %v579 = vsel %vm411, 0, %v578
        %580 = vst [vmem:[#allocation3 + $0xc8] sm:$0x1] %v579
        %v581 = vld [vmem:[#allocation3 + $0xd4] sm:$0x1]
        %v582 = vsel %vm411, 0, %v581
        %583 = vst [vmem:[#allocation3 + $0xd4] sm:$0x1] %v582
        %v584 = vld [vmem:[%s298] sm:$0xff]
        %v585 = vld [vmem:[%s298 + $0x8] sm:$0xff]
        %v586 = vld [vmem:[%s298 + $0x10] sm:$0xff]
        %v587 = vld [vmem:[%s298 + $0x18] sm:$0xff]
        %v588 = vld [vmem:[%s298 + $0x20] sm:$0xff]
        %v589 = vld [vmem:[%s298 + $0x28] sm:$0xff]
        %v590 = vld [vmem:[%s298 + $0x30] sm:$0xff]
        %v591 = vld [vmem:[%s298 + $0x38] sm:$0xff]
        %v592 = vld [vmem:[%s298 + $0x40] sm:$0xff]
        %v593 = vld [vmem:[%s298 + $0x48] sm:$0xff]
        %v594 = vld [vmem:[%s298 + $0x50] sm:$0xff]
        %v595 = vld [vmem:[%s298 + $0x58] sm:$0xff]
        %v596 = vld [vmem:[%s298 + $0x60] sm:$0xff]
        %v597 = vld [vmem:[%s298 + $0x68] sm:$0xff]
        %v598 = vld [vmem:[%s298 + $0x70] sm:$0xff]
        %v599 = vld [vmem:[%s298 + $0x78] sm:$0xff]
        %v600 = vld [vmem:[%s298 + $0x80] sm:$0xff]
        %v601 = vld [vmem:[%s298 + $0x88] sm:$0xff]
        %v602 = vld [vmem:[%s298 + $0x90] sm:$0xff]
        %v603 = vld [vmem:[%s298 + $0x98] sm:$0xff]
        %v604 = vld [vmem:[%s298 + $0xa0] sm:$0xff]
        %v605 = vld [vmem:[%s298 + $0xa8] sm:$0xff]
        %v606 = vld [vmem:[%s298 + $0xb0] sm:$0xff]
        %v607 = vld [vmem:[%s298 + $0xb8] sm:$0xff]
        %v608 = vld [vmem:[%s298 + $0xc0] sm:$0xff]
        %v609 = vld [vmem:[%s298 + $0xc8] sm:$0xff]
        %v610 = vld [vmem:[%s298 + $0xd0] sm:$0xff]
        %v611 = vld [vmem:[%s298 + $0xd8] sm:$0xff]
        %v612 = vld [vmem:[%s298 + $0xe0] sm:$0xff]
        %v613 = vld [vmem:[%s298 + $0xe8] sm:$0xff]
        %v614 = vld [vmem:[%s298 + $0xf0] sm:$0xff]
        %v615 = vld [vmem:[%s298 + $0xf8] sm:$0xff]
        %vm616 = vsmask.f32 4368
        %vm617 = vmor %vm350, %vm616
        %v619 = vshrl.u32 %v584, 16
        %v621 = vrot.slane %v619, 7
        %v622 = vshll.u32 %v584, 16
        %v624 = vor.u32 %v621, %v622
        %v625 = vrot.slane %v621, 4
        %v627 = vshrl.u32 %v585, 16
        %v629 = vrot.slane %v627, 7
        %v630 = vshll.u32 %v585, 16
        %v632 = vor.u32 %v629, %v630
        %v633 = vsel %vm617, %v625, %v632
        %v634 = vrot.slane %v629, 4
        %v636 = vshrl.u32 %v586, 16
        %v638 = vrot.slane %v636, 7
        %v639 = vshll.u32 %v586, 16
        %v641 = vor.u32 %v638, %v639
        %v642 = vrot.slane %v638, 4
        %v644 = vshrl.u32 %v587, 16
        %v646 = vrot.slane %v644, 7
        %v647 = vshll.u32 %v587, 16
        %v649 = vor.u32 %v646, %v647
        %v650 = vsel %vm617, %v642, %v649
        %v651 = vrot.slane %v646, 4
        %v653 = vshrl.u32 %v588, 16
        %v655 = vrot.slane %v653, 7
        %v656 = vshll.u32 %v588, 16
        %v658 = vor.u32 %v655, %v656
        %v659 = vrot.slane %v655, 4
        %v661 = vshrl.u32 %v589, 16
        %v663 = vrot.slane %v661, 7
        %v664 = vshll.u32 %v589, 16
        %v666 = vor.u32 %v663, %v664
        %v667 = vsel %vm617, %v659, %v666
        %v668 = vrot.slane %v663, 4
        %v670 = vshrl.u32 %v590, 16
        %v672 = vrot.slane %v670, 7
        %v673 = vshll.u32 %v590, 16
        %v675 = vor.u32 %v672, %v673
        %v676 = vrot.slane %v672, 4
        %v678 = vshrl.u32 %v591, 16
        %v680 = vrot.slane %v678, 7
        %v681 = vshll.u32 %v591, 16
        %v683 = vor.u32 %v680, %v681
        %v684 = vsel %vm617, %v676, %v683
        %v685 = vrot.slane %v680, 4
        %v687 = vshrl.u32 %v592, 16
        %v689 = vrot.slane %v687, 7
        %v690 = vshll.u32 %v592, 16
        %v692 = vor.u32 %v689, %v690
        %v693 = vrot.slane %v689, 4
        %v695 = vshrl.u32 %v593, 16
        %v697 = vrot.slane %v695, 7
        %v698 = vshll.u32 %v593, 16
        %v700 = vor.u32 %v697, %v698
        %v701 = vsel %vm617, %v693, %v700
        %v702 = vrot.slane %v697, 4
        %v704 = vshrl.u32 %v594, 16
        %v706 = vrot.slane %v704, 7
        %v707 = vshll.u32 %v594, 16
        %v709 = vor.u32 %v706, %v707
        %v710 = vrot.slane %v706, 4
        %v712 = vshrl.u32 %v595, 16
        %v714 = vrot.slane %v712, 7
        %v715 = vshll.u32 %v595, 16
        %v717 = vor.u32 %v714, %v715
        %v718 = vsel %vm617, %v710, %v717
        %v719 = vrot.slane %v714, 4
        %v721 = vshrl.u32 %v596, 16
        %v723 = vrot.slane %v721, 7
        %v724 = vshll.u32 %v596, 16
        %v726 = vor.u32 %v723, %v724
        %v727 = vrot.slane %v723, 4
        %v729 = vshrl.u32 %v597, 16
        %v731 = vrot.slane %v729, 7
        %v732 = vshll.u32 %v597, 16
        %v734 = vor.u32 %v731, %v732
        %v735 = vsel %vm617, %v727, %v734
        %v736 = vrot.slane %v731, 4
        %v738 = vshrl.u32 %v598, 16
        %v740 = vrot.slane %v738, 7
        %v741 = vshll.u32 %v598, 16
        %v743 = vor.u32 %v740, %v741
        %v744 = vrot.slane %v740, 4
        %v746 = vshrl.u32 %v599, 16
        %v748 = vrot.slane %v746, 7
        %v749 = vshll.u32 %v599, 16
        %v751 = vor.u32 %v748, %v749
        %v752 = vsel %vm617, %v744, %v751
        %v753 = vrot.slane %v748, 4
        %v755 = vshrl.u32 %v600, 16
        %v757 = vrot.slane %v755, 7
        %v758 = vshll.u32 %v600, 16
        %v760 = vor.u32 %v757, %v758
        %v761 = vrot.slane %v757, 4
        %v763 = vshrl.u32 %v601, 16
        %v765 = vrot.slane %v763, 7
        %v766 = vshll.u32 %v601, 16
        %v768 = vor.u32 %v765, %v766
        %v769 = vsel %vm617, %v761, %v768
        %v770 = vrot.slane %v765, 4
        %v772 = vshrl.u32 %v602, 16
        %v774 = vrot.slane %v772, 7
        %v775 = vshll.u32 %v602, 16
        %v777 = vor.u32 %v774, %v775
        %v778 = vrot.slane %v774, 4
        %v780 = vshrl.u32 %v603, 16
        %v782 = vrot.slane %v780, 7
        %v783 = vshll.u32 %v603, 16
        %v785 = vor.u32 %v782, %v783
        %v786 = vsel %vm617, %v778, %v785
        %v787 = vrot.slane %v782, 4
        %v789 = vshrl.u32 %v604, 16
        %v791 = vrot.slane %v789, 7
        %v792 = vshll.u32 %v604, 16
        %v794 = vor.u32 %v791, %v792
        %v795 = vrot.slane %v791, 4
        %v797 = vshrl.u32 %v605, 16
        %v799 = vrot.slane %v797, 7
        %v800 = vshll.u32 %v605, 16
        %v802 = vor.u32 %v799, %v800
        %v803 = vsel %vm617, %v795, %v802
        %v804 = vrot.slane %v799, 4
        %v806 = vshrl.u32 %v606, 16
        %v808 = vrot.slane %v806, 7
        %v809 = vshll.u32 %v606, 16
        %v811 = vor.u32 %v808, %v809
        %v812 = vrot.slane %v808, 4
        %v814 = vshrl.u32 %v607, 16
        %v816 = vrot.slane %v814, 7
        %v817 = vshll.u32 %v607, 16
        %v819 = vor.u32 %v816, %v817
        %v820 = vsel %vm617, %v812, %v819
        %v821 = vrot.slane %v816, 4
        %v823 = vshrl.u32 %v608, 16
        %v825 = vrot.slane %v823, 7
        %v826 = vshll.u32 %v608, 16
        %v828 = vor.u32 %v825, %v826
        %v829 = vrot.slane %v825, 4
        %v831 = vshrl.u32 %v609, 16
        %v833 = vrot.slane %v831, 7
        %v834 = vshll.u32 %v609, 16
        %v836 = vor.u32 %v833, %v834
        %v837 = vsel %vm617, %v829, %v836
        %v838 = vrot.slane %v833, 4
        %v840 = vshrl.u32 %v610, 16
        %v842 = vrot.slane %v840, 7
        %v843 = vshll.u32 %v610, 16
        %v845 = vor.u32 %v842, %v843
        %v846 = vrot.slane %v842, 4
        %v848 = vshrl.u32 %v611, 16
        %v850 = vrot.slane %v848, 7
        %v851 = vshll.u32 %v611, 16
        %v853 = vor.u32 %v850, %v851
        %v854 = vsel %vm617, %v846, %v853
        %v855 = vrot.slane %v850, 4
        %v857 = vshrl.u32 %v612, 16
        %v859 = vrot.slane %v857, 7
        %v860 = vshll.u32 %v612, 16
        %v862 = vor.u32 %v859, %v860
        %v863 = vrot.slane %v859, 4
        %v865 = vshrl.u32 %v613, 16
        %v867 = vrot.slane %v865, 7
        %v868 = vshll.u32 %v613, 16
        %v870 = vor.u32 %v867, %v868
        %v871 = vsel %vm617, %v863, %v870
        %v872 = vrot.slane %v867, 4
        %v874 = vshrl.u32 %v614, 16
        %v876 = vrot.slane %v874, 7
        %v877 = vshll.u32 %v614, 16
        %v879 = vor.u32 %v876, %v877
        %v880 = vrot.slane %v876, 4
        %v882 = vshrl.u32 %v615, 16
        %v884 = vrot.slane %v882, 7
        %v885 = vshll.u32 %v615, 16
        %v887 = vor.u32 %v884, %v885
        %v888 = vsel %vm617, %v880, %v887
        %v889 = vrot.slane %v884, 4
        %s938 = scalar_lea.vmem [#allocation2], 24
        %vm939 = vcmask 1043456
        %vm940 = vmand %vm939, %vm410
        %vm941 = vcmask 1047556
        %vm942 = vmand %vm941, %vm412
        %vm943 = vmor %vm942, %vm940
        %v944 = vld [vmem:[%s938] sm:$0xff]
        %v945 = vsel %vm943, %v624, %v944
        %946 = vst [vmem:[%s938] sm:$0xff] %v945
        %947 = vst [vmem:[%s938 + $0x8] sm:$0xff] %v633
        %v948 = vld [vmem:[%s938 + $0x10] sm:$0x11]
        %v949 = vsel %vm355, %v634, %v948
        %950 = vst [vmem:[%s938 + $0x10] sm:$0x11] %v949
        %v951 = vld [vmem:[%s938 + $0x18] sm:$0xff]
        %v952 = vsel %vm943, %v641, %v951
        %953 = vst [vmem:[%s938 + $0x18] sm:$0xff] %v952
        %954 = vst [vmem:[%s938 + $0x20] sm:$0xff] %v650
        %v955 = vld [vmem:[%s938 + $0x28] sm:$0x11]
        %v956 = vsel %vm355, %v651, %v955
        %957 = vst [vmem:[%s938 + $0x28] sm:$0x11] %v956
        %v958 = vld [vmem:[%s938 + $0x30] sm:$0xff]
        %v959 = vsel %vm943, %v658, %v958
        %960 = vst [vmem:[%s938 + $0x30] sm:$0xff] %v959
        %961 = vst [vmem:[%s938 + $0x38] sm:$0xff] %v667
        %v962 = vld [vmem:[%s938 + $0x40] sm:$0x11]
        %v963 = vsel %vm355, %v668, %v962
        %964 = vst [vmem:[%s938 + $0x40] sm:$0x11] %v963
        %v965 = vld [vmem:[%s938 + $0x48] sm:$0xff]
        %v966 = vsel %vm943, %v675, %v965
        %967 = vst [vmem:[%s938 + $0x48] sm:$0xff] %v966
        %968 = vst [vmem:[%s938 + $0x50] sm:$0xff] %v684
        %v969 = vld [vmem:[%s938 + $0x58] sm:$0x11]
        %v970 = vsel %vm355, %v685, %v969
        %971 = vst [vmem:[%s938 + $0x58] sm:$0x11] %v970
        %v972 = vld [vmem:[%s938 + $0x60] sm:$0xff]
        %v973 = vsel %vm943, %v692, %v972
        %974 = vst [vmem:[%s938 + $0x60] sm:$0xff] %v973
        %975 = vst [vmem:[%s938 + $0x68] sm:$0xff] %v701
        %v976 = vld [vmem:[%s938 + $0x70] sm:$0x11]
        %v977 = vsel %vm355, %v702, %v976
        %978 = vst [vmem:[%s938 + $0x70] sm:$0x11] %v977
        %v979 = vld [vmem:[%s938 + $0x78] sm:$0xff]
        %v980 = vsel %vm943, %v709, %v979
        %981 = vst [vmem:[%s938 + $0x78] sm:$0xff] %v980
        %982 = vst [vmem:[%s938 + $0x80] sm:$0xff] %v718
        %v983 = vld [vmem:[%s938 + $0x88] sm:$0x11]
        %v984 = vsel %vm355, %v719, %v983
        %985 = vst [vmem:[%s938 + $0x88] sm:$0x11] %v984
        %v986 = vld [vmem:[%s938 + $0x90] sm:$0xff]
        %v987 = vsel %vm943, %v726, %v986
        %988 = vst [vmem:[%s938 + $0x90] sm:$0xff] %v987
        %989 = vst [vmem:[%s938 + $0x98] sm:$0xff] %v735
        %v990 = vld [vmem:[%s938 + $0xa0] sm:$0x11]
        %v991 = vsel %vm355, %v736, %v990
        %992 = vst [vmem:[%s938 + $0xa0] sm:$0x11] %v991
        %v993 = vld [vmem:[%s938 + $0xa8] sm:$0xff]
        %v994 = vsel %vm943, %v743, %v993
        %995 = vst [vmem:[%s938 + $0xa8] sm:$0xff] %v994
        %996 = vst [vmem:[%s938 + $0xb0] sm:$0xff] %v752
        %v997 = vld [vmem:[%s938 + $0xb8] sm:$0x11]
        %v998 = vsel %vm355, %v753, %v997
        %999 = vst [vmem:[%s938 + $0xb8] sm:$0x11] %v998
        %v1000 = vld [vmem:[%s938 + $0xc0] sm:$0xff]
        %v1001 = vsel %vm943, %v760, %v1000
        %1002 = vst [vmem:[%s938 + $0xc0] sm:$0xff] %v1001
        %1003 = vst [vmem:[%s938 + $0xc8] sm:$0xff] %v769
        %v1004 = vld [vmem:[%s938 + $0xd0] sm:$0x11]
        %v1005 = vsel %vm355, %v770, %v1004
        %1006 = vst [vmem:[%s938 + $0xd0] sm:$0x11] %v1005
        %v1007 = vld [vmem:[%s938 + $0xd8] sm:$0xff]
        %v1008 = vsel %vm943, %v777, %v1007
        %1009 = vst [vmem:[%s938 + $0xd8] sm:$0xff] %v1008
        %1010 = vst [vmem:[%s938 + $0xe0] sm:$0xff] %v786
        %v1011 = vld [vmem:[%s938 + $0xe8] sm:$0x11]
        %v1012 = vsel %vm355, %v787, %v1011
        %1013 = vst [vmem:[%s938 + $0xe8] sm:$0x11] %v1012
        %v1014 = vld [vmem:[%s938 + $0xf0] sm:$0xff]
        %v1015 = vsel %vm943, %v794, %v1014
        %1016 = vst [vmem:[%s938 + $0xf0] sm:$0xff] %v1015
        %1017 = vst [vmem:[%s938 + $0xf8] sm:$0xff] %v803
        %v1018 = vld [vmem:[%s938 + $0x100] sm:$0x11]
        %v1019 = vsel %vm355, %v804, %v1018
        %1020 = vst [vmem:[%s938 + $0x100] sm:$0x11] %v1019
        %v1021 = vld [vmem:[%s938 + $0x108] sm:$0xff]
        %v1022 = vsel %vm943, %v811, %v1021
        %1023 = vst [vmem:[%s938 + $0x108] sm:$0xff] %v1022
        %1024 = vst [vmem:[%s938 + $0x110] sm:$0xff] %v820
        %v1025 = vld [vmem:[%s938 + $0x118] sm:$0x11]
        %v1026 = vsel %vm355, %v821, %v1025
        %1027 = vst [vmem:[%s938 + $0x118] sm:$0x11] %v1026
        %v1028 = vld [vmem:[%s938 + $0x120] sm:$0xff]
        %v1029 = vsel %vm943, %v828, %v1028
        %1030 = vst [vmem:[%s938 + $0x120] sm:$0xff] %v1029
        %1031 = vst [vmem:[%s938 + $0x128] sm:$0xff] %v837
        %v1032 = vld [vmem:[%s938 + $0x130] sm:$0x11]
        %v1033 = vsel %vm355, %v838, %v1032
        %1034 = vst [vmem:[%s938 + $0x130] sm:$0x11] %v1033
        %v1035 = vld [vmem:[%s938 + $0x138] sm:$0xff]
        %v1036 = vsel %vm943, %v845, %v1035
        %1037 = vst [vmem:[%s938 + $0x138] sm:$0xff] %v1036
        %1038 = vst [vmem:[%s938 + $0x140] sm:$0xff] %v854
        %v1039 = vld [vmem:[%s938 + $0x148] sm:$0x11]
        %v1040 = vsel %vm355, %v855, %v1039
        %1041 = vst [vmem:[%s938 + $0x148] sm:$0x11] %v1040
        %v1042 = vld [vmem:[%s938 + $0x150] sm:$0xff]
        %v1043 = vsel %vm943, %v862, %v1042
        %1044 = vst [vmem:[%s938 + $0x150] sm:$0xff] %v1043
        %1045 = vst [vmem:[%s938 + $0x158] sm:$0xff] %v871
        %v1046 = vld [vmem:[%s938 + $0x160] sm:$0x11]
        %v1047 = vsel %vm355, %v872, %v1046
        %1048 = vst [vmem:[%s938 + $0x160] sm:$0x11] %v1047
        %v1049 = vld [vmem:[%s938 + $0x168] sm:$0xff]
        %v1050 = vsel %vm943, %v879, %v1049
        %1051 = vst [vmem:[%s938 + $0x168] sm:$0xff] %v1050
        %1052 = vst [vmem:[%s938 + $0x170] sm:$0xff] %v888
        %v1053 = vld [vmem:[%s938 + $0x178] sm:$0x11]
        %v1054 = vsel %vm355, %v889, %v1053
        %1055 = vst [vmem:[%s938 + $0x178] sm:$0x11] %v1054
        %v1056 = vld [vmem:[#allocation2] sm:$0xff]
        %v1057 = vld [vmem:[#allocation2 + $0x8] sm:$0xff]
        %v1058 = vld [vmem:[#allocation2 + $0x18] sm:$0xff]
        %v1059 = vld [vmem:[#allocation2 + $0x20] sm:$0xff]
        %v1060 = vld [vmem:[#allocation2 + $0x30] sm:$0xff]
        %v1061 = vld [vmem:[#allocation2 + $0x38] sm:$0xff]
        %v1062 = vld [vmem:[#allocation2 + $0x48] sm:$0xff]
        %v1063 = vld [vmem:[#allocation2 + $0x50] sm:$0xff]
        %v1064 = vld [vmem:[#allocation2 + $0x60] sm:$0xff]
        %v1065 = vld [vmem:[#allocation2 + $0x68] sm:$0xff]
        %v1066 = vld [vmem:[#allocation2 + $0x78] sm:$0xff]
        %v1067 = vld [vmem:[#allocation2 + $0x80] sm:$0xff]
        %v1068 = vld [vmem:[#allocation2 + $0x90] sm:$0xff]
        %v1069 = vld [vmem:[#allocation2 + $0x98] sm:$0xff]
        %v1070 = vld [vmem:[#allocation2 + $0xa8] sm:$0xff]
        %v1071 = vld [vmem:[#allocation2 + $0xb0] sm:$0xff]
        %v1072 = vld [vmem:[#allocation2 + $0xc0] sm:$0xff]
        %v1073 = vld [vmem:[#allocation2 + $0xc8] sm:$0xff]
        %v1074 = vld [vmem:[#allocation2 + $0xd8] sm:$0xff]
        %v1075 = vld [vmem:[#allocation2 + $0xe0] sm:$0xff]
        %v1076 = vld [vmem:[#allocation2 + $0xf0] sm:$0xff]
        %v1077 = vld [vmem:[#allocation2 + $0xf8] sm:$0xff]
        %v1078 = vld [vmem:[#allocation2 + $0x108] sm:$0xff]
        %v1079 = vld [vmem:[#allocation2 + $0x110] sm:$0xff]
        %v1080 = vld [vmem:[#allocation2 + $0x120] sm:$0xff]
        %v1081 = vld [vmem:[#allocation2 + $0x128] sm:$0xff]
        %v1082 = vld [vmem:[#allocation2 + $0x138] sm:$0xff]
        %v1083 = vld [vmem:[#allocation2 + $0x140] sm:$0xff]
        %v1084 = vld [vmem:[#allocation2 + $0x150] sm:$0xff]
        %v1085 = vld [vmem:[#allocation2 + $0x158] sm:$0xff]
        %v1086 = vld [vmem:[#allocation2 + $0x168] sm:$0xff]
        %v1087 = vld [vmem:[#allocation2 + $0x170] sm:$0xff]
        %v1088 = vld [vmem:[#allocation7] sm:$0xf]
        %v1089 = vld [vmem:[#allocation7 + $0x4] sm:$0xf]
        %v1090 = vld [vmem:[#allocation7 + $0x8] sm:$0xf]
        %v1091 = vld [vmem:[#allocation7 + $0xc] sm:$0xf]
        %v1092 = vld [vmem:[#allocation7 + $0x10] sm:$0xf]
        %v1093 = vld [vmem:[#allocation7 + $0x14] sm:$0xf]
        %v1094 = vld [vmem:[#allocation7 + $0x18] sm:$0xf]
        %v1095 = vld [vmem:[#allocation7 + $0x1c] sm:$0xf]
        %v1096 = vld [vmem:[#allocation7 + $0x20] sm:$0xf]
        %v1097 = vld [vmem:[#allocation7 + $0x24] sm:$0xf]
        %v1098 = vld [vmem:[#allocation7 + $0x28] sm:$0xf]
        %v1099 = vld [vmem:[#allocation7 + $0x2c] sm:$0xf]
        %v1100 = vld [vmem:[#allocation7 + $0x30] sm:$0xf]
        %v1101 = vld [vmem:[#allocation7 + $0x34] sm:$0xf]
        %v1102 = vld [vmem:[#allocation7 + $0x38] sm:$0xf]
        %v1103 = vld [vmem:[#allocation7 + $0x3c] sm:$0xf]
        %v1104 = vld [vmem:[#allocation7 + $0x40] sm:$0xf]
        %v1105 = vld [vmem:[#allocation7 + $0x44] sm:$0xf]
        %v1106 = vld [vmem:[#allocation7 + $0x48] sm:$0xf]
        %v1107 = vld [vmem:[#allocation7 + $0x4c] sm:$0xf]
        %v1108 = vld [vmem:[#allocation7 + $0x50] sm:$0xf]
        %v1109 = vld [vmem:[#allocation7 + $0x54] sm:$0xf]
        %v1110 = vld [vmem:[#allocation7 + $0x58] sm:$0xf]
        %v1111 = vld [vmem:[#allocation7 + $0x5c] sm:$0xf]
        %v1112 = vld [vmem:[#allocation7 + $0x60] sm:$0xf]
        %v1113 = vld [vmem:[#allocation7 + $0x64] sm:$0xf]
        %v1114 = vld [vmem:[#allocation7 + $0x68] sm:$0xf]
        %v1115 = vld [vmem:[#allocation7 + $0x6c] sm:$0xf]
        %v1116 = vld [vmem:[#allocation7 + $0x70] sm:$0xf]
        %v1117 = vld [vmem:[#allocation7 + $0x74] sm:$0xf]
        %v1118 = vld [vmem:[#allocation7 + $0x78] sm:$0xf]
        %v1119 = vld [vmem:[#allocation7 + $0x7c] sm:$0xf]
        %v1120 = vld [vmem:[#allocation2 + $0x10] sm:$0x11]
        %v1121 = vld [vmem:[#allocation2 + $0x28] sm:$0x11]
        %v1122 = vld [vmem:[#allocation2 + $0x40] sm:$0x11]
        %v1123 = vld [vmem:[#allocation2 + $0x58] sm:$0x11]
        %v1124 = vld [vmem:[#allocation2 + $0x70] sm:$0x11]
        %v1125 = vld [vmem:[#allocation2 + $0x88] sm:$0x11]
        %v1126 = vld [vmem:[#allocation2 + $0xa0] sm:$0x11]
        %v1127 = vld [vmem:[#allocation2 + $0xb8] sm:$0x11]
        %v1128 = vld [vmem:[#allocation2 + $0xd0] sm:$0x11]
        %v1129 = vld [vmem:[#allocation2 + $0xe8] sm:$0x11]
        %v1130 = vld [vmem:[#allocation2 + $0x100] sm:$0x11]
        %v1131 = vld [vmem:[#allocation2 + $0x118] sm:$0x11]
        %v1132 = vld [vmem:[#allocation2 + $0x130] sm:$0x11]
        %v1133 = vld [vmem:[#allocation2 + $0x148] sm:$0x11]
        %v1134 = vld [vmem:[#allocation2 + $0x160] sm:$0x11]
        %v1135 = vld [vmem:[#allocation2 + $0x178] sm:$0x11]
        %vm1136 = vsmask.f32 3328
        %vm1137 = vsmask.f32 7440
        %vm1138 = vmor %vm1136, %vm1137
        %v1140 = vshrl.u32 %v1056, 16
        %v1142 = vrot.slane %v1140, 4
        %v1143 = vshll.u32 %v1056, 16
        %v1145 = vrot.slane %v1143, 5
        %v1146 = vor.u32 %v1142, %v1145
        %v1147 = vrot.slane %v1146, 4
        %v1149 = vshll.u32 %v1057, 16
        %v1151 = vrot.slane %v1149, 5
        %v1152 = vsel %vm1138, %v1147, %v1151
        %v1153 = vshrl.u32 %v1057, 16
        %v1155 = vrot.slane %v1153, 4
        %v1156 = vor.u32 %v1155, %v1151
        %v1157 = vrot.slane %v1156, 4
        %v1159 = vshll.u32 %v1120, 16
        %v1161 = vrot.slane %v1159, 5
        %v1162 = vsel %vm1138, %v1157, %v1161
        %v1164 = vshrl.u32 %v1058, 16
        %v1166 = vrot.slane %v1164, 4
        %v1167 = vshll.u32 %v1058, 16
        %v1169 = vrot.slane %v1167, 5
        %v1170 = vor.u32 %v1166, %v1169
        %v1171 = vrot.slane %v1170, 4
        %v1173 = vshll.u32 %v1059, 16
        %v1175 = vrot.slane %v1173, 5
        %v1176 = vsel %vm1138, %v1171, %v1175
        %v1177 = vshrl.u32 %v1059, 16
        %v1179 = vrot.slane %v1177, 4
        %v1180 = vor.u32 %v1179, %v1175
        %v1181 = vrot.slane %v1180, 4
        %v1183 = vshll.u32 %v1121, 16
        %v1185 = vrot.slane %v1183, 5
        %v1186 = vsel %vm1138, %v1181, %v1185
        %v1188 = vshrl.u32 %v1060, 16
        %v1190 = vrot.slane %v1188, 4
        %v1191 = vshll.u32 %v1060, 16
        %v1193 = vrot.slane %v1191, 5
        %v1194 = vor.u32 %v1190, %v1193
        %v1195 = vrot.slane %v1194, 4
        %v1197 = vshll.u32 %v1061, 16
        %v1199 = vrot.slane %v1197, 5
        %v1200 = vsel %vm1138, %v1195, %v1199
        %v1201 = vshrl.u32 %v1061, 16
        %v1203 = vrot.slane %v1201, 4
        %v1204 = vor.u32 %v1203, %v1199
        %v1205 = vrot.slane %v1204, 4
        %v1207 = vshll.u32 %v1122, 16
        %v1209 = vrot.slane %v1207, 5
        %v1210 = vsel %vm1138, %v1205, %v1209
        %v1212 = vshrl.u32 %v1062, 16
        %v1214 = vrot.slane %v1212, 4
        %v1215 = vshll.u32 %v1062, 16
        %v1217 = vrot.slane %v1215, 5
        %v1218 = vor.u32 %v1214, %v1217
        %v1219 = vrot.slane %v1218, 4
        %v1221 = vshll.u32 %v1063, 16
        %v1223 = vrot.slane %v1221, 5
        %v1224 = vsel %vm1138, %v1219, %v1223
        %v1225 = vshrl.u32 %v1063, 16
        %v1227 = vrot.slane %v1225, 4
        %v1228 = vor.u32 %v1227, %v1223
        %v1229 = vrot.slane %v1228, 4
        %v1231 = vshll.u32 %v1123, 16
        %v1233 = vrot.slane %v1231, 5
        %v1234 = vsel %vm1138, %v1229, %v1233
        %v1236 = vshrl.u32 %v1064, 16
        %v1238 = vrot.slane %v1236, 4
        %v1239 = vshll.u32 %v1064, 16
        %v1241 = vrot.slane %v1239, 5
        %v1242 = vor.u32 %v1238, %v1241
        %v1243 = vrot.slane %v1242, 4
        %v1245 = vshll.u32 %v1065, 16
        %v1247 = vrot.slane %v1245, 5
        %v1248 = vsel %vm1138, %v1243, %v1247
        %v1249 = vshrl.u32 %v1065, 16
        %v1251 = vrot.slane %v1249, 4
        %v1252 = vor.u32 %v1251, %v1247
        %v1253 = vrot.slane %v1252, 4
        %v1255 = vshll.u32 %v1124, 16
        %v1257 = vrot.slane %v1255, 5
        %v1258 = vsel %vm1138, %v1253, %v1257
        %v1260 = vshrl.u32 %v1066, 16
        %v1262 = vrot.slane %v1260, 4
        %v1263 = vshll.u32 %v1066, 16
        %v1265 = vrot.slane %v1263, 5
        %v1266 = vor.u32 %v1262, %v1265
        %v1267 = vrot.slane %v1266, 4
        %v1269 = vshll.u32 %v1067, 16
        %v1271 = vrot.slane %v1269, 5
        %v1272 = vsel %vm1138, %v1267, %v1271
        %v1273 = vshrl.u32 %v1067, 16
        %v1275 = vrot.slane %v1273, 4
        %v1276 = vor.u32 %v1275, %v1271
        %v1277 = vrot.slane %v1276, 4
        %v1279 = vshll.u32 %v1125, 16
        %v1281 = vrot.slane %v1279, 5
        %v1282 = vsel %vm1138, %v1277, %v1281
        %v1284 = vshrl.u32 %v1068, 16
        %v1286 = vrot.slane %v1284, 4
        %v1287 = vshll.u32 %v1068, 16
        %v1289 = vrot.slane %v1287, 5
        %v1290 = vor.u32 %v1286, %v1289
        %v1291 = vrot.slane %v1290, 4
        %v1293 = vshll.u32 %v1069, 16
        %v1295 = vrot.slane %v1293, 5
        %v1296 = vsel %vm1138, %v1291, %v1295
        %v1297 = vshrl.u32 %v1069, 16
        %v1299 = vrot.slane %v1297, 4
        %v1300 = vor.u32 %v1299, %v1295
        %v1301 = vrot.slane %v1300, 4
        %v1303 = vshll.u32 %v1126, 16
        %v1305 = vrot.slane %v1303, 5
        %v1306 = vsel %vm1138, %v1301, %v1305
        %v1308 = vshrl.u32 %v1070, 16
        %v1310 = vrot.slane %v1308, 4
        %v1311 = vshll.u32 %v1070, 16
        %v1313 = vrot.slane %v1311, 5
        %v1314 = vor.u32 %v1310, %v1313
        %v1315 = vrot.slane %v1314, 4
        %v1317 = vshll.u32 %v1071, 16
        %v1319 = vrot.slane %v1317, 5
        %v1320 = vsel %vm1138, %v1315, %v1319
        %v1321 = vshrl.u32 %v1071, 16
        %v1323 = vrot.slane %v1321, 4
        %v1324 = vor.u32 %v1323, %v1319
        %v1325 = vrot.slane %v1324, 4
        %v1327 = vshll.u32 %v1127, 16
        %v1329 = vrot.slane %v1327, 5
        %v1330 = vsel %vm1138, %v1325, %v1329
        %v1332 = vshrl.u32 %v1072, 16
        %v1334 = vrot.slane %v1332, 4
        %v1335 = vshll.u32 %v1072, 16
        %v1337 = vrot.slane %v1335, 5
        %v1338 = vor.u32 %v1334, %v1337
        %v1339 = vrot.slane %v1338, 4
        %v1341 = vshll.u32 %v1073, 16
        %v1343 = vrot.slane %v1341, 5
        %v1344 = vsel %vm1138, %v1339, %v1343
        %v1345 = vshrl.u32 %v1073, 16
        %v1347 = vrot.slane %v1345, 4
        %v1348 = vor.u32 %v1347, %v1343
        %v1349 = vrot.slane %v1348, 4
        %v1351 = vshll.u32 %v1128, 16
        %v1353 = vrot.slane %v1351, 5
        %v1354 = vsel %vm1138, %v1349, %v1353
        %v1356 = vshrl.u32 %v1074, 16
        %v1358 = vrot.slane %v1356, 4
        %v1359 = vshll.u32 %v1074, 16
        %v1361 = vrot.slane %v1359, 5
        %v1362 = vor.u32 %v1358, %v1361
        %v1363 = vrot.slane %v1362, 4
        %v1365 = vshll.u32 %v1075, 16
        %v1367 = vrot.slane %v1365, 5
        %v1368 = vsel %vm1138, %v1363, %v1367
        %v1369 = vshrl.u32 %v1075, 16
        %v1371 = vrot.slane %v1369, 4
        %v1372 = vor.u32 %v1371, %v1367
        %v1373 = vrot.slane %v1372, 4
        %v1375 = vshll.u32 %v1129, 16
        %v1377 = vrot.slane %v1375, 5
        %v1378 = vsel %vm1138, %v1373, %v1377
        %v1380 = vshrl.u32 %v1076, 16
        %v1382 = vrot.slane %v1380, 4
        %v1383 = vshll.u32 %v1076, 16
        %v1385 = vrot.slane %v1383, 5
        %v1386 = vor.u32 %v1382, %v1385
        %v1387 = vrot.slane %v1386, 4
        %v1389 = vshll.u32 %v1077, 16
        %v1391 = vrot.slane %v1389, 5
        %v1392 = vsel %vm1138, %v1387, %v1391
        %v1393 = vshrl.u32 %v1077, 16
        %v1395 = vrot.slane %v1393, 4
        %v1396 = vor.u32 %v1395, %v1391
        %v1397 = vrot.slane %v1396, 4
        %v1399 = vshll.u32 %v1130, 16
        %v1401 = vrot.slane %v1399, 5
        %v1402 = vsel %vm1138, %v1397, %v1401
        %v1404 = vshrl.u32 %v1078, 16
        %v1406 = vrot.slane %v1404, 4
        %v1407 = vshll.u32 %v1078, 16
        %v1409 = vrot.slane %v1407, 5
        %v1410 = vor.u32 %v1406, %v1409
        %v1411 = vrot.slane %v1410, 4
        %v1413 = vshll.u32 %v1079, 16
        %v1415 = vrot.slane %v1413, 5
        %v1416 = vsel %vm1138, %v1411, %v1415
        %v1417 = vshrl.u32 %v1079, 16
        %v1419 = vrot.slane %v1417, 4
        %v1420 = vor.u32 %v1419, %v1415
        %v1421 = vrot.slane %v1420, 4
        %v1423 = vshll.u32 %v1131, 16
        %v1425 = vrot.slane %v1423, 5
        %v1426 = vsel %vm1138, %v1421, %v1425
        %v1428 = vshrl.u32 %v1080, 16
        %v1430 = vrot.slane %v1428, 4
        %v1431 = vshll.u32 %v1080, 16
        %v1433 = vrot.slane %v1431, 5
        %v1434 = vor.u32 %v1430, %v1433
        %v1435 = vrot.slane %v1434, 4
        %v1437 = vshll.u32 %v1081, 16
        %v1439 = vrot.slane %v1437, 5
        %v1440 = vsel %vm1138, %v1435, %v1439
        %v1441 = vshrl.u32 %v1081, 16
        %v1443 = vrot.slane %v1441, 4
        %v1444 = vor.u32 %v1443, %v1439
        %v1445 = vrot.slane %v1444, 4
        %v1447 = vshll.u32 %v1132, 16
        %v1449 = vrot.slane %v1447, 5
        %v1450 = vsel %vm1138, %v1445, %v1449
        %v1452 = vshrl.u32 %v1082, 16
        %v1454 = vrot.slane %v1452, 4
        %v1455 = vshll.u32 %v1082, 16
        %v1457 = vrot.slane %v1455, 5
        %v1458 = vor.u32 %v1454, %v1457
        %v1459 = vrot.slane %v1458, 4
        %v1461 = vshll.u32 %v1083, 16
        %v1463 = vrot.slane %v1461, 5
        %v1464 = vsel %vm1138, %v1459, %v1463
        %v1465 = vshrl.u32 %v1083, 16
        %v1467 = vrot.slane %v1465, 4
        %v1468 = vor.u32 %v1467, %v1463
        %v1469 = vrot.slane %v1468, 4
        %v1471 = vshll.u32 %v1133, 16
        %v1473 = vrot.slane %v1471, 5
        %v1474 = vsel %vm1138, %v1469, %v1473
        %v1476 = vshrl.u32 %v1084, 16
        %v1478 = vrot.slane %v1476, 4
        %v1479 = vshll.u32 %v1084, 16
        %v1481 = vrot.slane %v1479, 5
        %v1482 = vor.u32 %v1478, %v1481
        %v1483 = vrot.slane %v1482, 4
        %v1485 = vshll.u32 %v1085, 16
        %v1487 = vrot.slane %v1485, 5
        %v1488 = vsel %vm1138, %v1483, %v1487
        %v1489 = vshrl.u32 %v1085, 16
        %v1491 = vrot.slane %v1489, 4
        %v1492 = vor.u32 %v1491, %v1487
        %v1493 = vrot.slane %v1492, 4
        %v1495 = vshll.u32 %v1134, 16
        %v1497 = vrot.slane %v1495, 5
        %v1498 = vsel %vm1138, %v1493, %v1497
        %v1500 = vshrl.u32 %v1086, 16
        %v1502 = vrot.slane %v1500, 4
        %v1503 = vshll.u32 %v1086, 16
        %v1505 = vrot.slane %v1503, 5
        %v1506 = vor.u32 %v1502, %v1505
        %v1507 = vrot.slane %v1506, 4
        %v1509 = vshll.u32 %v1087, 16
        %v1511 = vrot.slane %v1509, 5
        %v1512 = vsel %vm1138, %v1507, %v1511
        %v1513 = vshrl.u32 %v1087, 16
        %v1515 = vrot.slane %v1513, 4
        %v1516 = vor.u32 %v1515, %v1511
        %v1517 = vrot.slane %v1516, 4
        %v1519 = vshll.u32 %v1135, 16
        %v1521 = vrot.slane %v1519, 5
        %v1522 = vsel %vm1138, %v1517, %v1521
        %s1523 = scalar_lea.vmem [#allocation7], 128
        %v1524 = vld [vmem:[%s1523] sm:$0xf]
        %v1525 = vld [vmem:[%s1523 + $0x4] sm:$0xf]
        %v1526 = vld [vmem:[%s1523 + $0x8] sm:$0xf]
        %v1527 = vld [vmem:[%s1523 + $0xc] sm:$0xf]
        %v1528 = vld [vmem:[%s1523 + $0x10] sm:$0xf]
        %v1529 = vld [vmem:[%s1523 + $0x14] sm:$0xf]
        %v1530 = vld [vmem:[%s1523 + $0x18] sm:$0xf]
        %v1531 = vld [vmem:[%s1523 + $0x1c] sm:$0xf]
        %v1532 = vld [vmem:[%s1523 + $0x20] sm:$0xf]
        %v1533 = vld [vmem:[%s1523 + $0x24] sm:$0xf]
        %v1534 = vld [vmem:[%s1523 + $0x28] sm:$0xf]
        %v1535 = vld [vmem:[%s1523 + $0x2c] sm:$0xf]
        %v1536 = vld [vmem:[%s1523 + $0x30] sm:$0xf]
        %v1537 = vld [vmem:[%s1523 + $0x34] sm:$0xf]
        %v1538 = vld [vmem:[%s1523 + $0x38] sm:$0xf]
        %v1539 = vld [vmem:[%s1523 + $0x3c] sm:$0xf]
        %v1540 = vld [vmem:[%s1523 + $0x40] sm:$0xf]
        %v1541 = vld [vmem:[%s1523 + $0x44] sm:$0xf]
        %v1542 = vld [vmem:[%s1523 + $0x48] sm:$0xf]
        %v1543 = vld [vmem:[%s1523 + $0x4c] sm:$0xf]
        %v1544 = vld [vmem:[%s1523 + $0x50] sm:$0xf]
        %v1545 = vld [vmem:[%s1523 + $0x54] sm:$0xf]
        %v1546 = vld [vmem:[%s1523 + $0x58] sm:$0xf]
        %v1547 = vld [vmem:[%s1523 + $0x5c] sm:$0xf]
        %v1548 = vld [vmem:[%s1523 + $0x60] sm:$0xf]
        %v1549 = vld [vmem:[%s1523 + $0x64] sm:$0xf]
        %v1550 = vld [vmem:[%s1523 + $0x68] sm:$0xf]
        %v1551 = vld [vmem:[%s1523 + $0x6c] sm:$0xf]
        %v1552 = vld [vmem:[%s1523 + $0x70] sm:$0xf]
        %v1553 = vld [vmem:[%s1523 + $0x74] sm:$0xf]
        %v1554 = vld [vmem:[%s1523 + $0x78] sm:$0xf]
        %v1555 = vld [vmem:[%s1523 + $0x7c] sm:$0xf]
        %v1556 = vunpack.c.l.b16 %v1152
        %v1557 = vunpack.c.h.b16 %v1152
        %v1558 = vunpack.c.l.b16 %v1162
        %v1559 = vunpack.c.h.b16 %v1162
        %v1560 = vunpack.c.l.b16 %v1176
        %v1561 = vunpack.c.h.b16 %v1176
        %v1562 = vunpack.c.l.b16 %v1186
        %v1563 = vunpack.c.h.b16 %v1186
        %v1564 = vunpack.c.l.b16 %v1200
        %v1565 = vunpack.c.h.b16 %v1200
        %v1566 = vunpack.c.l.b16 %v1210
        %v1567 = vunpack.c.h.b16 %v1210
        %v1568 = vunpack.c.l.b16 %v1224
        %v1569 = vunpack.c.h.b16 %v1224
        %v1570 = vunpack.c.l.b16 %v1234
        %v1571 = vunpack.c.h.b16 %v1234
        %v1572 = vunpack.c.l.b16 %v1248
        %v1573 = vunpack.c.h.b16 %v1248
        %v1574 = vunpack.c.l.b16 %v1258
        %v1575 = vunpack.c.h.b16 %v1258
        %v1576 = vunpack.c.l.b16 %v1272
        %v1577 = vunpack.c.h.b16 %v1272
        %v1578 = vunpack.c.l.b16 %v1282
        %v1579 = vunpack.c.h.b16 %v1282
        %v1580 = vunpack.c.l.b16 %v1296
        %v1581 = vunpack.c.h.b16 %v1296
        %v1582 = vunpack.c.l.b16 %v1306
        %v1583 = vunpack.c.h.b16 %v1306
        %v1584 = vunpack.c.l.b16 %v1320
        %v1585 = vunpack.c.h.b16 %v1320
        %v1586 = vunpack.c.l.b16 %v1330
        %v1587 = vunpack.c.h.b16 %v1330
        %v1588 = vunpack.c.l.b16 %v1344
        %v1589 = vunpack.c.h.b16 %v1344
        %v1590 = vunpack.c.l.b16 %v1354
        %v1591 = vunpack.c.h.b16 %v1354
        %v1592 = vunpack.c.l.b16 %v1368
        %v1593 = vunpack.c.h.b16 %v1368
        %v1594 = vunpack.c.l.b16 %v1378
        %v1595 = vunpack.c.h.b16 %v1378
        %v1596 = vunpack.c.l.b16 %v1392
        %v1597 = vunpack.c.h.b16 %v1392
        %v1598 = vunpack.c.l.b16 %v1402
        %v1599 = vunpack.c.h.b16 %v1402
        %v1600 = vunpack.c.l.b16 %v1416
        %v1601 = vunpack.c.h.b16 %v1416
        %v1602 = vunpack.c.l.b16 %v1426
        %v1603 = vunpack.c.h.b16 %v1426
        %v1604 = vunpack.c.l.b16 %v1440
        %v1605 = vunpack.c.h.b16 %v1440
        %v1606 = vunpack.c.l.b16 %v1450
        %v1607 = vunpack.c.h.b16 %v1450
        %v1608 = vunpack.c.l.b16 %v1464
        %v1609 = vunpack.c.h.b16 %v1464
        %v1610 = vunpack.c.l.b16 %v1474
        %v1611 = vunpack.c.h.b16 %v1474
        %v1612 = vunpack.c.l.b16 %v1488
        %v1613 = vunpack.c.h.b16 %v1488
        %v1614 = vunpack.c.l.b16 %v1498
        %v1615 = vunpack.c.h.b16 %v1498
        %v1616 = vunpack.c.l.b16 %v1512
        %v1617 = vunpack.c.h.b16 %v1512
        %v1618 = vunpack.c.l.b16 %v1522
        %v1619 = vunpack.c.h.b16 %v1522
        %v1620 = vpack.c.b16 %v1558, %v1556
        %v1621 = vpack.c.b16 %v1559, %v1557
        %v1622 = vpack.c.b16 %v1562, %v1560
        %v1623 = vpack.c.b16 %v1563, %v1561
        %v1624 = vpack.c.b16 %v1566, %v1564
        %v1625 = vpack.c.b16 %v1567, %v1565
        %v1626 = vpack.c.b16 %v1570, %v1568
        %v1627 = vpack.c.b16 %v1571, %v1569
        %v1628 = vpack.c.b16 %v1574, %v1572
        %v1629 = vpack.c.b16 %v1575, %v1573
        %v1630 = vpack.c.b16 %v1578, %v1576
        %v1631 = vpack.c.b16 %v1579, %v1577
        %v1632 = vpack.c.b16 %v1582, %v1580
        %v1633 = vpack.c.b16 %v1583, %v1581
        %v1634 = vpack.c.b16 %v1586, %v1584
        %v1635 = vpack.c.b16 %v1587, %v1585
        %v1636 = vpack.c.b16 %v1590, %v1588
        %v1637 = vpack.c.b16 %v1591, %v1589
        %v1638 = vpack.c.b16 %v1594, %v1592
        %v1639 = vpack.c.b16 %v1595, %v1593
        %v1640 = vpack.c.b16 %v1598, %v1596
        %v1641 = vpack.c.b16 %v1599, %v1597
        %v1642 = vpack.c.b16 %v1602, %v1600
        %v1643 = vpack.c.b16 %v1603, %v1601
        %v1644 = vpack.c.b16 %v1606, %v1604
        %v1645 = vpack.c.b16 %v1607, %v1605
        %v1646 = vpack.c.b16 %v1610, %v1608
        %v1647 = vpack.c.b16 %v1611, %v1609
        %v1648 = vpack.c.b16 %v1614, %v1612
        %v1649 = vpack.c.b16 %v1615, %v1613
        %v1650 = vpack.c.b16 %v1618, %v1616
        %v1651 = vpack.c.b16 %v1619, %v1617
        %v1716 = vunpack.c.l.b16 %v1524
        %v1717 = vunpack.c.l.b16 %v1525
        %v1718 = vunpack.c.l.b16 %v1526
        %v1719 = vunpack.c.l.b16 %v1527
        %v1720 = vunpack.c.l.b16 %v1528
        %v1721 = vunpack.c.l.b16 %v1529
        %v1722 = vunpack.c.l.b16 %v1530
        %v1723 = vunpack.c.l.b16 %v1531
        %v1724 = vunpack.c.l.b16 %v1532
        %v1725 = vunpack.c.l.b16 %v1533
        %v1726 = vunpack.c.l.b16 %v1534
        %v1727 = vunpack.c.l.b16 %v1535
        %v1728 = vunpack.c.l.b16 %v1536
        %v1729 = vunpack.c.l.b16 %v1537
        %v1730 = vunpack.c.l.b16 %v1538
        %v1731 = vunpack.c.l.b16 %v1539
        %v1732 = vunpack.c.l.b16 %v1540
        %v1733 = vunpack.c.l.b16 %v1541
        %v1734 = vunpack.c.l.b16 %v1542
        %v1735 = vunpack.c.l.b16 %v1543
        %v1736 = vunpack.c.l.b16 %v1544
        %v1737 = vunpack.c.l.b16 %v1545
        %v1738 = vunpack.c.l.b16 %v1546
        %v1739 = vunpack.c.l.b16 %v1547
        %v1740 = vunpack.c.l.b16 %v1548
        %v1741 = vunpack.c.l.b16 %v1549
        %v1742 = vunpack.c.l.b16 %v1550
        %v1743 = vunpack.c.l.b16 %v1551
        %v1744 = vunpack.c.l.b16 %v1552
        %v1745 = vunpack.c.l.b16 %v1553
        %v1746 = vunpack.c.l.b16 %v1554
        %v1747 = vunpack.c.l.b16 %v1555
        %v1748 = vpack.c.b16 %v1717, %v1716
        %v1749 = vpack.c.b16 %v1719, %v1718
        %v1750 = vpack.c.b16 %v1721, %v1720
        %v1751 = vpack.c.b16 %v1723, %v1722
        %v1752 = vpack.c.b16 %v1725, %v1724
        %v1753 = vpack.c.b16 %v1727, %v1726
        %v1754 = vpack.c.b16 %v1729, %v1728
        %v1755 = vpack.c.b16 %v1731, %v1730
        %v1756 = vpack.c.b16 %v1733, %v1732
        %v1757 = vpack.c.b16 %v1735, %v1734
        %v1758 = vpack.c.b16 %v1737, %v1736
        %v1759 = vpack.c.b16 %v1739, %v1738
        %v1760 = vpack.c.b16 %v1741, %v1740
        %v1761 = vpack.c.b16 %v1743, %v1742
        %v1762 = vpack.c.b16 %v1745, %v1744
        %v1763 = vpack.c.b16 %v1747, %v1746
        %1780 = vmatprep.subr.bf16.mxu0 0
        %1781 = vmatpush1.bf16.msra.mxu0 %v1748
        %1782 = vmatprep.subr.bf16.mxu0 0
        %1783 = vmatpush1.bf16.msra.mxu0 %v1749
        %1784 = vmatprep.subr.bf16.mxu0 0
        %1785 = vmatpush1.bf16.msra.mxu0 %v1750
        %1786 = vmatprep.subr.bf16.mxu0 0
        %1787 = vmatpush1.bf16.msra.mxu0 %v1751
        %1788 = vmatprep.subr.bf16.mxu0 0
        %1789 = vmatpush1.bf16.msra.mxu0 %v1752
        %1790 = vmatprep.subr.bf16.mxu0 0
        %1791 = vmatpush1.bf16.msra.mxu0 %v1753
        %1792 = vmatprep.subr.bf16.mxu0 0
        %1793 = vmatpush1.bf16.msra.mxu0 %v1754
        %1794 = vmatprep.subr.bf16.mxu0 0
        %1795 = vmatpush1.bf16.msra.mxu0 %v1755
        %1796 = vmatprep.subr.bf16.mxu0 0
        %1797 = vmatpush1.bf16.msra.mxu0 %v1756
        %1798 = vmatprep.subr.bf16.mxu0 0
        %1799 = vmatpush1.bf16.msra.mxu0 %v1757
        %1800 = vmatprep.subr.bf16.mxu0 0
        %1801 = vmatpush1.bf16.msra.mxu0 %v1758
        %1802 = vmatprep.subr.bf16.mxu0 0
        %1803 = vmatpush1.bf16.msra.mxu0 %v1759
        %1804 = vmatprep.subr.bf16.mxu0 0
        %1805 = vmatpush1.bf16.msra.mxu0 %v1760
        %1806 = vmatprep.subr.bf16.mxu0 0
        %1807 = vmatpush1.bf16.msra.mxu0 %v1761
        %1808 = vmatprep.subr.bf16.mxu0 0
        %1809 = vmatpush1.bf16.msra.mxu0 %v1762
        %1810 = vmatprep.subr.bf16.mxu0 0
        %1811 = vmatpush1.bf16.msra.mxu0 %v1763
        %1812 = vmatprep.mubr.bf16.mxu0 %v1621
        %1813 = vmatmul.mubr.bf16.gmra.mrb[0].mxu0 %v1620
        %v1814 = vpop.f32.mrb[0].mxu0
        %v1815 = vadd.f32 0.0, %v1814
        %v1816 = vpop.f32.mrb[0].mxu0
        %v1817 = vpop.f32.mrb[0].mxu0
        %v1818 = vadd.f32 0.0, %v1817
        %v1819 = vpop.f32.mrb[0].mxu0
        %1820 = vmatprep.mubr.bf16.mxu0 %v1623
        %1821 = vmatmul.mubr.bf16.gmra.mrb[0].mxu0 %v1622
        %v1822 = vpop.f32.mrb[0].mxu0
        %v1823 = vadd.f32 0.0, %v1822
        %v1824 = vpop.f32.mrb[0].mxu0
        %v1825 = vpop.f32.mrb[0].mxu0
        %v1826 = vadd.f32 0.0, %v1825
        %v1827 = vpop.f32.mrb[0].mxu0
        %1828 = vmatprep.mubr.bf16.mxu0 %v1625
        %1829 = vmatmul.mubr.bf16.gmra.mrb[0].mxu0 %v1624
        %v1830 = vpop.f32.mrb[0].mxu0
        %v1831 = vadd.f32 0.0, %v1830
        %v1832 = vpop.f32.mrb[0].mxu0
        %v1833 = vpop.f32.mrb[0].mxu0
        %v1834 = vadd.f32 0.0, %v1833
        %v1835 = vpop.f32.mrb[0].mxu0
        %1836 = vmatprep.mubr.bf16.mxu0 %v1627
        %1837 = vmatmul.mubr.bf16.gmra.mrb[0].mxu0 %v1626
        %v1838 = vpop.f32.mrb[0].mxu0
        %v1839 = vadd.f32 0.0, %v1838
        %v1840 = vpop.f32.mrb[0].mxu0
        %v1841 = vpop.f32.mrb[0].mxu0
        %v1842 = vadd.f32 0.0, %v1841
        %v1843 = vpop.f32.mrb[0].mxu0
        %1844 = vmatprep.mubr.bf16.mxu0 %v1629
        %1845 = vmatmul.mubr.bf16.gmra.mrb[0].mxu0 %v1628
        %v1846 = vpop.f32.mrb[0].mxu0
        %v1847 = vadd.f32 0.0, %v1846
        %v1848 = vpop.f32.mrb[0].mxu0
        %v1849 = vpop.f32.mrb[0].mxu0
        %v1850 = vadd.f32 0.0, %v1849
        %v1851 = vpop.f32.mrb[0].mxu0
        %1852 = vmatprep.mubr.bf16.mxu0 %v1631
        %1853 = vmatmul.mubr.bf16.gmra.mrb[0].mxu0 %v1630
        %v1854 = vpop.f32.mrb[0].mxu0
        %v1855 = vadd.f32 0.0, %v1854
        %v1856 = vpop.f32.mrb[0].mxu0
        %v1857 = vpop.f32.mrb[0].mxu0
        %v1858 = vadd.f32 0.0, %v1857
        %v1859 = vpop.f32.mrb[0].mxu0
        %1860 = vmatprep.mubr.bf16.mxu0 %v1633
        %1861 = vmatmul.mubr.bf16.gmra.mrb[0].mxu0 %v1632
        %v1862 = vpop.f32.mrb[0].mxu0
        %v1863 = vadd.f32 0.0, %v1862
        %v1864 = vpop.f32.mrb[0].mxu0
        %v1865 = vpop.f32.mrb[0].mxu0
        %v1866 = vadd.f32 0.0, %v1865
        %v1867 = vpop.f32.mrb[0].mxu0
        %1868 = vmatprep.mubr.bf16.mxu0 %v1635
        %1869 = vmatmul.mubr.bf16.gmra.mrb[0].mxu0 %v1634
        %v1870 = vpop.f32.mrb[0].mxu0
        %v1871 = vadd.f32 0.0, %v1870
        %v1872 = vpop.f32.mrb[0].mxu0
        %v1873 = vpop.f32.mrb[0].mxu0
        %v1874 = vadd.f32 0.0, %v1873
        %v1875 = vpop.f32.mrb[0].mxu0
        %1876 = vmatprep.mubr.bf16.mxu0 %v1637
        %1877 = vmatmul.mubr.bf16.gmra.mrb[0].mxu0 %v1636
        %v1878 = vpop.f32.mrb[0].mxu0
        %v1879 = vadd.f32 0.0, %v1878
        %v1880 = vpop.f32.mrb[0].mxu0
        %v1881 = vpop.f32.mrb[0].mxu0
        %v1882 = vadd.f32 0.0, %v1881
        %v1883 = vpop.f32.mrb[0].mxu0
        %1884 = vmatprep.mubr.bf16.mxu0 %v1639
        %1885 = vmatmul.mubr.bf16.gmra.mrb[0].mxu0 %v1638
        %v1886 = vpop.f32.mrb[0].mxu0
        %v1887 = vadd.f32 0.0, %v1886
        %v1888 = vpop.f32.mrb[0].mxu0
        %v1889 = vpop.f32.mrb[0].mxu0
        %v1890 = vadd.f32 0.0, %v1889
        %v1891 = vpop.f32.mrb[0].mxu0
        %1892 = vmatprep.mubr.bf16.mxu0 %v1641
        %1893 = vmatmul.mubr.bf16.gmra.mrb[0].mxu0 %v1640
        %v1894 = vpop.f32.mrb[0].mxu0
        %v1895 = vadd.f32 0.0, %v1894
        %v1896 = vpop.f32.mrb[0].mxu0
        %v1897 = vpop.f32.mrb[0].mxu0
        %v1898 = vadd.f32 0.0, %v1897
        %v1899 = vpop.f32.mrb[0].mxu0
        %1900 = vmatprep.mubr.bf16.mxu0 %v1643
        %1901 = vmatmul.mubr.bf16.gmra.mrb[0].mxu0 %v1642
        %v1902 = vpop.f32.mrb[0].mxu0
        %v1903 = vadd.f32 0.0, %v1902
        %v1904 = vpop.f32.mrb[0].mxu0
        %v1905 = vpop.f32.mrb[0].mxu0
        %v1906 = vadd.f32 0.0, %v1905
        %v1907 = vpop.f32.mrb[0].mxu0
        %1908 = vmatprep.mubr.bf16.mxu0 %v1645
        %1909 = vmatmul.mubr.bf16.gmra.mrb[0].mxu0 %v1644
        %v1910 = vpop.f32.mrb[0].mxu0
        %v1911 = vadd.f32 0.0, %v1910
        %v1912 = vpop.f32.mrb[0].mxu0
        %v1913 = vpop.f32.mrb[0].mxu0
        %v1914 = vadd.f32 0.0, %v1913
        %v1915 = vpop.f32.mrb[0].mxu0
        %1916 = vmatprep.mubr.bf16.mxu0 %v1647
        %1917 = vmatmul.mubr.bf16.gmra.mrb[0].mxu0 %v1646
        %v1918 = vpop.f32.mrb[0].mxu0
        %v1919 = vadd.f32 0.0, %v1918
        %v1920 = vpop.f32.mrb[0].mxu0
        %v1921 = vpop.f32.mrb[0].mxu0
        %v1922 = vadd.f32 0.0, %v1921
        %v1923 = vpop.f32.mrb[0].mxu0
        %1924 = vmatprep.mubr.bf16.mxu0 %v1649
        %1925 = vmatmul.mubr.bf16.gmra.mrb[0].mxu0 %v1648
        %v1926 = vpop.f32.mrb[0].mxu0
        %v1927 = vadd.f32 0.0, %v1926
        %v1928 = vpop.f32.mrb[0].mxu0
        %v1929 = vpop.f32.mrb[0].mxu0
        %v1930 = vadd.f32 0.0, %v1929
        %v1931 = vpop.f32.mrb[0].mxu0
        %1932 = vmatprep.mubr.bf16.mxu0 %v1651
        %1933 = vmatmul.mubr.bf16.gmra.mrb[0].mxu0 %v1650
        %v1934 = vpop.f32.mrb[0].mxu0
        %v1935 = vadd.f32 0.0, %v1934
        %v1936 = vpop.f32.mrb[0].mxu0
        %v1937 = vpop.f32.mrb[0].mxu0
        %v1938 = vadd.f32 0.0, %v1937
        %v1939 = vpop.f32.mrb[0].mxu0
        %1940 = vdwg.mxu0
        %v1973 = vunpack.c.l.b16 %v1056
        %v1974 = vunpack.c.h.b16 %v1056
        %v1975 = vunpack.c.l.b16 %v1057
        %v1976 = vunpack.c.h.b16 %v1057
        %v1977 = vunpack.c.l.b16 %v1058
        %v1978 = vunpack.c.h.b16 %v1058
        %v1979 = vunpack.c.l.b16 %v1059
        %v1980 = vunpack.c.h.b16 %v1059
        %v1981 = vunpack.c.l.b16 %v1060
        %v1982 = vunpack.c.h.b16 %v1060
        %v1983 = vunpack.c.l.b16 %v1061
        %v1984 = vunpack.c.h.b16 %v1061
        %v1985 = vunpack.c.l.b16 %v1062
        %v1986 = vunpack.c.h.b16 %v1062
        %v1987 = vunpack.c.l.b16 %v1063
        %v1988 = vunpack.c.h.b16 %v1063
        %v1989 = vunpack.c.l.b16 %v1064
        %v1990 = vunpack.c.h.b16 %v1064
        %v1991 = vunpack.c.l.b16 %v1065
        %v1992 = vunpack.c.h.b16 %v1065
        %v1993 = vunpack.c.l.b16 %v1066
        %v1994 = vunpack.c.h.b16 %v1066
        %v1995 = vunpack.c.l.b16 %v1067
        %v1996 = vunpack.c.h.b16 %v1067
        %v1997 = vunpack.c.l.b16 %v1068
        %v1998 = vunpack.c.h.b16 %v1068
        %v1999 = vunpack.c.l.b16 %v1069
        %v2000 = vunpack.c.h.b16 %v1069
        %v2001 = vunpack.c.l.b16 %v1070
        %v2002 = vunpack.c.h.b16 %v1070
        %v2003 = vunpack.c.l.b16 %v1071
        %v2004 = vunpack.c.h.b16 %v1071
        %v2005 = vunpack.c.l.b16 %v1072
        %v2006 = vunpack.c.h.b16 %v1072
        %v2007 = vunpack.c.l.b16 %v1073
        %v2008 = vunpack.c.h.b16 %v1073
        %v2009 = vunpack.c.l.b16 %v1074
        %v2010 = vunpack.c.h.b16 %v1074
        %v2011 = vunpack.c.l.b16 %v1075
        %v2012 = vunpack.c.h.b16 %v1075
        %v2013 = vunpack.c.l.b16 %v1076
        %v2014 = vunpack.c.h.b16 %v1076
        %v2015 = vunpack.c.l.b16 %v1077
        %v2016 = vunpack.c.h.b16 %v1077
        %v2017 = vunpack.c.l.b16 %v1078
        %v2018 = vunpack.c.h.b16 %v1078
        %v2019 = vunpack.c.l.b16 %v1079
        %v2020 = vunpack.c.h.b16 %v1079
        %v2021 = vunpack.c.l.b16 %v1080
        %v2022 = vunpack.c.h.b16 %v1080
        %v2023 = vunpack.c.l.b16 %v1081
        %v2024 = vunpack.c.h.b16 %v1081
        %v2025 = vunpack.c.l.b16 %v1082
        %v2026 = vunpack.c.h.b16 %v1082
        %v2027 = vunpack.c.l.b16 %v1083
        %v2028 = vunpack.c.h.b16 %v1083
        %v2029 = vunpack.c.l.b16 %v1084
        %v2030 = vunpack.c.h.b16 %v1084
        %v2031 = vunpack.c.l.b16 %v1085
        %v2032 = vunpack.c.h.b16 %v1085
        %v2033 = vunpack.c.l.b16 %v1086
        %v2034 = vunpack.c.h.b16 %v1086
        %v2035 = vunpack.c.l.b16 %v1087
        %v2036 = vunpack.c.h.b16 %v1087
        %v2037 = vpack.c.b16 %v1975, %v1973
        %v2038 = vpack.c.b16 %v1976, %v1974
        %v2039 = vpack.c.b16 %v1979, %v1977
        %v2040 = vpack.c.b16 %v1980, %v1978
        %v2041 = vpack.c.b16 %v1983, %v1981
        %v2042 = vpack.c.b16 %v1984, %v1982
        %v2043 = vpack.c.b16 %v1987, %v1985
        %v2044 = vpack.c.b16 %v1988, %v1986
        %v2045 = vpack.c.b16 %v1991, %v1989
        %v2046 = vpack.c.b16 %v1992, %v1990
        %v2047 = vpack.c.b16 %v1995, %v1993
        %v2048 = vpack.c.b16 %v1996, %v1994
        %v2049 = vpack.c.b16 %v1999, %v1997
        %v2050 = vpack.c.b16 %v2000, %v1998
        %v2051 = vpack.c.b16 %v2003, %v2001
        %v2052 = vpack.c.b16 %v2004, %v2002
        %v2053 = vpack.c.b16 %v2007, %v2005
        %v2054 = vpack.c.b16 %v2008, %v2006
        %v2055 = vpack.c.b16 %v2011, %v2009
        %v2056 = vpack.c.b16 %v2012, %v2010
        %v2057 = vpack.c.b16 %v2015, %v2013
        %v2058 = vpack.c.b16 %v2016, %v2014
        %v2059 = vpack.c.b16 %v2019, %v2017
        %v2060 = vpack.c.b16 %v2020, %v2018
        %v2061 = vpack.c.b16 %v2023, %v2021
        %v2062 = vpack.c.b16 %v2024, %v2022
        %v2063 = vpack.c.b16 %v2027, %v2025
        %v2064 = vpack.c.b16 %v2028, %v2026
        %v2065 = vpack.c.b16 %v2031, %v2029
        %v2066 = vpack.c.b16 %v2032, %v2030
        %v2067 = vpack.c.b16 %v2035, %v2033
        %v2068 = vpack.c.b16 %v2036, %v2034
        %v2133 = vunpack.c.l.b16 %v1088
        %v2134 = vunpack.c.l.b16 %v1089
        %v2135 = vunpack.c.l.b16 %v1090
        %v2136 = vunpack.c.l.b16 %v1091
        %v2137 = vunpack.c.l.b16 %v1092
        %v2138 = vunpack.c.l.b16 %v1093
        %v2139 = vunpack.c.l.b16 %v1094
        %v2140 = vunpack.c.l.b16 %v1095
        %v2141 = vunpack.c.l.b16 %v1096
        %v2142 = vunpack.c.l.b16 %v1097
        %v2143 = vunpack.c.l.b16 %v1098
        %v2144 = vunpack.c.l.b16 %v1099
        %v2145 = vunpack.c.l.b16 %v1100
        %v2146 = vunpack.c.l.b16 %v1101
        %v2147 = vunpack.c.l.b16 %v1102
        %v2148 = vunpack.c.l.b16 %v1103
        %v2149 = vunpack.c.l.b16 %v1104
        %v2150 = vunpack.c.l.b16 %v1105
        %v2151 = vunpack.c.l.b16 %v1106
        %v2152 = vunpack.c.l.b16 %v1107
        %v2153 = vunpack.c.l.b16 %v1108
        %v2154 = vunpack.c.l.b16 %v1109
        %v2155 = vunpack.c.l.b16 %v1110
        %v2156 = vunpack.c.l.b16 %v1111
        %v2157 = vunpack.c.l.b16 %v1112
        %v2158 = vunpack.c.l.b16 %v1113
        %v2159 = vunpack.c.l.b16 %v1114
        %v2160 = vunpack.c.l.b16 %v1115
        %v2161 = vunpack.c.l.b16 %v1116
        %v2162 = vunpack.c.l.b16 %v1117
        %v2163 = vunpack.c.l.b16 %v1118
        %v2164 = vunpack.c.l.b16 %v1119
        %v2165 = vpack.c.b16 %v2134, %v2133
        %v2166 = vpack.c.b16 %v2136, %v2135
        %v2167 = vpack.c.b16 %v2138, %v2137
        %v2168 = vpack.c.b16 %v2140, %v2139
        %v2169 = vpack.c.b16 %v2142, %v2141
        %v2170 = vpack.c.b16 %v2144, %v2143
        %v2171 = vpack.c.b16 %v2146, %v2145
        %v2172 = vpack.c.b16 %v2148, %v2147
        %v2173 = vpack.c.b16 %v2150, %v2149
        %v2174 = vpack.c.b16 %v2152, %v2151
        %v2175 = vpack.c.b16 %v2154, %v2153
        %v2176 = vpack.c.b16 %v2156, %v2155
        %v2177 = vpack.c.b16 %v2158, %v2157
        %v2178 = vpack.c.b16 %v2160, %v2159
        %v2179 = vpack.c.b16 %v2162, %v2161
        %v2180 = vpack.c.b16 %v2164, %v2163
        %2197 = vmatprep.subr.bf16.mxu0 0
        %2198 = vmatpush1.bf16.msra.mxu0 %v2165
        %2199 = vmatprep.subr.bf16.mxu0 0
        %2200 = vmatpush1.bf16.msra.mxu0 %v2166
        %2201 = vmatprep.subr.bf16.mxu0 0
        %2202 = vmatpush1.bf16.msra.mxu0 %v2167
        %2203 = vmatprep.subr.bf16.mxu0 0
        %2204 = vmatpush1.bf16.msra.mxu0 %v2168
        %2205 = vmatprep.subr.bf16.mxu0 0
        %2206 = vmatpush1.bf16.msra.mxu0 %v2169
        %2207 = vmatprep.subr.bf16.mxu0 0
        %2208 = vmatpush1.bf16.msra.mxu0 %v2170
        %2209 = vmatprep.subr.bf16.mxu0 0
        %2210 = vmatpush1.bf16.msra.mxu0 %v2171
        %2211 = vmatprep.subr.bf16.mxu0 0
        %2212 = vmatpush1.bf16.msra.mxu0 %v2172
        %2213 = vmatprep.subr.bf16.mxu0 0
        %2214 = vmatpush1.bf16.msra.mxu0 %v2173
        %2215 = vmatprep.subr.bf16.mxu0 0
        %2216 = vmatpush1.bf16.msra.mxu0 %v2174
        %2217 = vmatprep.subr.bf16.mxu0 0
        %2218 = vmatpush1.bf16.msra.mxu0 %v2175
        %2219 = vmatprep.subr.bf16.mxu0 0
        %2220 = vmatpush1.bf16.msra.mxu0 %v2176
        %2221 = vmatprep.subr.bf16.mxu0 0
        %2222 = vmatpush1.bf16.msra.mxu0 %v2177
        %2223 = vmatprep.subr.bf16.mxu0 0
        %2224 = vmatpush1.bf16.msra.mxu0 %v2178
        %2225 = vmatprep.subr.bf16.mxu0 0
        %2226 = vmatpush1.bf16.msra.mxu0 %v2179
        %2227 = vmatprep.subr.bf16.mxu0 0
        %2228 = vmatpush1.bf16.msra.mxu0 %v2180
        %2229 = vmatprep.mubr.bf16.mxu0 %v2038
        %2230 = vmatmul.mubr.bf16.gmra.mrb[0].mxu0 %v2037
        %v2231 = vpop.f32.mrb[0].mxu0
        %v2232 = vadd.f32 %v1815, %v2231
        %v2233 = vpop.f32.mrb[0].mxu0
        %v2234 = vpop.f32.mrb[0].mxu0
        %v2235 = vadd.f32 %v1818, %v2234
        %v2236 = vpop.f32.mrb[0].mxu0
        %2237 = vmatprep.mubr.bf16.mxu0 %v2040
        %2238 = vmatmul.mubr.bf16.gmra.mrb[0].mxu0 %v2039
        %v2239 = vpop.f32.mrb[0].mxu0
        %v2240 = vadd.f32 %v1823, %v2239
        %v2241 = vpop.f32.mrb[0].mxu0
        %v2242 = vpop.f32.mrb[0].mxu0
        %v2243 = vadd.f32 %v1826, %v2242
        %v2244 = vpop.f32.mrb[0].mxu0
        %2245 = vmatprep.mubr.bf16.mxu0 %v2042
        %2246 = vmatmul.mubr.bf16.gmra.mrb[0].mxu0 %v2041
        %v2247 = vpop.f32.mrb[0].mxu0
        %v2248 = vadd.f32 %v1831, %v2247
        %v2249 = vpop.f32.mrb[0].mxu0
        %v2250 = vpop.f32.mrb[0].mxu0
        %v2251 = vadd.f32 %v1834, %v2250
        %v2252 = vpop.f32.mrb[0].mxu0
        %2253 = vmatprep.mubr.bf16.mxu0 %v2044
        %2254 = vmatmul.mubr.bf16.gmra.mrb[0].mxu0 %v2043
        %v2255 = vpop.f32.mrb[0].mxu0
        %v2256 = vadd.f32 %v1839, %v2255
        %v2257 = vpop.f32.mrb[0].mxu0
        %v2258 = vpop.f32.mrb[0].mxu0
        %v2259 = vadd.f32 %v1842, %v2258
        %v2260 = vpop.f32.mrb[0].mxu0
        %2261 = vmatprep.mubr.bf16.mxu0 %v2046
        %2262 = vmatmul.mubr.bf16.gmra.mrb[0].mxu0 %v2045
        %v2263 = vpop.f32.mrb[0].mxu0
        %v2264 = vadd.f32 %v1847, %v2263
        %v2265 = vpop.f32.mrb[0].mxu0
        %v2266 = vpop.f32.mrb[0].mxu0
        %v2267 = vadd.f32 %v1850, %v2266
        %v2268 = vpop.f32.mrb[0].mxu0
        %2269 = vmatprep.mubr.bf16.mxu0 %v2048
        %2270 = vmatmul.mubr.bf16.gmra.mrb[0].mxu0 %v2047
        %v2271 = vpop.f32.mrb[0].mxu0
        %v2272 = vadd.f32 %v1855, %v2271
        %v2273 = vpop.f32.mrb[0].mxu0
        %v2274 = vpop.f32.mrb[0].mxu0
        %v2275 = vadd.f32 %v1858, %v2274
        %v2276 = vpop.f32.mrb[0].mxu0
        %2277 = vmatprep.mubr.bf16.mxu0 %v2050
        %2278 = vmatmul.mubr.bf16.gmra.mrb[0].mxu0 %v2049
        %v2279 = vpop.f32.mrb[0].mxu0
        %v2280 = vadd.f32 %v1863, %v2279
        %v2281 = vpop.f32.mrb[0].mxu0
        %v2282 = vpop.f32.mrb[0].mxu0
        %v2283 = vadd.f32 %v1866, %v2282
        %v2284 = vpop.f32.mrb[0].mxu0
        %2285 = vmatprep.mubr.bf16.mxu0 %v2052
        %2286 = vmatmul.mubr.bf16.gmra.mrb[0].mxu0 %v2051
        %v2287 = vpop.f32.mrb[0].mxu0
        %v2288 = vadd.f32 %v1871, %v2287
        %v2289 = vpop.f32.mrb[0].mxu0
        %v2290 = vpop.f32.mrb[0].mxu0
        %v2291 = vadd.f32 %v1874, %v2290
        %v2292 = vpop.f32.mrb[0].mxu0
        %2293 = vmatprep.mubr.bf16.mxu0 %v2054
        %2294 = vmatmul.mubr.bf16.gmra.mrb[0].mxu0 %v2053
        %v2295 = vpop.f32.mrb[0].mxu0
        %v2296 = vadd.f32 %v1879, %v2295
        %v2297 = vpop.f32.mrb[0].mxu0
        %v2298 = vpop.f32.mrb[0].mxu0
        %v2299 = vadd.f32 %v1882, %v2298
        %v2300 = vpop.f32.mrb[0].mxu0
        %2301 = vmatprep.mubr.bf16.mxu0 %v2056
        %2302 = vmatmul.mubr.bf16.gmra.mrb[0].mxu0 %v2055
        %v2303 = vpop.f32.mrb[0].mxu0
        %v2304 = vadd.f32 %v1887, %v2303
        %v2305 = vpop.f32.mrb[0].mxu0
        %v2306 = vpop.f32.mrb[0].mxu0
        %v2307 = vadd.f32 %v1890, %v2306
        %v2308 = vpop.f32.mrb[0].mxu0
        %2309 = vmatprep.mubr.bf16.mxu0 %v2058
        %2310 = vmatmul.mubr.bf16.gmra.mrb[0].mxu0 %v2057
        %v2311 = vpop.f32.mrb[0].mxu0
        %v2312 = vadd.f32 %v1895, %v2311
        %v2313 = vpop.f32.mrb[0].mxu0
        %v2314 = vpop.f32.mrb[0].mxu0
        %v2315 = vadd.f32 %v1898, %v2314
        %v2316 = vpop.f32.mrb[0].mxu0
        %2317 = vmatprep.mubr.bf16.mxu0 %v2060
        %2318 = vmatmul.mubr.bf16.gmra.mrb[0].mxu0 %v2059
        %v2319 = vpop.f32.mrb[0].mxu0
        %v2320 = vadd.f32 %v1903, %v2319
        %v2321 = vpop.f32.mrb[0].mxu0
        %v2322 = vpop.f32.mrb[0].mxu0
        %v2323 = vadd.f32 %v1906, %v2322
        %v2324 = vpop.f32.mrb[0].mxu0
        %2325 = vmatprep.mubr.bf16.mxu0 %v2062
        %2326 = vmatmul.mubr.bf16.gmra.mrb[0].mxu0 %v2061
        %v2327 = vpop.f32.mrb[0].mxu0
        %v2328 = vadd.f32 %v1911, %v2327
        %v2329 = vpop.f32.mrb[0].mxu0
        %v2330 = vpop.f32.mrb[0].mxu0
        %v2331 = vadd.f32 %v1914, %v2330
        %v2332 = vpop.f32.mrb[0].mxu0
        %2333 = vmatprep.mubr.bf16.mxu0 %v2064
        %2334 = vmatmul.mubr.bf16.gmra.mrb[0].mxu0 %v2063
        %v2335 = vpop.f32.mrb[0].mxu0
        %v2336 = vadd.f32 %v1919, %v2335
        %v2337 = vpop.f32.mrb[0].mxu0
        %v2338 = vpop.f32.mrb[0].mxu0
        %v2339 = vadd.f32 %v1922, %v2338
        %v2340 = vpop.f32.mrb[0].mxu0
        %2341 = vmatprep.mubr.bf16.mxu0 %v2066
        %2342 = vmatmul.mubr.bf16.gmra.mrb[0].mxu0 %v2065
        %v2343 = vpop.f32.mrb[0].mxu0
        %v2344 = vadd.f32 %v1927, %v2343
        %v2345 = vpop.f32.mrb[0].mxu0
        %v2346 = vpop.f32.mrb[0].mxu0
        %v2347 = vadd.f32 %v1930, %v2346
        %v2348 = vpop.f32.mrb[0].mxu0
        %2349 = vmatprep.mubr.bf16.mxu0 %v2068
        %2350 = vmatmul.mubr.bf16.gmra.mrb[0].mxu0 %v2067
        %v2351 = vpop.f32.mrb[0].mxu0
        %v2352 = vadd.f32 %v1935, %v2351
        %v2353 = vpop.f32.mrb[0].mxu0
        %v2354 = vpop.f32.mrb[0].mxu0
        %v2355 = vadd.f32 %v1938, %v2354
        %v2356 = vpop.f32.mrb[0].mxu0
        %2357 = vdwg.mxu0
        %v2358 = vld [vmem:[#allocation2] sm:$0xee]
        %v2359 = vld [vmem:[#allocation2 + $0x18] sm:$0xee]
        %v2360 = vld [vmem:[#allocation2 + $0x30] sm:$0xee]
        %v2361 = vld [vmem:[#allocation2 + $0x48] sm:$0xee]
        %v2362 = vld [vmem:[#allocation2 + $0x60] sm:$0xee]
        %v2363 = vld [vmem:[#allocation2 + $0x78] sm:$0xee]
        %v2364 = vld [vmem:[#allocation2 + $0x90] sm:$0xee]
        %v2365 = vld [vmem:[#allocation2 + $0xa8] sm:$0xee]
        %v2366 = vld [vmem:[#allocation2 + $0xc0] sm:$0xee]
        %v2367 = vld [vmem:[#allocation2 + $0xd8] sm:$0xee]
        %v2368 = vld [vmem:[#allocation2 + $0xf0] sm:$0xee]
        %v2369 = vld [vmem:[#allocation2 + $0x108] sm:$0xee]
        %v2370 = vld [vmem:[#allocation2 + $0x120] sm:$0xee]
        %v2371 = vld [vmem:[#allocation2 + $0x138] sm:$0xee]
        %v2372 = vld [vmem:[#allocation2 + $0x150] sm:$0xee]
        %v2373 = vld [vmem:[#allocation2 + $0x168] sm:$0xee]
        %vm2406 = vcmask 1042432
        %vm2407 = vcmask 1046532
        %vm2408 = vmor %vm2406, %vm2407
        %v2409 = vrot.slane %v2358, 5
        %v2410 = vrot.slane %v2409, 4
        %v2411 = vrot.slane %v1057, 5
        %v2412 = vsel %vm2408, %v2410, %v2411
        %v2413 = vrot.slane %v2411, 4
        %v2414 = vrot.slane %v1120, 5
        %v2415 = vsel %vm2408, %v2413, %v2414
        %v2416 = vrot.slane %v2359, 5
        %v2417 = vrot.slane %v2416, 4
        %v2418 = vrot.slane %v1059, 5
        %v2419 = vsel %vm2408, %v2417, %v2418
        %v2420 = vrot.slane %v2418, 4
        %v2421 = vrot.slane %v1121, 5
        %v2422 = vsel %vm2408, %v2420, %v2421
        %v2423 = vrot.slane %v2360, 5
        %v2424 = vrot.slane %v2423, 4
        %v2425 = vrot.slane %v1061, 5
        %v2426 = vsel %vm2408, %v2424, %v2425
        %v2427 = vrot.slane %v2425, 4
        %v2428 = vrot.slane %v1122, 5
        %v2429 = vsel %vm2408, %v2427, %v2428
        %v2430 = vrot.slane %v2361, 5
        %v2431 = vrot.slane %v2430, 4
        %v2432 = vrot.slane %v1063, 5
        %v2433 = vsel %vm2408, %v2431, %v2432
        %v2434 = vrot.slane %v2432, 4
        %v2435 = vrot.slane %v1123, 5
        %v2436 = vsel %vm2408, %v2434, %v2435
        %v2437 = vrot.slane %v2362, 5
        %v2438 = vrot.slane %v2437, 4
        %v2439 = vrot.slane %v1065, 5
        %v2440 = vsel %vm2408, %v2438, %v2439
        %v2441 = vrot.slane %v2439, 4
        %v2442 = vrot.slane %v1124, 5
        %v2443 = vsel %vm2408, %v2441, %v2442
        %v2444 = vrot.slane %v2363, 5
        %v2445 = vrot.slane %v2444, 4
        %v2446 = vrot.slane %v1067, 5
        %v2447 = vsel %vm2408, %v2445, %v2446
        %v2448 = vrot.slane %v2446, 4
        %v2449 = vrot.slane %v1125, 5
        %v2450 = vsel %vm2408, %v2448, %v2449
        %v2451 = vrot.slane %v2364, 5
        %v2452 = vrot.slane %v2451, 4
        %v2453 = vrot.slane %v1069, 5
        %v2454 = vsel %vm2408, %v2452, %v2453
        %v2455 = vrot.slane %v2453, 4
        %v2456 = vrot.slane %v1126, 5
        %v2457 = vsel %vm2408, %v2455, %v2456
        %v2458 = vrot.slane %v2365, 5
        %v2459 = vrot.slane %v2458, 4
        %v2460 = vrot.slane %v1071, 5
        %v2461 = vsel %vm2408, %v2459, %v2460
        %v2462 = vrot.slane %v2460, 4
        %v2463 = vrot.slane %v1127, 5
        %v2464 = vsel %vm2408, %v2462, %v2463
        %v2465 = vrot.slane %v2366, 5
        %v2466 = vrot.slane %v2465, 4
        %v2467 = vrot.slane %v1073, 5
        %v2468 = vsel %vm2408, %v2466, %v2467
        %v2469 = vrot.slane %v2467, 4
        %v2470 = vrot.slane %v1128, 5
        %v2471 = vsel %vm2408, %v2469, %v2470
        %v2472 = vrot.slane %v2367, 5
        %v2473 = vrot.slane %v2472, 4
        %v2474 = vrot.slane %v1075, 5
        %v2475 = vsel %vm2408, %v2473, %v2474
        %v2476 = vrot.slane %v2474, 4
        %v2477 = vrot.slane %v1129, 5
        %v2478 = vsel %vm2408, %v2476, %v2477
        %v2479 = vrot.slane %v2368, 5
        %v2480 = vrot.slane %v2479, 4
        %v2481 = vrot.slane %v1077, 5
        %v2482 = vsel %vm2408, %v2480, %v2481
        %v2483 = vrot.slane %v2481, 4
        %v2484 = vrot.slane %v1130, 5
        %v2485 = vsel %vm2408, %v2483, %v2484
        %v2486 = vrot.slane %v2369, 5
        %v2487 = vrot.slane %v2486, 4
        %v2488 = vrot.slane %v1079, 5
        %v2489 = vsel %vm2408, %v2487, %v2488
        %v2490 = vrot.slane %v2488, 4
        %v2491 = vrot.slane %v1131, 5
        %v2492 = vsel %vm2408, %v2490, %v2491
        %v2493 = vrot.slane %v2370, 5
        %v2494 = vrot.slane %v2493, 4
        %v2495 = vrot.slane %v1081, 5
        %v2496 = vsel %vm2408, %v2494, %v2495
        %v2497 = vrot.slane %v2495, 4
        %v2498 = vrot.slane %v1132, 5
        %v2499 = vsel %vm2408, %v2497, %v2498
        %v2500 = vrot.slane %v2371, 5
        %v2501 = vrot.slane %v2500, 4
        %v2502 = vrot.slane %v1083, 5
        %v2503 = vsel %vm2408, %v2501, %v2502
        %v2504 = vrot.slane %v2502, 4
        %v2505 = vrot.slane %v1133, 5
        %v2506 = vsel %vm2408, %v2504, %v2505
        %v2507 = vrot.slane %v2372, 5
        %v2508 = vrot.slane %v2507, 4
        %v2509 = vrot.slane %v1085, 5
        %v2510 = vsel %vm2408, %v2508, %v2509
        %v2511 = vrot.slane %v2509, 4
        %v2512 = vrot.slane %v1134, 5
        %v2513 = vsel %vm2408, %v2511, %v2512
        %v2514 = vrot.slane %v2373, 5
        %v2515 = vrot.slane %v2514, 4
        %v2516 = vrot.slane %v1087, 5
        %v2517 = vsel %vm2408, %v2515, %v2516
        %v2518 = vrot.slane %v2516, 4
        %v2519 = vrot.slane %v1135, 5
        %v2520 = vsel %vm2408, %v2518, %v2519
        %s2521 = scalar_lea.vmem [#allocation7], 256
        %v2522 = vld [vmem:[%s2521] sm:$0xf]
        %v2523 = vld [vmem:[%s2521 + $0x4] sm:$0xf]
        %v2524 = vld [vmem:[%s2521 + $0x8] sm:$0xf]
        %v2525 = vld [vmem:[%s2521 + $0xc] sm:$0xf]
        %v2526 = vld [vmem:[%s2521 + $0x10] sm:$0xf]
        %v2527 = vld [vmem:[%s2521 + $0x14] sm:$0xf]
        %v2528 = vld [vmem:[%s2521 + $0x18] sm:$0xf]
        %v2529 = vld [vmem:[%s2521 + $0x1c] sm:$0xf]
        %v2530 = vld [vmem:[%s2521 + $0x20] sm:$0xf]
        %v2531 = vld [vmem:[%s2521 + $0x24] sm:$0xf]
        %v2532 = vld [vmem:[%s2521 + $0x28] sm:$0xf]
        %v2533 = vld [vmem:[%s2521 + $0x2c] sm:$0xf]
        %v2534 = vld [vmem:[%s2521 + $0x30] sm:$0xf]
        %v2535 = vld [vmem:[%s2521 + $0x34] sm:$0xf]
        %v2536 = vld [vmem:[%s2521 + $0x38] sm:$0xf]
        %v2537 = vld [vmem:[%s2521 + $0x3c] sm:$0xf]
        %v2538 = vld [vmem:[%s2521 + $0x40] sm:$0xf]
        %v2539 = vld [vmem:[%s2521 + $0x44] sm:$0xf]
        %v2540 = vld [vmem:[%s2521 + $0x48] sm:$0xf]
        %v2541 = vld [vmem:[%s2521 + $0x4c] sm:$0xf]
        %v2542 = vld [vmem:[%s2521 + $0x50] sm:$0xf]
        %v2543 = vld [vmem:[%s2521 + $0x54] sm:$0xf]
        %v2544 = vld [vmem:[%s2521 + $0x58] sm:$0xf]
        %v2545 = vld [vmem:[%s2521 + $0x5c] sm:$0xf]
        %v2546 = vld [vmem:[%s2521 + $0x60] sm:$0xf]
        %v2547 = vld [vmem:[%s2521 + $0x64] sm:$0xf]
        %v2548 = vld [vmem:[%s2521 + $0x68] sm:$0xf]
        %v2549 = vld [vmem:[%s2521 + $0x6c] sm:$0xf]
        %v2550 = vld [vmem:[%s2521 + $0x70] sm:$0xf]
        %v2551 = vld [vmem:[%s2521 + $0x74] sm:$0xf]
        %v2552 = vld [vmem:[%s2521 + $0x78] sm:$0xf]
        %v2553 = vld [vmem:[%s2521 + $0x7c] sm:$0xf]
        %v2554 = vunpack.c.l.b16 %v2412
        %v2555 = vunpack.c.h.b16 %v2412
        %v2556 = vunpack.c.l.b16 %v2415
        %v2557 = vunpack.c.h.b16 %v2415
        %v2558 = vunpack.c.l.b16 %v2419
        %v2559 = vunpack.c.h.b16 %v2419
        %v2560 = vunpack.c.l.b16 %v2422
        %v2561 = vunpack.c.h.b16 %v2422
        %v2562 = vunpack.c.l.b16 %v2426
        %v2563 = vunpack.c.h.b16 %v2426
        %v2564 = vunpack.c.l.b16 %v2429
        %v2565 = vunpack.c.h.b16 %v2429
        %v2566 = vunpack.c.l.b16 %v2433
        %v2567 = vunpack.c.h.b16 %v2433
        %v2568 = vunpack.c.l.b16 %v2436
        %v2569 = vunpack.c.h.b16 %v2436
        %v2570 = vunpack.c.l.b16 %v2440
        %v2571 = vunpack.c.h.b16 %v2440
        %v2572 = vunpack.c.l.b16 %v2443
        %v2573 = vunpack.c.h.b16 %v2443
        %v2574 = vunpack.c.l.b16 %v2447
        %v2575 = vunpack.c.h.b16 %v2447
        %v2576 = vunpack.c.l.b16 %v2450
        %v2577 = vunpack.c.h.b16 %v2450
        %v2578 = vunpack.c.l.b16 %v2454
        %v2579 = vunpack.c.h.b16 %v2454
        %v2580 = vunpack.c.l.b16 %v2457
        %v2581 = vunpack.c.h.b16 %v2457
        %v2582 = vunpack.c.l.b16 %v2461
        %v2583 = vunpack.c.h.b16 %v2461
        %v2584 = vunpack.c.l.b16 %v2464
        %v2585 = vunpack.c.h.b16 %v2464
        %v2586 = vunpack.c.l.b16 %v2468
        %v2587 = vunpack.c.h.b16 %v2468
        %v2588 = vunpack.c.l.b16 %v2471
        %v2589 = vunpack.c.h.b16 %v2471
        %v2590 = vunpack.c.l.b16 %v2475
        %v2591 = vunpack.c.h.b16 %v2475
        %v2592 = vunpack.c.l.b16 %v2478
        %v2593 = vunpack.c.h.b16 %v2478
        %v2594 = vunpack.c.l.b16 %v2482
        %v2595 = vunpack.c.h.b16 %v2482
        %v2596 = vunpack.c.l.b16 %v2485
        %v2597 = vunpack.c.h.b16 %v2485
        %v2598 = vunpack.c.l.b16 %v2489
        %v2599 = vunpack.c.h.b16 %v2489
        %v2600 = vunpack.c.l.b16 %v2492
        %v2601 = vunpack.c.h.b16 %v2492
        %v2602 = vunpack.c.l.b16 %v2496
        %v2603 = vunpack.c.h.b16 %v2496
        %v2604 = vunpack.c.l.b16 %v2499
        %v2605 = vunpack.c.h.b16 %v2499
        %v2606 = vunpack.c.l.b16 %v2503
        %v2607 = vunpack.c.h.b16 %v2503
        %v2608 = vunpack.c.l.b16 %v2506
        %v2609 = vunpack.c.h.b16 %v2506
        %v2610 = vunpack.c.l.b16 %v2510
        %v2611 = vunpack.c.h.b16 %v2510
        %v2612 = vunpack.c.l.b16 %v2513
        %v2613 = vunpack.c.h.b16 %v2513
        %v2614 = vunpack.c.l.b16 %v2517
        %v2615 = vunpack.c.h.b16 %v2517
        %v2616 = vunpack.c.l.b16 %v2520
        %v2617 = vunpack.c.h.b16 %v2520
        %v2618 = vpack.c.b16 %v2556, %v2554
        %v2619 = vpack.c.b16 %v2557, %v2555
        %v2620 = vpack.c.b16 %v2560, %v2558
        %v2621 = vpack.c.b16 %v2561, %v2559
        %v2622 = vpack.c.b16 %v2564, %v2562
        %v2623 = vpack.c.b16 %v2565, %v2563
        %v2624 = vpack.c.b16 %v2568, %v2566
        %v2625 = vpack.c.b16 %v2569, %v2567
        %v2626 = vpack.c.b16 %v2572, %v2570
        %v2627 = vpack.c.b16 %v2573, %v2571
        %v2628 = vpack.c.b16 %v2576, %v2574
        %v2629 = vpack.c.b16 %v2577, %v2575
        %v2630 = vpack.c.b16 %v2580, %v2578
        %v2631 = vpack.c.b16 %v2581, %v2579
        %v2632 = vpack.c.b16 %v2584, %v2582
        %v2633 = vpack.c.b16 %v2585, %v2583
        %v2634 = vpack.c.b16 %v2588, %v2586
        %v2635 = vpack.c.b16 %v2589, %v2587
        %v2636 = vpack.c.b16 %v2592, %v2590
        %v2637 = vpack.c.b16 %v2593, %v2591
        %v2638 = vpack.c.b16 %v2596, %v2594
        %v2639 = vpack.c.b16 %v2597, %v2595
        %v2640 = vpack.c.b16 %v2600, %v2598
        %v2641 = vpack.c.b16 %v2601, %v2599
        %v2642 = vpack.c.b16 %v2604, %v2602
        %v2643 = vpack.c.b16 %v2605, %v2603
        %v2644 = vpack.c.b16 %v2608, %v2606
        %v2645 = vpack.c.b16 %v2609, %v2607
        %v2646 = vpack.c.b16 %v2612, %v2610
        %v2647 = vpack.c.b16 %v2613, %v2611
        %v2648 = vpack.c.b16 %v2616, %v2614
        %v2649 = vpack.c.b16 %v2617, %v2615
        %v2714 = vunpack.c.l.b16 %v2522
        %v2715 = vunpack.c.l.b16 %v2523
        %v2716 = vunpack.c.l.b16 %v2524
        %v2717 = vunpack.c.l.b16 %v2525
        %v2718 = vunpack.c.l.b16 %v2526
        %v2719 = vunpack.c.l.b16 %v2527
        %v2720 = vunpack.c.l.b16 %v2528
        %v2721 = vunpack.c.l.b16 %v2529
        %v2722 = vunpack.c.l.b16 %v2530
        %v2723 = vunpack.c.l.b16 %v2531
        %v2724 = vunpack.c.l.b16 %v2532
        %v2725 = vunpack.c.l.b16 %v2533
        %v2726 = vunpack.c.l.b16 %v2534
        %v2727 = vunpack.c.l.b16 %v2535
        %v2728 = vunpack.c.l.b16 %v2536
        %v2729 = vunpack.c.l.b16 %v2537
        %v2730 = vunpack.c.l.b16 %v2538
        %v2731 = vunpack.c.l.b16 %v2539
        %v2732 = vunpack.c.l.b16 %v2540
        %v2733 = vunpack.c.l.b16 %v2541
        %v2734 = vunpack.c.l.b16 %v2542
        %v2735 = vunpack.c.l.b16 %v2543
        %v2736 = vunpack.c.l.b16 %v2544
        %v2737 = vunpack.c.l.b16 %v2545
        %v2738 = vunpack.c.l.b16 %v2546
        %v2739 = vunpack.c.l.b16 %v2547
        %v2740 = vunpack.c.l.b16 %v2548
        %v2741 = vunpack.c.l.b16 %v2549
        %v2742 = vunpack.c.l.b16 %v2550
        %v2743 = vunpack.c.l.b16 %v2551
        %v2744 = vunpack.c.l.b16 %v2552
        %v2745 = vunpack.c.l.b16 %v2553
        %v2746 = vpack.c.b16 %v2715, %v2714
        %v2747 = vpack.c.b16 %v2717, %v2716
        %v2748 = vpack.c.b16 %v2719, %v2718
        %v2749 = vpack.c.b16 %v2721, %v2720
        %v2750 = vpack.c.b16 %v2723, %v2722
        %v2751 = vpack.c.b16 %v2725, %v2724
        %v2752 = vpack.c.b16 %v2727, %v2726
        %v2753 = vpack.c.b16 %v2729, %v2728
        %v2754 = vpack.c.b16 %v2731, %v2730
        %v2755 = vpack.c.b16 %v2733, %v2732
        %v2756 = vpack.c.b16 %v2735, %v2734
        %v2757 = vpack.c.b16 %v2737, %v2736
        %v2758 = vpack.c.b16 %v2739, %v2738
        %v2759 = vpack.c.b16 %v2741, %v2740
        %v2760 = vpack.c.b16 %v2743, %v2742
        %v2761 = vpack.c.b16 %v2745, %v2744
        %2778 = vmatprep.subr.bf16.mxu0 0
        %2779 = vmatpush1.bf16.msra.mxu0 %v2746
        %2780 = vmatprep.subr.bf16.mxu0 0
        %2781 = vmatpush1.bf16.msra.mxu0 %v2747
        %2782 = vmatprep.subr.bf16.mxu0 0
        %2783 = vmatpush1.bf16.msra.mxu0 %v2748
        %2784 = vmatprep.subr.bf16.mxu0 0
        %2785 = vmatpush1.bf16.msra.mxu0 %v2749
        %2786 = vmatprep.subr.bf16.mxu0 0
        %2787 = vmatpush1.bf16.msra.mxu0 %v2750
        %2788 = vmatprep.subr.bf16.mxu0 0
        %2789 = vmatpush1.bf16.msra.mxu0 %v2751
        %2790 = vmatprep.subr.bf16.mxu0 0
        %2791 = vmatpush1.bf16.msra.mxu0 %v2752
        %2792 = vmatprep.subr.bf16.mxu0 0
        %2793 = vmatpush1.bf16.msra.mxu0 %v2753
        %2794 = vmatprep.subr.bf16.mxu0 0
        %2795 = vmatpush1.bf16.msra.mxu0 %v2754
        %2796 = vmatprep.subr.bf16.mxu0 0
        %2797 = vmatpush1.bf16.msra.mxu0 %v2755
        %2798 = vmatprep.subr.bf16.mxu0 0
        %2799 = vmatpush1.bf16.msra.mxu0 %v2756
        %2800 = vmatprep.subr.bf16.mxu0 0
        %2801 = vmatpush1.bf16.msra.mxu0 %v2757
        %2802 = vmatprep.subr.bf16.mxu0 0
        %2803 = vmatpush1.bf16.msra.mxu0 %v2758
        %2804 = vmatprep.subr.bf16.mxu0 0
        %2805 = vmatpush1.bf16.msra.mxu0 %v2759
        %2806 = vmatprep.subr.bf16.mxu0 0
        %2807 = vmatpush1.bf16.msra.mxu0 %v2760
        %2808 = vmatprep.subr.bf16.mxu0 0
        %2809 = vmatpush1.bf16.msra.mxu0 %v2761
        %2810 = vmatprep.mubr.bf16.mxu0 %v2619
        %2811 = vmatmul.mubr.bf16.gmra.mrb[0].mxu0 %v2618
        %v2812 = vpop.f32.mrb[0].mxu0
        %v2813 = vadd.f32 0.0, %v2812
        %v2814 = vpop.f32.mrb[0].mxu0
        %v2815 = vpop.f32.mrb[0].mxu0
        %v2816 = vadd.f32 0.0, %v2815
        %v2817 = vpop.f32.mrb[0].mxu0
        %2818 = vmatprep.mubr.bf16.mxu0 %v2621
        %2819 = vmatmul.mubr.bf16.gmra.mrb[0].mxu0 %v2620
        %v2820 = vpop.f32.mrb[0].mxu0
        %v2821 = vadd.f32 0.0, %v2820
        %v2822 = vpop.f32.mrb[0].mxu0
        %v2823 = vpop.f32.mrb[0].mxu0
        %v2824 = vadd.f32 0.0, %v2823
        %v2825 = vpop.f32.mrb[0].mxu0
        %2826 = vmatprep.mubr.bf16.mxu0 %v2623
        %2827 = vmatmul.mubr.bf16.gmra.mrb[0].mxu0 %v2622
        %v2828 = vpop.f32.mrb[0].mxu0
        %v2829 = vadd.f32 0.0, %v2828
        %v2830 = vpop.f32.mrb[0].mxu0
        %v2831 = vpop.f32.mrb[0].mxu0
        %v2832 = vadd.f32 0.0, %v2831
        %v2833 = vpop.f32.mrb[0].mxu0
        %2834 = vmatprep.mubr.bf16.mxu0 %v2625
        %2835 = vmatmul.mubr.bf16.gmra.mrb[0].mxu0 %v2624
        %v2836 = vpop.f32.mrb[0].mxu0
        %v2837 = vadd.f32 0.0, %v2836
        %v2838 = vpop.f32.mrb[0].mxu0
        %v2839 = vpop.f32.mrb[0].mxu0
        %v2840 = vadd.f32 0.0, %v2839
        %v2841 = vpop.f32.mrb[0].mxu0
        %2842 = vmatprep.mubr.bf16.mxu0 %v2627
        %2843 = vmatmul.mubr.bf16.gmra.mrb[0].mxu0 %v2626
        %v2844 = vpop.f32.mrb[0].mxu0
        %v2845 = vadd.f32 0.0, %v2844
        %v2846 = vpop.f32.mrb[0].mxu0
        %v2847 = vpop.f32.mrb[0].mxu0
        %v2848 = vadd.f32 0.0, %v2847
        %v2849 = vpop.f32.mrb[0].mxu0
        %2850 = vmatprep.mubr.bf16.mxu0 %v2629
        %2851 = vmatmul.mubr.bf16.gmra.mrb[0].mxu0 %v2628
        %v2852 = vpop.f32.mrb[0].mxu0
        %v2853 = vadd.f32 0.0, %v2852
        %v2854 = vpop.f32.mrb[0].mxu0
        %v2855 = vpop.f32.mrb[0].mxu0
        %v2856 = vadd.f32 0.0, %v2855
        %v2857 = vpop.f32.mrb[0].mxu0
        %2858 = vmatprep.mubr.bf16.mxu0 %v2631
        %2859 = vmatmul.mubr.bf16.gmra.mrb[0].mxu0 %v2630
        %v2860 = vpop.f32.mrb[0].mxu0
        %v2861 = vadd.f32 0.0, %v2860
        %v2862 = vpop.f32.mrb[0].mxu0
        %v2863 = vpop.f32.mrb[0].mxu0
        %v2864 = vadd.f32 0.0, %v2863
        %v2865 = vpop.f32.mrb[0].mxu0
        %2866 = vmatprep.mubr.bf16.mxu0 %v2633
        %2867 = vmatmul.mubr.bf16.gmra.mrb[0].mxu0 %v2632
        %v2868 = vpop.f32.mrb[0].mxu0
        %v2869 = vadd.f32 0.0, %v2868
        %v2870 = vpop.f32.mrb[0].mxu0
        %v2871 = vpop.f32.mrb[0].mxu0
        %v2872 = vadd.f32 0.0, %v2871
        %v2873 = vpop.f32.mrb[0].mxu0
        %2874 = vmatprep.mubr.bf16.mxu0 %v2635
        %2875 = vmatmul.mubr.bf16.gmra.mrb[0].mxu0 %v2634
        %v2876 = vpop.f32.mrb[0].mxu0
        %v2877 = vadd.f32 0.0, %v2876
        %v2878 = vpop.f32.mrb[0].mxu0
        %v2879 = vpop.f32.mrb[0].mxu0
        %v2880 = vadd.f32 0.0, %v2879
        %v2881 = vpop.f32.mrb[0].mxu0
        %2882 = vmatprep.mubr.bf16.mxu0 %v2637
        %2883 = vmatmul.mubr.bf16.gmra.mrb[0].mxu0 %v2636
        %v2884 = vpop.f32.mrb[0].mxu0
        %v2885 = vadd.f32 0.0, %v2884
        %v2886 = vpop.f32.mrb[0].mxu0
        %v2887 = vpop.f32.mrb[0].mxu0
        %v2888 = vadd.f32 0.0, %v2887
        %v2889 = vpop.f32.mrb[0].mxu0
        %2890 = vmatprep.mubr.bf16.mxu0 %v2639
        %2891 = vmatmul.mubr.bf16.gmra.mrb[0].mxu0 %v2638
        %v2892 = vpop.f32.mrb[0].mxu0
        %v2893 = vadd.f32 0.0, %v2892
        %v2894 = vpop.f32.mrb[0].mxu0
        %v2895 = vpop.f32.mrb[0].mxu0
        %v2896 = vadd.f32 0.0, %v2895
        %v2897 = vpop.f32.mrb[0].mxu0
        %2898 = vmatprep.mubr.bf16.mxu0 %v2641
        %2899 = vmatmul.mubr.bf16.gmra.mrb[0].mxu0 %v2640
        %v2900 = vpop.f32.mrb[0].mxu0
        %v2901 = vadd.f32 0.0, %v2900
        %v2902 = vpop.f32.mrb[0].mxu0
        %v2903 = vpop.f32.mrb[0].mxu0
        %v2904 = vadd.f32 0.0, %v2903
        %v2905 = vpop.f32.mrb[0].mxu0
        %2906 = vmatprep.mubr.bf16.mxu0 %v2643
        %2907 = vmatmul.mubr.bf16.gmra.mrb[0].mxu0 %v2642
        %v2908 = vpop.f32.mrb[0].mxu0
        %v2909 = vadd.f32 0.0, %v2908
        %v2910 = vpop.f32.mrb[0].mxu0
        %v2911 = vpop.f32.mrb[0].mxu0
        %v2912 = vadd.f32 0.0, %v2911
        %v2913 = vpop.f32.mrb[0].mxu0
        %2914 = vmatprep.mubr.bf16.mxu0 %v2645
        %2915 = vmatmul.mubr.bf16.gmra.mrb[0].mxu0 %v2644
        %v2916 = vpop.f32.mrb[0].mxu0
        %v2917 = vadd.f32 0.0, %v2916
        %v2918 = vpop.f32.mrb[0].mxu0
        %v2919 = vpop.f32.mrb[0].mxu0
        %v2920 = vadd.f32 0.0, %v2919
        %v2921 = vpop.f32.mrb[0].mxu0
        %2922 = vmatprep.mubr.bf16.mxu0 %v2647
        %2923 = vmatmul.mubr.bf16.gmra.mrb[0].mxu0 %v2646
        %v2924 = vpop.f32.mrb[0].mxu0
        %v2925 = vadd.f32 0.0, %v2924
        %v2926 = vpop.f32.mrb[0].mxu0
        %v2927 = vpop.f32.mrb[0].mxu0
        %v2928 = vadd.f32 0.0, %v2927
        %v2929 = vpop.f32.mrb[0].mxu0
        %2930 = vmatprep.mubr.bf16.mxu0 %v2649
        %2931 = vmatmul.mubr.bf16.gmra.mrb[0].mxu0 %v2648
        %v2932 = vpop.f32.mrb[0].mxu0
        %v2933 = vadd.f32 0.0, %v2932
        %v2934 = vpop.f32.mrb[0].mxu0
        %v2935 = vpop.f32.mrb[0].mxu0
        %v2936 = vadd.f32 0.0, %v2935
        %v2937 = vpop.f32.mrb[0].mxu0
        %2938 = vdwg.mxu0
        %v2939 = vadd.f32 %v2232, %v2813
        %v2940 = vadd.f32 %v2235, %v2816
        %v2941 = vadd.f32 %v2240, %v2821
        %v2942 = vadd.f32 %v2243, %v2824
        %v2943 = vadd.f32 %v2248, %v2829
        %v2944 = vadd.f32 %v2251, %v2832
        %v2945 = vadd.f32 %v2256, %v2837
        %v2946 = vadd.f32 %v2259, %v2840
        %v2947 = vadd.f32 %v2264, %v2845
        %v2948 = vadd.f32 %v2267, %v2848
        %v2949 = vadd.f32 %v2272, %v2853
        %v2950 = vadd.f32 %v2275, %v2856
        %v2951 = vadd.f32 %v2280, %v2861
        %v2952 = vadd.f32 %v2283, %v2864
        %v2953 = vadd.f32 %v2288, %v2869
        %v2954 = vadd.f32 %v2291, %v2872
        %v2955 = vadd.f32 %v2296, %v2877
        %v2956 = vadd.f32 %v2299, %v2880
        %v2957 = vadd.f32 %v2304, %v2885
        %v2958 = vadd.f32 %v2307, %v2888
        %v2959 = vadd.f32 %v2312, %v2893
        %v2960 = vadd.f32 %v2315, %v2896
        %v2961 = vadd.f32 %v2320, %v2901
        %v2962 = vadd.f32 %v2323, %v2904
        %v2963 = vadd.f32 %v2328, %v2909
        %v2964 = vadd.f32 %v2331, %v2912
        %v2965 = vadd.f32 %v2336, %v2917
        %v2966 = vadd.f32 %v2339, %v2920
        %v2967 = vadd.f32 %v2344, %v2925
        %v2968 = vadd.f32 %v2347, %v2928
        %v2969 = vadd.f32 %v2352, %v2933
        %v2970 = vadd.f32 %v2355, %v2936
        %v2971 = vld [vmem:[%s938] sm:$0xff]
        %v2972 = vld [vmem:[%s938 + $0x8] sm:$0xff]
        %v2973 = vld [vmem:[%s938 + $0x18] sm:$0xff]
        %v2974 = vld [vmem:[%s938 + $0x20] sm:$0xff]
        %v2975 = vld [vmem:[%s938 + $0x30] sm:$0xff]
        %v2976 = vld [vmem:[%s938 + $0x38] sm:$0xff]
        %v2977 = vld [vmem:[%s938 + $0x48] sm:$0xff]
        %v2978 = vld [vmem:[%s938 + $0x50] sm:$0xff]
        %v2979 = vld [vmem:[%s938 + $0x60] sm:$0xff]
        %v2980 = vld [vmem:[%s938 + $0x68] sm:$0xff]
        %v2981 = vld [vmem:[%s938 + $0x78] sm:$0xff]
        %v2982 = vld [vmem:[%s938 + $0x80] sm:$0xff]
        %v2983 = vld [vmem:[%s938 + $0x90] sm:$0xff]
        %v2984 = vld [vmem:[%s938 + $0x98] sm:$0xff]
        %v2985 = vld [vmem:[%s938 + $0xa8] sm:$0xff]
        %v2986 = vld [vmem:[%s938 + $0xb0] sm:$0xff]
        %v2987 = vld [vmem:[%s938 + $0xc0] sm:$0xff]
        %v2988 = vld [vmem:[%s938 + $0xc8] sm:$0xff]
        %v2989 = vld [vmem:[%s938 + $0xd8] sm:$0xff]
        %v2990 = vld [vmem:[%s938 + $0xe0] sm:$0xff]
        %v2991 = vld [vmem:[%s938 + $0xf0] sm:$0xff]
        %v2992 = vld [vmem:[%s938 + $0xf8] sm:$0xff]
        %v2993 = vld [vmem:[%s938 + $0x108] sm:$0xff]
        %v2994 = vld [vmem:[%s938 + $0x110] sm:$0xff]
        %v2995 = vld [vmem:[%s938 + $0x120] sm:$0xff]
        %v2996 = vld [vmem:[%s938 + $0x128] sm:$0xff]
        %v2997 = vld [vmem:[%s938 + $0x138] sm:$0xff]
        %v2998 = vld [vmem:[%s938 + $0x140] sm:$0xff]
        %v2999 = vld [vmem:[%s938 + $0x150] sm:$0xff]
        %v3000 = vld [vmem:[%s938 + $0x158] sm:$0xff]
        %v3001 = vld [vmem:[%s938 + $0x168] sm:$0xff]
        %v3002 = vld [vmem:[%s938 + $0x170] sm:$0xff]
        %s3003 = scalar_lea.vmem [#allocation7], 384
        %v3004 = vld [vmem:[%s3003] sm:$0xf]
        %v3005 = vld [vmem:[%s3003 + $0x4] sm:$0xf]
        %v3006 = vld [vmem:[%s3003 + $0x8] sm:$0xf]
        %v3007 = vld [vmem:[%s3003 + $0xc] sm:$0xf]
        %v3008 = vld [vmem:[%s3003 + $0x10] sm:$0xf]
        %v3009 = vld [vmem:[%s3003 + $0x14] sm:$0xf]
        %v3010 = vld [vmem:[%s3003 + $0x18] sm:$0xf]
        %v3011 = vld [vmem:[%s3003 + $0x1c] sm:$0xf]
        %v3012 = vld [vmem:[%s3003 + $0x20] sm:$0xf]
        %v3013 = vld [vmem:[%s3003 + $0x24] sm:$0xf]
        %v3014 = vld [vmem:[%s3003 + $0x28] sm:$0xf]
        %v3015 = vld [vmem:[%s3003 + $0x2c] sm:$0xf]
        %v3016 = vld [vmem:[%s3003 + $0x30] sm:$0xf]
        %v3017 = vld [vmem:[%s3003 + $0x34] sm:$0xf]
        %v3018 = vld [vmem:[%s3003 + $0x38] sm:$0xf]
        %v3019 = vld [vmem:[%s3003 + $0x3c] sm:$0xf]
        %v3020 = vld [vmem:[%s3003 + $0x40] sm:$0xf]
        %v3021 = vld [vmem:[%s3003 + $0x44] sm:$0xf]
        %v3022 = vld [vmem:[%s3003 + $0x48] sm:$0xf]
        %v3023 = vld [vmem:[%s3003 + $0x4c] sm:$0xf]
        %v3024 = vld [vmem:[%s3003 + $0x50] sm:$0xf]
        %v3025 = vld [vmem:[%s3003 + $0x54] sm:$0xf]
        %v3026 = vld [vmem:[%s3003 + $0x58] sm:$0xf]
        %v3027 = vld [vmem:[%s3003 + $0x5c] sm:$0xf]
        %v3028 = vld [vmem:[%s3003 + $0x60] sm:$0xf]
        %v3029 = vld [vmem:[%s3003 + $0x64] sm:$0xf]
        %v3030 = vld [vmem:[%s3003 + $0x68] sm:$0xf]
        %v3031 = vld [vmem:[%s3003 + $0x6c] sm:$0xf]
        %v3032 = vld [vmem:[%s3003 + $0x70] sm:$0xf]
        %v3033 = vld [vmem:[%s3003 + $0x74] sm:$0xf]
        %v3034 = vld [vmem:[%s3003 + $0x78] sm:$0xf]
        %v3035 = vld [vmem:[%s3003 + $0x7c] sm:$0xf]
        %v3068 = vunpack.c.l.b16 %v2971
        %v3069 = vunpack.c.h.b16 %v2971
        %v3070 = vunpack.c.l.b16 %v2972
        %v3071 = vunpack.c.h.b16 %v2972
        %v3072 = vunpack.c.l.b16 %v2973
        %v3073 = vunpack.c.h.b16 %v2973
        %v3074 = vunpack.c.l.b16 %v2974
        %v3075 = vunpack.c.h.b16 %v2974
        %v3076 = vunpack.c.l.b16 %v2975
        %v3077 = vunpack.c.h.b16 %v2975
        %v3078 = vunpack.c.l.b16 %v2976
        %v3079 = vunpack.c.h.b16 %v2976
        %v3080 = vunpack.c.l.b16 %v2977
        %v3081 = vunpack.c.h.b16 %v2977
        %v3082 = vunpack.c.l.b16 %v2978
        %v3083 = vunpack.c.h.b16 %v2978
        %v3084 = vunpack.c.l.b16 %v2979
        %v3085 = vunpack.c.h.b16 %v2979
        %v3086 = vunpack.c.l.b16 %v2980
        %v3087 = vunpack.c.h.b16 %v2980
        %v3088 = vunpack.c.l.b16 %v2981
        %v3089 = vunpack.c.h.b16 %v2981
        %v3090 = vunpack.c.l.b16 %v2982
        %v3091 = vunpack.c.h.b16 %v2982
        %v3092 = vunpack.c.l.b16 %v2983
        %v3093 = vunpack.c.h.b16 %v2983
        %v3094 = vunpack.c.l.b16 %v2984
        %v3095 = vunpack.c.h.b16 %v2984
        %v3096 = vunpack.c.l.b16 %v2985
        %v3097 = vunpack.c.h.b16 %v2985
        %v3098 = vunpack.c.l.b16 %v2986
        %v3099 = vunpack.c.h.b16 %v2986
        %v3100 = vunpack.c.l.b16 %v2987
        %v3101 = vunpack.c.h.b16 %v2987
        %v3102 = vunpack.c.l.b16 %v2988
        %v3103 = vunpack.c.h.b16 %v2988
        %v3104 = vunpack.c.l.b16 %v2989
        %v3105 = vunpack.c.h.b16 %v2989
        %v3106 = vunpack.c.l.b16 %v2990
        %v3107 = vunpack.c.h.b16 %v2990
        %v3108 = vunpack.c.l.b16 %v2991
        %v3109 = vunpack.c.h.b16 %v2991
        %v3110 = vunpack.c.l.b16 %v2992
        %v3111 = vunpack.c.h.b16 %v2992
        %v3112 = vunpack.c.l.b16 %v2993
        %v3113 = vunpack.c.h.b16 %v2993
        %v3114 = vunpack.c.l.b16 %v2994
        %v3115 = vunpack.c.h.b16 %v2994
        %v3116 = vunpack.c.l.b16 %v2995
        %v3117 = vunpack.c.h.b16 %v2995
        %v3118 = vunpack.c.l.b16 %v2996
        %v3119 = vunpack.c.h.b16 %v2996
        %v3120 = vunpack.c.l.b16 %v2997
        %v3121 = vunpack.c.h.b16 %v2997
        %v3122 = vunpack.c.l.b16 %v2998
        %v3123 = vunpack.c.h.b16 %v2998
        %v3124 = vunpack.c.l.b16 %v2999
        %v3125 = vunpack.c.h.b16 %v2999
        %v3126 = vunpack.c.l.b16 %v3000
        %v3127 = vunpack.c.h.b16 %v3000
        %v3128 = vunpack.c.l.b16 %v3001
        %v3129 = vunpack.c.h.b16 %v3001
        %v3130 = vunpack.c.l.b16 %v3002
        %v3131 = vunpack.c.h.b16 %v3002
        %v3132 = vpack.c.b16 %v3070, %v3068
        %v3133 = vpack.c.b16 %v3071, %v3069
        %v3134 = vpack.c.b16 %v3074, %v3072
        %v3135 = vpack.c.b16 %v3075, %v3073
        %v3136 = vpack.c.b16 %v3078, %v3076
        %v3137 = vpack.c.b16 %v3079, %v3077
        %v3138 = vpack.c.b16 %v3082, %v3080
        %v3139 = vpack.c.b16 %v3083, %v3081
        %v3140 = vpack.c.b16 %v3086, %v3084
        %v3141 = vpack.c.b16 %v3087, %v3085
        %v3142 = vpack.c.b16 %v3090, %v3088
        %v3143 = vpack.c.b16 %v3091, %v3089
        %v3144 = vpack.c.b16 %v3094, %v3092
        %v3145 = vpack.c.b16 %v3095, %v3093
        %v3146 = vpack.c.b16 %v3098, %v3096
        %v3147 = vpack.c.b16 %v3099, %v3097
        %v3148 = vpack.c.b16 %v3102, %v3100
        %v3149 = vpack.c.b16 %v3103, %v3101
        %v3150 = vpack.c.b16 %v3106, %v3104
        %v3151 = vpack.c.b16 %v3107, %v3105
        %v3152 = vpack.c.b16 %v3110, %v3108
        %v3153 = vpack.c.b16 %v3111, %v3109
        %v3154 = vpack.c.b16 %v3114, %v3112
        %v3155 = vpack.c.b16 %v3115, %v3113
        %v3156 = vpack.c.b16 %v3118, %v3116
        %v3157 = vpack.c.b16 %v3119, %v3117
        %v3158 = vpack.c.b16 %v3122, %v3120
        %v3159 = vpack.c.b16 %v3123, %v3121
        %v3160 = vpack.c.b16 %v3126, %v3124
        %v3161 = vpack.c.b16 %v3127, %v3125
        %v3162 = vpack.c.b16 %v3130, %v3128
        %v3163 = vpack.c.b16 %v3131, %v3129
        %v3228 = vunpack.c.l.b16 %v3004
        %v3229 = vunpack.c.l.b16 %v3005
        %v3230 = vunpack.c.l.b16 %v3006
        %v3231 = vunpack.c.l.b16 %v3007
        %v3232 = vunpack.c.l.b16 %v3008
        %v3233 = vunpack.c.l.b16 %v3009
        %v3234 = vunpack.c.l.b16 %v3010
        %v3235 = vunpack.c.l.b16 %v3011
        %v3236 = vunpack.c.l.b16 %v3012
        %v3237 = vunpack.c.l.b16 %v3013
        %v3238 = vunpack.c.l.b16 %v3014
        %v3239 = vunpack.c.l.b16 %v3015
        %v3240 = vunpack.c.l.b16 %v3016
        %v3241 = vunpack.c.l.b16 %v3017
        %v3242 = vunpack.c.l.b16 %v3018
        %v3243 = vunpack.c.l.b16 %v3019
        %v3244 = vunpack.c.l.b16 %v3020
        %v3245 = vunpack.c.l.b16 %v3021
        %v3246 = vunpack.c.l.b16 %v3022
        %v3247 = vunpack.c.l.b16 %v3023
        %v3248 = vunpack.c.l.b16 %v3024
        %v3249 = vunpack.c.l.b16 %v3025
        %v3250 = vunpack.c.l.b16 %v3026
        %v3251 = vunpack.c.l.b16 %v3027
        %v3252 = vunpack.c.l.b16 %v3028
        %v3253 = vunpack.c.l.b16 %v3029
        %v3254 = vunpack.c.l.b16 %v3030
        %v3255 = vunpack.c.l.b16 %v3031
        %v3256 = vunpack.c.l.b16 %v3032
        %v3257 = vunpack.c.l.b16 %v3033
        %v3258 = vunpack.c.l.b16 %v3034
        %v3259 = vunpack.c.l.b16 %v3035
        %v3260 = vpack.c.b16 %v3229, %v3228
        %v3261 = vpack.c.b16 %v3231, %v3230
        %v3262 = vpack.c.b16 %v3233, %v3232
        %v3263 = vpack.c.b16 %v3235, %v3234
        %v3264 = vpack.c.b16 %v3237, %v3236
        %v3265 = vpack.c.b16 %v3239, %v3238
        %v3266 = vpack.c.b16 %v3241, %v3240
        %v3267 = vpack.c.b16 %v3243, %v3242
        %v3268 = vpack.c.b16 %v3245, %v3244
        %v3269 = vpack.c.b16 %v3247, %v3246
        %v3270 = vpack.c.b16 %v3249, %v3248
        %v3271 = vpack.c.b16 %v3251, %v3250
        %v3272 = vpack.c.b16 %v3253, %v3252
        %v3273 = vpack.c.b16 %v3255, %v3254
        %v3274 = vpack.c.b16 %v3257, %v3256
        %v3275 = vpack.c.b16 %v3259, %v3258
        %3292 = vmatprep.subr.bf16.mxu0 0
        %3293 = vmatpush1.bf16.msra.mxu0 %v3260
        %3294 = vmatprep.subr.bf16.mxu0 0
        %3295 = vmatpush1.bf16.msra.mxu0 %v3261
        %3296 = vmatprep.subr.bf16.mxu0 0
        %3297 = vmatpush1.bf16.msra.mxu0 %v3262
        %3298 = vmatprep.subr.bf16.mxu0 0
        %3299 = vmatpush1.bf16.msra.mxu0 %v3263
        %3300 = vmatprep.subr.bf16.mxu0 0
        %3301 = vmatpush1.bf16.msra.mxu0 %v3264
        %3302 = vmatprep.subr.bf16.mxu0 0
        %3303 = vmatpush1.bf16.msra.mxu0 %v3265
        %3304 = vmatprep.subr.bf16.mxu0 0
        %3305 = vmatpush1.bf16.msra.mxu0 %v3266
        %3306 = vmatprep.subr.bf16.mxu0 0
        %3307 = vmatpush1.bf16.msra.mxu0 %v3267
        %3308 = vmatprep.subr.bf16.mxu0 0
        %3309 = vmatpush1.bf16.msra.mxu0 %v3268
        %3310 = vmatprep.subr.bf16.mxu0 0
        %3311 = vmatpush1.bf16.msra.mxu0 %v3269
        %3312 = vmatprep.subr.bf16.mxu0 0
        %3313 = vmatpush1.bf16.msra.mxu0 %v3270
        %3314 = vmatprep.subr.bf16.mxu0 0
        %3315 = vmatpush1.bf16.msra.mxu0 %v3271
        %3316 = vmatprep.subr.bf16.mxu0 0
        %3317 = vmatpush1.bf16.msra.mxu0 %v3272
        %3318 = vmatprep.subr.bf16.mxu0 0
        %3319 = vmatpush1.bf16.msra.mxu0 %v3273
        %3320 = vmatprep.subr.bf16.mxu0 0
        %3321 = vmatpush1.bf16.msra.mxu0 %v3274
        %3322 = vmatprep.subr.bf16.mxu0 0
        %3323 = vmatpush1.bf16.msra.mxu0 %v3275
        %3324 = vmatprep.mubr.bf16.mxu0 %v3133
        %3325 = vmatmul.mubr.bf16.gmra.mrb[0].mxu0 %v3132
        %v3326 = vpop.f32.mrb[0].mxu0
        %v3327 = vadd.f32 0.0, %v3326
        %v3328 = vpop.f32.mrb[0].mxu0
        %v3329 = vpop.f32.mrb[0].mxu0
        %v3330 = vadd.f32 0.0, %v3329
        %v3331 = vpop.f32.mrb[0].mxu0
        %3332 = vmatprep.mubr.bf16.mxu0 %v3135
        %3333 = vmatmul.mubr.bf16.gmra.mrb[0].mxu0 %v3134
        %v3334 = vpop.f32.mrb[0].mxu0
        %v3335 = vadd.f32 0.0, %v3334
        %v3336 = vpop.f32.mrb[0].mxu0
        %v3337 = vpop.f32.mrb[0].mxu0
        %v3338 = vadd.f32 0.0, %v3337
        %v3339 = vpop.f32.mrb[0].mxu0
        %3340 = vmatprep.mubr.bf16.mxu0 %v3137
        %3341 = vmatmul.mubr.bf16.gmra.mrb[0].mxu0 %v3136
        %v3342 = vpop.f32.mrb[0].mxu0
        %v3343 = vadd.f32 0.0, %v3342
        %v3344 = vpop.f32.mrb[0].mxu0
        %v3345 = vpop.f32.mrb[0].mxu0
        %v3346 = vadd.f32 0.0, %v3345
        %v3347 = vpop.f32.mrb[0].mxu0
        %3348 = vmatprep.mubr.bf16.mxu0 %v3139
        %3349 = vmatmul.mubr.bf16.gmra.mrb[0].mxu0 %v3138
        %v3350 = vpop.f32.mrb[0].mxu0
        %v3351 = vadd.f32 0.0, %v3350
        %v3352 = vpop.f32.mrb[0].mxu0
        %v3353 = vpop.f32.mrb[0].mxu0
        %v3354 = vadd.f32 0.0, %v3353
        %v3355 = vpop.f32.mrb[0].mxu0
        %3356 = vmatprep.mubr.bf16.mxu0 %v3141
        %3357 = vmatmul.mubr.bf16.gmra.mrb[0].mxu0 %v3140
        %v3358 = vpop.f32.mrb[0].mxu0
        %v3359 = vadd.f32 0.0, %v3358
        %v3360 = vpop.f32.mrb[0].mxu0
        %v3361 = vpop.f32.mrb[0].mxu0
        %v3362 = vadd.f32 0.0, %v3361
        %v3363 = vpop.f32.mrb[0].mxu0
        %3364 = vmatprep.mubr.bf16.mxu0 %v3143
        %3365 = vmatmul.mubr.bf16.gmra.mrb[0].mxu0 %v3142
        %v3366 = vpop.f32.mrb[0].mxu0
        %v3367 = vadd.f32 0.0, %v3366
        %v3368 = vpop.f32.mrb[0].mxu0
        %v3369 = vpop.f32.mrb[0].mxu0
        %v3370 = vadd.f32 0.0, %v3369
        %v3371 = vpop.f32.mrb[0].mxu0
        %3372 = vmatprep.mubr.bf16.mxu0 %v3145
        %3373 = vmatmul.mubr.bf16.gmra.mrb[0].mxu0 %v3144
        %v3374 = vpop.f32.mrb[0].mxu0
        %v3375 = vadd.f32 0.0, %v3374
        %v3376 = vpop.f32.mrb[0].mxu0
        %v3377 = vpop.f32.mrb[0].mxu0
        %v3378 = vadd.f32 0.0, %v3377
        %v3379 = vpop.f32.mrb[0].mxu0
        %3380 = vmatprep.mubr.bf16.mxu0 %v3147
        %3381 = vmatmul.mubr.bf16.gmra.mrb[0].mxu0 %v3146
        %v3382 = vpop.f32.mrb[0].mxu0
        %v3383 = vadd.f32 0.0, %v3382
        %v3384 = vpop.f32.mrb[0].mxu0
        %v3385 = vpop.f32.mrb[0].mxu0
        %v3386 = vadd.f32 0.0, %v3385
        %v3387 = vpop.f32.mrb[0].mxu0
        %3388 = vmatprep.mubr.bf16.mxu0 %v3149
        %3389 = vmatmul.mubr.bf16.gmra.mrb[0].mxu0 %v3148
        %v3390 = vpop.f32.mrb[0].mxu0
        %v3391 = vadd.f32 0.0, %v3390
        %v3392 = vpop.f32.mrb[0].mxu0
        %v3393 = vpop.f32.mrb[0].mxu0
        %v3394 = vadd.f32 0.0, %v3393
        %v3395 = vpop.f32.mrb[0].mxu0
        %3396 = vmatprep.mubr.bf16.mxu0 %v3151
        %3397 = vmatmul.mubr.bf16.gmra.mrb[0].mxu0 %v3150
        %v3398 = vpop.f32.mrb[0].mxu0
        %v3399 = vadd.f32 0.0, %v3398
        %v3400 = vpop.f32.mrb[0].mxu0
        %v3401 = vpop.f32.mrb[0].mxu0
        %v3402 = vadd.f32 0.0, %v3401
        %v3403 = vpop.f32.mrb[0].mxu0
        %3404 = vmatprep.mubr.bf16.mxu0 %v3153
        %3405 = vmatmul.mubr.bf16.gmra.mrb[0].mxu0 %v3152
        %v3406 = vpop.f32.mrb[0].mxu0
        %v3407 = vadd.f32 0.0, %v3406
        %v3408 = vpop.f32.mrb[0].mxu0
        %v3409 = vpop.f32.mrb[0].mxu0
        %v3410 = vadd.f32 0.0, %v3409
        %v3411 = vpop.f32.mrb[0].mxu0
        %3412 = vmatprep.mubr.bf16.mxu0 %v3155
        %3413 = vmatmul.mubr.bf16.gmra.mrb[0].mxu0 %v3154
        %v3414 = vpop.f32.mrb[0].mxu0
        %v3415 = vadd.f32 0.0, %v3414
        %v3416 = vpop.f32.mrb[0].mxu0
        %v3417 = vpop.f32.mrb[0].mxu0
        %v3418 = vadd.f32 0.0, %v3417
        %v3419 = vpop.f32.mrb[0].mxu0
        %3420 = vmatprep.mubr.bf16.mxu0 %v3157
        %3421 = vmatmul.mubr.bf16.gmra.mrb[0].mxu0 %v3156
        %v3422 = vpop.f32.mrb[0].mxu0
        %v3423 = vadd.f32 0.0, %v3422
        %v3424 = vpop.f32.mrb[0].mxu0
        %v3425 = vpop.f32.mrb[0].mxu0
        %v3426 = vadd.f32 0.0, %v3425
        %v3427 = vpop.f32.mrb[0].mxu0
        %3428 = vmatprep.mubr.bf16.mxu0 %v3159
        %3429 = vmatmul.mubr.bf16.gmra.mrb[0].mxu0 %v3158
        %v3430 = vpop.f32.mrb[0].mxu0
        %v3431 = vadd.f32 0.0, %v3430
        %v3432 = vpop.f32.mrb[0].mxu0
        %v3433 = vpop.f32.mrb[0].mxu0
        %v3434 = vadd.f32 0.0, %v3433
        %v3435 = vpop.f32.mrb[0].mxu0
        %3436 = vmatprep.mubr.bf16.mxu0 %v3161
        %3437 = vmatmul.mubr.bf16.gmra.mrb[0].mxu0 %v3160
        %v3438 = vpop.f32.mrb[0].mxu0
        %v3439 = vadd.f32 0.0, %v3438
        %v3440 = vpop.f32.mrb[0].mxu0
        %v3441 = vpop.f32.mrb[0].mxu0
        %v3442 = vadd.f32 0.0, %v3441
        %v3443 = vpop.f32.mrb[0].mxu0
        %3444 = vmatprep.mubr.bf16.mxu0 %v3163
        %3445 = vmatmul.mubr.bf16.gmra.mrb[0].mxu0 %v3162
        %v3446 = vpop.f32.mrb[0].mxu0
        %v3447 = vadd.f32 0.0, %v3446
        %v3448 = vpop.f32.mrb[0].mxu0
        %v3449 = vpop.f32.mrb[0].mxu0
        %v3450 = vadd.f32 0.0, %v3449
        %v3451 = vpop.f32.mrb[0].mxu0
        %3452 = vdwg.mxu0
        %v3453 = vadd.f32 %v2939, %v3327
        %v3454 = vadd.f32 %v2940, %v3330
        %v3455 = vadd.f32 %v2941, %v3335
        %v3456 = vadd.f32 %v2942, %v3338
        %v3457 = vadd.f32 %v2943, %v3343
        %v3458 = vadd.f32 %v2944, %v3346
        %v3459 = vadd.f32 %v2945, %v3351
        %v3460 = vadd.f32 %v2946, %v3354
        %v3461 = vadd.f32 %v2947, %v3359
        %v3462 = vadd.f32 %v2948, %v3362
        %v3463 = vadd.f32 %v2949, %v3367
        %v3464 = vadd.f32 %v2950, %v3370
        %v3465 = vadd.f32 %v2951, %v3375
        %v3466 = vadd.f32 %v2952, %v3378
        %v3467 = vadd.f32 %v2953, %v3383
        %v3468 = vadd.f32 %v2954, %v3386
        %v3469 = vadd.f32 %v2955, %v3391
        %v3470 = vadd.f32 %v2956, %v3394
        %v3471 = vadd.f32 %v2957, %v3399
        %v3472 = vadd.f32 %v2958, %v3402
        %v3473 = vadd.f32 %v2959, %v3407
        %v3474 = vadd.f32 %v2960, %v3410
        %v3475 = vadd.f32 %v2961, %v3415
        %v3476 = vadd.f32 %v2962, %v3418
        %v3477 = vadd.f32 %v2963, %v3423
        %v3478 = vadd.f32 %v2964, %v3426
        %v3479 = vadd.f32 %v2965, %v3431
        %v3480 = vadd.f32 %v2966, %v3434
        %v3481 = vadd.f32 %v2967, %v3439
        %v3482 = vadd.f32 %v2968, %v3442
        %v3483 = vadd.f32 %v2969, %v3447
        %v3484 = vadd.f32 %v2970, %v3450
        %v3485 = vld [vmem:[%s938] sm:$0xff]
        %v3486 = vld [vmem:[%s938 + $0x8] sm:$0xff]
        %v3487 = vld [vmem:[%s938 + $0x10] sm:$0x11]
        %v3488 = vld [vmem:[%s938 + $0x18] sm:$0xff]
        %v3489 = vld [vmem:[%s938 + $0x20] sm:$0xff]
        %v3490 = vld [vmem:[%s938 + $0x28] sm:$0x11]
        %v3491 = vld [vmem:[%s938 + $0x30] sm:$0xff]
        %v3492 = vld [vmem:[%s938 + $0x38] sm:$0xff]
        %v3493 = vld [vmem:[%s938 + $0x40] sm:$0x11]
        %v3494 = vld [vmem:[%s938 + $0x48] sm:$0xff]
        %v3495 = vld [vmem:[%s938 + $0x50] sm:$0xff]
        %v3496 = vld [vmem:[%s938 + $0x58] sm:$0x11]
        %v3497 = vld [vmem:[%s938 + $0x60] sm:$0xff]
        %v3498 = vld [vmem:[%s938 + $0x68] sm:$0xff]
        %v3499 = vld [vmem:[%s938 + $0x70] sm:$0x11]
        %v3500 = vld [vmem:[%s938 + $0x78] sm:$0xff]
        %v3501 = vld [vmem:[%s938 + $0x80] sm:$0xff]
        %v3502 = vld [vmem:[%s938 + $0x88] sm:$0x11]
        %v3503 = vld [vmem:[%s938 + $0x90] sm:$0xff]
        %v3504 = vld [vmem:[%s938 + $0x98] sm:$0xff]
        %v3505 = vld [vmem:[%s938 + $0xa0] sm:$0x11]
        %v3506 = vld [vmem:[%s938 + $0xa8] sm:$0xff]
        %v3507 = vld [vmem:[%s938 + $0xb0] sm:$0xff]
        %v3508 = vld [vmem:[%s938 + $0xb8] sm:$0x11]
        %v3509 = vld [vmem:[%s938 + $0xc0] sm:$0xff]
        %v3510 = vld [vmem:[%s938 + $0xc8] sm:$0xff]
        %v3511 = vld [vmem:[%s938 + $0xd0] sm:$0x11]
        %v3512 = vld [vmem:[%s938 + $0xd8] sm:$0xff]
        %v3513 = vld [vmem:[%s938 + $0xe0] sm:$0xff]
        %v3514 = vld [vmem:[%s938 + $0xe8] sm:$0x11]
        %v3515 = vld [vmem:[%s938 + $0xf0] sm:$0xff]
        %v3516 = vld [vmem:[%s938 + $0xf8] sm:$0xff]
        %v3517 = vld [vmem:[%s938 + $0x100] sm:$0x11]
        %v3518 = vld [vmem:[%s938 + $0x108] sm:$0xff]
        %v3519 = vld [vmem:[%s938 + $0x110] sm:$0xff]
        %v3520 = vld [vmem:[%s938 + $0x118] sm:$0x11]
        %v3521 = vld [vmem:[%s938 + $0x120] sm:$0xff]
        %v3522 = vld [vmem:[%s938 + $0x128] sm:$0xff]
        %v3523 = vld [vmem:[%s938 + $0x130] sm:$0x11]
        %v3524 = vld [vmem:[%s938 + $0x138] sm:$0xff]
        %v3525 = vld [vmem:[%s938 + $0x140] sm:$0xff]
        %v3526 = vld [vmem:[%s938 + $0x148] sm:$0x11]
        %v3527 = vld [vmem:[%s938 + $0x150] sm:$0xff]
        %v3528 = vld [vmem:[%s938 + $0x158] sm:$0xff]
        %v3529 = vld [vmem:[%s938 + $0x160] sm:$0x11]
        %v3530 = vld [vmem:[%s938 + $0x168] sm:$0xff]
        %v3531 = vld [vmem:[%s938 + $0x170] sm:$0xff]
        %v3532 = vld [vmem:[%s938 + $0x178] sm:$0x11]
        %v3534 = vshrl.u32 %v3485, 16
        %v3536 = vrot.slane %v3534, 4
        %v3537 = vshll.u32 %v3485, 16
        %v3539 = vrot.slane %v3537, 5
        %v3540 = vor.u32 %v3536, %v3539
        %v3541 = vrot.slane %v3540, 4
        %v3543 = vshll.u32 %v3486, 16
        %v3545 = vrot.slane %v3543, 5
        %v3546 = vsel %vm1138, %v3541, %v3545
        %v3547 = vshrl.u32 %v3486, 16
        %v3549 = vrot.slane %v3547, 4
        %v3550 = vor.u32 %v3549, %v3545
        %v3551 = vrot.slane %v3550, 4
        %v3553 = vshll.u32 %v3487, 16
        %v3555 = vrot.slane %v3553, 5
        %v3556 = vsel %vm1138, %v3551, %v3555
        %v3558 = vshrl.u32 %v3488, 16
        %v3560 = vrot.slane %v3558, 4
        %v3561 = vshll.u32 %v3488, 16
        %v3563 = vrot.slane %v3561, 5
        %v3564 = vor.u32 %v3560, %v3563
        %v3565 = vrot.slane %v3564, 4
        %v3567 = vshll.u32 %v3489, 16
        %v3569 = vrot.slane %v3567, 5
        %v3570 = vsel %vm1138, %v3565, %v3569
        %v3571 = vshrl.u32 %v3489, 16
        %v3573 = vrot.slane %v3571, 4
        %v3574 = vor.u32 %v3573, %v3569
        %v3575 = vrot.slane %v3574, 4
        %v3577 = vshll.u32 %v3490, 16
        %v3579 = vrot.slane %v3577, 5
        %v3580 = vsel %vm1138, %v3575, %v3579
        %v3582 = vshrl.u32 %v3491, 16
        %v3584 = vrot.slane %v3582, 4
        %v3585 = vshll.u32 %v3491, 16
        %v3587 = vrot.slane %v3585, 5
        %v3588 = vor.u32 %v3584, %v3587
        %v3589 = vrot.slane %v3588, 4
        %v3591 = vshll.u32 %v3492, 16
        %v3593 = vrot.slane %v3591, 5
        %v3594 = vsel %vm1138, %v3589, %v3593
        %v3595 = vshrl.u32 %v3492, 16
        %v3597 = vrot.slane %v3595, 4
        %v3598 = vor.u32 %v3597, %v3593
        %v3599 = vrot.slane %v3598, 4
        %v3601 = vshll.u32 %v3493, 16
        %v3603 = vrot.slane %v3601, 5
        %v3604 = vsel %vm1138, %v3599, %v3603
        %v3606 = vshrl.u32 %v3494, 16
        %v3608 = vrot.slane %v3606, 4
        %v3609 = vshll.u32 %v3494, 16
        %v3611 = vrot.slane %v3609, 5
        %v3612 = vor.u32 %v3608, %v3611
        %v3613 = vrot.slane %v3612, 4
        %v3615 = vshll.u32 %v3495, 16
        %v3617 = vrot.slane %v3615, 5
        %v3618 = vsel %vm1138, %v3613, %v3617
        %v3619 = vshrl.u32 %v3495, 16
        %v3621 = vrot.slane %v3619, 4
        %v3622 = vor.u32 %v3621, %v3617
        %v3623 = vrot.slane %v3622, 4
        %v3625 = vshll.u32 %v3496, 16
        %v3627 = vrot.slane %v3625, 5
        %v3628 = vsel %vm1138, %v3623, %v3627
        %v3630 = vshrl.u32 %v3497, 16
        %v3632 = vrot.slane %v3630, 4
        %v3633 = vshll.u32 %v3497, 16
        %v3635 = vrot.slane %v3633, 5
        %v3636 = vor.u32 %v3632, %v3635
        %v3637 = vrot.slane %v3636, 4
        %v3639 = vshll.u32 %v3498, 16
        %v3641 = vrot.slane %v3639, 5
        %v3642 = vsel %vm1138, %v3637, %v3641
        %v3643 = vshrl.u32 %v3498, 16
        %v3645 = vrot.slane %v3643, 4
        %v3646 = vor.u32 %v3645, %v3641
        %v3647 = vrot.slane %v3646, 4
        %v3649 = vshll.u32 %v3499, 16
        %v3651 = vrot.slane %v3649, 5
        %v3652 = vsel %vm1138, %v3647, %v3651
        %v3654 = vshrl.u32 %v3500, 16
        %v3656 = vrot.slane %v3654, 4
        %v3657 = vshll.u32 %v3500, 16
        %v3659 = vrot.slane %v3657, 5
        %v3660 = vor.u32 %v3656, %v3659
        %v3661 = vrot.slane %v3660, 4
        %v3663 = vshll.u32 %v3501, 16
        %v3665 = vrot.slane %v3663, 5
        %v3666 = vsel %vm1138, %v3661, %v3665
        %v3667 = vshrl.u32 %v3501, 16
        %v3669 = vrot.slane %v3667, 4
        %v3670 = vor.u32 %v3669, %v3665
        %v3671 = vrot.slane %v3670, 4
        %v3673 = vshll.u32 %v3502, 16
        %v3675 = vrot.slane %v3673, 5
        %v3676 = vsel %vm1138, %v3671, %v3675
        %v3678 = vshrl.u32 %v3503, 16
        %v3680 = vrot.slane %v3678, 4
        %v3681 = vshll.u32 %v3503, 16
        %v3683 = vrot.slane %v3681, 5
        %v3684 = vor.u32 %v3680, %v3683
        %v3685 = vrot.slane %v3684, 4
        %v3687 = vshll.u32 %v3504, 16
        %v3689 = vrot.slane %v3687, 5
        %v3690 = vsel %vm1138, %v3685, %v3689
        %v3691 = vshrl.u32 %v3504, 16
        %v3693 = vrot.slane %v3691, 4
        %v3694 = vor.u32 %v3693, %v3689
        %v3695 = vrot.slane %v3694, 4
        %v3697 = vshll.u32 %v3505, 16
        %v3699 = vrot.slane %v3697, 5
        %v3700 = vsel %vm1138, %v3695, %v3699
        %v3702 = vshrl.u32 %v3506, 16
        %v3704 = vrot.slane %v3702, 4
        %v3705 = vshll.u32 %v3506, 16
        %v3707 = vrot.slane %v3705, 5
        %v3708 = vor.u32 %v3704, %v3707
        %v3709 = vrot.slane %v3708, 4
        %v3711 = vshll.u32 %v3507, 16
        %v3713 = vrot.slane %v3711, 5
        %v3714 = vsel %vm1138, %v3709, %v3713
        %v3715 = vshrl.u32 %v3507, 16
        %v3717 = vrot.slane %v3715, 4
        %v3718 = vor.u32 %v3717, %v3713
        %v3719 = vrot.slane %v3718, 4
        %v3721 = vshll.u32 %v3508, 16
        %v3723 = vrot.slane %v3721, 5
        %v3724 = vsel %vm1138, %v3719, %v3723
        %v3726 = vshrl.u32 %v3509, 16
        %v3728 = vrot.slane %v3726, 4
        %v3729 = vshll.u32 %v3509, 16
        %v3731 = vrot.slane %v3729, 5
        %v3732 = vor.u32 %v3728, %v3731
        %v3733 = vrot.slane %v3732, 4
        %v3735 = vshll.u32 %v3510, 16
        %v3737 = vrot.slane %v3735, 5
        %v3738 = vsel %vm1138, %v3733, %v3737
        %v3739 = vshrl.u32 %v3510, 16
        %v3741 = vrot.slane %v3739, 4
        %v3742 = vor.u32 %v3741, %v3737
        %v3743 = vrot.slane %v3742, 4
        %v3745 = vshll.u32 %v3511, 16
        %v3747 = vrot.slane %v3745, 5
        %v3748 = vsel %vm1138, %v3743, %v3747
        %v3750 = vshrl.u32 %v3512, 16
        %v3752 = vrot.slane %v3750, 4
        %v3753 = vshll.u32 %v3512, 16
        %v3755 = vrot.slane %v3753, 5
        %v3756 = vor.u32 %v3752, %v3755
        %v3757 = vrot.slane %v3756, 4
        %v3759 = vshll.u32 %v3513, 16
        %v3761 = vrot.slane %v3759, 5
        %v3762 = vsel %vm1138, %v3757, %v3761
        %v3763 = vshrl.u32 %v3513, 16
        %v3765 = vrot.slane %v3763, 4
        %v3766 = vor.u32 %v3765, %v3761
        %v3767 = vrot.slane %v3766, 4
        %v3769 = vshll.u32 %v3514, 16
        %v3771 = vrot.slane %v3769, 5
        %v3772 = vsel %vm1138, %v3767, %v3771
        %v3774 = vshrl.u32 %v3515, 16
        %v3776 = vrot.slane %v3774, 4
        %v3777 = vshll.u32 %v3515, 16
        %v3779 = vrot.slane %v3777, 5
        %v3780 = vor.u32 %v3776, %v3779
        %v3781 = vrot.slane %v3780, 4
        %v3783 = vshll.u32 %v3516, 16
        %v3785 = vrot.slane %v3783, 5
        %v3786 = vsel %vm1138, %v3781, %v3785
        %v3787 = vshrl.u32 %v3516, 16
        %v3789 = vrot.slane %v3787, 4
        %v3790 = vor.u32 %v3789, %v3785
        %v3791 = vrot.slane %v3790, 4
        %v3793 = vshll.u32 %v3517, 16
        %v3795 = vrot.slane %v3793, 5
        %v3796 = vsel %vm1138, %v3791, %v3795
        %v3798 = vshrl.u32 %v3518, 16
        %v3800 = vrot.slane %v3798, 4
        %v3801 = vshll.u32 %v3518, 16
        %v3803 = vrot.slane %v3801, 5
        %v3804 = vor.u32 %v3800, %v3803
        %v3805 = vrot.slane %v3804, 4
        %v3807 = vshll.u32 %v3519, 16
        %v3809 = vrot.slane %v3807, 5
        %v3810 = vsel %vm1138, %v3805, %v3809
        %v3811 = vshrl.u32 %v3519, 16
        %v3813 = vrot.slane %v3811, 4
        %v3814 = vor.u32 %v3813, %v3809
        %v3815 = vrot.slane %v3814, 4
        %v3817 = vshll.u32 %v3520, 16
        %v3819 = vrot.slane %v3817, 5
        %v3820 = vsel %vm1138, %v3815, %v3819
        %v3822 = vshrl.u32 %v3521, 16
        %v3824 = vrot.slane %v3822, 4
        %v3825 = vshll.u32 %v3521, 16
        %v3827 = vrot.slane %v3825, 5
        %v3828 = vor.u32 %v3824, %v3827
        %v3829 = vrot.slane %v3828, 4
        %v3831 = vshll.u32 %v3522, 16
        %v3833 = vrot.slane %v3831, 5
        %v3834 = vsel %vm1138, %v3829, %v3833
        %v3835 = vshrl.u32 %v3522, 16
        %v3837 = vrot.slane %v3835, 4
        %v3838 = vor.u32 %v3837, %v3833
        %v3839 = vrot.slane %v3838, 4
        %v3841 = vshll.u32 %v3523, 16
        %v3843 = vrot.slane %v3841, 5
        %v3844 = vsel %vm1138, %v3839, %v3843
        %v3846 = vshrl.u32 %v3524, 16
        %v3848 = vrot.slane %v3846, 4
        %v3849 = vshll.u32 %v3524, 16
        %v3851 = vrot.slane %v3849, 5
        %v3852 = vor.u32 %v3848, %v3851
        %v3853 = vrot.slane %v3852, 4
        %v3855 = vshll.u32 %v3525, 16
        %v3857 = vrot.slane %v3855, 5
        %v3858 = vsel %vm1138, %v3853, %v3857
        %v3859 = vshrl.u32 %v3525, 16
        %v3861 = vrot.slane %v3859, 4
        %v3862 = vor.u32 %v3861, %v3857
        %v3863 = vrot.slane %v3862, 4
        %v3865 = vshll.u32 %v3526, 16
        %v3867 = vrot.slane %v3865, 5
        %v3868 = vsel %vm1138, %v3863, %v3867
        %v3870 = vshrl.u32 %v3527, 16
        %v3872 = vrot.slane %v3870, 4
        %v3873 = vshll.u32 %v3527, 16
        %v3875 = vrot.slane %v3873, 5
        %v3876 = vor.u32 %v3872, %v3875
        %v3877 = vrot.slane %v3876, 4
        %v3879 = vshll.u32 %v3528, 16
        %v3881 = vrot.slane %v3879, 5
        %v3882 = vsel %vm1138, %v3877, %v3881
        %v3883 = vshrl.u32 %v3528, 16
        %v3885 = vrot.slane %v3883, 4
        %v3886 = vor.u32 %v3885, %v3881
        %v3887 = vrot.slane %v3886, 4
        %v3889 = vshll.u32 %v3529, 16
        %v3891 = vrot.slane %v3889, 5
        %v3892 = vsel %vm1138, %v3887, %v3891
        %v3894 = vshrl.u32 %v3530, 16
        %v3896 = vrot.slane %v3894, 4
        %v3897 = vshll.u32 %v3530, 16
        %v3899 = vrot.slane %v3897, 5
        %v3900 = vor.u32 %v3896, %v3899
        %v3901 = vrot.slane %v3900, 4
        %v3903 = vshll.u32 %v3531, 16
        %v3905 = vrot.slane %v3903, 5
        %v3906 = vsel %vm1138, %v3901, %v3905
        %v3907 = vshrl.u32 %v3531, 16
        %v3909 = vrot.slane %v3907, 4
        %v3910 = vor.u32 %v3909, %v3905
        %v3911 = vrot.slane %v3910, 4
        %v3913 = vshll.u32 %v3532, 16
        %v3915 = vrot.slane %v3913, 5
        %v3916 = vsel %vm1138, %v3911, %v3915
        %s3917 = scalar_lea.vmem [#allocation7], 512
        %v3918 = vld [vmem:[%s3917] sm:$0xf]
        %v3919 = vld [vmem:[%s3917 + $0x4] sm:$0xf]
        %v3920 = vld [vmem:[%s3917 + $0x8] sm:$0xf]
        %v3921 = vld [vmem:[%s3917 + $0xc] sm:$0xf]
        %v3922 = vld [vmem:[%s3917 + $0x10] sm:$0xf]
        %v3923 = vld [vmem:[%s3917 + $0x14] sm:$0xf]
        %v3924 = vld [vmem:[%s3917 + $0x18] sm:$0xf]
        %v3925 = vld [vmem:[%s3917 + $0x1c] sm:$0xf]
        %v3926 = vld [vmem:[%s3917 + $0x20] sm:$0xf]
        %v3927 = vld [vmem:[%s3917 + $0x24] sm:$0xf]
        %v3928 = vld [vmem:[%s3917 + $0x28] sm:$0xf]
        %v3929 = vld [vmem:[%s3917 + $0x2c] sm:$0xf]
        %v3930 = vld [vmem:[%s3917 + $0x30] sm:$0xf]
        %v3931 = vld [vmem:[%s3917 + $0x34] sm:$0xf]
        %v3932 = vld [vmem:[%s3917 + $0x38] sm:$0xf]
        %v3933 = vld [vmem:[%s3917 + $0x3c] sm:$0xf]
        %v3934 = vld [vmem:[%s3917 + $0x40] sm:$0xf]
        %v3935 = vld [vmem:[%s3917 + $0x44] sm:$0xf]
        %v3936 = vld [vmem:[%s3917 + $0x48] sm:$0xf]
        %v3937 = vld [vmem:[%s3917 + $0x4c] sm:$0xf]
        %v3938 = vld [vmem:[%s3917 + $0x50] sm:$0xf]
        %v3939 = vld [vmem:[%s3917 + $0x54] sm:$0xf]
        %v3940 = vld [vmem:[%s3917 + $0x58] sm:$0xf]
        %v3941 = vld [vmem:[%s3917 + $0x5c] sm:$0xf]
        %v3942 = vld [vmem:[%s3917 + $0x60] sm:$0xf]
        %v3943 = vld [vmem:[%s3917 + $0x64] sm:$0xf]
        %v3944 = vld [vmem:[%s3917 + $0x68] sm:$0xf]
        %v3945 = vld [vmem:[%s3917 + $0x6c] sm:$0xf]
        %v3946 = vld [vmem:[%s3917 + $0x70] sm:$0xf]
        %v3947 = vld [vmem:[%s3917 + $0x74] sm:$0xf]
        %v3948 = vld [vmem:[%s3917 + $0x78] sm:$0xf]
        %v3949 = vld [vmem:[%s3917 + $0x7c] sm:$0xf]
        %v3950 = vunpack.c.l.b16 %v3546
        %v3951 = vunpack.c.h.b16 %v3546
        %v3952 = vunpack.c.l.b16 %v3556
        %v3953 = vunpack.c.h.b16 %v3556
        %v3954 = vunpack.c.l.b16 %v3570
        %v3955 = vunpack.c.h.b16 %v3570
        %v3956 = vunpack.c.l.b16 %v3580
        %v3957 = vunpack.c.h.b16 %v3580
        %v3958 = vunpack.c.l.b16 %v3594
        %v3959 = vunpack.c.h.b16 %v3594
        %v3960 = vunpack.c.l.b16 %v3604
        %v3961 = vunpack.c.h.b16 %v3604
        %v3962 = vunpack.c.l.b16 %v3618
        %v3963 = vunpack.c.h.b16 %v3618
        %v3964 = vunpack.c.l.b16 %v3628
        %v3965 = vunpack.c.h.b16 %v3628
        %v3966 = vunpack.c.l.b16 %v3642
        %v3967 = vunpack.c.h.b16 %v3642
        %v3968 = vunpack.c.l.b16 %v3652
        %v3969 = vunpack.c.h.b16 %v3652
        %v3970 = vunpack.c.l.b16 %v3666
        %v3971 = vunpack.c.h.b16 %v3666
        %v3972 = vunpack.c.l.b16 %v3676
        %v3973 = vunpack.c.h.b16 %v3676
        %v3974 = vunpack.c.l.b16 %v3690
        %v3975 = vunpack.c.h.b16 %v3690
        %v3976 = vunpack.c.l.b16 %v3700
        %v3977 = vunpack.c.h.b16 %v3700
        %v3978 = vunpack.c.l.b16 %v3714
        %v3979 = vunpack.c.h.b16 %v3714
        %v3980 = vunpack.c.l.b16 %v3724
        %v3981 = vunpack.c.h.b16 %v3724
        %v3982 = vunpack.c.l.b16 %v3738
        %v3983 = vunpack.c.h.b16 %v3738
        %v3984 = vunpack.c.l.b16 %v3748
        %v3985 = vunpack.c.h.b16 %v3748
        %v3986 = vunpack.c.l.b16 %v3762
        %v3987 = vunpack.c.h.b16 %v3762
        %v3988 = vunpack.c.l.b16 %v3772
        %v3989 = vunpack.c.h.b16 %v3772
        %v3990 = vunpack.c.l.b16 %v3786
        %v3991 = vunpack.c.h.b16 %v3786
        %v3992 = vunpack.c.l.b16 %v3796
        %v3993 = vunpack.c.h.b16 %v3796
        %v3994 = vunpack.c.l.b16 %v3810
        %v3995 = vunpack.c.h.b16 %v3810
        %v3996 = vunpack.c.l.b16 %v3820
        %v3997 = vunpack.c.h.b16 %v3820
        %v3998 = vunpack.c.l.b16 %v3834
        %v3999 = vunpack.c.h.b16 %v3834
        %v4000 = vunpack.c.l.b16 %v3844
        %v4001 = vunpack.c.h.b16 %v3844
        %v4002 = vunpack.c.l.b16 %v3858
        %v4003 = vunpack.c.h.b16 %v3858
        %v4004 = vunpack.c.l.b16 %v3868
        %v4005 = vunpack.c.h.b16 %v3868
        %v4006 = vunpack.c.l.b16 %v3882
        %v4007 = vunpack.c.h.b16 %v3882
        %v4008 = vunpack.c.l.b16 %v3892
        %v4009 = vunpack.c.h.b16 %v3892
        %v4010 = vunpack.c.l.b16 %v3906
        %v4011 = vunpack.c.h.b16 %v3906
        %v4012 = vunpack.c.l.b16 %v3916
        %v4013 = vunpack.c.h.b16 %v3916
        %v4014 = vpack.c.b16 %v3952, %v3950
        %v4015 = vpack.c.b16 %v3953, %v3951
        %v4016 = vpack.c.b16 %v3956, %v3954
        %v4017 = vpack.c.b16 %v3957, %v3955
        %v4018 = vpack.c.b16 %v3960, %v3958
        %v4019 = vpack.c.b16 %v3961, %v3959
        %v4020 = vpack.c.b16 %v3964, %v3962
        %v4021 = vpack.c.b16 %v3965, %v3963
        %v4022 = vpack.c.b16 %v3968, %v3966
        %v4023 = vpack.c.b16 %v3969, %v3967
        %v4024 = vpack.c.b16 %v3972, %v3970
        %v4025 = vpack.c.b16 %v3973, %v3971
        %v4026 = vpack.c.b16 %v3976, %v3974
        %v4027 = vpack.c.b16 %v3977, %v3975
        %v4028 = vpack.c.b16 %v3980, %v3978
        %v4029 = vpack.c.b16 %v3981, %v3979
        %v4030 = vpack.c.b16 %v3984, %v3982
        %v4031 = vpack.c.b16 %v3985, %v3983
        %v4032 = vpack.c.b16 %v3988, %v3986
        %v4033 = vpack.c.b16 %v3989, %v3987
        %v4034 = vpack.c.b16 %v3992, %v3990
        %v4035 = vpack.c.b16 %v3993, %v3991
        %v4036 = vpack.c.b16 %v3996, %v3994
        %v4037 = vpack.c.b16 %v3997, %v3995
        %v4038 = vpack.c.b16 %v4000, %v3998
        %v4039 = vpack.c.b16 %v4001, %v3999
        %v4040 = vpack.c.b16 %v4004, %v4002
        %v4041 = vpack.c.b16 %v4005, %v4003
        %v4042 = vpack.c.b16 %v4008, %v4006
        %v4043 = vpack.c.b16 %v4009, %v4007
        %v4044 = vpack.c.b16 %v4012, %v4010
        %v4045 = vpack.c.b16 %v4013, %v4011
        %v4110 = vunpack.c.l.b16 %v3918
        %v4111 = vunpack.c.l.b16 %v3919
        %v4112 = vunpack.c.l.b16 %v3920
        %v4113 = vunpack.c.l.b16 %v3921
        %v4114 = vunpack.c.l.b16 %v3922
        %v4115 = vunpack.c.l.b16 %v3923
        %v4116 = vunpack.c.l.b16 %v3924
        %v4117 = vunpack.c.l.b16 %v3925
        %v4118 = vunpack.c.l.b16 %v3926
        %v4119 = vunpack.c.l.b16 %v3927
        %v4120 = vunpack.c.l.b16 %v3928
        %v4121 = vunpack.c.l.b16 %v3929
        %v4122 = vunpack.c.l.b16 %v3930
        %v4123 = vunpack.c.l.b16 %v3931
        %v4124 = vunpack.c.l.b16 %v3932
        %v4125 = vunpack.c.l.b16 %v3933
        %v4126 = vunpack.c.l.b16 %v3934
        %v4127 = vunpack.c.l.b16 %v3935
        %v4128 = vunpack.c.l.b16 %v3936
        %v4129 = vunpack.c.l.b16 %v3937
        %v4130 = vunpack.c.l.b16 %v3938
        %v4131 = vunpack.c.l.b16 %v3939
        %v4132 = vunpack.c.l.b16 %v3940
        %v4133 = vunpack.c.l.b16 %v3941
        %v4134 = vunpack.c.l.b16 %v3942
        %v4135 = vunpack.c.l.b16 %v3943
        %v4136 = vunpack.c.l.b16 %v3944
        %v4137 = vunpack.c.l.b16 %v3945
        %v4138 = vunpack.c.l.b16 %v3946
        %v4139 = vunpack.c.l.b16 %v3947
        %v4140 = vunpack.c.l.b16 %v3948
        %v4141 = vunpack.c.l.b16 %v3949
        %v4142 = vpack.c.b16 %v4111, %v4110
        %v4143 = vpack.c.b16 %v4113, %v4112
        %v4144 = vpack.c.b16 %v4115, %v4114
        %v4145 = vpack.c.b16 %v4117, %v4116
        %v4146 = vpack.c.b16 %v4119, %v4118
        %v4147 = vpack.c.b16 %v4121, %v4120
        %v4148 = vpack.c.b16 %v4123, %v4122
        %v4149 = vpack.c.b16 %v4125, %v4124
        %v4150 = vpack.c.b16 %v4127, %v4126
        %v4151 = vpack.c.b16 %v4129, %v4128
        %v4152 = vpack.c.b16 %v4131, %v4130
        %v4153 = vpack.c.b16 %v4133, %v4132
        %v4154 = vpack.c.b16 %v4135, %v4134
        %v4155 = vpack.c.b16 %v4137, %v4136
        %v4156 = vpack.c.b16 %v4139, %v4138
        %v4157 = vpack.c.b16 %v4141, %v4140
        %4174 = vmatprep.subr.bf16.mxu0 0
        %4175 = vmatpush1.bf16.msra.mxu0 %v4142
        %4176 = vmatprep.subr.bf16.mxu0 0
        %4177 = vmatpush1.bf16.msra.mxu0 %v4143
        %4178 = vmatprep.subr.bf16.mxu0 0
        %4179 = vmatpush1.bf16.msra.mxu0 %v4144
        %4180 = vmatprep.subr.bf16.mxu0 0
        %4181 = vmatpush1.bf16.msra.mxu0 %v4145
        %4182 = vmatprep.subr.bf16.mxu0 0
        %4183 = vmatpush1.bf16.msra.mxu0 %v4146
        %4184 = vmatprep.subr.bf16.mxu0 0
        %4185 = vmatpush1.bf16.msra.mxu0 %v4147
        %4186 = vmatprep.subr.bf16.mxu0 0
        %4187 = vmatpush1.bf16.msra.mxu0 %v4148
        %4188 = vmatprep.subr.bf16.mxu0 0
        %4189 = vmatpush1.bf16.msra.mxu0 %v4149
        %4190 = vmatprep.subr.bf16.mxu0 0
        %4191 = vmatpush1.bf16.msra.mxu0 %v4150
        %4192 = vmatprep.subr.bf16.mxu0 0
        %4193 = vmatpush1.bf16.msra.mxu0 %v4151
        %4194 = vmatprep.subr.bf16.mxu0 0
        %4195 = vmatpush1.bf16.msra.mxu0 %v4152
        %4196 = vmatprep.subr.bf16.mxu0 0
        %4197 = vmatpush1.bf16.msra.mxu0 %v4153
        %4198 = vmatprep.subr.bf16.mxu0 0
        %4199 = vmatpush1.bf16.msra.mxu0 %v4154
        %4200 = vmatprep.subr.bf16.mxu0 0
        %4201 = vmatpush1.bf16.msra.mxu0 %v4155
        %4202 = vmatprep.subr.bf16.mxu0 0
        %4203 = vmatpush1.bf16.msra.mxu0 %v4156
        %4204 = vmatprep.subr.bf16.mxu0 0
        %4205 = vmatpush1.bf16.msra.mxu0 %v4157
        %4206 = vmatprep.mubr.bf16.mxu0 %v4015
        %4207 = vmatmul.mubr.bf16.gmra.mrb[0].mxu0 %v4014
        %v4208 = vpop.f32.mrb[0].mxu0
        %v4209 = vadd.f32 0.0, %v4208
        %v4210 = vpop.f32.mrb[0].mxu0
        %v4211 = vpop.f32.mrb[0].mxu0
        %v4212 = vadd.f32 0.0, %v4211
        %v4213 = vpop.f32.mrb[0].mxu0
        %4214 = vmatprep.mubr.bf16.mxu0 %v4017
        %4215 = vmatmul.mubr.bf16.gmra.mrb[0].mxu0 %v4016
        %v4216 = vpop.f32.mrb[0].mxu0
        %v4217 = vadd.f32 0.0, %v4216
        %v4218 = vpop.f32.mrb[0].mxu0
        %v4219 = vpop.f32.mrb[0].mxu0
        %v4220 = vadd.f32 0.0, %v4219
        %v4221 = vpop.f32.mrb[0].mxu0
        %4222 = vmatprep.mubr.bf16.mxu0 %v4019
        %4223 = vmatmul.mubr.bf16.gmra.mrb[0].mxu0 %v4018
        %v4224 = vpop.f32.mrb[0].mxu0
        %v4225 = vadd.f32 0.0, %v4224
        %v4226 = vpop.f32.mrb[0].mxu0
        %v4227 = vpop.f32.mrb[0].mxu0
        %v4228 = vadd.f32 0.0, %v4227
        %v4229 = vpop.f32.mrb[0].mxu0
        %4230 = vmatprep.mubr.bf16.mxu0 %v4021
        %4231 = vmatmul.mubr.bf16.gmra.mrb[0].mxu0 %v4020
        %v4232 = vpop.f32.mrb[0].mxu0
        %v4233 = vadd.f32 0.0, %v4232
        %v4234 = vpop.f32.mrb[0].mxu0
        %v4235 = vpop.f32.mrb[0].mxu0
        %v4236 = vadd.f32 0.0, %v4235
        %v4237 = vpop.f32.mrb[0].mxu0
        %4238 = vmatprep.mubr.bf16.mxu0 %v4023
        %4239 = vmatmul.mubr.bf16.gmra.mrb[0].mxu0 %v4022
        %v4240 = vpop.f32.mrb[0].mxu0
        %v4241 = vadd.f32 0.0, %v4240
        %v4242 = vpop.f32.mrb[0].mxu0
        %v4243 = vpop.f32.mrb[0].mxu0
        %v4244 = vadd.f32 0.0, %v4243
        %v4245 = vpop.f32.mrb[0].mxu0
        %4246 = vmatprep.mubr.bf16.mxu0 %v4025
        %4247 = vmatmul.mubr.bf16.gmra.mrb[0].mxu0 %v4024
        %v4248 = vpop.f32.mrb[0].mxu0
        %v4249 = vadd.f32 0.0, %v4248
        %v4250 = vpop.f32.mrb[0].mxu0
        %v4251 = vpop.f32.mrb[0].mxu0
        %v4252 = vadd.f32 0.0, %v4251
        %v4253 = vpop.f32.mrb[0].mxu0
        %4254 = vmatprep.mubr.bf16.mxu0 %v4027
        %4255 = vmatmul.mubr.bf16.gmra.mrb[0].mxu0 %v4026
        %v4256 = vpop.f32.mrb[0].mxu0
        %v4257 = vadd.f32 0.0, %v4256
        %v4258 = vpop.f32.mrb[0].mxu0
        %v4259 = vpop.f32.mrb[0].mxu0
        %v4260 = vadd.f32 0.0, %v4259
        %v4261 = vpop.f32.mrb[0].mxu0
        %4262 = vmatprep.mubr.bf16.mxu0 %v4029
        %4263 = vmatmul.mubr.bf16.gmra.mrb[0].mxu0 %v4028
        %v4264 = vpop.f32.mrb[0].mxu0
        %v4265 = vadd.f32 0.0, %v4264
        %v4266 = vpop.f32.mrb[0].mxu0
        %v4267 = vpop.f32.mrb[0].mxu0
        %v4268 = vadd.f32 0.0, %v4267
        %v4269 = vpop.f32.mrb[0].mxu0
        %4270 = vmatprep.mubr.bf16.mxu0 %v4031
        %4271 = vmatmul.mubr.bf16.gmra.mrb[0].mxu0 %v4030
        %v4272 = vpop.f32.mrb[0].mxu0
        %v4273 = vadd.f32 0.0, %v4272
        %v4274 = vpop.f32.mrb[0].mxu0
        %v4275 = vpop.f32.mrb[0].mxu0
        %v4276 = vadd.f32 0.0, %v4275
        %v4277 = vpop.f32.mrb[0].mxu0
        %4278 = vmatprep.mubr.bf16.mxu0 %v4033
        %4279 = vmatmul.mubr.bf16.gmra.mrb[0].mxu0 %v4032
        %v4280 = vpop.f32.mrb[0].mxu0
        %v4281 = vadd.f32 0.0, %v4280
        %v4282 = vpop.f32.mrb[0].mxu0
        %v4283 = vpop.f32.mrb[0].mxu0
        %v4284 = vadd.f32 0.0, %v4283
        %v4285 = vpop.f32.mrb[0].mxu0
        %4286 = vmatprep.mubr.bf16.mxu0 %v4035
        %4287 = vmatmul.mubr.bf16.gmra.mrb[0].mxu0 %v4034
        %v4288 = vpop.f32.mrb[0].mxu0
        %v4289 = vadd.f32 0.0, %v4288
        %v4290 = vpop.f32.mrb[0].mxu0
        %v4291 = vpop.f32.mrb[0].mxu0
        %v4292 = vadd.f32 0.0, %v4291
        %v4293 = vpop.f32.mrb[0].mxu0
        %4294 = vmatprep.mubr.bf16.mxu0 %v4037
        %4295 = vmatmul.mubr.bf16.gmra.mrb[0].mxu0 %v4036
        %v4296 = vpop.f32.mrb[0].mxu0
        %v4297 = vadd.f32 0.0, %v4296
        %v4298 = vpop.f32.mrb[0].mxu0
        %v4299 = vpop.f32.mrb[0].mxu0
        %v4300 = vadd.f32 0.0, %v4299
        %v4301 = vpop.f32.mrb[0].mxu0
        %4302 = vmatprep.mubr.bf16.mxu0 %v4039
        %4303 = vmatmul.mubr.bf16.gmra.mrb[0].mxu0 %v4038
        %v4304 = vpop.f32.mrb[0].mxu0
        %v4305 = vadd.f32 0.0, %v4304
        %v4306 = vpop.f32.mrb[0].mxu0
        %v4307 = vpop.f32.mrb[0].mxu0
        %v4308 = vadd.f32 0.0, %v4307
        %v4309 = vpop.f32.mrb[0].mxu0
        %4310 = vmatprep.mubr.bf16.mxu0 %v4041
        %4311 = vmatmul.mubr.bf16.gmra.mrb[0].mxu0 %v4040
        %v4312 = vpop.f32.mrb[0].mxu0
        %v4313 = vadd.f32 0.0, %v4312
        %v4314 = vpop.f32.mrb[0].mxu0
        %v4315 = vpop.f32.mrb[0].mxu0
        %v4316 = vadd.f32 0.0, %v4315
        %v4317 = vpop.f32.mrb[0].mxu0
        %4318 = vmatprep.mubr.bf16.mxu0 %v4043
        %4319 = vmatmul.mubr.bf16.gmra.mrb[0].mxu0 %v4042
        %v4320 = vpop.f32.mrb[0].mxu0
        %v4321 = vadd.f32 0.0, %v4320
        %v4322 = vpop.f32.mrb[0].mxu0
        %v4323 = vpop.f32.mrb[0].mxu0
        %v4324 = vadd.f32 0.0, %v4323
        %v4325 = vpop.f32.mrb[0].mxu0
        %4326 = vmatprep.mubr.bf16.mxu0 %v4045
        %4327 = vmatmul.mubr.bf16.gmra.mrb[0].mxu0 %v4044
        %v4328 = vpop.f32.mrb[0].mxu0
        %v4329 = vadd.f32 0.0, %v4328
        %v4330 = vpop.f32.mrb[0].mxu0
        %v4331 = vpop.f32.mrb[0].mxu0
        %v4332 = vadd.f32 0.0, %v4331
        %v4333 = vpop.f32.mrb[0].mxu0
        %4334 = vdwg.mxu0
        %v4335 = vadd.f32 %v3453, %v4209
        %v4336 = vadd.f32 %v3454, %v4212
        %v4337 = vadd.f32 %v3455, %v4217
        %v4338 = vadd.f32 %v3456, %v4220
        %v4339 = vadd.f32 %v3457, %v4225
        %v4340 = vadd.f32 %v3458, %v4228
        %v4341 = vadd.f32 %v3459, %v4233
        %v4342 = vadd.f32 %v3460, %v4236
        %v4343 = vadd.f32 %v3461, %v4241
        %v4344 = vadd.f32 %v3462, %v4244
        %v4345 = vadd.f32 %v3463, %v4249
        %v4346 = vadd.f32 %v3464, %v4252
        %v4347 = vadd.f32 %v3465, %v4257
        %v4348 = vadd.f32 %v3466, %v4260
        %v4349 = vadd.f32 %v3467, %v4265
        %v4350 = vadd.f32 %v3468, %v4268
        %v4351 = vadd.f32 %v3469, %v4273
        %v4352 = vadd.f32 %v3470, %v4276
        %v4353 = vadd.f32 %v3471, %v4281
        %v4354 = vadd.f32 %v3472, %v4284
        %v4355 = vadd.f32 %v3473, %v4289
        %v4356 = vadd.f32 %v3474, %v4292
        %v4357 = vadd.f32 %v3475, %v4297
        %v4358 = vadd.f32 %v3476, %v4300
        %v4359 = vadd.f32 %v3477, %v4305
        %v4360 = vadd.f32 %v3478, %v4308
        %v4361 = vadd.f32 %v3479, %v4313
        %v4362 = vadd.f32 %v3480, %v4316
        %v4363 = vadd.f32 %v3481, %v4321
        %v4364 = vadd.f32 %v3482, %v4324
        %v4365 = vadd.f32 %v3483, %v4329
        %v4366 = vadd.f32 %v3484, %v4332
        %v4367 = vld [vmem:[%s938] sm:$0xee]
        %v4368 = vld [vmem:[%s938 + $0x18] sm:$0xee]
        %v4369 = vld [vmem:[%s938 + $0x30] sm:$0xee]
        %v4370 = vld [vmem:[%s938 + $0x48] sm:$0xee]
        %v4371 = vld [vmem:[%s938 + $0x60] sm:$0xee]
        %v4372 = vld [vmem:[%s938 + $0x78] sm:$0xee]
        %v4373 = vld [vmem:[%s938 + $0x90] sm:$0xee]
        %v4374 = vld [vmem:[%s938 + $0xa8] sm:$0xee]
        %v4375 = vld [vmem:[%s938 + $0xc0] sm:$0xee]
        %v4376 = vld [vmem:[%s938 + $0xd8] sm:$0xee]
        %v4377 = vld [vmem:[%s938 + $0xf0] sm:$0xee]
        %v4378 = vld [vmem:[%s938 + $0x108] sm:$0xee]
        %v4379 = vld [vmem:[%s938 + $0x120] sm:$0xee]
        %v4380 = vld [vmem:[%s938 + $0x138] sm:$0xee]
        %v4381 = vld [vmem:[%s938 + $0x150] sm:$0xee]
        %v4382 = vld [vmem:[%s938 + $0x168] sm:$0xee]
        %v4431 = vrot.slane %v4367, 5
        %v4432 = vrot.slane %v4431, 4
        %v4433 = vrot.slane %v3486, 5
        %v4434 = vsel %vm2408, %v4432, %v4433
        %v4435 = vrot.slane %v4433, 4
        %v4436 = vrot.slane %v3487, 5
        %v4437 = vsel %vm2408, %v4435, %v4436
        %v4438 = vrot.slane %v4368, 5
        %v4439 = vrot.slane %v4438, 4
        %v4440 = vrot.slane %v3489, 5
        %v4441 = vsel %vm2408, %v4439, %v4440
        %v4442 = vrot.slane %v4440, 4
        %v4443 = vrot.slane %v3490, 5
        %v4444 = vsel %vm2408, %v4442, %v4443
        %v4445 = vrot.slane %v4369, 5
        %v4446 = vrot.slane %v4445, 4
        %v4447 = vrot.slane %v3492, 5
        %v4448 = vsel %vm2408, %v4446, %v4447
        %v4449 = vrot.slane %v4447, 4
        %v4450 = vrot.slane %v3493, 5
        %v4451 = vsel %vm2408, %v4449, %v4450
        %v4452 = vrot.slane %v4370, 5
        %v4453 = vrot.slane %v4452, 4
        %v4454 = vrot.slane %v3495, 5
        %v4455 = vsel %vm2408, %v4453, %v4454
        %v4456 = vrot.slane %v4454, 4
        %v4457 = vrot.slane %v3496, 5
        %v4458 = vsel %vm2408, %v4456, %v4457
        %v4459 = vrot.slane %v4371, 5
        %v4460 = vrot.slane %v4459, 4
        %v4461 = vrot.slane %v3498, 5
        %v4462 = vsel %vm2408, %v4460, %v4461
        %v4463 = vrot.slane %v4461, 4
        %v4464 = vrot.slane %v3499, 5
        %v4465 = vsel %vm2408, %v4463, %v4464
        %v4466 = vrot.slane %v4372, 5
        %v4467 = vrot.slane %v4466, 4
        %v4468 = vrot.slane %v3501, 5
        %v4469 = vsel %vm2408, %v4467, %v4468
        %v4470 = vrot.slane %v4468, 4
        %v4471 = vrot.slane %v3502, 5
        %v4472 = vsel %vm2408, %v4470, %v4471
        %v4473 = vrot.slane %v4373, 5
        %v4474 = vrot.slane %v4473, 4
        %v4475 = vrot.slane %v3504, 5
        %v4476 = vsel %vm2408, %v4474, %v4475
        %v4477 = vrot.slane %v4475, 4
        %v4478 = vrot.slane %v3505, 5
        %v4479 = vsel %vm2408, %v4477, %v4478
        %v4480 = vrot.slane %v4374, 5
        %v4481 = vrot.slane %v4480, 4
        %v4482 = vrot.slane %v3507, 5
        %v4483 = vsel %vm2408, %v4481, %v4482
        %v4484 = vrot.slane %v4482, 4
        %v4485 = vrot.slane %v3508, 5
        %v4486 = vsel %vm2408, %v4484, %v4485
        %v4487 = vrot.slane %v4375, 5
        %v4488 = vrot.slane %v4487, 4
        %v4489 = vrot.slane %v3510, 5
        %v4490 = vsel %vm2408, %v4488, %v4489
        %v4491 = vrot.slane %v4489, 4
        %v4492 = vrot.slane %v3511, 5
        %v4493 = vsel %vm2408, %v4491, %v4492
        %v4494 = vrot.slane %v4376, 5
        %v4495 = vrot.slane %v4494, 4
        %v4496 = vrot.slane %v3513, 5
        %v4497 = vsel %vm2408, %v4495, %v4496
        %v4498 = vrot.slane %v4496, 4
        %v4499 = vrot.slane %v3514, 5
        %v4500 = vsel %vm2408, %v4498, %v4499
        %v4501 = vrot.slane %v4377, 5
        %v4502 = vrot.slane %v4501, 4
        %v4503 = vrot.slane %v3516, 5
        %v4504 = vsel %vm2408, %v4502, %v4503
        %v4505 = vrot.slane %v4503, 4
        %v4506 = vrot.slane %v3517, 5
        %v4507 = vsel %vm2408, %v4505, %v4506
        %v4508 = vrot.slane %v4378, 5
        %v4509 = vrot.slane %v4508, 4
        %v4510 = vrot.slane %v3519, 5
        %v4511 = vsel %vm2408, %v4509, %v4510
        %v4512 = vrot.slane %v4510, 4
        %v4513 = vrot.slane %v3520, 5
        %v4514 = vsel %vm2408, %v4512, %v4513
        %v4515 = vrot.slane %v4379, 5
        %v4516 = vrot.slane %v4515, 4
        %v4517 = vrot.slane %v3522, 5
        %v4518 = vsel %vm2408, %v4516, %v4517
        %v4519 = vrot.slane %v4517, 4
        %v4520 = vrot.slane %v3523, 5
        %v4521 = vsel %vm2408, %v4519, %v4520
        %v4522 = vrot.slane %v4380, 5
        %v4523 = vrot.slane %v4522, 4
        %v4524 = vrot.slane %v3525, 5
        %v4525 = vsel %vm2408, %v4523, %v4524
        %v4526 = vrot.slane %v4524, 4
        %v4527 = vrot.slane %v3526, 5
        %v4528 = vsel %vm2408, %v4526, %v4527
        %v4529 = vrot.slane %v4381, 5
        %v4530 = vrot.slane %v4529, 4
        %v4531 = vrot.slane %v3528, 5
        %v4532 = vsel %vm2408, %v4530, %v4531
        %v4533 = vrot.slane %v4531, 4
        %v4534 = vrot.slane %v3529, 5
        %v4535 = vsel %vm2408, %v4533, %v4534
        %v4536 = vrot.slane %v4382, 5
        %v4537 = vrot.slane %v4536, 4
        %v4538 = vrot.slane %v3531, 5
        %v4539 = vsel %vm2408, %v4537, %v4538
        %v4540 = vrot.slane %v4538, 4
        %v4541 = vrot.slane %v3532, 5
        %v4542 = vsel %vm2408, %v4540, %v4541
        %s4543 = scalar_lea.vmem [#allocation7], 640
        %v4544 = vld [vmem:[%s4543] sm:$0xf]
        %v4545 = vld [vmem:[%s4543 + $0x4] sm:$0xf]
        %v4546 = vld [vmem:[%s4543 + $0x8] sm:$0xf]
        %v4547 = vld [vmem:[%s4543 + $0xc] sm:$0xf]
        %v4548 = vld [vmem:[%s4543 + $0x10] sm:$0xf]
        %v4549 = vld [vmem:[%s4543 + $0x14] sm:$0xf]
        %v4550 = vld [vmem:[%s4543 + $0x18] sm:$0xf]
        %v4551 = vld [vmem:[%s4543 + $0x1c] sm:$0xf]
        %v4552 = vld [vmem:[%s4543 + $0x20] sm:$0xf]
        %v4553 = vld [vmem:[%s4543 + $0x24] sm:$0xf]
        %v4554 = vld [vmem:[%s4543 + $0x28] sm:$0xf]
        %v4555 = vld [vmem:[%s4543 + $0x2c] sm:$0xf]
        %v4556 = vld [vmem:[%s4543 + $0x30] sm:$0xf]
        %v4557 = vld [vmem:[%s4543 + $0x34] sm:$0xf]
        %v4558 = vld [vmem:[%s4543 + $0x38] sm:$0xf]
        %v4559 = vld [vmem:[%s4543 + $0x3c] sm:$0xf]
        %v4560 = vld [vmem:[%s4543 + $0x40] sm:$0xf]
        %v4561 = vld [vmem:[%s4543 + $0x44] sm:$0xf]
        %v4562 = vld [vmem:[%s4543 + $0x48] sm:$0xf]
        %v4563 = vld [vmem:[%s4543 + $0x4c] sm:$0xf]
        %v4564 = vld [vmem:[%s4543 + $0x50] sm:$0xf]
        %v4565 = vld [vmem:[%s4543 + $0x54] sm:$0xf]
        %v4566 = vld [vmem:[%s4543 + $0x58] sm:$0xf]
        %v4567 = vld [vmem:[%s4543 + $0x5c] sm:$0xf]
        %v4568 = vld [vmem:[%s4543 + $0x60] sm:$0xf]
        %v4569 = vld [vmem:[%s4543 + $0x64] sm:$0xf]
        %v4570 = vld [vmem:[%s4543 + $0x68] sm:$0xf]
        %v4571 = vld [vmem:[%s4543 + $0x6c] sm:$0xf]
        %v4572 = vld [vmem:[%s4543 + $0x70] sm:$0xf]
        %v4573 = vld [vmem:[%s4543 + $0x74] sm:$0xf]
        %v4574 = vld [vmem:[%s4543 + $0x78] sm:$0xf]
        %v4575 = vld [vmem:[%s4543 + $0x7c] sm:$0xf]
        %v4576 = vunpack.c.l.b16 %v4434
        %v4577 = vunpack.c.h.b16 %v4434
        %v4578 = vunpack.c.l.b16 %v4437
        %v4579 = vunpack.c.h.b16 %v4437
        %v4580 = vunpack.c.l.b16 %v4441
        %v4581 = vunpack.c.h.b16 %v4441
        %v4582 = vunpack.c.l.b16 %v4444
        %v4583 = vunpack.c.h.b16 %v4444
        %v4584 = vunpack.c.l.b16 %v4448
        %v4585 = vunpack.c.h.b16 %v4448
        %v4586 = vunpack.c.l.b16 %v4451
        %v4587 = vunpack.c.h.b16 %v4451
        %v4588 = vunpack.c.l.b16 %v4455
        %v4589 = vunpack.c.h.b16 %v4455
        %v4590 = vunpack.c.l.b16 %v4458
        %v4591 = vunpack.c.h.b16 %v4458
        %v4592 = vunpack.c.l.b16 %v4462
        %v4593 = vunpack.c.h.b16 %v4462
        %v4594 = vunpack.c.l.b16 %v4465
        %v4595 = vunpack.c.h.b16 %v4465
        %v4596 = vunpack.c.l.b16 %v4469
        %v4597 = vunpack.c.h.b16 %v4469
        %v4598 = vunpack.c.l.b16 %v4472
        %v4599 = vunpack.c.h.b16 %v4472
        %v4600 = vunpack.c.l.b16 %v4476
        %v4601 = vunpack.c.h.b16 %v4476
        %v4602 = vunpack.c.l.b16 %v4479
        %v4603 = vunpack.c.h.b16 %v4479
        %v4604 = vunpack.c.l.b16 %v4483
        %v4605 = vunpack.c.h.b16 %v4483
        %v4606 = vunpack.c.l.b16 %v4486
        %v4607 = vunpack.c.h.b16 %v4486
        %v4608 = vunpack.c.l.b16 %v4490
        %v4609 = vunpack.c.h.b16 %v4490
        %v4610 = vunpack.c.l.b16 %v4493
        %v4611 = vunpack.c.h.b16 %v4493
        %v4612 = vunpack.c.l.b16 %v4497
        %v4613 = vunpack.c.h.b16 %v4497
        %v4614 = vunpack.c.l.b16 %v4500
        %v4615 = vunpack.c.h.b16 %v4500
        %v4616 = vunpack.c.l.b16 %v4504
        %v4617 = vunpack.c.h.b16 %v4504
        %v4618 = vunpack.c.l.b16 %v4507
        %v4619 = vunpack.c.h.b16 %v4507
        %v4620 = vunpack.c.l.b16 %v4511
        %v4621 = vunpack.c.h.b16 %v4511
        %v4622 = vunpack.c.l.b16 %v4514
        %v4623 = vunpack.c.h.b16 %v4514
        %v4624 = vunpack.c.l.b16 %v4518
        %v4625 = vunpack.c.h.b16 %v4518
        %v4626 = vunpack.c.l.b16 %v4521
        %v4627 = vunpack.c.h.b16 %v4521
        %v4628 = vunpack.c.l.b16 %v4525
        %v4629 = vunpack.c.h.b16 %v4525
        %v4630 = vunpack.c.l.b16 %v4528
        %v4631 = vunpack.c.h.b16 %v4528
        %v4632 = vunpack.c.l.b16 %v4532
        %v4633 = vunpack.c.h.b16 %v4532
        %v4634 = vunpack.c.l.b16 %v4535
        %v4635 = vunpack.c.h.b16 %v4535
        %v4636 = vunpack.c.l.b16 %v4539
        %v4637 = vunpack.c.h.b16 %v4539
        %v4638 = vunpack.c.l.b16 %v4542
        %v4639 = vunpack.c.h.b16 %v4542
        %v4640 = vpack.c.b16 %v4578, %v4576
        %v4641 = vpack.c.b16 %v4579, %v4577
        %v4642 = vpack.c.b16 %v4582, %v4580
        %v4643 = vpack.c.b16 %v4583, %v4581
        %v4644 = vpack.c.b16 %v4586, %v4584
        %v4645 = vpack.c.b16 %v4587, %v4585
        %v4646 = vpack.c.b16 %v4590, %v4588
        %v4647 = vpack.c.b16 %v4591, %v4589
        %v4648 = vpack.c.b16 %v4594, %v4592
        %v4649 = vpack.c.b16 %v4595, %v4593
        %v4650 = vpack.c.b16 %v4598, %v4596
        %v4651 = vpack.c.b16 %v4599, %v4597
        %v4652 = vpack.c.b16 %v4602, %v4600
        %v4653 = vpack.c.b16 %v4603, %v4601
        %v4654 = vpack.c.b16 %v4606, %v4604
        %v4655 = vpack.c.b16 %v4607, %v4605
        %v4656 = vpack.c.b16 %v4610, %v4608
        %v4657 = vpack.c.b16 %v4611, %v4609
        %v4658 = vpack.c.b16 %v4614, %v4612
        %v4659 = vpack.c.b16 %v4615, %v4613
        %v4660 = vpack.c.b16 %v4618, %v4616
        %v4661 = vpack.c.b16 %v4619, %v4617
        %v4662 = vpack.c.b16 %v4622, %v4620
        %v4663 = vpack.c.b16 %v4623, %v4621
        %v4664 = vpack.c.b16 %v4626, %v4624
        %v4665 = vpack.c.b16 %v4627, %v4625
        %v4666 = vpack.c.b16 %v4630, %v4628
        %v4667 = vpack.c.b16 %v4631, %v4629
        %v4668 = vpack.c.b16 %v4634, %v4632
        %v4669 = vpack.c.b16 %v4635, %v4633
        %v4670 = vpack.c.b16 %v4638, %v4636
        %v4671 = vpack.c.b16 %v4639, %v4637
        %v4736 = vunpack.c.l.b16 %v4544
        %v4737 = vunpack.c.l.b16 %v4545
        %v4738 = vunpack.c.l.b16 %v4546
        %v4739 = vunpack.c.l.b16 %v4547
        %v4740 = vunpack.c.l.b16 %v4548
        %v4741 = vunpack.c.l.b16 %v4549
        %v4742 = vunpack.c.l.b16 %v4550
        %v4743 = vunpack.c.l.b16 %v4551
        %v4744 = vunpack.c.l.b16 %v4552
        %v4745 = vunpack.c.l.b16 %v4553
        %v4746 = vunpack.c.l.b16 %v4554
        %v4747 = vunpack.c.l.b16 %v4555
        %v4748 = vunpack.c.l.b16 %v4556
        %v4749 = vunpack.c.l.b16 %v4557
        %v4750 = vunpack.c.l.b16 %v4558
        %v4751 = vunpack.c.l.b16 %v4559
        %v4752 = vunpack.c.l.b16 %v4560
        %v4753 = vunpack.c.l.b16 %v4561
        %v4754 = vunpack.c.l.b16 %v4562
        %v4755 = vunpack.c.l.b16 %v4563
        %v4756 = vunpack.c.l.b16 %v4564
        %v4757 = vunpack.c.l.b16 %v4565
        %v4758 = vunpack.c.l.b16 %v4566
        %v4759 = vunpack.c.l.b16 %v4567
        %v4760 = vunpack.c.l.b16 %v4568
        %v4761 = vunpack.c.l.b16 %v4569
        %v4762 = vunpack.c.l.b16 %v4570
        %v4763 = vunpack.c.l.b16 %v4571
        %v4764 = vunpack.c.l.b16 %v4572
        %v4765 = vunpack.c.l.b16 %v4573
        %v4766 = vunpack.c.l.b16 %v4574
        %v4767 = vunpack.c.l.b16 %v4575
        %v4768 = vpack.c.b16 %v4737, %v4736
        %v4769 = vpack.c.b16 %v4739, %v4738
        %v4770 = vpack.c.b16 %v4741, %v4740
        %v4771 = vpack.c.b16 %v4743, %v4742
        %v4772 = vpack.c.b16 %v4745, %v4744
        %v4773 = vpack.c.b16 %v4747, %v4746
        %v4774 = vpack.c.b16 %v4749, %v4748
        %v4775 = vpack.c.b16 %v4751, %v4750
        %v4776 = vpack.c.b16 %v4753, %v4752
        %v4777 = vpack.c.b16 %v4755, %v4754
        %v4778 = vpack.c.b16 %v4757, %v4756
        %v4779 = vpack.c.b16 %v4759, %v4758
        %v4780 = vpack.c.b16 %v4761, %v4760
        %v4781 = vpack.c.b16 %v4763, %v4762
        %v4782 = vpack.c.b16 %v4765, %v4764
        %v4783 = vpack.c.b16 %v4767, %v4766
        %4800 = vmatprep.subr.bf16.mxu0 0
        %4801 = vmatpush1.bf16.msra.mxu0 %v4768
        %4802 = vmatprep.subr.bf16.mxu0 0
        %4803 = vmatpush1.bf16.msra.mxu0 %v4769
        %4804 = vmatprep.subr.bf16.mxu0 0
        %4805 = vmatpush1.bf16.msra.mxu0 %v4770
        %4806 = vmatprep.subr.bf16.mxu0 0
        %4807 = vmatpush1.bf16.msra.mxu0 %v4771
        %4808 = vmatprep.subr.bf16.mxu0 0
        %4809 = vmatpush1.bf16.msra.mxu0 %v4772
        %4810 = vmatprep.subr.bf16.mxu0 0
        %4811 = vmatpush1.bf16.msra.mxu0 %v4773
        %4812 = vmatprep.subr.bf16.mxu0 0
        %4813 = vmatpush1.bf16.msra.mxu0 %v4774
        %4814 = vmatprep.subr.bf16.mxu0 0
        %4815 = vmatpush1.bf16.msra.mxu0 %v4775
        %4816 = vmatprep.subr.bf16.mxu0 0
        %4817 = vmatpush1.bf16.msra.mxu0 %v4776
        %4818 = vmatprep.subr.bf16.mxu0 0
        %4819 = vmatpush1.bf16.msra.mxu0 %v4777
        %4820 = vmatprep.subr.bf16.mxu0 0
        %4821 = vmatpush1.bf16.msra.mxu0 %v4778
        %4822 = vmatprep.subr.bf16.mxu0 0
        %4823 = vmatpush1.bf16.msra.mxu0 %v4779
        %4824 = vmatprep.subr.bf16.mxu0 0
        %4825 = vmatpush1.bf16.msra.mxu0 %v4780
        %4826 = vmatprep.subr.bf16.mxu0 0
        %4827 = vmatpush1.bf16.msra.mxu0 %v4781
        %4828 = vmatprep.subr.bf16.mxu0 0
        %4829 = vmatpush1.bf16.msra.mxu0 %v4782
        %4830 = vmatprep.subr.bf16.mxu0 0
        %4831 = vmatpush1.bf16.msra.mxu0 %v4783
        %4832 = vmatprep.mubr.bf16.mxu0 %v4641
        %4833 = vmatmul.mubr.bf16.gmra.mrb[0].mxu0 %v4640
        %v4834 = vpop.f32.mrb[0].mxu0
        %v4835 = vadd.f32 0.0, %v4834
        %v4836 = vpop.f32.mrb[0].mxu0
        %v4837 = vpop.f32.mrb[0].mxu0
        %v4838 = vadd.f32 0.0, %v4837
        %v4839 = vpop.f32.mrb[0].mxu0
        %4840 = vmatprep.mubr.bf16.mxu0 %v4643
        %4841 = vmatmul.mubr.bf16.gmra.mrb[0].mxu0 %v4642
        %v4842 = vpop.f32.mrb[0].mxu0
        %v4843 = vadd.f32 0.0, %v4842
        %v4844 = vpop.f32.mrb[0].mxu0
        %v4845 = vpop.f32.mrb[0].mxu0
        %v4846 = vadd.f32 0.0, %v4845
        %v4847 = vpop.f32.mrb[0].mxu0
        %4848 = vmatprep.mubr.bf16.mxu0 %v4645
        %4849 = vmatmul.mubr.bf16.gmra.mrb[0].mxu0 %v4644
        %v4850 = vpop.f32.mrb[0].mxu0
        %v4851 = vadd.f32 0.0, %v4850
        %v4852 = vpop.f32.mrb[0].mxu0
        %v4853 = vpop.f32.mrb[0].mxu0
        %v4854 = vadd.f32 0.0, %v4853
        %v4855 = vpop.f32.mrb[0].mxu0
        %4856 = vmatprep.mubr.bf16.mxu0 %v4647
        %4857 = vmatmul.mubr.bf16.gmra.mrb[0].mxu0 %v4646
        %v4858 = vpop.f32.mrb[0].mxu0
        %v4859 = vadd.f32 0.0, %v4858
        %v4860 = vpop.f32.mrb[0].mxu0
        %v4861 = vpop.f32.mrb[0].mxu0
        %v4862 = vadd.f32 0.0, %v4861
        %v4863 = vpop.f32.mrb[0].mxu0
        %4864 = vmatprep.mubr.bf16.mxu0 %v4649
        %4865 = vmatmul.mubr.bf16.gmra.mrb[0].mxu0 %v4648
        %v4866 = vpop.f32.mrb[0].mxu0
        %v4867 = vadd.f32 0.0, %v4866
        %v4868 = vpop.f32.mrb[0].mxu0
        %v4869 = vpop.f32.mrb[0].mxu0
        %v4870 = vadd.f32 0.0, %v4869
        %v4871 = vpop.f32.mrb[0].mxu0
        %4872 = vmatprep.mubr.bf16.mxu0 %v4651
        %4873 = vmatmul.mubr.bf16.gmra.mrb[0].mxu0 %v4650
        %v4874 = vpop.f32.mrb[0].mxu0
        %v4875 = vadd.f32 0.0, %v4874
        %v4876 = vpop.f32.mrb[0].mxu0
        %v4877 = vpop.f32.mrb[0].mxu0
        %v4878 = vadd.f32 0.0, %v4877
        %v4879 = vpop.f32.mrb[0].mxu0
        %4880 = vmatprep.mubr.bf16.mxu0 %v4653
        %4881 = vmatmul.mubr.bf16.gmra.mrb[0].mxu0 %v4652
        %v4882 = vpop.f32.mrb[0].mxu0
        %v4883 = vadd.f32 0.0, %v4882
        %v4884 = vpop.f32.mrb[0].mxu0
        %v4885 = vpop.f32.mrb[0].mxu0
        %v4886 = vadd.f32 0.0, %v4885
        %v4887 = vpop.f32.mrb[0].mxu0
        %4888 = vmatprep.mubr.bf16.mxu0 %v4655
        %4889 = vmatmul.mubr.bf16.gmra.mrb[0].mxu0 %v4654
        %v4890 = vpop.f32.mrb[0].mxu0
        %v4891 = vadd.f32 0.0, %v4890
        %v4892 = vpop.f32.mrb[0].mxu0
        %v4893 = vpop.f32.mrb[0].mxu0
        %v4894 = vadd.f32 0.0, %v4893
        %v4895 = vpop.f32.mrb[0].mxu0
        %4896 = vmatprep.mubr.bf16.mxu0 %v4657
        %4897 = vmatmul.mubr.bf16.gmra.mrb[0].mxu0 %v4656
        %v4898 = vpop.f32.mrb[0].mxu0
        %v4899 = vadd.f32 0.0, %v4898
        %v4900 = vpop.f32.mrb[0].mxu0
        %v4901 = vpop.f32.mrb[0].mxu0
        %v4902 = vadd.f32 0.0, %v4901
        %v4903 = vpop.f32.mrb[0].mxu0
        %4904 = vmatprep.mubr.bf16.mxu0 %v4659
        %4905 = vmatmul.mubr.bf16.gmra.mrb[0].mxu0 %v4658
        %v4906 = vpop.f32.mrb[0].mxu0
        %v4907 = vadd.f32 0.0, %v4906
        %v4908 = vpop.f32.mrb[0].mxu0
        %v4909 = vpop.f32.mrb[0].mxu0
        %v4910 = vadd.f32 0.0, %v4909
        %v4911 = vpop.f32.mrb[0].mxu0
        %4912 = vmatprep.mubr.bf16.mxu0 %v4661
        %4913 = vmatmul.mubr.bf16.gmra.mrb[0].mxu0 %v4660
        %v4914 = vpop.f32.mrb[0].mxu0
        %v4915 = vadd.f32 0.0, %v4914
        %v4916 = vpop.f32.mrb[0].mxu0
        %v4917 = vpop.f32.mrb[0].mxu0
        %v4918 = vadd.f32 0.0, %v4917
        %v4919 = vpop.f32.mrb[0].mxu0
        %4920 = vmatprep.mubr.bf16.mxu0 %v4663
        %4921 = vmatmul.mubr.bf16.gmra.mrb[0].mxu0 %v4662
        %v4922 = vpop.f32.mrb[0].mxu0
        %v4923 = vadd.f32 0.0, %v4922
        %v4924 = vpop.f32.mrb[0].mxu0
        %v4925 = vpop.f32.mrb[0].mxu0
        %v4926 = vadd.f32 0.0, %v4925
        %v4927 = vpop.f32.mrb[0].mxu0
        %4928 = vmatprep.mubr.bf16.mxu0 %v4665
        %4929 = vmatmul.mubr.bf16.gmra.mrb[0].mxu0 %v4664
        %v4930 = vpop.f32.mrb[0].mxu0
        %v4931 = vadd.f32 0.0, %v4930
        %v4932 = vpop.f32.mrb[0].mxu0
        %v4933 = vpop.f32.mrb[0].mxu0
        %v4934 = vadd.f32 0.0, %v4933
        %v4935 = vpop.f32.mrb[0].mxu0
        %4936 = vmatprep.mubr.bf16.mxu0 %v4667
        %4937 = vmatmul.mubr.bf16.gmra.mrb[0].mxu0 %v4666
        %v4938 = vpop.f32.mrb[0].mxu0
        %v4939 = vadd.f32 0.0, %v4938
        %v4940 = vpop.f32.mrb[0].mxu0
        %v4941 = vpop.f32.mrb[0].mxu0
        %v4942 = vadd.f32 0.0, %v4941
        %v4943 = vpop.f32.mrb[0].mxu0
        %4944 = vmatprep.mubr.bf16.mxu0 %v4669
        %4945 = vmatmul.mubr.bf16.gmra.mrb[0].mxu0 %v4668
        %v4946 = vpop.f32.mrb[0].mxu0
        %v4947 = vadd.f32 0.0, %v4946
        %v4948 = vpop.f32.mrb[0].mxu0
        %v4949 = vpop.f32.mrb[0].mxu0
        %v4950 = vadd.f32 0.0, %v4949
        %v4951 = vpop.f32.mrb[0].mxu0
        %4952 = vmatprep.mubr.bf16.mxu0 %v4671
        %4953 = vmatmul.mubr.bf16.gmra.mrb[0].mxu0 %v4670
        %v4954 = vpop.f32.mrb[0].mxu0
        %v4955 = vadd.f32 0.0, %v4954
        %v4956 = vpop.f32.mrb[0].mxu0
        %v4957 = vpop.f32.mrb[0].mxu0
        %v4958 = vadd.f32 0.0, %v4957
        %v4959 = vpop.f32.mrb[0].mxu0
        %4960 = vdwg.mxu0
        %v4961 = vadd.f32 %v4335, %v4835
        %v4962 = vadd.f32 %v4336, %v4838
        %v4963 = vadd.f32 %v4337, %v4843
        %v4964 = vadd.f32 %v4338, %v4846
        %v4965 = vadd.f32 %v4339, %v4851
        %v4966 = vadd.f32 %v4340, %v4854
        %v4967 = vadd.f32 %v4341, %v4859
        %v4968 = vadd.f32 %v4342, %v4862
        %v4969 = vadd.f32 %v4343, %v4867
        %v4970 = vadd.f32 %v4344, %v4870
        %v4971 = vadd.f32 %v4345, %v4875
        %v4972 = vadd.f32 %v4346, %v4878
        %v4973 = vadd.f32 %v4347, %v4883
        %v4974 = vadd.f32 %v4348, %v4886
        %v4975 = vadd.f32 %v4349, %v4891
        %v4976 = vadd.f32 %v4350, %v4894
        %v4977 = vadd.f32 %v4351, %v4899
        %v4978 = vadd.f32 %v4352, %v4902
        %v4979 = vadd.f32 %v4353, %v4907
        %v4980 = vadd.f32 %v4354, %v4910
        %v4981 = vadd.f32 %v4355, %v4915
        %v4982 = vadd.f32 %v4356, %v4918
        %v4983 = vadd.f32 %v4357, %v4923
        %v4984 = vadd.f32 %v4358, %v4926
        %v4985 = vadd.f32 %v4359, %v4931
        %v4986 = vadd.f32 %v4360, %v4934
        %v4987 = vadd.f32 %v4361, %v4939
        %v4988 = vadd.f32 %v4362, %v4942
        %v4989 = vadd.f32 %v4363, %v4947
        %v4990 = vadd.f32 %v4364, %v4950
        %v4991 = vadd.f32 %v4365, %v4955
        %v4992 = vadd.f32 %v4366, %v4958
        %s4993 = scalar_lea.vmem [#allocation2], 48
        %v4994 = vld [vmem:[%s4993] sm:$0xff]
        %v4995 = vld [vmem:[%s4993 + $0x8] sm:$0xff]
        %v4996 = vld [vmem:[%s4993 + $0x18] sm:$0xff]
        %v4997 = vld [vmem:[%s4993 + $0x20] sm:$0xff]
        %v4998 = vld [vmem:[%s4993 + $0x30] sm:$0xff]
        %v4999 = vld [vmem:[%s4993 + $0x38] sm:$0xff]
        %v5000 = vld [vmem:[%s4993 + $0x48] sm:$0xff]
        %v5001 = vld [vmem:[%s4993 + $0x50] sm:$0xff]
        %v5002 = vld [vmem:[%s4993 + $0x60] sm:$0xff]
        %v5003 = vld [vmem:[%s4993 + $0x68] sm:$0xff]
        %v5004 = vld [vmem:[%s4993 + $0x78] sm:$0xff]
        %v5005 = vld [vmem:[%s4993 + $0x80] sm:$0xff]
        %v5006 = vld [vmem:[%s4993 + $0x90] sm:$0xff]
        %v5007 = vld [vmem:[%s4993 + $0x98] sm:$0xff]
        %v5008 = vld [vmem:[%s4993 + $0xa8] sm:$0xff]
        %v5009 = vld [vmem:[%s4993 + $0xb0] sm:$0xff]
        %v5010 = vld [vmem:[%s4993 + $0xc0] sm:$0xff]
        %v5011 = vld [vmem:[%s4993 + $0xc8] sm:$0xff]
        %v5012 = vld [vmem:[%s4993 + $0xd8] sm:$0xff]
        %v5013 = vld [vmem:[%s4993 + $0xe0] sm:$0xff]
        %v5014 = vld [vmem:[%s4993 + $0xf0] sm:$0xff]
        %v5015 = vld [vmem:[%s4993 + $0xf8] sm:$0xff]
        %v5016 = vld [vmem:[%s4993 + $0x108] sm:$0xff]
        %v5017 = vld [vmem:[%s4993 + $0x110] sm:$0xff]
        %v5018 = vld [vmem:[%s4993 + $0x120] sm:$0xff]
        %v5019 = vld [vmem:[%s4993 + $0x128] sm:$0xff]
        %v5020 = vld [vmem:[%s4993 + $0x138] sm:$0xff]
        %v5021 = vld [vmem:[%s4993 + $0x140] sm:$0xff]
        %v5022 = vld [vmem:[%s4993 + $0x150] sm:$0xff]
        %v5023 = vld [vmem:[%s4993 + $0x158] sm:$0xff]
        %v5024 = vld [vmem:[%s4993 + $0x168] sm:$0xff]
        %v5025 = vld [vmem:[%s4993 + $0x170] sm:$0xff]
        %s5026 = scalar_lea.vmem [#allocation7], 768
        %v5027 = vld [vmem:[%s5026] sm:$0xf]
        %v5028 = vld [vmem:[%s5026 + $0x4] sm:$0xf]
        %v5029 = vld [vmem:[%s5026 + $0x8] sm:$0xf]
        %v5030 = vld [vmem:[%s5026 + $0xc] sm:$0xf]
        %v5031 = vld [vmem:[%s5026 + $0x10] sm:$0xf]
        %v5032 = vld [vmem:[%s5026 + $0x14] sm:$0xf]
        %v5033 = vld [vmem:[%s5026 + $0x18] sm:$0xf]
        %v5034 = vld [vmem:[%s5026 + $0x1c] sm:$0xf]
        %v5035 = vld [vmem:[%s5026 + $0x20] sm:$0xf]
        %v5036 = vld [vmem:[%s5026 + $0x24] sm:$0xf]
        %v5037 = vld [vmem:[%s5026 + $0x28] sm:$0xf]
        %v5038 = vld [vmem:[%s5026 + $0x2c] sm:$0xf]
        %v5039 = vld [vmem:[%s5026 + $0x30] sm:$0xf]
        %v5040 = vld [vmem:[%s5026 + $0x34] sm:$0xf]
        %v5041 = vld [vmem:[%s5026 + $0x38] sm:$0xf]
        %v5042 = vld [vmem:[%s5026 + $0x3c] sm:$0xf]
        %v5043 = vld [vmem:[%s5026 + $0x40] sm:$0xf]
        %v5044 = vld [vmem:[%s5026 + $0x44] sm:$0xf]
        %v5045 = vld [vmem:[%s5026 + $0x48] sm:$0xf]
        %v5046 = vld [vmem:[%s5026 + $0x4c] sm:$0xf]
        %v5047 = vld [vmem:[%s5026 + $0x50] sm:$0xf]
        %v5048 = vld [vmem:[%s5026 + $0x54] sm:$0xf]
        %v5049 = vld [vmem:[%s5026 + $0x58] sm:$0xf]
        %v5050 = vld [vmem:[%s5026 + $0x5c] sm:$0xf]
        %v5051 = vld [vmem:[%s5026 + $0x60] sm:$0xf]
        %v5052 = vld [vmem:[%s5026 + $0x64] sm:$0xf]
        %v5053 = vld [vmem:[%s5026 + $0x68] sm:$0xf]
        %v5054 = vld [vmem:[%s5026 + $0x6c] sm:$0xf]
        %v5055 = vld [vmem:[%s5026 + $0x70] sm:$0xf]
        %v5056 = vld [vmem:[%s5026 + $0x74] sm:$0xf]
        %v5057 = vld [vmem:[%s5026 + $0x78] sm:$0xf]
        %v5058 = vld [vmem:[%s5026 + $0x7c] sm:$0xf]
        %v5091 = vunpack.c.l.b16 %v4994
        %v5092 = vunpack.c.h.b16 %v4994
        %v5093 = vunpack.c.l.b16 %v4995
        %v5094 = vunpack.c.h.b16 %v4995
        %v5095 = vunpack.c.l.b16 %v4996
        %v5096 = vunpack.c.h.b16 %v4996
        %v5097 = vunpack.c.l.b16 %v4997
        %v5098 = vunpack.c.h.b16 %v4997
        %v5099 = vunpack.c.l.b16 %v4998
        %v5100 = vunpack.c.h.b16 %v4998
        %v5101 = vunpack.c.l.b16 %v4999
        %v5102 = vunpack.c.h.b16 %v4999
        %v5103 = vunpack.c.l.b16 %v5000
        %v5104 = vunpack.c.h.b16 %v5000
        %v5105 = vunpack.c.l.b16 %v5001
        %v5106 = vunpack.c.h.b16 %v5001
        %v5107 = vunpack.c.l.b16 %v5002
        %v5108 = vunpack.c.h.b16 %v5002
        %v5109 = vunpack.c.l.b16 %v5003
        %v5110 = vunpack.c.h.b16 %v5003
        %v5111 = vunpack.c.l.b16 %v5004
        %v5112 = vunpack.c.h.b16 %v5004
        %v5113 = vunpack.c.l.b16 %v5005
        %v5114 = vunpack.c.h.b16 %v5005
        %v5115 = vunpack.c.l.b16 %v5006
        %v5116 = vunpack.c.h.b16 %v5006
        %v5117 = vunpack.c.l.b16 %v5007
        %v5118 = vunpack.c.h.b16 %v5007
        %v5119 = vunpack.c.l.b16 %v5008
        %v5120 = vunpack.c.h.b16 %v5008
        %v5121 = vunpack.c.l.b16 %v5009
        %v5122 = vunpack.c.h.b16 %v5009
        %v5123 = vunpack.c.l.b16 %v5010
        %v5124 = vunpack.c.h.b16 %v5010
        %v5125 = vunpack.c.l.b16 %v5011
        %v5126 = vunpack.c.h.b16 %v5011
        %v5127 = vunpack.c.l.b16 %v5012
        %v5128 = vunpack.c.h.b16 %v5012
        %v5129 = vunpack.c.l.b16 %v5013
        %v5130 = vunpack.c.h.b16 %v5013
        %v5131 = vunpack.c.l.b16 %v5014
        %v5132 = vunpack.c.h.b16 %v5014
        %v5133 = vunpack.c.l.b16 %v5015
        %v5134 = vunpack.c.h.b16 %v5015
        %v5135 = vunpack.c.l.b16 %v5016
        %v5136 = vunpack.c.h.b16 %v5016
        %v5137 = vunpack.c.l.b16 %v5017
        %v5138 = vunpack.c.h.b16 %v5017
        %v5139 = vunpack.c.l.b16 %v5018
        %v5140 = vunpack.c.h.b16 %v5018
        %v5141 = vunpack.c.l.b16 %v5019
        %v5142 = vunpack.c.h.b16 %v5019
        %v5143 = vunpack.c.l.b16 %v5020
        %v5144 = vunpack.c.h.b16 %v5020
        %v5145 = vunpack.c.l.b16 %v5021
        %v5146 = vunpack.c.h.b16 %v5021
        %v5147 = vunpack.c.l.b16 %v5022
        %v5148 = vunpack.c.h.b16 %v5022
        %v5149 = vunpack.c.l.b16 %v5023
        %v5150 = vunpack.c.h.b16 %v5023
        %v5151 = vunpack.c.l.b16 %v5024
        %v5152 = vunpack.c.h.b16 %v5024
        %v5153 = vunpack.c.l.b16 %v5025
        %v5154 = vunpack.c.h.b16 %v5025
        %v5155 = vpack.c.b16 %v5093, %v5091
        %v5156 = vpack.c.b16 %v5094, %v5092
        %v5157 = vpack.c.b16 %v5097, %v5095
        %v5158 = vpack.c.b16 %v5098, %v5096
        %v5159 = vpack.c.b16 %v5101, %v5099
        %v5160 = vpack.c.b16 %v5102, %v5100
        %v5161 = vpack.c.b16 %v5105, %v5103
        %v5162 = vpack.c.b16 %v5106, %v5104
        %v5163 = vpack.c.b16 %v5109, %v5107
        %v5164 = vpack.c.b16 %v5110, %v5108
        %v5165 = vpack.c.b16 %v5113, %v5111
        %v5166 = vpack.c.b16 %v5114, %v5112
        %v5167 = vpack.c.b16 %v5117, %v5115
        %v5168 = vpack.c.b16 %v5118, %v5116
        %v5169 = vpack.c.b16 %v5121, %v5119
        %v5170 = vpack.c.b16 %v5122, %v5120
        %v5171 = vpack.c.b16 %v5125, %v5123
        %v5172 = vpack.c.b16 %v5126, %v5124
        %v5173 = vpack.c.b16 %v5129, %v5127
        %v5174 = vpack.c.b16 %v5130, %v5128
        %v5175 = vpack.c.b16 %v5133, %v5131
        %v5176 = vpack.c.b16 %v5134, %v5132
        %v5177 = vpack.c.b16 %v5137, %v5135
        %v5178 = vpack.c.b16 %v5138, %v5136
        %v5179 = vpack.c.b16 %v5141, %v5139
        %v5180 = vpack.c.b16 %v5142, %v5140
        %v5181 = vpack.c.b16 %v5145, %v5143
        %v5182 = vpack.c.b16 %v5146, %v5144
        %v5183 = vpack.c.b16 %v5149, %v5147
        %v5184 = vpack.c.b16 %v5150, %v5148
        %v5185 = vpack.c.b16 %v5153, %v5151
        %v5186 = vpack.c.b16 %v5154, %v5152
        %v5251 = vunpack.c.l.b16 %v5027
        %v5252 = vunpack.c.l.b16 %v5028
        %v5253 = vunpack.c.l.b16 %v5029
        %v5254 = vunpack.c.l.b16 %v5030
        %v5255 = vunpack.c.l.b16 %v5031
        %v5256 = vunpack.c.l.b16 %v5032
        %v5257 = vunpack.c.l.b16 %v5033
        %v5258 = vunpack.c.l.b16 %v5034
        %v5259 = vunpack.c.l.b16 %v5035
        %v5260 = vunpack.c.l.b16 %v5036
        %v5261 = vunpack.c.l.b16 %v5037
        %v5262 = vunpack.c.l.b16 %v5038
        %v5263 = vunpack.c.l.b16 %v5039
        %v5264 = vunpack.c.l.b16 %v5040
        %v5265 = vunpack.c.l.b16 %v5041
        %v5266 = vunpack.c.l.b16 %v5042
        %v5267 = vunpack.c.l.b16 %v5043
        %v5268 = vunpack.c.l.b16 %v5044
        %v5269 = vunpack.c.l.b16 %v5045
        %v5270 = vunpack.c.l.b16 %v5046
        %v5271 = vunpack.c.l.b16 %v5047
        %v5272 = vunpack.c.l.b16 %v5048
        %v5273 = vunpack.c.l.b16 %v5049
        %v5274 = vunpack.c.l.b16 %v5050
        %v5275 = vunpack.c.l.b16 %v5051
        %v5276 = vunpack.c.l.b16 %v5052
        %v5277 = vunpack.c.l.b16 %v5053
        %v5278 = vunpack.c.l.b16 %v5054
        %v5279 = vunpack.c.l.b16 %v5055
        %v5280 = vunpack.c.l.b16 %v5056
        %v5281 = vunpack.c.l.b16 %v5057
        %v5282 = vunpack.c.l.b16 %v5058
        %v5283 = vpack.c.b16 %v5252, %v5251
        %v5284 = vpack.c.b16 %v5254, %v5253
        %v5285 = vpack.c.b16 %v5256, %v5255
        %v5286 = vpack.c.b16 %v5258, %v5257
        %v5287 = vpack.c.b16 %v5260, %v5259
        %v5288 = vpack.c.b16 %v5262, %v5261
        %v5289 = vpack.c.b16 %v5264, %v5263
        %v5290 = vpack.c.b16 %v5266, %v5265
        %v5291 = vpack.c.b16 %v5268, %v5267
        %v5292 = vpack.c.b16 %v5270, %v5269
        %v5293 = vpack.c.b16 %v5272, %v5271
        %v5294 = vpack.c.b16 %v5274, %v5273
        %v5295 = vpack.c.b16 %v5276, %v5275
        %v5296 = vpack.c.b16 %v5278, %v5277
        %v5297 = vpack.c.b16 %v5280, %v5279
        %v5298 = vpack.c.b16 %v5282, %v5281
        %5315 = vmatprep.subr.bf16.mxu0 0
        %5316 = vmatpush1.bf16.msra.mxu0 %v5283
        %5317 = vmatprep.subr.bf16.mxu0 0
        %5318 = vmatpush1.bf16.msra.mxu0 %v5284
        %5319 = vmatprep.subr.bf16.mxu0 0
        %5320 = vmatpush1.bf16.msra.mxu0 %v5285
        %5321 = vmatprep.subr.bf16.mxu0 0
        %5322 = vmatpush1.bf16.msra.mxu0 %v5286
        %5323 = vmatprep.subr.bf16.mxu0 0
        %5324 = vmatpush1.bf16.msra.mxu0 %v5287
        %5325 = vmatprep.subr.bf16.mxu0 0
        %5326 = vmatpush1.bf16.msra.mxu0 %v5288
        %5327 = vmatprep.subr.bf16.mxu0 0
        %5328 = vmatpush1.bf16.msra.mxu0 %v5289
        %5329 = vmatprep.subr.bf16.mxu0 0
        %5330 = vmatpush1.bf16.msra.mxu0 %v5290
        %5331 = vmatprep.subr.bf16.mxu0 0
        %5332 = vmatpush1.bf16.msra.mxu0 %v5291
        %5333 = vmatprep.subr.bf16.mxu0 0
        %5334 = vmatpush1.bf16.msra.mxu0 %v5292
        %5335 = vmatprep.subr.bf16.mxu0 0
        %5336 = vmatpush1.bf16.msra.mxu0 %v5293
        %5337 = vmatprep.subr.bf16.mxu0 0
        %5338 = vmatpush1.bf16.msra.mxu0 %v5294
        %5339 = vmatprep.subr.bf16.mxu0 0
        %5340 = vmatpush1.bf16.msra.mxu0 %v5295
        %5341 = vmatprep.subr.bf16.mxu0 0
        %5342 = vmatpush1.bf16.msra.mxu0 %v5296
        %5343 = vmatprep.subr.bf16.mxu0 0
        %5344 = vmatpush1.bf16.msra.mxu0 %v5297
        %5345 = vmatprep.subr.bf16.mxu0 0
        %5346 = vmatpush1.bf16.msra.mxu0 %v5298
        %5347 = vmatprep.mubr.bf16.mxu0 %v5156
        %5348 = vmatmul.mubr.bf16.gmra.mrb[0].mxu0 %v5155
        %v5349 = vpop.f32.mrb[0].mxu0
        %v5350 = vadd.f32 0.0, %v5349
        %v5351 = vpop.f32.mrb[0].mxu0
        %v5352 = vpop.f32.mrb[0].mxu0
        %v5353 = vadd.f32 0.0, %v5352
        %v5354 = vpop.f32.mrb[0].mxu0
        %5355 = vmatprep.mubr.bf16.mxu0 %v5158
        %5356 = vmatmul.mubr.bf16.gmra.mrb[0].mxu0 %v5157
        %v5357 = vpop.f32.mrb[0].mxu0
        %v5358 = vadd.f32 0.0, %v5357
        %v5359 = vpop.f32.mrb[0].mxu0
        %v5360 = vpop.f32.mrb[0].mxu0
        %v5361 = vadd.f32 0.0, %v5360
        %v5362 = vpop.f32.mrb[0].mxu0
        %5363 = vmatprep.mubr.bf16.mxu0 %v5160
        %5364 = vmatmul.mubr.bf16.gmra.mrb[0].mxu0 %v5159
        %v5365 = vpop.f32.mrb[0].mxu0
        %v5366 = vadd.f32 0.0, %v5365
        %v5367 = vpop.f32.mrb[0].mxu0
        %v5368 = vpop.f32.mrb[0].mxu0
        %v5369 = vadd.f32 0.0, %v5368
        %v5370 = vpop.f32.mrb[0].mxu0
        %5371 = vmatprep.mubr.bf16.mxu0 %v5162
        %5372 = vmatmul.mubr.bf16.gmra.mrb[0].mxu0 %v5161
        %v5373 = vpop.f32.mrb[0].mxu0
        %v5374 = vadd.f32 0.0, %v5373
        %v5375 = vpop.f32.mrb[0].mxu0
        %v5376 = vpop.f32.mrb[0].mxu0
        %v5377 = vadd.f32 0.0, %v5376
        %v5378 = vpop.f32.mrb[0].mxu0
        %5379 = vmatprep.mubr.bf16.mxu0 %v5164
        %5380 = vmatmul.mubr.bf16.gmra.mrb[0].mxu0 %v5163
        %v5381 = vpop.f32.mrb[0].mxu0
        %v5382 = vadd.f32 0.0, %v5381
        %v5383 = vpop.f32.mrb[0].mxu0
        %v5384 = vpop.f32.mrb[0].mxu0
        %v5385 = vadd.f32 0.0, %v5384
        %v5386 = vpop.f32.mrb[0].mxu0
        %5387 = vmatprep.mubr.bf16.mxu0 %v5166
        %5388 = vmatmul.mubr.bf16.gmra.mrb[0].mxu0 %v5165
        %v5389 = vpop.f32.mrb[0].mxu0
        %v5390 = vadd.f32 0.0, %v5389
        %v5391 = vpop.f32.mrb[0].mxu0
        %v5392 = vpop.f32.mrb[0].mxu0
        %v5393 = vadd.f32 0.0, %v5392
        %v5394 = vpop.f32.mrb[0].mxu0
        %5395 = vmatprep.mubr.bf16.mxu0 %v5168
        %5396 = vmatmul.mubr.bf16.gmra.mrb[0].mxu0 %v5167
        %v5397 = vpop.f32.mrb[0].mxu0
        %v5398 = vadd.f32 0.0, %v5397
        %v5399 = vpop.f32.mrb[0].mxu0
        %v5400 = vpop.f32.mrb[0].mxu0
        %v5401 = vadd.f32 0.0, %v5400
        %v5402 = vpop.f32.mrb[0].mxu0
        %5403 = vmatprep.mubr.bf16.mxu0 %v5170
        %5404 = vmatmul.mubr.bf16.gmra.mrb[0].mxu0 %v5169
        %v5405 = vpop.f32.mrb[0].mxu0
        %v5406 = vadd.f32 0.0, %v5405
        %v5407 = vpop.f32.mrb[0].mxu0
        %v5408 = vpop.f32.mrb[0].mxu0
        %v5409 = vadd.f32 0.0, %v5408
        %v5410 = vpop.f32.mrb[0].mxu0
        %5411 = vmatprep.mubr.bf16.mxu0 %v5172
        %5412 = vmatmul.mubr.bf16.gmra.mrb[0].mxu0 %v5171
        %v5413 = vpop.f32.mrb[0].mxu0
        %v5414 = vadd.f32 0.0, %v5413
        %v5415 = vpop.f32.mrb[0].mxu0
        %v5416 = vpop.f32.mrb[0].mxu0
        %v5417 = vadd.f32 0.0, %v5416
        %v5418 = vpop.f32.mrb[0].mxu0
        %5419 = vmatprep.mubr.bf16.mxu0 %v5174
        %5420 = vmatmul.mubr.bf16.gmra.mrb[0].mxu0 %v5173
        %v5421 = vpop.f32.mrb[0].mxu0
        %v5422 = vadd.f32 0.0, %v5421
        %v5423 = vpop.f32.mrb[0].mxu0
        %v5424 = vpop.f32.mrb[0].mxu0
        %v5425 = vadd.f32 0.0, %v5424
        %v5426 = vpop.f32.mrb[0].mxu0
        %5427 = vmatprep.mubr.bf16.mxu0 %v5176
        %5428 = vmatmul.mubr.bf16.gmra.mrb[0].mxu0 %v5175
        %v5429 = vpop.f32.mrb[0].mxu0
        %v5430 = vadd.f32 0.0, %v5429
        %v5431 = vpop.f32.mrb[0].mxu0
        %v5432 = vpop.f32.mrb[0].mxu0
        %v5433 = vadd.f32 0.0, %v5432
        %v5434 = vpop.f32.mrb[0].mxu0
        %5435 = vmatprep.mubr.bf16.mxu0 %v5178
        %5436 = vmatmul.mubr.bf16.gmra.mrb[0].mxu0 %v5177
        %v5437 = vpop.f32.mrb[0].mxu0
        %v5438 = vadd.f32 0.0, %v5437
        %v5439 = vpop.f32.mrb[0].mxu0
        %v5440 = vpop.f32.mrb[0].mxu0
        %v5441 = vadd.f32 0.0, %v5440
        %v5442 = vpop.f32.mrb[0].mxu0
        %5443 = vmatprep.mubr.bf16.mxu0 %v5180
        %5444 = vmatmul.mubr.bf16.gmra.mrb[0].mxu0 %v5179
        %v5445 = vpop.f32.mrb[0].mxu0
        %v5446 = vadd.f32 0.0, %v5445
        %v5447 = vpop.f32.mrb[0].mxu0
        %v5448 = vpop.f32.mrb[0].mxu0
        %v5449 = vadd.f32 0.0, %v5448
        %v5450 = vpop.f32.mrb[0].mxu0
        %5451 = vmatprep.mubr.bf16.mxu0 %v5182
        %5452 = vmatmul.mubr.bf16.gmra.mrb[0].mxu0 %v5181
        %v5453 = vpop.f32.mrb[0].mxu0
        %v5454 = vadd.f32 0.0, %v5453
        %v5455 = vpop.f32.mrb[0].mxu0
        %v5456 = vpop.f32.mrb[0].mxu0
        %v5457 = vadd.f32 0.0, %v5456
        %v5458 = vpop.f32.mrb[0].mxu0
        %5459 = vmatprep.mubr.bf16.mxu0 %v5184
        %5460 = vmatmul.mubr.bf16.gmra.mrb[0].mxu0 %v5183
        %v5461 = vpop.f32.mrb[0].mxu0
        %v5462 = vadd.f32 0.0, %v5461
        %v5463 = vpop.f32.mrb[0].mxu0
        %v5464 = vpop.f32.mrb[0].mxu0
        %v5465 = vadd.f32 0.0, %v5464
        %v5466 = vpop.f32.mrb[0].mxu0
        %5467 = vmatprep.mubr.bf16.mxu0 %v5186
        %5468 = vmatmul.mubr.bf16.gmra.mrb[0].mxu0 %v5185
        %v5469 = vpop.f32.mrb[0].mxu0
        %v5470 = vadd.f32 0.0, %v5469
        %v5471 = vpop.f32.mrb[0].mxu0
        %v5472 = vpop.f32.mrb[0].mxu0
        %v5473 = vadd.f32 0.0, %v5472
        %v5474 = vpop.f32.mrb[0].mxu0
        %5475 = vdwg.mxu0
        %v5476 = vadd.f32 %v4961, %v5350
        %v5477 = vadd.f32 %v4962, %v5353
        %v5478 = vadd.f32 %v4963, %v5358
        %v5479 = vadd.f32 %v4964, %v5361
        %v5480 = vadd.f32 %v4965, %v5366
        %v5481 = vadd.f32 %v4966, %v5369
        %v5482 = vadd.f32 %v4967, %v5374
        %v5483 = vadd.f32 %v4968, %v5377
        %v5484 = vadd.f32 %v4969, %v5382
        %v5485 = vadd.f32 %v4970, %v5385
        %v5486 = vadd.f32 %v4971, %v5390
        %v5487 = vadd.f32 %v4972, %v5393
        %v5488 = vadd.f32 %v4973, %v5398
        %v5489 = vadd.f32 %v4974, %v5401
        %v5490 = vadd.f32 %v4975, %v5406
        %v5491 = vadd.f32 %v4976, %v5409
        %v5492 = vadd.f32 %v4977, %v5414
        %v5493 = vadd.f32 %v4978, %v5417
        %v5494 = vadd.f32 %v4979, %v5422
        %v5495 = vadd.f32 %v4980, %v5425
        %v5496 = vadd.f32 %v4981, %v5430
        %v5497 = vadd.f32 %v4982, %v5433
        %v5498 = vadd.f32 %v4983, %v5438
        %v5499 = vadd.f32 %v4984, %v5441
        %v5500 = vadd.f32 %v4985, %v5446
        %v5501 = vadd.f32 %v4986, %v5449
        %v5502 = vadd.f32 %v4987, %v5454
        %v5503 = vadd.f32 %v4988, %v5457
        %v5504 = vadd.f32 %v4989, %v5462
        %v5505 = vadd.f32 %v4990, %v5465
        %v5506 = vadd.f32 %v4991, %v5470
        %v5507 = vadd.f32 %v4992, %v5473
        %v5508 = vld [vmem:[%s4993] sm:$0xff]
        %v5509 = vld [vmem:[%s4993 + $0x8] sm:$0xff]
        %v5510 = vld [vmem:[%s4993 + $0x10] sm:$0x11]
        %v5511 = vld [vmem:[%s4993 + $0x18] sm:$0xff]
        %v5512 = vld [vmem:[%s4993 + $0x20] sm:$0xff]
        %v5513 = vld [vmem:[%s4993 + $0x28] sm:$0x11]
        %v5514 = vld [vmem:[%s4993 + $0x30] sm:$0xff]
        %v5515 = vld [vmem:[%s4993 + $0x38] sm:$0xff]
        %v5516 = vld [vmem:[%s4993 + $0x40] sm:$0x11]
        %v5517 = vld [vmem:[%s4993 + $0x48] sm:$0xff]
        %v5518 = vld [vmem:[%s4993 + $0x50] sm:$0xff]
        %v5519 = vld [vmem:[%s4993 + $0x58] sm:$0x11]
        %v5520 = vld [vmem:[%s4993 + $0x60] sm:$0xff]
        %v5521 = vld [vmem:[%s4993 + $0x68] sm:$0xff]
        %v5522 = vld [vmem:[%s4993 + $0x70] sm:$0x11]
        %v5523 = vld [vmem:[%s4993 + $0x78] sm:$0xff]
        %v5524 = vld [vmem:[%s4993 + $0x80] sm:$0xff]
        %v5525 = vld [vmem:[%s4993 + $0x88] sm:$0x11]
        %v5526 = vld [vmem:[%s4993 + $0x90] sm:$0xff]
        %v5527 = vld [vmem:[%s4993 + $0x98] sm:$0xff]
        %v5528 = vld [vmem:[%s4993 + $0xa0] sm:$0x11]
        %v5529 = vld [vmem:[%s4993 + $0xa8] sm:$0xff]
        %v5530 = vld [vmem:[%s4993 + $0xb0] sm:$0xff]
        %v5531 = vld [vmem:[%s4993 + $0xb8] sm:$0x11]
        %v5532 = vld [vmem:[%s4993 + $0xc0] sm:$0xff]
        %v5533 = vld [vmem:[%s4993 + $0xc8] sm:$0xff]
        %v5534 = vld [vmem:[%s4993 + $0xd0] sm:$0x11]
        %v5535 = vld [vmem:[%s4993 + $0xd8] sm:$0xff]
        %v5536 = vld [vmem:[%s4993 + $0xe0] sm:$0xff]
        %v5537 = vld [vmem:[%s4993 + $0xe8] sm:$0x11]
        %v5538 = vld [vmem:[%s4993 + $0xf0] sm:$0xff]
        %v5539 = vld [vmem:[%s4993 + $0xf8] sm:$0xff]
        %v5540 = vld [vmem:[%s4993 + $0x100] sm:$0x11]
        %v5541 = vld [vmem:[%s4993 + $0x108] sm:$0xff]
        %v5542 = vld [vmem:[%s4993 + $0x110] sm:$0xff]
        %v5543 = vld [vmem:[%s4993 + $0x118] sm:$0x11]
        %v5544 = vld [vmem:[%s4993 + $0x120] sm:$0xff]
        %v5545 = vld [vmem:[%s4993 + $0x128] sm:$0xff]
        %v5546 = vld [vmem:[%s4993 + $0x130] sm:$0x11]
        %v5547 = vld [vmem:[%s4993 + $0x138] sm:$0xff]
        %v5548 = vld [vmem:[%s4993 + $0x140] sm:$0xff]
        %v5549 = vld [vmem:[%s4993 + $0x148] sm:$0x11]
        %v5550 = vld [vmem:[%s4993 + $0x150] sm:$0xff]
        %v5551 = vld [vmem:[%s4993 + $0x158] sm:$0xff]
        %v5552 = vld [vmem:[%s4993 + $0x160] sm:$0x11]
        %v5553 = vld [vmem:[%s4993 + $0x168] sm:$0xff]
        %v5554 = vld [vmem:[%s4993 + $0x170] sm:$0xff]
        %v5555 = vld [vmem:[%s4993 + $0x178] sm:$0x11]
        %v5557 = vshrl.u32 %v5508, 16
        %v5559 = vrot.slane %v5557, 4
        %v5560 = vshll.u32 %v5508, 16
        %v5562 = vrot.slane %v5560, 5
        %v5563 = vor.u32 %v5559, %v5562
        %v5564 = vrot.slane %v5563, 4
        %v5566 = vshll.u32 %v5509, 16
        %v5568 = vrot.slane %v5566, 5
        %v5569 = vsel %vm1138, %v5564, %v5568
        %v5570 = vshrl.u32 %v5509, 16
        %v5572 = vrot.slane %v5570, 4
        %v5573 = vor.u32 %v5572, %v5568
        %v5574 = vrot.slane %v5573, 4
        %v5576 = vshll.u32 %v5510, 16
        %v5578 = vrot.slane %v5576, 5
        %v5579 = vsel %vm1138, %v5574, %v5578
        %v5581 = vshrl.u32 %v5511, 16
        %v5583 = vrot.slane %v5581, 4
        %v5584 = vshll.u32 %v5511, 16
        %v5586 = vrot.slane %v5584, 5
        %v5587 = vor.u32 %v5583, %v5586
        %v5588 = vrot.slane %v5587, 4
        %v5590 = vshll.u32 %v5512, 16
        %v5592 = vrot.slane %v5590, 5
        %v5593 = vsel %vm1138, %v5588, %v5592
        %v5594 = vshrl.u32 %v5512, 16
        %v5596 = vrot.slane %v5594, 4
        %v5597 = vor.u32 %v5596, %v5592
        %v5598 = vrot.slane %v5597, 4
        %v5600 = vshll.u32 %v5513, 16
        %v5602 = vrot.slane %v5600, 5
        %v5603 = vsel %vm1138, %v5598, %v5602
        %v5605 = vshrl.u32 %v5514, 16
        %v5607 = vrot.slane %v5605, 4
        %v5608 = vshll.u32 %v5514, 16
        %v5610 = vrot.slane %v5608, 5
        %v5611 = vor.u32 %v5607, %v5610
        %v5612 = vrot.slane %v5611, 4
        %v5614 = vshll.u32 %v5515, 16
        %v5616 = vrot.slane %v5614, 5
        %v5617 = vsel %vm1138, %v5612, %v5616
        %v5618 = vshrl.u32 %v5515, 16
        %v5620 = vrot.slane %v5618, 4
        %v5621 = vor.u32 %v5620, %v5616
        %v5622 = vrot.slane %v5621, 4
        %v5624 = vshll.u32 %v5516, 16
        %v5626 = vrot.slane %v5624, 5
        %v5627 = vsel %vm1138, %v5622, %v5626
        %v5629 = vshrl.u32 %v5517, 16
        %v5631 = vrot.slane %v5629, 4
        %v5632 = vshll.u32 %v5517, 16
        %v5634 = vrot.slane %v5632, 5
        %v5635 = vor.u32 %v5631, %v5634
        %v5636 = vrot.slane %v5635, 4
        %v5638 = vshll.u32 %v5518, 16
        %v5640 = vrot.slane %v5638, 5
        %v5641 = vsel %vm1138, %v5636, %v5640
        %v5642 = vshrl.u32 %v5518, 16
        %v5644 = vrot.slane %v5642, 4
        %v5645 = vor.u32 %v5644, %v5640
        %v5646 = vrot.slane %v5645, 4
        %v5648 = vshll.u32 %v5519, 16
        %v5650 = vrot.slane %v5648, 5
        %v5651 = vsel %vm1138, %v5646, %v5650
        %v5653 = vshrl.u32 %v5520, 16
        %v5655 = vrot.slane %v5653, 4
        %v5656 = vshll.u32 %v5520, 16
        %v5658 = vrot.slane %v5656, 5
        %v5659 = vor.u32 %v5655, %v5658
        %v5660 = vrot.slane %v5659, 4
        %v5662 = vshll.u32 %v5521, 16
        %v5664 = vrot.slane %v5662, 5
        %v5665 = vsel %vm1138, %v5660, %v5664
        %v5666 = vshrl.u32 %v5521, 16
        %v5668 = vrot.slane %v5666, 4
        %v5669 = vor.u32 %v5668, %v5664
        %v5670 = vrot.slane %v5669, 4
        %v5672 = vshll.u32 %v5522, 16
        %v5674 = vrot.slane %v5672, 5
        %v5675 = vsel %vm1138, %v5670, %v5674
        %v5677 = vshrl.u32 %v5523, 16
        %v5679 = vrot.slane %v5677, 4
        %v5680 = vshll.u32 %v5523, 16
        %v5682 = vrot.slane %v5680, 5
        %v5683 = vor.u32 %v5679, %v5682
        %v5684 = vrot.slane %v5683, 4
        %v5686 = vshll.u32 %v5524, 16
        %v5688 = vrot.slane %v5686, 5
        %v5689 = vsel %vm1138, %v5684, %v5688
        %v5690 = vshrl.u32 %v5524, 16
        %v5692 = vrot.slane %v5690, 4
        %v5693 = vor.u32 %v5692, %v5688
        %v5694 = vrot.slane %v5693, 4
        %v5696 = vshll.u32 %v5525, 16
        %v5698 = vrot.slane %v5696, 5
        %v5699 = vsel %vm1138, %v5694, %v5698
        %v5701 = vshrl.u32 %v5526, 16
        %v5703 = vrot.slane %v5701, 4
        %v5704 = vshll.u32 %v5526, 16
        %v5706 = vrot.slane %v5704, 5
        %v5707 = vor.u32 %v5703, %v5706
        %v5708 = vrot.slane %v5707, 4
        %v5710 = vshll.u32 %v5527, 16
        %v5712 = vrot.slane %v5710, 5
        %v5713 = vsel %vm1138, %v5708, %v5712
        %v5714 = vshrl.u32 %v5527, 16
        %v5716 = vrot.slane %v5714, 4
        %v5717 = vor.u32 %v5716, %v5712
        %v5718 = vrot.slane %v5717, 4
        %v5720 = vshll.u32 %v5528, 16
        %v5722 = vrot.slane %v5720, 5
        %v5723 = vsel %vm1138, %v5718, %v5722
        %v5725 = vshrl.u32 %v5529, 16
        %v5727 = vrot.slane %v5725, 4
        %v5728 = vshll.u32 %v5529, 16
        %v5730 = vrot.slane %v5728, 5
        %v5731 = vor.u32 %v5727, %v5730
        %v5732 = vrot.slane %v5731, 4
        %v5734 = vshll.u32 %v5530, 16
        %v5736 = vrot.slane %v5734, 5
        %v5737 = vsel %vm1138, %v5732, %v5736
        %v5738 = vshrl.u32 %v5530, 16
        %v5740 = vrot.slane %v5738, 4
        %v5741 = vor.u32 %v5740, %v5736
        %v5742 = vrot.slane %v5741, 4
        %v5744 = vshll.u32 %v5531, 16
        %v5746 = vrot.slane %v5744, 5
        %v5747 = vsel %vm1138, %v5742, %v5746
        %v5749 = vshrl.u32 %v5532, 16
        %v5751 = vrot.slane %v5749, 4
        %v5752 = vshll.u32 %v5532, 16
        %v5754 = vrot.slane %v5752, 5
        %v5755 = vor.u32 %v5751, %v5754
        %v5756 = vrot.slane %v5755, 4
        %v5758 = vshll.u32 %v5533, 16
        %v5760 = vrot.slane %v5758, 5
        %v5761 = vsel %vm1138, %v5756, %v5760
        %v5762 = vshrl.u32 %v5533, 16
        %v5764 = vrot.slane %v5762, 4
        %v5765 = vor.u32 %v5764, %v5760
        %v5766 = vrot.slane %v5765, 4
        %v5768 = vshll.u32 %v5534, 16
        %v5770 = vrot.slane %v5768, 5
        %v5771 = vsel %vm1138, %v5766, %v5770
        %v5773 = vshrl.u32 %v5535, 16
        %v5775 = vrot.slane %v5773, 4
        %v5776 = vshll.u32 %v5535, 16
        %v5778 = vrot.slane %v5776, 5
        %v5779 = vor.u32 %v5775, %v5778
        %v5780 = vrot.slane %v5779, 4
        %v5782 = vshll.u32 %v5536, 16
        %v5784 = vrot.slane %v5782, 5
        %v5785 = vsel %vm1138, %v5780, %v5784
        %v5786 = vshrl.u32 %v5536, 16
        %v5788 = vrot.slane %v5786, 4
        %v5789 = vor.u32 %v5788, %v5784
        %v5790 = vrot.slane %v5789, 4
        %v5792 = vshll.u32 %v5537, 16
        %v5794 = vrot.slane %v5792, 5
        %v5795 = vsel %vm1138, %v5790, %v5794
        %v5797 = vshrl.u32 %v5538, 16
        %v5799 = vrot.slane %v5797, 4
        %v5800 = vshll.u32 %v5538, 16
        %v5802 = vrot.slane %v5800, 5
        %v5803 = vor.u32 %v5799, %v5802
        %v5804 = vrot.slane %v5803, 4
        %v5806 = vshll.u32 %v5539, 16
        %v5808 = vrot.slane %v5806, 5
        %v5809 = vsel %vm1138, %v5804, %v5808
        %v5810 = vshrl.u32 %v5539, 16
        %v5812 = vrot.slane %v5810, 4
        %v5813 = vor.u32 %v5812, %v5808
        %v5814 = vrot.slane %v5813, 4
        %v5816 = vshll.u32 %v5540, 16
        %v5818 = vrot.slane %v5816, 5
        %v5819 = vsel %vm1138, %v5814, %v5818
        %v5821 = vshrl.u32 %v5541, 16
        %v5823 = vrot.slane %v5821, 4
        %v5824 = vshll.u32 %v5541, 16
        %v5826 = vrot.slane %v5824, 5
        %v5827 = vor.u32 %v5823, %v5826
        %v5828 = vrot.slane %v5827, 4
        %v5830 = vshll.u32 %v5542, 16
        %v5832 = vrot.slane %v5830, 5
        %v5833 = vsel %vm1138, %v5828, %v5832
        %v5834 = vshrl.u32 %v5542, 16
        %v5836 = vrot.slane %v5834, 4
        %v5837 = vor.u32 %v5836, %v5832
        %v5838 = vrot.slane %v5837, 4
        %v5840 = vshll.u32 %v5543, 16
        %v5842 = vrot.slane %v5840, 5
        %v5843 = vsel %vm1138, %v5838, %v5842
        %v5845 = vshrl.u32 %v5544, 16
        %v5847 = vrot.slane %v5845, 4
        %v5848 = vshll.u32 %v5544, 16
        %v5850 = vrot.slane %v5848, 5
        %v5851 = vor.u32 %v5847, %v5850
        %v5852 = vrot.slane %v5851, 4
        %v5854 = vshll.u32 %v5545, 16
        %v5856 = vrot.slane %v5854, 5
        %v5857 = vsel %vm1138, %v5852, %v5856
        %v5858 = vshrl.u32 %v5545, 16
        %v5860 = vrot.slane %v5858, 4
        %v5861 = vor.u32 %v5860, %v5856
        %v5862 = vrot.slane %v5861, 4
        %v5864 = vshll.u32 %v5546, 16
        %v5866 = vrot.slane %v5864, 5
        %v5867 = vsel %vm1138, %v5862, %v5866
        %v5869 = vshrl.u32 %v5547, 16
        %v5871 = vrot.slane %v5869, 4
        %v5872 = vshll.u32 %v5547, 16
        %v5874 = vrot.slane %v5872, 5
        %v5875 = vor.u32 %v5871, %v5874
        %v5876 = vrot.slane %v5875, 4
        %v5878 = vshll.u32 %v5548, 16
        %v5880 = vrot.slane %v5878, 5
        %v5881 = vsel %vm1138, %v5876, %v5880
        %v5882 = vshrl.u32 %v5548, 16
        %v5884 = vrot.slane %v5882, 4
        %v5885 = vor.u32 %v5884, %v5880
        %v5886 = vrot.slane %v5885, 4
        %v5888 = vshll.u32 %v5549, 16
        %v5890 = vrot.slane %v5888, 5
        %v5891 = vsel %vm1138, %v5886, %v5890
        %v5893 = vshrl.u32 %v5550, 16
        %v5895 = vrot.slane %v5893, 4
        %v5896 = vshll.u32 %v5550, 16
        %v5898 = vrot.slane %v5896, 5
        %v5899 = vor.u32 %v5895, %v5898
        %v5900 = vrot.slane %v5899, 4
        %v5902 = vshll.u32 %v5551, 16
        %v5904 = vrot.slane %v5902, 5
        %v5905 = vsel %vm1138, %v5900, %v5904
        %v5906 = vshrl.u32 %v5551, 16
        %v5908 = vrot.slane %v5906, 4
        %v5909 = vor.u32 %v5908, %v5904
        %v5910 = vrot.slane %v5909, 4
        %v5912 = vshll.u32 %v5552, 16
        %v5914 = vrot.slane %v5912, 5
        %v5915 = vsel %vm1138, %v5910, %v5914
        %v5917 = vshrl.u32 %v5553, 16
        %v5919 = vrot.slane %v5917, 4
        %v5920 = vshll.u32 %v5553, 16
        %v5922 = vrot.slane %v5920, 5
        %v5923 = vor.u32 %v5919, %v5922
        %v5924 = vrot.slane %v5923, 4
        %v5926 = vshll.u32 %v5554, 16
        %v5928 = vrot.slane %v5926, 5
        %v5929 = vsel %vm1138, %v5924, %v5928
        %v5930 = vshrl.u32 %v5554, 16
        %v5932 = vrot.slane %v5930, 4
        %v5933 = vor.u32 %v5932, %v5928
        %v5934 = vrot.slane %v5933, 4
        %v5936 = vshll.u32 %v5555, 16
        %v5938 = vrot.slane %v5936, 5
        %v5939 = vsel %vm1138, %v5934, %v5938
        %s5940 = scalar_lea.vmem [#allocation7], 896
        %v5941 = vld [vmem:[%s5940] sm:$0xf]
        %v5942 = vld [vmem:[%s5940 + $0x4] sm:$0xf]
        %v5943 = vld [vmem:[%s5940 + $0x8] sm:$0xf]
        %v5944 = vld [vmem:[%s5940 + $0xc] sm:$0xf]
        %v5945 = vld [vmem:[%s5940 + $0x10] sm:$0xf]
        %v5946 = vld [vmem:[%s5940 + $0x14] sm:$0xf]
        %v5947 = vld [vmem:[%s5940 + $0x18] sm:$0xf]
        %v5948 = vld [vmem:[%s5940 + $0x1c] sm:$0xf]
        %v5949 = vld [vmem:[%s5940 + $0x20] sm:$0xf]
        %v5950 = vld [vmem:[%s5940 + $0x24] sm:$0xf]
        %v5951 = vld [vmem:[%s5940 + $0x28] sm:$0xf]
        %v5952 = vld [vmem:[%s5940 + $0x2c] sm:$0xf]
        %v5953 = vld [vmem:[%s5940 + $0x30] sm:$0xf]
        %v5954 = vld [vmem:[%s5940 + $0x34] sm:$0xf]
        %v5955 = vld [vmem:[%s5940 + $0x38] sm:$0xf]
        %v5956 = vld [vmem:[%s5940 + $0x3c] sm:$0xf]
        %v5957 = vld [vmem:[%s5940 + $0x40] sm:$0xf]
        %v5958 = vld [vmem:[%s5940 + $0x44] sm:$0xf]
        %v5959 = vld [vmem:[%s5940 + $0x48] sm:$0xf]
        %v5960 = vld [vmem:[%s5940 + $0x4c] sm:$0xf]
        %v5961 = vld [vmem:[%s5940 + $0x50] sm:$0xf]
        %v5962 = vld [vmem:[%s5940 + $0x54] sm:$0xf]
        %v5963 = vld [vmem:[%s5940 + $0x58] sm:$0xf]
        %v5964 = vld [vmem:[%s5940 + $0x5c] sm:$0xf]
        %v5965 = vld [vmem:[%s5940 + $0x60] sm:$0xf]
        %v5966 = vld [vmem:[%s5940 + $0x64] sm:$0xf]
        %v5967 = vld [vmem:[%s5940 + $0x68] sm:$0xf]
        %v5968 = vld [vmem:[%s5940 + $0x6c] sm:$0xf]
        %v5969 = vld [vmem:[%s5940 + $0x70] sm:$0xf]
        %v5970 = vld [vmem:[%s5940 + $0x74] sm:$0xf]
        %v5971 = vld [vmem:[%s5940 + $0x78] sm:$0xf]
        %v5972 = vld [vmem:[%s5940 + $0x7c] sm:$0xf]
        %v5973 = vunpack.c.l.b16 %v5569
        %v5974 = vunpack.c.h.b16 %v5569
        %v5975 = vunpack.c.l.b16 %v5579
        %v5976 = vunpack.c.h.b16 %v5579
        %v5977 = vunpack.c.l.b16 %v5593
        %v5978 = vunpack.c.h.b16 %v5593
        %v5979 = vunpack.c.l.b16 %v5603
        %v5980 = vunpack.c.h.b16 %v5603
        %v5981 = vunpack.c.l.b16 %v5617
        %v5982 = vunpack.c.h.b16 %v5617
        %v5983 = vunpack.c.l.b16 %v5627
        %v5984 = vunpack.c.h.b16 %v5627
        %v5985 = vunpack.c.l.b16 %v5641
        %v5986 = vunpack.c.h.b16 %v5641
        %v5987 = vunpack.c.l.b16 %v5651
        %v5988 = vunpack.c.h.b16 %v5651
        %v5989 = vunpack.c.l.b16 %v5665
        %v5990 = vunpack.c.h.b16 %v5665
        %v5991 = vunpack.c.l.b16 %v5675
        %v5992 = vunpack.c.h.b16 %v5675
        %v5993 = vunpack.c.l.b16 %v5689
        %v5994 = vunpack.c.h.b16 %v5689
        %v5995 = vunpack.c.l.b16 %v5699
        %v5996 = vunpack.c.h.b16 %v5699
        %v5997 = vunpack.c.l.b16 %v5713
        %v5998 = vunpack.c.h.b16 %v5713
        %v5999 = vunpack.c.l.b16 %v5723
        %v6000 = vunpack.c.h.b16 %v5723
        %v6001 = vunpack.c.l.b16 %v5737
        %v6002 = vunpack.c.h.b16 %v5737
        %v6003 = vunpack.c.l.b16 %v5747
        %v6004 = vunpack.c.h.b16 %v5747
        %v6005 = vunpack.c.l.b16 %v5761
        %v6006 = vunpack.c.h.b16 %v5761
        %v6007 = vunpack.c.l.b16 %v5771
        %v6008 = vunpack.c.h.b16 %v5771
        %v6009 = vunpack.c.l.b16 %v5785
        %v6010 = vunpack.c.h.b16 %v5785
        %v6011 = vunpack.c.l.b16 %v5795
        %v6012 = vunpack.c.h.b16 %v5795
        %v6013 = vunpack.c.l.b16 %v5809
        %v6014 = vunpack.c.h.b16 %v5809
        %v6015 = vunpack.c.l.b16 %v5819
        %v6016 = vunpack.c.h.b16 %v5819
        %v6017 = vunpack.c.l.b16 %v5833
        %v6018 = vunpack.c.h.b16 %v5833
        %v6019 = vunpack.c.l.b16 %v5843
        %v6020 = vunpack.c.h.b16 %v5843
        %v6021 = vunpack.c.l.b16 %v5857
        %v6022 = vunpack.c.h.b16 %v5857
        %v6023 = vunpack.c.l.b16 %v5867
        %v6024 = vunpack.c.h.b16 %v5867
        %v6025 = vunpack.c.l.b16 %v5881
        %v6026 = vunpack.c.h.b16 %v5881
        %v6027 = vunpack.c.l.b16 %v5891
        %v6028 = vunpack.c.h.b16 %v5891
        %v6029 = vunpack.c.l.b16 %v5905
        %v6030 = vunpack.c.h.b16 %v5905
        %v6031 = vunpack.c.l.b16 %v5915
        %v6032 = vunpack.c.h.b16 %v5915
        %v6033 = vunpack.c.l.b16 %v5929
        %v6034 = vunpack.c.h.b16 %v5929
        %v6035 = vunpack.c.l.b16 %v5939
        %v6036 = vunpack.c.h.b16 %v5939
        %v6037 = vpack.c.b16 %v5975, %v5973
        %v6038 = vpack.c.b16 %v5976, %v5974
        %v6039 = vpack.c.b16 %v5979, %v5977
        %v6040 = vpack.c.b16 %v5980, %v5978
        %v6041 = vpack.c.b16 %v5983, %v5981
        %v6042 = vpack.c.b16 %v5984, %v5982
        %v6043 = vpack.c.b16 %v5987, %v5985
        %v6044 = vpack.c.b16 %v5988, %v5986
        %v6045 = vpack.c.b16 %v5991, %v5989
        %v6046 = vpack.c.b16 %v5992, %v5990
        %v6047 = vpack.c.b16 %v5995, %v5993
        %v6048 = vpack.c.b16 %v5996, %v5994
        %v6049 = vpack.c.b16 %v5999, %v5997
        %v6050 = vpack.c.b16 %v6000, %v5998
        %v6051 = vpack.c.b16 %v6003, %v6001
        %v6052 = vpack.c.b16 %v6004, %v6002
        %v6053 = vpack.c.b16 %v6007, %v6005
        %v6054 = vpack.c.b16 %v6008, %v6006
        %v6055 = vpack.c.b16 %v6011, %v6009
        %v6056 = vpack.c.b16 %v6012, %v6010
        %v6057 = vpack.c.b16 %v6015, %v6013
        %v6058 = vpack.c.b16 %v6016, %v6014
        %v6059 = vpack.c.b16 %v6019, %v6017
        %v6060 = vpack.c.b16 %v6020, %v6018
        %v6061 = vpack.c.b16 %v6023, %v6021
        %v6062 = vpack.c.b16 %v6024, %v6022
        %v6063 = vpack.c.b16 %v6027, %v6025
        %v6064 = vpack.c.b16 %v6028, %v6026
        %v6065 = vpack.c.b16 %v6031, %v6029
        %v6066 = vpack.c.b16 %v6032, %v6030
        %v6067 = vpack.c.b16 %v6035, %v6033
        %v6068 = vpack.c.b16 %v6036, %v6034
        %v6133 = vunpack.c.l.b16 %v5941
        %v6134 = vunpack.c.l.b16 %v5942
        %v6135 = vunpack.c.l.b16 %v5943
        %v6136 = vunpack.c.l.b16 %v5944
        %v6137 = vunpack.c.l.b16 %v5945
        %v6138 = vunpack.c.l.b16 %v5946
        %v6139 = vunpack.c.l.b16 %v5947
        %v6140 = vunpack.c.l.b16 %v5948
        %v6141 = vunpack.c.l.b16 %v5949
        %v6142 = vunpack.c.l.b16 %v5950
        %v6143 = vunpack.c.l.b16 %v5951
        %v6144 = vunpack.c.l.b16 %v5952
        %v6145 = vunpack.c.l.b16 %v5953
        %v6146 = vunpack.c.l.b16 %v5954
        %v6147 = vunpack.c.l.b16 %v5955
        %v6148 = vunpack.c.l.b16 %v5956
        %v6149 = vunpack.c.l.b16 %v5957
        %v6150 = vunpack.c.l.b16 %v5958
        %v6151 = vunpack.c.l.b16 %v5959
        %v6152 = vunpack.c.l.b16 %v5960
        %v6153 = vunpack.c.l.b16 %v5961
        %v6154 = vunpack.c.l.b16 %v5962
        %v6155 = vunpack.c.l.b16 %v5963
        %v6156 = vunpack.c.l.b16 %v5964
        %v6157 = vunpack.c.l.b16 %v5965
        %v6158 = vunpack.c.l.b16 %v5966
        %v6159 = vunpack.c.l.b16 %v5967
        %v6160 = vunpack.c.l.b16 %v5968
        %v6161 = vunpack.c.l.b16 %v5969
        %v6162 = vunpack.c.l.b16 %v5970
        %v6163 = vunpack.c.l.b16 %v5971
        %v6164 = vunpack.c.l.b16 %v5972
        %v6165 = vpack.c.b16 %v6134, %v6133
        %v6166 = vpack.c.b16 %v6136, %v6135
        %v6167 = vpack.c.b16 %v6138, %v6137
        %v6168 = vpack.c.b16 %v6140, %v6139
        %v6169 = vpack.c.b16 %v6142, %v6141
        %v6170 = vpack.c.b16 %v6144, %v6143
        %v6171 = vpack.c.b16 %v6146, %v6145
        %v6172 = vpack.c.b16 %v6148, %v6147
        %v6173 = vpack.c.b16 %v6150, %v6149
        %v6174 = vpack.c.b16 %v6152, %v6151
        %v6175 = vpack.c.b16 %v6154, %v6153
        %v6176 = vpack.c.b16 %v6156, %v6155
        %v6177 = vpack.c.b16 %v6158, %v6157
        %v6178 = vpack.c.b16 %v6160, %v6159
        %v6179 = vpack.c.b16 %v6162, %v6161
        %v6180 = vpack.c.b16 %v6164, %v6163
        %6197 = vmatprep.subr.bf16.mxu0 0
        %6198 = vmatpush1.bf16.msra.mxu0 %v6165
        %6199 = vmatprep.subr.bf16.mxu0 0
        %6200 = vmatpush1.bf16.msra.mxu0 %v6166
        %6201 = vmatprep.subr.bf16.mxu0 0
        %6202 = vmatpush1.bf16.msra.mxu0 %v6167
        %6203 = vmatprep.subr.bf16.mxu0 0
        %6204 = vmatpush1.bf16.msra.mxu0 %v6168
        %6205 = vmatprep.subr.bf16.mxu0 0
        %6206 = vmatpush1.bf16.msra.mxu0 %v6169
        %6207 = vmatprep.subr.bf16.mxu0 0
        %6208 = vmatpush1.bf16.msra.mxu0 %v6170
        %6209 = vmatprep.subr.bf16.mxu0 0
        %6210 = vmatpush1.bf16.msra.mxu0 %v6171
        %6211 = vmatprep.subr.bf16.mxu0 0
        %6212 = vmatpush1.bf16.msra.mxu0 %v6172
        %6213 = vmatprep.subr.bf16.mxu0 0
        %6214 = vmatpush1.bf16.msra.mxu0 %v6173
        %6215 = vmatprep.subr.bf16.mxu0 0
        %6216 = vmatpush1.bf16.msra.mxu0 %v6174
        %6217 = vmatprep.subr.bf16.mxu0 0
        %6218 = vmatpush1.bf16.msra.mxu0 %v6175
        %6219 = vmatprep.subr.bf16.mxu0 0
        %6220 = vmatpush1.bf16.msra.mxu0 %v6176
        %6221 = vmatprep.subr.bf16.mxu0 0
        %6222 = vmatpush1.bf16.msra.mxu0 %v6177
        %6223 = vmatprep.subr.bf16.mxu0 0
        %6224 = vmatpush1.bf16.msra.mxu0 %v6178
        %6225 = vmatprep.subr.bf16.mxu0 0
        %6226 = vmatpush1.bf16.msra.mxu0 %v6179
        %6227 = vmatprep.subr.bf16.mxu0 0
        %6228 = vmatpush1.bf16.msra.mxu0 %v6180
        %6229 = vmatprep.mubr.bf16.mxu0 %v6038
        %6230 = vmatmul.mubr.bf16.gmra.mrb[0].mxu0 %v6037
        %v6231 = vpop.f32.mrb[0].mxu0
        %v6232 = vadd.f32 0.0, %v6231
        %v6233 = vpop.f32.mrb[0].mxu0
        %v6234 = vpop.f32.mrb[0].mxu0
        %v6235 = vadd.f32 0.0, %v6234
        %v6236 = vpop.f32.mrb[0].mxu0
        %6237 = vmatprep.mubr.bf16.mxu0 %v6040
        %6238 = vmatmul.mubr.bf16.gmra.mrb[0].mxu0 %v6039
        %v6239 = vpop.f32.mrb[0].mxu0
        %v6240 = vadd.f32 0.0, %v6239
        %v6241 = vpop.f32.mrb[0].mxu0
        %v6242 = vpop.f32.mrb[0].mxu0
        %v6243 = vadd.f32 0.0, %v6242
        %v6244 = vpop.f32.mrb[0].mxu0
        %6245 = vmatprep.mubr.bf16.mxu0 %v6042
        %6246 = vmatmul.mubr.bf16.gmra.mrb[0].mxu0 %v6041
        %v6247 = vpop.f32.mrb[0].mxu0
        %v6248 = vadd.f32 0.0, %v6247
        %v6249 = vpop.f32.mrb[0].mxu0
        %v6250 = vpop.f32.mrb[0].mxu0
        %v6251 = vadd.f32 0.0, %v6250
        %v6252 = vpop.f32.mrb[0].mxu0
        %6253 = vmatprep.mubr.bf16.mxu0 %v6044
        %6254 = vmatmul.mubr.bf16.gmra.mrb[0].mxu0 %v6043
        %v6255 = vpop.f32.mrb[0].mxu0
        %v6256 = vadd.f32 0.0, %v6255
        %v6257 = vpop.f32.mrb[0].mxu0
        %v6258 = vpop.f32.mrb[0].mxu0
        %v6259 = vadd.f32 0.0, %v6258
        %v6260 = vpop.f32.mrb[0].mxu0
        %6261 = vmatprep.mubr.bf16.mxu0 %v6046
        %6262 = vmatmul.mubr.bf16.gmra.mrb[0].mxu0 %v6045
        %v6263 = vpop.f32.mrb[0].mxu0
        %v6264 = vadd.f32 0.0, %v6263
        %v6265 = vpop.f32.mrb[0].mxu0
        %v6266 = vpop.f32.mrb[0].mxu0
        %v6267 = vadd.f32 0.0, %v6266
        %v6268 = vpop.f32.mrb[0].mxu0
        %6269 = vmatprep.mubr.bf16.mxu0 %v6048
        %6270 = vmatmul.mubr.bf16.gmra.mrb[0].mxu0 %v6047
        %v6271 = vpop.f32.mrb[0].mxu0
        %v6272 = vadd.f32 0.0, %v6271
        %v6273 = vpop.f32.mrb[0].mxu0
        %v6274 = vpop.f32.mrb[0].mxu0
        %v6275 = vadd.f32 0.0, %v6274
        %v6276 = vpop.f32.mrb[0].mxu0
        %6277 = vmatprep.mubr.bf16.mxu0 %v6050
        %6278 = vmatmul.mubr.bf16.gmra.mrb[0].mxu0 %v6049
        %v6279 = vpop.f32.mrb[0].mxu0
        %v6280 = vadd.f32 0.0, %v6279
        %v6281 = vpop.f32.mrb[0].mxu0
        %v6282 = vpop.f32.mrb[0].mxu0
        %v6283 = vadd.f32 0.0, %v6282
        %v6284 = vpop.f32.mrb[0].mxu0
        %6285 = vmatprep.mubr.bf16.mxu0 %v6052
        %6286 = vmatmul.mubr.bf16.gmra.mrb[0].mxu0 %v6051
        %v6287 = vpop.f32.mrb[0].mxu0
        %v6288 = vadd.f32 0.0, %v6287
        %v6289 = vpop.f32.mrb[0].mxu0
        %v6290 = vpop.f32.mrb[0].mxu0
        %v6291 = vadd.f32 0.0, %v6290
        %v6292 = vpop.f32.mrb[0].mxu0
        %6293 = vmatprep.mubr.bf16.mxu0 %v6054
        %6294 = vmatmul.mubr.bf16.gmra.mrb[0].mxu0 %v6053
        %v6295 = vpop.f32.mrb[0].mxu0
        %v6296 = vadd.f32 0.0, %v6295
        %v6297 = vpop.f32.mrb[0].mxu0
        %v6298 = vpop.f32.mrb[0].mxu0
        %v6299 = vadd.f32 0.0, %v6298
        %v6300 = vpop.f32.mrb[0].mxu0
        %6301 = vmatprep.mubr.bf16.mxu0 %v6056
        %6302 = vmatmul.mubr.bf16.gmra.mrb[0].mxu0 %v6055
        %v6303 = vpop.f32.mrb[0].mxu0
        %v6304 = vadd.f32 0.0, %v6303
        %v6305 = vpop.f32.mrb[0].mxu0
        %v6306 = vpop.f32.mrb[0].mxu0
        %v6307 = vadd.f32 0.0, %v6306
        %v6308 = vpop.f32.mrb[0].mxu0
        %6309 = vmatprep.mubr.bf16.mxu0 %v6058
        %6310 = vmatmul.mubr.bf16.gmra.mrb[0].mxu0 %v6057
        %v6311 = vpop.f32.mrb[0].mxu0
        %v6312 = vadd.f32 0.0, %v6311
        %v6313 = vpop.f32.mrb[0].mxu0
        %v6314 = vpop.f32.mrb[0].mxu0
        %v6315 = vadd.f32 0.0, %v6314
        %v6316 = vpop.f32.mrb[0].mxu0
        %6317 = vmatprep.mubr.bf16.mxu0 %v6060
        %6318 = vmatmul.mubr.bf16.gmra.mrb[0].mxu0 %v6059
        %v6319 = vpop.f32.mrb[0].mxu0
        %v6320 = vadd.f32 0.0, %v6319
        %v6321 = vpop.f32.mrb[0].mxu0
        %v6322 = vpop.f32.mrb[0].mxu0
        %v6323 = vadd.f32 0.0, %v6322
        %v6324 = vpop.f32.mrb[0].mxu0
        %6325 = vmatprep.mubr.bf16.mxu0 %v6062
        %6326 = vmatmul.mubr.bf16.gmra.mrb[0].mxu0 %v6061
        %v6327 = vpop.f32.mrb[0].mxu0
        %v6328 = vadd.f32 0.0, %v6327
        %v6329 = vpop.f32.mrb[0].mxu0
        %v6330 = vpop.f32.mrb[0].mxu0
        %v6331 = vadd.f32 0.0, %v6330
        %v6332 = vpop.f32.mrb[0].mxu0
        %6333 = vmatprep.mubr.bf16.mxu0 %v6064
        %6334 = vmatmul.mubr.bf16.gmra.mrb[0].mxu0 %v6063
        %v6335 = vpop.f32.mrb[0].mxu0
        %v6336 = vadd.f32 0.0, %v6335
        %v6337 = vpop.f32.mrb[0].mxu0
        %v6338 = vpop.f32.mrb[0].mxu0
        %v6339 = vadd.f32 0.0, %v6338
        %v6340 = vpop.f32.mrb[0].mxu0
        %6341 = vmatprep.mubr.bf16.mxu0 %v6066
        %6342 = vmatmul.mubr.bf16.gmra.mrb[0].mxu0 %v6065
        %v6343 = vpop.f32.mrb[0].mxu0
        %v6344 = vadd.f32 0.0, %v6343
        %v6345 = vpop.f32.mrb[0].mxu0
        %v6346 = vpop.f32.mrb[0].mxu0
        %v6347 = vadd.f32 0.0, %v6346
        %v6348 = vpop.f32.mrb[0].mxu0
        %6349 = vmatprep.mubr.bf16.mxu0 %v6068
        %6350 = vmatmul.mubr.bf16.gmra.mrb[0].mxu0 %v6067
        %v6351 = vpop.f32.mrb[0].mxu0
        %v6352 = vadd.f32 0.0, %v6351
        %v6353 = vpop.f32.mrb[0].mxu0
        %v6354 = vpop.f32.mrb[0].mxu0
        %v6355 = vadd.f32 0.0, %v6354
        %v6356 = vpop.f32.mrb[0].mxu0
        %6357 = vdwg.mxu0
        %v6358 = vadd.f32 %v5476, %v6232
        %v6359 = vadd.f32 %v5477, %v6235
        %v6360 = vadd.f32 %v5478, %v6240
        %v6361 = vadd.f32 %v5479, %v6243
        %v6362 = vadd.f32 %v5480, %v6248
        %v6363 = vadd.f32 %v5481, %v6251
        %v6364 = vadd.f32 %v5482, %v6256
        %v6365 = vadd.f32 %v5483, %v6259
        %v6366 = vadd.f32 %v5484, %v6264
        %v6367 = vadd.f32 %v5485, %v6267
        %v6368 = vadd.f32 %v5486, %v6272
        %v6369 = vadd.f32 %v5487, %v6275
        %v6370 = vadd.f32 %v5488, %v6280
        %v6371 = vadd.f32 %v5489, %v6283
        %v6372 = vadd.f32 %v5490, %v6288
        %v6373 = vadd.f32 %v5491, %v6291
        %v6374 = vadd.f32 %v5492, %v6296
        %v6375 = vadd.f32 %v5493, %v6299
        %v6376 = vadd.f32 %v5494, %v6304
        %v6377 = vadd.f32 %v5495, %v6307
        %v6378 = vadd.f32 %v5496, %v6312
        %v6379 = vadd.f32 %v5497, %v6315
        %v6380 = vadd.f32 %v5498, %v6320
        %v6381 = vadd.f32 %v5499, %v6323
        %v6382 = vadd.f32 %v5500, %v6328
        %v6383 = vadd.f32 %v5501, %v6331
        %v6384 = vadd.f32 %v5502, %v6336
        %v6385 = vadd.f32 %v5503, %v6339
        %v6386 = vadd.f32 %v5504, %v6344
        %v6387 = vadd.f32 %v5505, %v6347
        %v6388 = vadd.f32 %v5506, %v6352
        %v6389 = vadd.f32 %v5507, %v6355
        %v6390 = vld [vmem:[%s4993] sm:$0xee]
        %v6391 = vld [vmem:[%s4993 + $0x18] sm:$0xee]
        %v6392 = vld [vmem:[%s4993 + $0x30] sm:$0xee]
        %v6393 = vld [vmem:[%s4993 + $0x48] sm:$0xee]
        %v6394 = vld [vmem:[%s4993 + $0x60] sm:$0xee]
        %v6395 = vld [vmem:[%s4993 + $0x78] sm:$0xee]
        %v6396 = vld [vmem:[%s4993 + $0x90] sm:$0xee]
        %v6397 = vld [vmem:[%s4993 + $0xa8] sm:$0xee]
        %v6398 = vld [vmem:[%s4993 + $0xc0] sm:$0xee]
        %v6399 = vld [vmem:[%s4993 + $0xd8] sm:$0xee]
        %v6400 = vld [vmem:[%s4993 + $0xf0] sm:$0xee]
        %v6401 = vld [vmem:[%s4993 + $0x108] sm:$0xee]
        %v6402 = vld [vmem:[%s4993 + $0x120] sm:$0xee]
        %v6403 = vld [vmem:[%s4993 + $0x138] sm:$0xee]
        %v6404 = vld [vmem:[%s4993 + $0x150] sm:$0xee]
        %v6405 = vld [vmem:[%s4993 + $0x168] sm:$0xee]
        %v6454 = vrot.slane %v6390, 5
        %v6455 = vrot.slane %v6454, 4
        %v6456 = vrot.slane %v5509, 5
        %v6457 = vsel %vm2408, %v6455, %v6456
        %v6458 = vrot.slane %v6456, 4
        %v6459 = vrot.slane %v5510, 5
        %v6460 = vsel %vm2408, %v6458, %v6459
        %v6461 = vrot.slane %v6391, 5
        %v6462 = vrot.slane %v6461, 4
        %v6463 = vrot.slane %v5512, 5
        %v6464 = vsel %vm2408, %v6462, %v6463
        %v6465 = vrot.slane %v6463, 4
        %v6466 = vrot.slane %v5513, 5
        %v6467 = vsel %vm2408, %v6465, %v6466
        %v6468 = vrot.slane %v6392, 5
        %v6469 = vrot.slane %v6468, 4
        %v6470 = vrot.slane %v5515, 5
        %v6471 = vsel %vm2408, %v6469, %v6470
        %v6472 = vrot.slane %v6470, 4
        %v6473 = vrot.slane %v5516, 5
        %v6474 = vsel %vm2408, %v6472, %v6473
        %v6475 = vrot.slane %v6393, 5
        %v6476 = vrot.slane %v6475, 4
        %v6477 = vrot.slane %v5518, 5
        %v6478 = vsel %vm2408, %v6476, %v6477
        %v6479 = vrot.slane %v6477, 4
        %v6480 = vrot.slane %v5519, 5
        %v6481 = vsel %vm2408, %v6479, %v6480
        %v6482 = vrot.slane %v6394, 5
        %v6483 = vrot.slane %v6482, 4
        %v6484 = vrot.slane %v5521, 5
        %v6485 = vsel %vm2408, %v6483, %v6484
        %v6486 = vrot.slane %v6484, 4
        %v6487 = vrot.slane %v5522, 5
        %v6488 = vsel %vm2408, %v6486, %v6487
        %v6489 = vrot.slane %v6395, 5
        %v6490 = vrot.slane %v6489, 4
        %v6491 = vrot.slane %v5524, 5
        %v6492 = vsel %vm2408, %v6490, %v6491
        %v6493 = vrot.slane %v6491, 4
        %v6494 = vrot.slane %v5525, 5
        %v6495 = vsel %vm2408, %v6493, %v6494
        %v6496 = vrot.slane %v6396, 5
        %v6497 = vrot.slane %v6496, 4
        %v6498 = vrot.slane %v5527, 5
        %v6499 = vsel %vm2408, %v6497, %v6498
        %v6500 = vrot.slane %v6498, 4
        %v6501 = vrot.slane %v5528, 5
        %v6502 = vsel %vm2408, %v6500, %v6501
        %v6503 = vrot.slane %v6397, 5
        %v6504 = vrot.slane %v6503, 4
        %v6505 = vrot.slane %v5530, 5
        %v6506 = vsel %vm2408, %v6504, %v6505
        %v6507 = vrot.slane %v6505, 4
        %v6508 = vrot.slane %v5531, 5
        %v6509 = vsel %vm2408, %v6507, %v6508
        %v6510 = vrot.slane %v6398, 5
        %v6511 = vrot.slane %v6510, 4
        %v6512 = vrot.slane %v5533, 5
        %v6513 = vsel %vm2408, %v6511, %v6512
        %v6514 = vrot.slane %v6512, 4
        %v6515 = vrot.slane %v5534, 5
        %v6516 = vsel %vm2408, %v6514, %v6515
        %v6517 = vrot.slane %v6399, 5
        %v6518 = vrot.slane %v6517, 4
        %v6519 = vrot.slane %v5536, 5
        %v6520 = vsel %vm2408, %v6518, %v6519
        %v6521 = vrot.slane %v6519, 4
        %v6522 = vrot.slane %v5537, 5
        %v6523 = vsel %vm2408, %v6521, %v6522
        %v6524 = vrot.slane %v6400, 5
        %v6525 = vrot.slane %v6524, 4
        %v6526 = vrot.slane %v5539, 5
        %v6527 = vsel %vm2408, %v6525, %v6526
        %v6528 = vrot.slane %v6526, 4
        %v6529 = vrot.slane %v5540, 5
        %v6530 = vsel %vm2408, %v6528, %v6529
        %v6531 = vrot.slane %v6401, 5
        %v6532 = vrot.slane %v6531, 4
        %v6533 = vrot.slane %v5542, 5
        %v6534 = vsel %vm2408, %v6532, %v6533
        %v6535 = vrot.slane %v6533, 4
        %v6536 = vrot.slane %v5543, 5
        %v6537 = vsel %vm2408, %v6535, %v6536
        %v6538 = vrot.slane %v6402, 5
        %v6539 = vrot.slane %v6538, 4
        %v6540 = vrot.slane %v5545, 5
        %v6541 = vsel %vm2408, %v6539, %v6540
        %v6542 = vrot.slane %v6540, 4
        %v6543 = vrot.slane %v5546, 5
        %v6544 = vsel %vm2408, %v6542, %v6543
        %v6545 = vrot.slane %v6403, 5
        %v6546 = vrot.slane %v6545, 4
        %v6547 = vrot.slane %v5548, 5
        %v6548 = vsel %vm2408, %v6546, %v6547
        %v6549 = vrot.slane %v6547, 4
        %v6550 = vrot.slane %v5549, 5
        %v6551 = vsel %vm2408, %v6549, %v6550
        %v6552 = vrot.slane %v6404, 5
        %v6553 = vrot.slane %v6552, 4
        %v6554 = vrot.slane %v5551, 5
        %v6555 = vsel %vm2408, %v6553, %v6554
        %v6556 = vrot.slane %v6554, 4
        %v6557 = vrot.slane %v5552, 5
        %v6558 = vsel %vm2408, %v6556, %v6557
        %v6559 = vrot.slane %v6405, 5
        %v6560 = vrot.slane %v6559, 4
        %v6561 = vrot.slane %v5554, 5
        %v6562 = vsel %vm2408, %v6560, %v6561
        %v6563 = vrot.slane %v6561, 4
        %v6564 = vrot.slane %v5555, 5
        %v6565 = vsel %vm2408, %v6563, %v6564
        %s6566 = scalar_lea.vmem [#allocation7], 1024
        %v6567 = vld [vmem:[%s6566] sm:$0xf]
        %v6568 = vld [vmem:[%s6566 + $0x4] sm:$0xf]
        %v6569 = vld [vmem:[%s6566 + $0x8] sm:$0xf]
        %v6570 = vld [vmem:[%s6566 + $0xc] sm:$0xf]
        %v6571 = vld [vmem:[%s6566 + $0x10] sm:$0xf]
        %v6572 = vld [vmem:[%s6566 + $0x14] sm:$0xf]
        %v6573 = vld [vmem:[%s6566 + $0x18] sm:$0xf]
        %v6574 = vld [vmem:[%s6566 + $0x1c] sm:$0xf]
        %v6575 = vld [vmem:[%s6566 + $0x20] sm:$0xf]
        %v6576 = vld [vmem:[%s6566 + $0x24] sm:$0xf]
        %v6577 = vld [vmem:[%s6566 + $0x28] sm:$0xf]
        %v6578 = vld [vmem:[%s6566 + $0x2c] sm:$0xf]
        %v6579 = vld [vmem:[%s6566 + $0x30] sm:$0xf]
        %v6580 = vld [vmem:[%s6566 + $0x34] sm:$0xf]
        %v6581 = vld [vmem:[%s6566 + $0x38] sm:$0xf]
        %v6582 = vld [vmem:[%s6566 + $0x3c] sm:$0xf]
        %v6583 = vld [vmem:[%s6566 + $0x40] sm:$0xf]
        %v6584 = vld [vmem:[%s6566 + $0x44] sm:$0xf]
        %v6585 = vld [vmem:[%s6566 + $0x48] sm:$0xf]
        %v6586 = vld [vmem:[%s6566 + $0x4c] sm:$0xf]
        %v6587 = vld [vmem:[%s6566 + $0x50] sm:$0xf]
        %v6588 = vld [vmem:[%s6566 + $0x54] sm:$0xf]
        %v6589 = vld [vmem:[%s6566 + $0x58] sm:$0xf]
        %v6590 = vld [vmem:[%s6566 + $0x5c] sm:$0xf]
        %v6591 = vld [vmem:[%s6566 + $0x60] sm:$0xf]
        %v6592 = vld [vmem:[%s6566 + $0x64] sm:$0xf]
        %v6593 = vld [vmem:[%s6566 + $0x68] sm:$0xf]
        %v6594 = vld [vmem:[%s6566 + $0x6c] sm:$0xf]
        %v6595 = vld [vmem:[%s6566 + $0x70] sm:$0xf]
        %v6596 = vld [vmem:[%s6566 + $0x74] sm:$0xf]
        %v6597 = vld [vmem:[%s6566 + $0x78] sm:$0xf]
        %v6598 = vld [vmem:[%s6566 + $0x7c] sm:$0xf]
        %v6599 = vunpack.c.l.b16 %v6457
        %v6600 = vunpack.c.h.b16 %v6457
        %v6601 = vunpack.c.l.b16 %v6460
        %v6602 = vunpack.c.h.b16 %v6460
        %v6603 = vunpack.c.l.b16 %v6464
        %v6604 = vunpack.c.h.b16 %v6464
        %v6605 = vunpack.c.l.b16 %v6467
        %v6606 = vunpack.c.h.b16 %v6467
        %v6607 = vunpack.c.l.b16 %v6471
        %v6608 = vunpack.c.h.b16 %v6471
        %v6609 = vunpack.c.l.b16 %v6474
        %v6610 = vunpack.c.h.b16 %v6474
        %v6611 = vunpack.c.l.b16 %v6478
        %v6612 = vunpack.c.h.b16 %v6478
        %v6613 = vunpack.c.l.b16 %v6481
        %v6614 = vunpack.c.h.b16 %v6481
        %v6615 = vunpack.c.l.b16 %v6485
        %v6616 = vunpack.c.h.b16 %v6485
        %v6617 = vunpack.c.l.b16 %v6488
        %v6618 = vunpack.c.h.b16 %v6488
        %v6619 = vunpack.c.l.b16 %v6492
        %v6620 = vunpack.c.h.b16 %v6492
        %v6621 = vunpack.c.l.b16 %v6495
        %v6622 = vunpack.c.h.b16 %v6495
        %v6623 = vunpack.c.l.b16 %v6499
        %v6624 = vunpack.c.h.b16 %v6499
        %v6625 = vunpack.c.l.b16 %v6502
        %v6626 = vunpack.c.h.b16 %v6502
        %v6627 = vunpack.c.l.b16 %v6506
        %v6628 = vunpack.c.h.b16 %v6506
        %v6629 = vunpack.c.l.b16 %v6509
        %v6630 = vunpack.c.h.b16 %v6509
        %v6631 = vunpack.c.l.b16 %v6513
        %v6632 = vunpack.c.h.b16 %v6513
        %v6633 = vunpack.c.l.b16 %v6516
        %v6634 = vunpack.c.h.b16 %v6516
        %v6635 = vunpack.c.l.b16 %v6520
        %v6636 = vunpack.c.h.b16 %v6520
        %v6637 = vunpack.c.l.b16 %v6523
        %v6638 = vunpack.c.h.b16 %v6523
        %v6639 = vunpack.c.l.b16 %v6527
        %v6640 = vunpack.c.h.b16 %v6527
        %v6641 = vunpack.c.l.b16 %v6530
        %v6642 = vunpack.c.h.b16 %v6530
        %v6643 = vunpack.c.l.b16 %v6534
        %v6644 = vunpack.c.h.b16 %v6534
        %v6645 = vunpack.c.l.b16 %v6537
        %v6646 = vunpack.c.h.b16 %v6537
        %v6647 = vunpack.c.l.b16 %v6541
        %v6648 = vunpack.c.h.b16 %v6541
        %v6649 = vunpack.c.l.b16 %v6544
        %v6650 = vunpack.c.h.b16 %v6544
        %v6651 = vunpack.c.l.b16 %v6548
        %v6652 = vunpack.c.h.b16 %v6548
        %v6653 = vunpack.c.l.b16 %v6551
        %v6654 = vunpack.c.h.b16 %v6551
        %v6655 = vunpack.c.l.b16 %v6555
        %v6656 = vunpack.c.h.b16 %v6555
        %v6657 = vunpack.c.l.b16 %v6558
        %v6658 = vunpack.c.h.b16 %v6558
        %v6659 = vunpack.c.l.b16 %v6562
        %v6660 = vunpack.c.h.b16 %v6562
        %v6661 = vunpack.c.l.b16 %v6565
        %v6662 = vunpack.c.h.b16 %v6565
        %v6663 = vpack.c.b16 %v6601, %v6599
        %v6664 = vpack.c.b16 %v6602, %v6600
        %v6665 = vpack.c.b16 %v6605, %v6603
        %v6666 = vpack.c.b16 %v6606, %v6604
        %v6667 = vpack.c.b16 %v6609, %v6607
        %v6668 = vpack.c.b16 %v6610, %v6608
        %v6669 = vpack.c.b16 %v6613, %v6611
        %v6670 = vpack.c.b16 %v6614, %v6612
        %v6671 = vpack.c.b16 %v6617, %v6615
        %v6672 = vpack.c.b16 %v6618, %v6616
        %v6673 = vpack.c.b16 %v6621, %v6619
        %v6674 = vpack.c.b16 %v6622, %v6620
        %v6675 = vpack.c.b16 %v6625, %v6623
        %v6676 = vpack.c.b16 %v6626, %v6624
        %v6677 = vpack.c.b16 %v6629, %v6627
        %v6678 = vpack.c.b16 %v6630, %v6628
        %v6679 = vpack.c.b16 %v6633, %v6631
        %v6680 = vpack.c.b16 %v6634, %v6632
        %v6681 = vpack.c.b16 %v6637, %v6635
        %v6682 = vpack.c.b16 %v6638, %v6636
        %v6683 = vpack.c.b16 %v6641, %v6639
        %v6684 = vpack.c.b16 %v6642, %v6640
        %v6685 = vpack.c.b16 %v6645, %v6643
        %v6686 = vpack.c.b16 %v6646, %v6644
        %v6687 = vpack.c.b16 %v6649, %v6647
        %v6688 = vpack.c.b16 %v6650, %v6648
        %v6689 = vpack.c.b16 %v6653, %v6651
        %v6690 = vpack.c.b16 %v6654, %v6652
        %v6691 = vpack.c.b16 %v6657, %v6655
        %v6692 = vpack.c.b16 %v6658, %v6656
        %v6693 = vpack.c.b16 %v6661, %v6659
        %v6694 = vpack.c.b16 %v6662, %v6660
        %v6759 = vunpack.c.l.b16 %v6567
        %v6760 = vunpack.c.l.b16 %v6568
        %v6761 = vunpack.c.l.b16 %v6569
        %v6762 = vunpack.c.l.b16 %v6570
        %v6763 = vunpack.c.l.b16 %v6571
        %v6764 = vunpack.c.l.b16 %v6572
        %v6765 = vunpack.c.l.b16 %v6573
        %v6766 = vunpack.c.l.b16 %v6574
        %v6767 = vunpack.c.l.b16 %v6575
        %v6768 = vunpack.c.l.b16 %v6576
        %v6769 = vunpack.c.l.b16 %v6577
        %v6770 = vunpack.c.l.b16 %v6578
        %v6771 = vunpack.c.l.b16 %v6579
        %v6772 = vunpack.c.l.b16 %v6580
        %v6773 = vunpack.c.l.b16 %v6581
        %v6774 = vunpack.c.l.b16 %v6582
        %v6775 = vunpack.c.l.b16 %v6583
        %v6776 = vunpack.c.l.b16 %v6584
        %v6777 = vunpack.c.l.b16 %v6585
        %v6778 = vunpack.c.l.b16 %v6586
        %v6779 = vunpack.c.l.b16 %v6587
        %v6780 = vunpack.c.l.b16 %v6588
        %v6781 = vunpack.c.l.b16 %v6589
        %v6782 = vunpack.c.l.b16 %v6590
        %v6783 = vunpack.c.l.b16 %v6591
        %v6784 = vunpack.c.l.b16 %v6592
        %v6785 = vunpack.c.l.b16 %v6593
        %v6786 = vunpack.c.l.b16 %v6594
        %v6787 = vunpack.c.l.b16 %v6595
        %v6788 = vunpack.c.l.b16 %v6596
        %v6789 = vunpack.c.l.b16 %v6597
        %v6790 = vunpack.c.l.b16 %v6598
        %v6791 = vpack.c.b16 %v6760, %v6759
        %v6792 = vpack.c.b16 %v6762, %v6761
        %v6793 = vpack.c.b16 %v6764, %v6763
        %v6794 = vpack.c.b16 %v6766, %v6765
        %v6795 = vpack.c.b16 %v6768, %v6767
        %v6796 = vpack.c.b16 %v6770, %v6769
        %v6797 = vpack.c.b16 %v6772, %v6771
        %v6798 = vpack.c.b16 %v6774, %v6773
        %v6799 = vpack.c.b16 %v6776, %v6775
        %v6800 = vpack.c.b16 %v6778, %v6777
        %v6801 = vpack.c.b16 %v6780, %v6779
        %v6802 = vpack.c.b16 %v6782, %v6781
        %v6803 = vpack.c.b16 %v6784, %v6783
        %v6804 = vpack.c.b16 %v6786, %v6785
        %v6805 = vpack.c.b16 %v6788, %v6787
        %v6806 = vpack.c.b16 %v6790, %v6789
        %6823 = vmatprep.subr.bf16.mxu0 0
        %6824 = vmatpush1.bf16.msra.mxu0 %v6791
        %6825 = vmatprep.subr.bf16.mxu0 0
        %6826 = vmatpush1.bf16.msra.mxu0 %v6792
        %6827 = vmatprep.subr.bf16.mxu0 0
        %6828 = vmatpush1.bf16.msra.mxu0 %v6793
        %6829 = vmatprep.subr.bf16.mxu0 0
        %6830 = vmatpush1.bf16.msra.mxu0 %v6794
        %6831 = vmatprep.subr.bf16.mxu0 0
        %6832 = vmatpush1.bf16.msra.mxu0 %v6795
        %6833 = vmatprep.subr.bf16.mxu0 0
        %6834 = vmatpush1.bf16.msra.mxu0 %v6796
        %6835 = vmatprep.subr.bf16.mxu0 0
        %6836 = vmatpush1.bf16.msra.mxu0 %v6797
        %6837 = vmatprep.subr.bf16.mxu0 0
        %6838 = vmatpush1.bf16.msra.mxu0 %v6798
        %6839 = vmatprep.subr.bf16.mxu0 0
        %6840 = vmatpush1.bf16.msra.mxu0 %v6799
        %6841 = vmatprep.subr.bf16.mxu0 0
        %6842 = vmatpush1.bf16.msra.mxu0 %v6800
        %6843 = vmatprep.subr.bf16.mxu0 0
        %6844 = vmatpush1.bf16.msra.mxu0 %v6801
        %6845 = vmatprep.subr.bf16.mxu0 0
        %6846 = vmatpush1.bf16.msra.mxu0 %v6802
        %6847 = vmatprep.subr.bf16.mxu0 0
        %6848 = vmatpush1.bf16.msra.mxu0 %v6803
        %6849 = vmatprep.subr.bf16.mxu0 0
        %6850 = vmatpush1.bf16.msra.mxu0 %v6804
        %6851 = vmatprep.subr.bf16.mxu0 0
        %6852 = vmatpush1.bf16.msra.mxu0 %v6805
        %6853 = vmatprep.subr.bf16.mxu0 0
        %6854 = vmatpush1.bf16.msra.mxu0 %v6806
        %6855 = vmatprep.mubr.bf16.mxu0 %v6664
        %6856 = vmatmul.mubr.bf16.gmra.mrb[0].mxu0 %v6663
        %v6857 = vpop.f32.mrb[0].mxu0
        %v6858 = vadd.f32 0.0, %v6857
        %v6859 = vpop.f32.mrb[0].mxu0
        %v6860 = vpop.f32.mrb[0].mxu0
        %v6861 = vadd.f32 0.0, %v6860
        %v6862 = vpop.f32.mrb[0].mxu0
        %6863 = vmatprep.mubr.bf16.mxu0 %v6666
        %6864 = vmatmul.mubr.bf16.gmra.mrb[0].mxu0 %v6665
        %v6865 = vpop.f32.mrb[0].mxu0
        %v6866 = vadd.f32 0.0, %v6865
        %v6867 = vpop.f32.mrb[0].mxu0
        %v6868 = vpop.f32.mrb[0].mxu0
        %v6869 = vadd.f32 0.0, %v6868
        %v6870 = vpop.f32.mrb[0].mxu0
        %6871 = vmatprep.mubr.bf16.mxu0 %v6668
        %6872 = vmatmul.mubr.bf16.gmra.mrb[0].mxu0 %v6667
        %v6873 = vpop.f32.mrb[0].mxu0
        %v6874 = vadd.f32 0.0, %v6873
        %v6875 = vpop.f32.mrb[0].mxu0
        %v6876 = vpop.f32.mrb[0].mxu0
        %v6877 = vadd.f32 0.0, %v6876
        %v6878 = vpop.f32.mrb[0].mxu0
        %6879 = vmatprep.mubr.bf16.mxu0 %v6670
        %6880 = vmatmul.mubr.bf16.gmra.mrb[0].mxu0 %v6669
        %v6881 = vpop.f32.mrb[0].mxu0
        %v6882 = vadd.f32 0.0, %v6881
        %v6883 = vpop.f32.mrb[0].mxu0
        %v6884 = vpop.f32.mrb[0].mxu0
        %v6885 = vadd.f32 0.0, %v6884
        %v6886 = vpop.f32.mrb[0].mxu0
        %6887 = vmatprep.mubr.bf16.mxu0 %v6672
        %6888 = vmatmul.mubr.bf16.gmra.mrb[0].mxu0 %v6671
        %v6889 = vpop.f32.mrb[0].mxu0
        %v6890 = vadd.f32 0.0, %v6889
        %v6891 = vpop.f32.mrb[0].mxu0
        %v6892 = vpop.f32.mrb[0].mxu0
        %v6893 = vadd.f32 0.0, %v6892
        %v6894 = vpop.f32.mrb[0].mxu0
        %6895 = vmatprep.mubr.bf16.mxu0 %v6674
        %6896 = vmatmul.mubr.bf16.gmra.mrb[0].mxu0 %v6673
        %v6897 = vpop.f32.mrb[0].mxu0
        %v6898 = vadd.f32 0.0, %v6897
        %v6899 = vpop.f32.mrb[0].mxu0
        %v6900 = vpop.f32.mrb[0].mxu0
        %v6901 = vadd.f32 0.0, %v6900
        %v6902 = vpop.f32.mrb[0].mxu0
        %6903 = vmatprep.mubr.bf16.mxu0 %v6676
        %6904 = vmatmul.mubr.bf16.gmra.mrb[0].mxu0 %v6675
        %v6905 = vpop.f32.mrb[0].mxu0
        %v6906 = vadd.f32 0.0, %v6905
        %v6907 = vpop.f32.mrb[0].mxu0
        %v6908 = vpop.f32.mrb[0].mxu0
        %v6909 = vadd.f32 0.0, %v6908
        %v6910 = vpop.f32.mrb[0].mxu0
        %6911 = vmatprep.mubr.bf16.mxu0 %v6678
        %6912 = vmatmul.mubr.bf16.gmra.mrb[0].mxu0 %v6677
        %v6913 = vpop.f32.mrb[0].mxu0
        %v6914 = vadd.f32 0.0, %v6913
        %v6915 = vpop.f32.mrb[0].mxu0
        %v6916 = vpop.f32.mrb[0].mxu0
        %v6917 = vadd.f32 0.0, %v6916
        %v6918 = vpop.f32.mrb[0].mxu0
        %6919 = vmatprep.mubr.bf16.mxu0 %v6680
        %6920 = vmatmul.mubr.bf16.gmra.mrb[0].mxu0 %v6679
        %v6921 = vpop.f32.mrb[0].mxu0
        %v6922 = vadd.f32 0.0, %v6921
        %v6923 = vpop.f32.mrb[0].mxu0
        %v6924 = vpop.f32.mrb[0].mxu0
        %v6925 = vadd.f32 0.0, %v6924
        %v6926 = vpop.f32.mrb[0].mxu0
        %6927 = vmatprep.mubr.bf16.mxu0 %v6682
        %6928 = vmatmul.mubr.bf16.gmra.mrb[0].mxu0 %v6681
        %v6929 = vpop.f32.mrb[0].mxu0
        %v6930 = vadd.f32 0.0, %v6929
        %v6931 = vpop.f32.mrb[0].mxu0
        %v6932 = vpop.f32.mrb[0].mxu0
        %v6933 = vadd.f32 0.0, %v6932
        %v6934 = vpop.f32.mrb[0].mxu0
        %6935 = vmatprep.mubr.bf16.mxu0 %v6684
        %6936 = vmatmul.mubr.bf16.gmra.mrb[0].mxu0 %v6683
        %v6937 = vpop.f32.mrb[0].mxu0
        %v6938 = vadd.f32 0.0, %v6937
        %v6939 = vpop.f32.mrb[0].mxu0
        %v6940 = vpop.f32.mrb[0].mxu0
        %v6941 = vadd.f32 0.0, %v6940
        %v6942 = vpop.f32.mrb[0].mxu0
        %6943 = vmatprep.mubr.bf16.mxu0 %v6686
        %6944 = vmatmul.mubr.bf16.gmra.mrb[0].mxu0 %v6685
        %v6945 = vpop.f32.mrb[0].mxu0
        %v6946 = vadd.f32 0.0, %v6945
        %v6947 = vpop.f32.mrb[0].mxu0
        %v6948 = vpop.f32.mrb[0].mxu0
        %v6949 = vadd.f32 0.0, %v6948
        %v6950 = vpop.f32.mrb[0].mxu0
        %6951 = vmatprep.mubr.bf16.mxu0 %v6688
        %6952 = vmatmul.mubr.bf16.gmra.mrb[0].mxu0 %v6687
        %v6953 = vpop.f32.mrb[0].mxu0
        %v6954 = vadd.f32 0.0, %v6953
        %v6955 = vpop.f32.mrb[0].mxu0
        %v6956 = vpop.f32.mrb[0].mxu0
        %v6957 = vadd.f32 0.0, %v6956
        %v6958 = vpop.f32.mrb[0].mxu0
        %6959 = vmatprep.mubr.bf16.mxu0 %v6690
        %6960 = vmatmul.mubr.bf16.gmra.mrb[0].mxu0 %v6689
        %v6961 = vpop.f32.mrb[0].mxu0
        %v6962 = vadd.f32 0.0, %v6961
        %v6963 = vpop.f32.mrb[0].mxu0
        %v6964 = vpop.f32.mrb[0].mxu0
        %v6965 = vadd.f32 0.0, %v6964
        %v6966 = vpop.f32.mrb[0].mxu0
        %6967 = vmatprep.mubr.bf16.mxu0 %v6692
        %6968 = vmatmul.mubr.bf16.gmra.mrb[0].mxu0 %v6691
        %v6969 = vpop.f32.mrb[0].mxu0
        %v6970 = vadd.f32 0.0, %v6969
        %v6971 = vpop.f32.mrb[0].mxu0
        %v6972 = vpop.f32.mrb[0].mxu0
        %v6973 = vadd.f32 0.0, %v6972
        %v6974 = vpop.f32.mrb[0].mxu0
        %6975 = vmatprep.mubr.bf16.mxu0 %v6694
        %6976 = vmatmul.mubr.bf16.gmra.mrb[0].mxu0 %v6693
        %v6977 = vpop.f32.mrb[0].mxu0
        %v6978 = vadd.f32 0.0, %v6977
        %v6979 = vpop.f32.mrb[0].mxu0
        %v6980 = vpop.f32.mrb[0].mxu0
        %v6981 = vadd.f32 0.0, %v6980
        %v6982 = vpop.f32.mrb[0].mxu0
        %6983 = vdwg.mxu0
        %v6984 = vadd.f32 %v6358, %v6858
        %v6985 = vadd.f32 %v6359, %v6861
        %v6986 = vadd.f32 %v6360, %v6866
        %v6987 = vadd.f32 %v6361, %v6869
        %v6988 = vadd.f32 %v6362, %v6874
        %v6989 = vadd.f32 %v6363, %v6877
        %v6990 = vadd.f32 %v6364, %v6882
        %v6991 = vadd.f32 %v6365, %v6885
        %v6992 = vadd.f32 %v6366, %v6890
        %v6993 = vadd.f32 %v6367, %v6893
        %v6994 = vadd.f32 %v6368, %v6898
        %v6995 = vadd.f32 %v6369, %v6901
        %v6996 = vadd.f32 %v6370, %v6906
        %v6997 = vadd.f32 %v6371, %v6909
        %v6998 = vadd.f32 %v6372, %v6914
        %v6999 = vadd.f32 %v6373, %v6917
        %v7000 = vadd.f32 %v6374, %v6922
        %v7001 = vadd.f32 %v6375, %v6925
        %v7002 = vadd.f32 %v6376, %v6930
        %v7003 = vadd.f32 %v6377, %v6933
        %v7004 = vadd.f32 %v6378, %v6938
        %v7005 = vadd.f32 %v6379, %v6941
        %v7006 = vadd.f32 %v6380, %v6946
        %v7007 = vadd.f32 %v6381, %v6949
        %v7008 = vadd.f32 %v6382, %v6954
        %v7009 = vadd.f32 %v6383, %v6957
        %v7010 = vadd.f32 %v6384, %v6962
        %v7011 = vadd.f32 %v6385, %v6965
        %v7012 = vadd.f32 %v6386, %v6970
        %v7013 = vadd.f32 %v6387, %v6973
        %v7014 = vadd.f32 %v6388, %v6978
        %v7015 = vadd.f32 %v6389, %v6981
        %v7016 = vld [vmem:[%s2] sm:$0x1]
        %v7018 = vlaneseq
        %v7019 = vshrl.u32 %v7018, 7
        %v7020 = vsub.s32 0, %v7019
        %v7021 = vrot.slane %v7016, %v7020
        %v7023 = vadd.f32 %v6984, %v7021
        %v7024 = vadd.f32 %v6985, %v7021
        %v7025 = vadd.f32 %v6986, %v7021
        %v7026 = vadd.f32 %v6987, %v7021
        %v7027 = vadd.f32 %v6988, %v7021
        %v7028 = vadd.f32 %v6989, %v7021
        %v7029 = vadd.f32 %v6990, %v7021
        %v7030 = vadd.f32 %v6991, %v7021
        %v7031 = vadd.f32 %v6992, %v7021
        %v7032 = vadd.f32 %v6993, %v7021
        %v7033 = vadd.f32 %v6994, %v7021
        %v7034 = vadd.f32 %v6995, %v7021
        %v7035 = vadd.f32 %v6996, %v7021
        %v7036 = vadd.f32 %v6997, %v7021
        %v7037 = vadd.f32 %v6998, %v7021
        %v7038 = vadd.f32 %v6999, %v7021
        %v7039 = vadd.f32 %v7000, %v7021
        %v7040 = vadd.f32 %v7001, %v7021
        %v7041 = vadd.f32 %v7002, %v7021
        %v7042 = vadd.f32 %v7003, %v7021
        %v7043 = vadd.f32 %v7004, %v7021
        %v7044 = vadd.f32 %v7005, %v7021
        %v7045 = vadd.f32 %v7006, %v7021
        %v7046 = vadd.f32 %v7007, %v7021
        %v7047 = vadd.f32 %v7008, %v7021
        %v7048 = vadd.f32 %v7009, %v7021
        %v7049 = vadd.f32 %v7010, %v7021
        %v7050 = vadd.f32 %v7011, %v7021
        %v7051 = vadd.f32 %v7012, %v7021
        %v7052 = vadd.f32 %v7013, %v7021
        %v7053 = vadd.f32 %v7014, %v7021
        %v7054 = vadd.f32 %v7015, %v7021
        %v7055 = vmax.f32 %v7023, 0.0
        %v7056 = vmax.f32 %v7024, 0.0
        %v7057 = vmax.f32 %v7025, 0.0
        %v7058 = vmax.f32 %v7026, 0.0
        %v7059 = vmax.f32 %v7027, 0.0
        %v7060 = vmax.f32 %v7028, 0.0
        %v7061 = vmax.f32 %v7029, 0.0
        %v7062 = vmax.f32 %v7030, 0.0
        %v7063 = vmax.f32 %v7031, 0.0
        %v7064 = vmax.f32 %v7032, 0.0
        %v7065 = vmax.f32 %v7033, 0.0
        %v7066 = vmax.f32 %v7034, 0.0
        %v7067 = vmax.f32 %v7035, 0.0
        %v7068 = vmax.f32 %v7036, 0.0
        %v7069 = vmax.f32 %v7037, 0.0
        %v7070 = vmax.f32 %v7038, 0.0
        %v7071 = vmax.f32 %v7039, 0.0
        %v7072 = vmax.f32 %v7040, 0.0
        %v7073 = vmax.f32 %v7041, 0.0
        %v7074 = vmax.f32 %v7042, 0.0
        %v7075 = vmax.f32 %v7043, 0.0
        %v7076 = vmax.f32 %v7044, 0.0
        %v7077 = vmax.f32 %v7045, 0.0
        %v7078 = vmax.f32 %v7046, 0.0
        %v7079 = vmax.f32 %v7047, 0.0
        %v7080 = vmax.f32 %v7048, 0.0
        %v7081 = vmax.f32 %v7049, 0.0
        %v7082 = vmax.f32 %v7050, 0.0
        %v7083 = vmax.f32 %v7051, 0.0
        %v7084 = vmax.f32 %v7052, 0.0
        %v7085 = vmax.f32 %v7053, 0.0
        %v7086 = vmax.f32 %v7054, 0.0
        %v7087 = vpack.c.bf16 %v7056, %v7055
        %v7088 = vpack.c.bf16 %v7058, %v7057
        %v7089 = vpack.c.bf16 %v7060, %v7059
        %v7090 = vpack.c.bf16 %v7062, %v7061
        %v7091 = vpack.c.bf16 %v7064, %v7063
        %v7092 = vpack.c.bf16 %v7066, %v7065
        %v7093 = vpack.c.bf16 %v7068, %v7067
        %v7094 = vpack.c.bf16 %v7070, %v7069
        %v7095 = vpack.c.bf16 %v7072, %v7071
        %v7096 = vpack.c.bf16 %v7074, %v7073
        %v7097 = vpack.c.bf16 %v7076, %v7075
        %v7098 = vpack.c.bf16 %v7078, %v7077
        %v7099 = vpack.c.bf16 %v7080, %v7079
        %v7100 = vpack.c.bf16 %v7082, %v7081
        %v7101 = vpack.c.bf16 %v7084, %v7083
        %v7102 = vpack.c.bf16 %v7086, %v7085
        %v7119 = vunpack.c.l.b16 %v7087
        %v7120 = vunpack.c.h.b16 %v7087
        %v7121 = vunpack.c.l.b16 %v7088
        %v7122 = vunpack.c.h.b16 %v7088
        %v7123 = vunpack.c.l.b16 %v7089
        %v7124 = vunpack.c.h.b16 %v7089
        %v7125 = vunpack.c.l.b16 %v7090
        %v7126 = vunpack.c.h.b16 %v7090
        %v7127 = vunpack.c.l.b16 %v7091
        %v7128 = vunpack.c.h.b16 %v7091
        %v7129 = vunpack.c.l.b16 %v7092
        %v7130 = vunpack.c.h.b16 %v7092
        %v7131 = vunpack.c.l.b16 %v7093
        %v7132 = vunpack.c.h.b16 %v7093
        %v7133 = vunpack.c.l.b16 %v7094
        %v7134 = vunpack.c.h.b16 %v7094
        %v7135 = vunpack.c.l.b16 %v7095
        %v7136 = vunpack.c.h.b16 %v7095
        %v7137 = vunpack.c.l.b16 %v7096
        %v7138 = vunpack.c.h.b16 %v7096
        %v7139 = vunpack.c.l.b16 %v7097
        %v7140 = vunpack.c.h.b16 %v7097
        %v7141 = vunpack.c.l.b16 %v7098
        %v7142 = vunpack.c.h.b16 %v7098
        %v7143 = vunpack.c.l.b16 %v7099
        %v7144 = vunpack.c.h.b16 %v7099
        %v7145 = vunpack.c.l.b16 %v7100
        %v7146 = vunpack.c.h.b16 %v7100
        %v7147 = vunpack.c.l.b16 %v7101
        %v7148 = vunpack.c.h.b16 %v7101
        %v7149 = vunpack.c.l.b16 %v7102
        %v7150 = vunpack.c.h.b16 %v7102
        %v7151 = vpack.c.b16 %v7119, %v7119
        %v7152 = vpack.c.b16 %v7120, %v7120
        %v7153 = vpack.c.b16 %v7121, %v7121
        %v7154 = vpack.c.b16 %v7122, %v7122
        %v7155 = vpack.c.b16 %v7123, %v7123
        %v7156 = vpack.c.b16 %v7124, %v7124
        %v7157 = vpack.c.b16 %v7125, %v7125
        %v7158 = vpack.c.b16 %v7126, %v7126
        %v7159 = vpack.c.b16 %v7127, %v7127
        %v7160 = vpack.c.b16 %v7128, %v7128
        %v7161 = vpack.c.b16 %v7129, %v7129
        %v7162 = vpack.c.b16 %v7130, %v7130
        %v7163 = vpack.c.b16 %v7131, %v7131
        %v7164 = vpack.c.b16 %v7132, %v7132
        %v7165 = vpack.c.b16 %v7133, %v7133
        %v7166 = vpack.c.b16 %v7134, %v7134
        %v7167 = vpack.c.b16 %v7135, %v7135
        %v7168 = vpack.c.b16 %v7136, %v7136
        %v7169 = vpack.c.b16 %v7137, %v7137
        %v7170 = vpack.c.b16 %v7138, %v7138
        %v7171 = vpack.c.b16 %v7139, %v7139
        %v7172 = vpack.c.b16 %v7140, %v7140
        %v7173 = vpack.c.b16 %v7141, %v7141
        %v7174 = vpack.c.b16 %v7142, %v7142
        %v7175 = vpack.c.b16 %v7143, %v7143
        %v7176 = vpack.c.b16 %v7144, %v7144
        %v7177 = vpack.c.b16 %v7145, %v7145
        %v7178 = vpack.c.b16 %v7146, %v7146
        %v7179 = vpack.c.b16 %v7147, %v7147
        %v7180 = vpack.c.b16 %v7148, %v7148
        %v7181 = vpack.c.b16 %v7149, %v7149
        %v7182 = vpack.c.b16 %v7150, %v7150
        %v7184 = vshrl.u32 %v7151, 16
        %v7186 = vrot.slane %v7184, 7
        %v7187 = vshll.u32 %v7151, 16
        %v7189 = vor.u32 %v7186, %v7187
        %v7190 = vrot.slane %v7186, 4
        %v7192 = vshrl.u32 %v7152, 16
        %v7194 = vrot.slane %v7192, 7
        %v7195 = vshll.u32 %v7152, 16
        %v7197 = vor.u32 %v7194, %v7195
        %v7198 = vsel %vm617, %v7190, %v7197
        %v7199 = vrot.slane %v7194, 4
        %v7201 = vshrl.u32 %v7153, 16
        %v7203 = vrot.slane %v7201, 7
        %v7204 = vshll.u32 %v7153, 16
        %v7206 = vor.u32 %v7203, %v7204
        %v7207 = vrot.slane %v7203, 4
        %v7209 = vshrl.u32 %v7154, 16
        %v7211 = vrot.slane %v7209, 7
        %v7212 = vshll.u32 %v7154, 16
        %v7214 = vor.u32 %v7211, %v7212
        %v7215 = vsel %vm617, %v7207, %v7214
        %v7216 = vrot.slane %v7211, 4
        %v7218 = vshrl.u32 %v7155, 16
        %v7220 = vrot.slane %v7218, 7
        %v7221 = vshll.u32 %v7155, 16
        %v7223 = vor.u32 %v7220, %v7221
        %v7224 = vrot.slane %v7220, 4
        %v7226 = vshrl.u32 %v7156, 16
        %v7228 = vrot.slane %v7226, 7
        %v7229 = vshll.u32 %v7156, 16
        %v7231 = vor.u32 %v7228, %v7229
        %v7232 = vsel %vm617, %v7224, %v7231
        %v7233 = vrot.slane %v7228, 4
        %v7235 = vshrl.u32 %v7157, 16
        %v7237 = vrot.slane %v7235, 7
        %v7238 = vshll.u32 %v7157, 16
        %v7240 = vor.u32 %v7237, %v7238
        %v7241 = vrot.slane %v7237, 4
        %v7243 = vshrl.u32 %v7158, 16
        %v7245 = vrot.slane %v7243, 7
        %v7246 = vshll.u32 %v7158, 16
        %v7248 = vor.u32 %v7245, %v7246
        %v7249 = vsel %vm617, %v7241, %v7248
        %v7250 = vrot.slane %v7245, 4
        %v7252 = vshrl.u32 %v7159, 16
        %v7254 = vrot.slane %v7252, 7
        %v7255 = vshll.u32 %v7159, 16
        %v7257 = vor.u32 %v7254, %v7255
        %v7258 = vrot.slane %v7254, 4
        %v7260 = vshrl.u32 %v7160, 16
        %v7262 = vrot.slane %v7260, 7
        %v7263 = vshll.u32 %v7160, 16
        %v7265 = vor.u32 %v7262, %v7263
        %v7266 = vsel %vm617, %v7258, %v7265
        %v7267 = vrot.slane %v7262, 4
        %v7269 = vshrl.u32 %v7161, 16
        %v7271 = vrot.slane %v7269, 7
        %v7272 = vshll.u32 %v7161, 16
        %v7274 = vor.u32 %v7271, %v7272
        %v7275 = vrot.slane %v7271, 4
        %v7277 = vshrl.u32 %v7162, 16
        %v7279 = vrot.slane %v7277, 7
        %v7280 = vshll.u32 %v7162, 16
        %v7282 = vor.u32 %v7279, %v7280
        %v7283 = vsel %vm617, %v7275, %v7282
        %v7284 = vrot.slane %v7279, 4
        %v7286 = vshrl.u32 %v7163, 16
        %v7288 = vrot.slane %v7286, 7
        %v7289 = vshll.u32 %v7163, 16
        %v7291 = vor.u32 %v7288, %v7289
        %v7292 = vrot.slane %v7288, 4
        %v7294 = vshrl.u32 %v7164, 16
        %v7296 = vrot.slane %v7294, 7
        %v7297 = vshll.u32 %v7164, 16
        %v7299 = vor.u32 %v7296, %v7297
        %v7300 = vsel %vm617, %v7292, %v7299
        %v7301 = vrot.slane %v7296, 4
        %v7303 = vshrl.u32 %v7165, 16
        %v7305 = vrot.slane %v7303, 7
        %v7306 = vshll.u32 %v7165, 16
        %v7308 = vor.u32 %v7305, %v7306
        %v7309 = vrot.slane %v7305, 4
        %v7311 = vshrl.u32 %v7166, 16
        %v7313 = vrot.slane %v7311, 7
        %v7314 = vshll.u32 %v7166, 16
        %v7316 = vor.u32 %v7313, %v7314
        %v7317 = vsel %vm617, %v7309, %v7316
        %v7318 = vrot.slane %v7313, 4
        %v7320 = vshrl.u32 %v7167, 16
        %v7322 = vrot.slane %v7320, 7
        %v7323 = vshll.u32 %v7167, 16
        %v7325 = vor.u32 %v7322, %v7323
        %v7326 = vrot.slane %v7322, 4
        %v7328 = vshrl.u32 %v7168, 16
        %v7330 = vrot.slane %v7328, 7
        %v7331 = vshll.u32 %v7168, 16
        %v7333 = vor.u32 %v7330, %v7331
        %v7334 = vsel %vm617, %v7326, %v7333
        %v7335 = vrot.slane %v7330, 4
        %v7337 = vshrl.u32 %v7169, 16
        %v7339 = vrot.slane %v7337, 7
        %v7340 = vshll.u32 %v7169, 16
        %v7342 = vor.u32 %v7339, %v7340
        %v7343 = vrot.slane %v7339, 4
        %v7345 = vshrl.u32 %v7170, 16
        %v7347 = vrot.slane %v7345, 7
        %v7348 = vshll.u32 %v7170, 16
        %v7350 = vor.u32 %v7347, %v7348
        %v7351 = vsel %vm617, %v7343, %v7350
        %v7352 = vrot.slane %v7347, 4
        %v7354 = vshrl.u32 %v7171, 16
        %v7356 = vrot.slane %v7354, 7
        %v7357 = vshll.u32 %v7171, 16
        %v7359 = vor.u32 %v7356, %v7357
        %v7360 = vrot.slane %v7356, 4
        %v7362 = vshrl.u32 %v7172, 16
        %v7364 = vrot.slane %v7362, 7
        %v7365 = vshll.u32 %v7172, 16
        %v7367 = vor.u32 %v7364, %v7365
        %v7368 = vsel %vm617, %v7360, %v7367
        %v7369 = vrot.slane %v7364, 4
        %v7371 = vshrl.u32 %v7173, 16
        %v7373 = vrot.slane %v7371, 7
        %v7374 = vshll.u32 %v7173, 16
        %v7376 = vor.u32 %v7373, %v7374
        %v7377 = vrot.slane %v7373, 4
        %v7379 = vshrl.u32 %v7174, 16
        %v7381 = vrot.slane %v7379, 7
        %v7382 = vshll.u32 %v7174, 16
        %v7384 = vor.u32 %v7381, %v7382
        %v7385 = vsel %vm617, %v7377, %v7384
        %v7386 = vrot.slane %v7381, 4
        %v7388 = vshrl.u32 %v7175, 16
        %v7390 = vrot.slane %v7388, 7
        %v7391 = vshll.u32 %v7175, 16
        %v7393 = vor.u32 %v7390, %v7391
        %v7394 = vrot.slane %v7390, 4
        %v7396 = vshrl.u32 %v7176, 16
        %v7398 = vrot.slane %v7396, 7
        %v7399 = vshll.u32 %v7176, 16
        %v7401 = vor.u32 %v7398, %v7399
        %v7402 = vsel %vm617, %v7394, %v7401
        %v7403 = vrot.slane %v7398, 4
        %v7405 = vshrl.u32 %v7177, 16
        %v7407 = vrot.slane %v7405, 7
        %v7408 = vshll.u32 %v7177, 16
        %v7410 = vor.u32 %v7407, %v7408
        %v7411 = vrot.slane %v7407, 4
        %v7413 = vshrl.u32 %v7178, 16
        %v7415 = vrot.slane %v7413, 7
        %v7416 = vshll.u32 %v7178, 16
        %v7418 = vor.u32 %v7415, %v7416
        %v7419 = vsel %vm617, %v7411, %v7418
        %v7420 = vrot.slane %v7415, 4
        %v7422 = vshrl.u32 %v7179, 16
        %v7424 = vrot.slane %v7422, 7
        %v7425 = vshll.u32 %v7179, 16
        %v7427 = vor.u32 %v7424, %v7425
        %v7428 = vrot.slane %v7424, 4
        %v7430 = vshrl.u32 %v7180, 16
        %v7432 = vrot.slane %v7430, 7
        %v7433 = vshll.u32 %v7180, 16
        %v7435 = vor.u32 %v7432, %v7433
        %v7436 = vsel %vm617, %v7428, %v7435
        %v7437 = vrot.slane %v7432, 4
        %v7439 = vshrl.u32 %v7181, 16
        %v7441 = vrot.slane %v7439, 7
        %v7442 = vshll.u32 %v7181, 16
        %v7444 = vor.u32 %v7441, %v7442
        %v7445 = vrot.slane %v7441, 4
        %v7447 = vshrl.u32 %v7182, 16
        %v7449 = vrot.slane %v7447, 7
        %v7450 = vshll.u32 %v7182, 16
        %v7452 = vor.u32 %v7449, %v7450
        %v7453 = vsel %vm617, %v7445, %v7452
        %v7454 = vrot.slane %v7449, 4
        %s7503 = scalar_lea.vmem [#allocation3], 12
        %v7504 = vld [vmem:[%s7503] sm:$0xf]
        %v7505 = vsel %vm940, %v7189, %v7504
        %7506 = vst [vmem:[%s7503] sm:$0xf] %v7505
        %7507 = vst [vmem:[%s7503 + $0x4] sm:$0xf] %v7198
        %v7508 = vld [vmem:[%s7503 + $0x8] sm:$0x1]
        %v7509 = vsel %vm351, %v7199, %v7508
        %7510 = vst [vmem:[%s7503 + $0x8] sm:$0x1] %v7509
        %v7511 = vld [vmem:[%s7503 + $0xc] sm:$0xf]
        %v7512 = vsel %vm940, %v7206, %v7511
        %7513 = vst [vmem:[%s7503 + $0xc] sm:$0xf] %v7512
        %7514 = vst [vmem:[%s7503 + $0x10] sm:$0xf] %v7215
        %v7515 = vld [vmem:[%s7503 + $0x14] sm:$0x1]
        %v7516 = vsel %vm351, %v7216, %v7515
        %7517 = vst [vmem:[%s7503 + $0x14] sm:$0x1] %v7516
        %v7518 = vld [vmem:[%s7503 + $0x18] sm:$0xf]
        %v7519 = vsel %vm940, %v7223, %v7518
        %7520 = vst [vmem:[%s7503 + $0x18] sm:$0xf] %v7519
        %7521 = vst [vmem:[%s7503 + $0x1c] sm:$0xf] %v7232
        %v7522 = vld [vmem:[%s7503 + $0x20] sm:$0x1]
        %v7523 = vsel %vm351, %v7233, %v7522
        %7524 = vst [vmem:[%s7503 + $0x20] sm:$0x1] %v7523
        %v7525 = vld [vmem:[%s7503 + $0x24] sm:$0xf]
        %v7526 = vsel %vm940, %v7240, %v7525
        %7527 = vst [vmem:[%s7503 + $0x24] sm:$0xf] %v7526
        %7528 = vst [vmem:[%s7503 + $0x28] sm:$0xf] %v7249
        %v7529 = vld [vmem:[%s7503 + $0x2c] sm:$0x1]
        %v7530 = vsel %vm351, %v7250, %v7529
        %7531 = vst [vmem:[%s7503 + $0x2c] sm:$0x1] %v7530
        %v7532 = vld [vmem:[%s7503 + $0x30] sm:$0xf]
        %v7533 = vsel %vm940, %v7257, %v7532
        %7534 = vst [vmem:[%s7503 + $0x30] sm:$0xf] %v7533
        %7535 = vst [vmem:[%s7503 + $0x34] sm:$0xf] %v7266
        %v7536 = vld [vmem:[%s7503 + $0x38] sm:$0x1]
        %v7537 = vsel %vm351, %v7267, %v7536
        %7538 = vst [vmem:[%s7503 + $0x38] sm:$0x1] %v7537
        %v7539 = vld [vmem:[%s7503 + $0x3c] sm:$0xf]
        %v7540 = vsel %vm940, %v7274, %v7539
        %7541 = vst [vmem:[%s7503 + $0x3c] sm:$0xf] %v7540
        %7542 = vst [vmem:[%s7503 + $0x40] sm:$0xf] %v7283
        %v7543 = vld [vmem:[%s7503 + $0x44] sm:$0x1]
        %v7544 = vsel %vm351, %v7284, %v7543
        %7545 = vst [vmem:[%s7503 + $0x44] sm:$0x1] %v7544
        %v7546 = vld [vmem:[%s7503 + $0x48] sm:$0xf]
        %v7547 = vsel %vm940, %v7291, %v7546
        %7548 = vst [vmem:[%s7503 + $0x48] sm:$0xf] %v7547
        %7549 = vst [vmem:[%s7503 + $0x4c] sm:$0xf] %v7300
        %v7550 = vld [vmem:[%s7503 + $0x50] sm:$0x1]
        %v7551 = vsel %vm351, %v7301, %v7550
        %7552 = vst [vmem:[%s7503 + $0x50] sm:$0x1] %v7551
        %v7553 = vld [vmem:[%s7503 + $0x54] sm:$0xf]
        %v7554 = vsel %vm940, %v7308, %v7553
        %7555 = vst [vmem:[%s7503 + $0x54] sm:$0xf] %v7554
        %7556 = vst [vmem:[%s7503 + $0x58] sm:$0xf] %v7317
        %v7557 = vld [vmem:[%s7503 + $0x5c] sm:$0x1]
        %v7558 = vsel %vm351, %v7318, %v7557
        %7559 = vst [vmem:[%s7503 + $0x5c] sm:$0x1] %v7558
        %v7560 = vld [vmem:[%s7503 + $0x60] sm:$0xf]
        %v7561 = vsel %vm940, %v7325, %v7560
        %7562 = vst [vmem:[%s7503 + $0x60] sm:$0xf] %v7561
        %7563 = vst [vmem:[%s7503 + $0x64] sm:$0xf] %v7334
        %v7564 = vld [vmem:[%s7503 + $0x68] sm:$0x1]
        %v7565 = vsel %vm351, %v7335, %v7564
        %7566 = vst [vmem:[%s7503 + $0x68] sm:$0x1] %v7565
        %v7567 = vld [vmem:[%s7503 + $0x6c] sm:$0xf]
        %v7568 = vsel %vm940, %v7342, %v7567
        %7569 = vst [vmem:[%s7503 + $0x6c] sm:$0xf] %v7568
        %7570 = vst [vmem:[%s7503 + $0x70] sm:$0xf] %v7351
        %v7571 = vld [vmem:[%s7503 + $0x74] sm:$0x1]
        %v7572 = vsel %vm351, %v7352, %v7571
        %7573 = vst [vmem:[%s7503 + $0x74] sm:$0x1] %v7572
        %v7574 = vld [vmem:[%s7503 + $0x78] sm:$0xf]
        %v7575 = vsel %vm940, %v7359, %v7574
        %7576 = vst [vmem:[%s7503 + $0x78] sm:$0xf] %v7575
        %7577 = vst [vmem:[%s7503 + $0x7c] sm:$0xf] %v7368
        %v7578 = vld [vmem:[%s7503 + $0x80] sm:$0x1]
        %v7579 = vsel %vm351, %v7369, %v7578
        %7580 = vst [vmem:[%s7503 + $0x80] sm:$0x1] %v7579
        %v7581 = vld [vmem:[%s7503 + $0x84] sm:$0xf]
        %v7582 = vsel %vm940, %v7376, %v7581
        %7583 = vst [vmem:[%s7503 + $0x84] sm:$0xf] %v7582
        %7584 = vst [vmem:[%s7503 + $0x88] sm:$0xf] %v7385
        %v7585 = vld [vmem:[%s7503 + $0x8c] sm:$0x1]
        %v7586 = vsel %vm351, %v7386, %v7585
        %7587 = vst [vmem:[%s7503 + $0x8c] sm:$0x1] %v7586
        %v7588 = vld [vmem:[%s7503 + $0x90] sm:$0xf]
        %v7589 = vsel %vm940, %v7393, %v7588
        %7590 = vst [vmem:[%s7503 + $0x90] sm:$0xf] %v7589
        %7591 = vst [vmem:[%s7503 + $0x94] sm:$0xf] %v7402
        %v7592 = vld [vmem:[%s7503 + $0x98] sm:$0x1]
        %v7593 = vsel %vm351, %v7403, %v7592
        %7594 = vst [vmem:[%s7503 + $0x98] sm:$0x1] %v7593
        %v7595 = vld [vmem:[%s7503 + $0x9c] sm:$0xf]
        %v7596 = vsel %vm940, %v7410, %v7595
        %7597 = vst [vmem:[%s7503 + $0x9c] sm:$0xf] %v7596
        %7598 = vst [vmem:[%s7503 + $0xa0] sm:$0xf] %v7419
        %v7599 = vld [vmem:[%s7503 + $0xa4] sm:$0x1]
        %v7600 = vsel %vm351, %v7420, %v7599
        %7601 = vst [vmem:[%s7503 + $0xa4] sm:$0x1] %v7600
        %v7602 = vld [vmem:[%s7503 + $0xa8] sm:$0xf]
        %v7603 = vsel %vm940, %v7427, %v7602
        %7604 = vst [vmem:[%s7503 + $0xa8] sm:$0xf] %v7603
        %7605 = vst [vmem:[%s7503 + $0xac] sm:$0xf] %v7436
        %v7606 = vld [vmem:[%s7503 + $0xb0] sm:$0x1]
        %v7607 = vsel %vm351, %v7437, %v7606
        %7608 = vst [vmem:[%s7503 + $0xb0] sm:$0x1] %v7607
        %v7609 = vld [vmem:[%s7503 + $0xb4] sm:$0xf]
        %v7610 = vsel %vm940, %v7444, %v7609
        %7611 = vst [vmem:[%s7503 + $0xb4] sm:$0xf] %v7610
        %7612 = vst [vmem:[%s7503 + $0xb8] sm:$0xf] %v7453
        %v7613 = vld [vmem:[%s7503 + $0xbc] sm:$0x1]
        %v7614 = vsel %vm351, %v7454, %v7613
        %7615 = vst [vmem:[%s7503 + $0xbc] sm:$0x1] %v7614
        %v7616 = vld [vmem:[#allocation3] sm:$0xf]
        %v7617 = vld [vmem:[#allocation3 + $0x4] sm:$0xf]
        %v7618 = vld [vmem:[#allocation3 + $0xc] sm:$0xf]
        %v7619 = vld [vmem:[#allocation3 + $0x10] sm:$0xf]
        %v7620 = vld [vmem:[#allocation3 + $0x18] sm:$0xf]
        %v7621 = vld [vmem:[#allocation3 + $0x1c] sm:$0xf]
        %v7622 = vld [vmem:[#allocation3 + $0x24] sm:$0xf]
        %v7623 = vld [vmem:[#allocation3 + $0x28] sm:$0xf]
        %v7624 = vld [vmem:[#allocation3 + $0x30] sm:$0xf]
        %v7625 = vld [vmem:[#allocation3 + $0x34] sm:$0xf]
        %v7626 = vld [vmem:[#allocation3 + $0x3c] sm:$0xf]
        %v7627 = vld [vmem:[#allocation3 + $0x40] sm:$0xf]
        %v7628 = vld [vmem:[#allocation3 + $0x48] sm:$0xf]
        %v7629 = vld [vmem:[#allocation3 + $0x4c] sm:$0xf]
        %v7630 = vld [vmem:[#allocation3 + $0x54] sm:$0xf]
        %v7631 = vld [vmem:[#allocation3 + $0x58] sm:$0xf]
        %v7632 = vld [vmem:[#allocation3 + $0x60] sm:$0xf]
        %v7633 = vld [vmem:[#allocation3 + $0x64] sm:$0xf]
        %v7634 = vld [vmem:[#allocation3 + $0x6c] sm:$0xf]
        %v7635 = vld [vmem:[#allocation3 + $0x70] sm:$0xf]
        %v7636 = vld [vmem:[#allocation3 + $0x78] sm:$0xf]
        %v7637 = vld [vmem:[#allocation3 + $0x7c] sm:$0xf]
        %v7638 = vld [vmem:[#allocation3 + $0x84] sm:$0xf]
        %v7639 = vld [vmem:[#allocation3 + $0x88] sm:$0xf]
        %v7640 = vld [vmem:[#allocation3 + $0x90] sm:$0xf]
        %v7641 = vld [vmem:[#allocation3 + $0x94] sm:$0xf]
        %v7642 = vld [vmem:[#allocation3 + $0x9c] sm:$0xf]
        %v7643 = vld [vmem:[#allocation3 + $0xa0] sm:$0xf]
        %v7644 = vld [vmem:[#allocation3 + $0xa8] sm:$0xf]
        %v7645 = vld [vmem:[#allocation3 + $0xac] sm:$0xf]
        %v7646 = vld [vmem:[#allocation3 + $0xb4] sm:$0xf]
        %v7647 = vld [vmem:[#allocation3 + $0xb8] sm:$0xf]
        %v7648 = vld [vmem:[#allocation9] sm:$0xf]
        %v7649 = vld [vmem:[#allocation9 + $0x4] sm:$0xf]
        %v7650 = vld [vmem:[#allocation9 + $0x8] sm:$0xf]
        %v7651 = vld [vmem:[#allocation9 + $0xc] sm:$0xf]
        %v7652 = vld [vmem:[#allocation9 + $0x10] sm:$0xf]
        %v7653 = vld [vmem:[#allocation9 + $0x14] sm:$0xf]
        %v7654 = vld [vmem:[#allocation9 + $0x18] sm:$0xf]
        %v7655 = vld [vmem:[#allocation9 + $0x1c] sm:$0xf]
        %v7656 = vld [vmem:[#allocation9 + $0x20] sm:$0xf]
        %v7657 = vld [vmem:[#allocation9 + $0x24] sm:$0xf]
        %v7658 = vld [vmem:[#allocation9 + $0x28] sm:$0xf]
        %v7659 = vld [vmem:[#allocation9 + $0x2c] sm:$0xf]
        %v7660 = vld [vmem:[#allocation9 + $0x30] sm:$0xf]
        %v7661 = vld [vmem:[#allocation9 + $0x34] sm:$0xf]
        %v7662 = vld [vmem:[#allocation9 + $0x38] sm:$0xf]
        %v7663 = vld [vmem:[#allocation9 + $0x3c] sm:$0xf]
        %v7664 = vld [vmem:[#allocation3 + $0x8] sm:$0x1]
        %v7665 = vld [vmem:[#allocation3 + $0x14] sm:$0x1]
        %v7666 = vld [vmem:[#allocation3 + $0x20] sm:$0x1]
        %v7667 = vld [vmem:[#allocation3 + $0x2c] sm:$0x1]
        %v7668 = vld [vmem:[#allocation3 + $0x38] sm:$0x1]
        %v7669 = vld [vmem:[#allocation3 + $0x44] sm:$0x1]
        %v7670 = vld [vmem:[#allocation3 + $0x50] sm:$0x1]
        %v7671 = vld [vmem:[#allocation3 + $0x5c] sm:$0x1]
        %v7672 = vld [vmem:[#allocation3 + $0x68] sm:$0x1]
        %v7673 = vld [vmem:[#allocation3 + $0x74] sm:$0x1]
        %v7674 = vld [vmem:[#allocation3 + $0x80] sm:$0x1]
        %v7675 = vld [vmem:[#allocation3 + $0x8c] sm:$0x1]
        %v7676 = vld [vmem:[#allocation3 + $0x98] sm:$0x1]
        %v7677 = vld [vmem:[#allocation3 + $0xa4] sm:$0x1]
        %v7678 = vld [vmem:[#allocation3 + $0xb0] sm:$0x1]
        %v7679 = vld [vmem:[#allocation3 + $0xbc] sm:$0x1]
        %v7681 = vshrl.u32 %v7616, 16
        %v7683 = vrot.slane %v7681, 4
        %v7684 = vshll.u32 %v7616, 16
        %v7686 = vrot.slane %v7684, 5
        %v7687 = vor.u32 %v7683, %v7686
        %v7688 = vrot.slane %v7687, 4
        %v7690 = vshll.u32 %v7617, 16
        %v7692 = vrot.slane %v7690, 5
        %v7693 = vsel %vm1138, %v7688, %v7692
        %v7694 = vshrl.u32 %v7617, 16
        %v7696 = vrot.slane %v7694, 4
        %v7697 = vor.u32 %v7696, %v7692
        %v7698 = vrot.slane %v7697, 4
        %v7700 = vshll.u32 %v7664, 16
        %v7702 = vrot.slane %v7700, 5
        %v7703 = vsel %vm1138, %v7698, %v7702
        %v7705 = vshrl.u32 %v7618, 16
        %v7707 = vrot.slane %v7705, 4
        %v7708 = vshll.u32 %v7618, 16
        %v7710 = vrot.slane %v7708, 5
        %v7711 = vor.u32 %v7707, %v7710
        %v7712 = vrot.slane %v7711, 4
        %v7714 = vshll.u32 %v7619, 16
        %v7716 = vrot.slane %v7714, 5
        %v7717 = vsel %vm1138, %v7712, %v7716
        %v7718 = vshrl.u32 %v7619, 16
        %v7720 = vrot.slane %v7718, 4
        %v7721 = vor.u32 %v7720, %v7716
        %v7722 = vrot.slane %v7721, 4
        %v7724 = vshll.u32 %v7665, 16
        %v7726 = vrot.slane %v7724, 5
        %v7727 = vsel %vm1138, %v7722, %v7726
        %v7729 = vshrl.u32 %v7620, 16
        %v7731 = vrot.slane %v7729, 4
        %v7732 = vshll.u32 %v7620, 16
        %v7734 = vrot.slane %v7732, 5
        %v7735 = vor.u32 %v7731, %v7734
        %v7736 = vrot.slane %v7735, 4
        %v7738 = vshll.u32 %v7621, 16
        %v7740 = vrot.slane %v7738, 5
        %v7741 = vsel %vm1138, %v7736, %v7740
        %v7742 = vshrl.u32 %v7621, 16
        %v7744 = vrot.slane %v7742, 4
        %v7745 = vor.u32 %v7744, %v7740
        %v7746 = vrot.slane %v7745, 4
        %v7748 = vshll.u32 %v7666, 16
        %v7750 = vrot.slane %v7748, 5
        %v7751 = vsel %vm1138, %v7746, %v7750
        %v7753 = vshrl.u32 %v7622, 16
        %v7755 = vrot.slane %v7753, 4
        %v7756 = vshll.u32 %v7622, 16
        %v7758 = vrot.slane %v7756, 5
        %v7759 = vor.u32 %v7755, %v7758
        %v7760 = vrot.slane %v7759, 4
        %v7762 = vshll.u32 %v7623, 16
        %v7764 = vrot.slane %v7762, 5
        %v7765 = vsel %vm1138, %v7760, %v7764
        %v7766 = vshrl.u32 %v7623, 16
        %v7768 = vrot.slane %v7766, 4
        %v7769 = vor.u32 %v7768, %v7764
        %v7770 = vrot.slane %v7769, 4
        %v7772 = vshll.u32 %v7667, 16
        %v7774 = vrot.slane %v7772, 5
        %v7775 = vsel %vm1138, %v7770, %v7774
        %v7777 = vshrl.u32 %v7624, 16
        %v7779 = vrot.slane %v7777, 4
        %v7780 = vshll.u32 %v7624, 16
        %v7782 = vrot.slane %v7780, 5
        %v7783 = vor.u32 %v7779, %v7782
        %v7784 = vrot.slane %v7783, 4
        %v7786 = vshll.u32 %v7625, 16
        %v7788 = vrot.slane %v7786, 5
        %v7789 = vsel %vm1138, %v7784, %v7788
        %v7790 = vshrl.u32 %v7625, 16
        %v7792 = vrot.slane %v7790, 4
        %v7793 = vor.u32 %v7792, %v7788
        %v7794 = vrot.slane %v7793, 4
        %v7796 = vshll.u32 %v7668, 16
        %v7798 = vrot.slane %v7796, 5
        %v7799 = vsel %vm1138, %v7794, %v7798
        %v7801 = vshrl.u32 %v7626, 16
        %v7803 = vrot.slane %v7801, 4
        %v7804 = vshll.u32 %v7626, 16
        %v7806 = vrot.slane %v7804, 5
        %v7807 = vor.u32 %v7803, %v7806
        %v7808 = vrot.slane %v7807, 4
        %v7810 = vshll.u32 %v7627, 16
        %v7812 = vrot.slane %v7810, 5
        %v7813 = vsel %vm1138, %v7808, %v7812
        %v7814 = vshrl.u32 %v7627, 16
        %v7816 = vrot.slane %v7814, 4
        %v7817 = vor.u32 %v7816, %v7812
        %v7818 = vrot.slane %v7817, 4
        %v7820 = vshll.u32 %v7669, 16
        %v7822 = vrot.slane %v7820, 5
        %v7823 = vsel %vm1138, %v7818, %v7822
        %v7825 = vshrl.u32 %v7628, 16
        %v7827 = vrot.slane %v7825, 4
        %v7828 = vshll.u32 %v7628, 16
        %v7830 = vrot.slane %v7828, 5
        %v7831 = vor.u32 %v7827, %v7830
        %v7832 = vrot.slane %v7831, 4
        %v7834 = vshll.u32 %v7629, 16
        %v7836 = vrot.slane %v7834, 5
        %v7837 = vsel %vm1138, %v7832, %v7836
        %v7838 = vshrl.u32 %v7629, 16
        %v7840 = vrot.slane %v7838, 4
        %v7841 = vor.u32 %v7840, %v7836
        %v7842 = vrot.slane %v7841, 4
        %v7844 = vshll.u32 %v7670, 16
        %v7846 = vrot.slane %v7844, 5
        %v7847 = vsel %vm1138, %v7842, %v7846
        %v7849 = vshrl.u32 %v7630, 16
        %v7851 = vrot.slane %v7849, 4
        %v7852 = vshll.u32 %v7630, 16
        %v7854 = vrot.slane %v7852, 5
        %v7855 = vor.u32 %v7851, %v7854
        %v7856 = vrot.slane %v7855, 4
        %v7858 = vshll.u32 %v7631, 16
        %v7860 = vrot.slane %v7858, 5
        %v7861 = vsel %vm1138, %v7856, %v7860
        %v7862 = vshrl.u32 %v7631, 16
        %v7864 = vrot.slane %v7862, 4
        %v7865 = vor.u32 %v7864, %v7860
        %v7866 = vrot.slane %v7865, 4
        %v7868 = vshll.u32 %v7671, 16
        %v7870 = vrot.slane %v7868, 5
        %v7871 = vsel %vm1138, %v7866, %v7870
        %v7873 = vshrl.u32 %v7632, 16
        %v7875 = vrot.slane %v7873, 4
        %v7876 = vshll.u32 %v7632, 16
        %v7878 = vrot.slane %v7876, 5
        %v7879 = vor.u32 %v7875, %v7878
        %v7880 = vrot.slane %v7879, 4
        %v7882 = vshll.u32 %v7633, 16
        %v7884 = vrot.slane %v7882, 5
        %v7885 = vsel %vm1138, %v7880, %v7884
        %v7886 = vshrl.u32 %v7633, 16
        %v7888 = vrot.slane %v7886, 4
        %v7889 = vor.u32 %v7888, %v7884
        %v7890 = vrot.slane %v7889, 4
        %v7892 = vshll.u32 %v7672, 16
        %v7894 = vrot.slane %v7892, 5
        %v7895 = vsel %vm1138, %v7890, %v7894
        %v7897 = vshrl.u32 %v7634, 16
        %v7899 = vrot.slane %v7897, 4
        %v7900 = vshll.u32 %v7634, 16
        %v7902 = vrot.slane %v7900, 5
        %v7903 = vor.u32 %v7899, %v7902
        %v7904 = vrot.slane %v7903, 4
        %v7906 = vshll.u32 %v7635, 16
        %v7908 = vrot.slane %v7906, 5
        %v7909 = vsel %vm1138, %v7904, %v7908
        %v7910 = vshrl.u32 %v7635, 16
        %v7912 = vrot.slane %v7910, 4
        %v7913 = vor.u32 %v7912, %v7908
        %v7914 = vrot.slane %v7913, 4
        %v7916 = vshll.u32 %v7673, 16
        %v7918 = vrot.slane %v7916, 5
        %v7919 = vsel %vm1138, %v7914, %v7918
        %v7921 = vshrl.u32 %v7636, 16
        %v7923 = vrot.slane %v7921, 4
        %v7924 = vshll.u32 %v7636, 16
        %v7926 = vrot.slane %v7924, 5
        %v7927 = vor.u32 %v7923, %v7926
        %v7928 = vrot.slane %v7927, 4
        %v7930 = vshll.u32 %v7637, 16
        %v7932 = vrot.slane %v7930, 5
        %v7933 = vsel %vm1138, %v7928, %v7932
        %v7934 = vshrl.u32 %v7637, 16
        %v7936 = vrot.slane %v7934, 4
        %v7937 = vor.u32 %v7936, %v7932
        %v7938 = vrot.slane %v7937, 4
        %v7940 = vshll.u32 %v7674, 16
        %v7942 = vrot.slane %v7940, 5
        %v7943 = vsel %vm1138, %v7938, %v7942
        %v7945 = vshrl.u32 %v7638, 16
        %v7947 = vrot.slane %v7945, 4
        %v7948 = vshll.u32 %v7638, 16
        %v7950 = vrot.slane %v7948, 5
        %v7951 = vor.u32 %v7947, %v7950
        %v7952 = vrot.slane %v7951, 4
        %v7954 = vshll.u32 %v7639, 16
        %v7956 = vrot.slane %v7954, 5
        %v7957 = vsel %vm1138, %v7952, %v7956
        %v7958 = vshrl.u32 %v7639, 16
        %v7960 = vrot.slane %v7958, 4
        %v7961 = vor.u32 %v7960, %v7956
        %v7962 = vrot.slane %v7961, 4
        %v7964 = vshll.u32 %v7675, 16
        %v7966 = vrot.slane %v7964, 5
        %v7967 = vsel %vm1138, %v7962, %v7966
        %v7969 = vshrl.u32 %v7640, 16
        %v7971 = vrot.slane %v7969, 4
        %v7972 = vshll.u32 %v7640, 16
        %v7974 = vrot.slane %v7972, 5
        %v7975 = vor.u32 %v7971, %v7974
        %v7976 = vrot.slane %v7975, 4
        %v7978 = vshll.u32 %v7641, 16
        %v7980 = vrot.slane %v7978, 5
        %v7981 = vsel %vm1138, %v7976, %v7980
        %v7982 = vshrl.u32 %v7641, 16
        %v7984 = vrot.slane %v7982, 4
        %v7985 = vor.u32 %v7984, %v7980
        %v7986 = vrot.slane %v7985, 4
        %v7988 = vshll.u32 %v7676, 16
        %v7990 = vrot.slane %v7988, 5
        %v7991 = vsel %vm1138, %v7986, %v7990
        %v7993 = vshrl.u32 %v7642, 16
        %v7995 = vrot.slane %v7993, 4
        %v7996 = vshll.u32 %v7642, 16
        %v7998 = vrot.slane %v7996, 5
        %v7999 = vor.u32 %v7995, %v7998
        %v8000 = vrot.slane %v7999, 4
        %v8002 = vshll.u32 %v7643, 16
        %v8004 = vrot.slane %v8002, 5
        %v8005 = vsel %vm1138, %v8000, %v8004
        %v8006 = vshrl.u32 %v7643, 16
        %v8008 = vrot.slane %v8006, 4
        %v8009 = vor.u32 %v8008, %v8004
        %v8010 = vrot.slane %v8009, 4
        %v8012 = vshll.u32 %v7677, 16
        %v8014 = vrot.slane %v8012, 5
        %v8015 = vsel %vm1138, %v8010, %v8014
        %v8017 = vshrl.u32 %v7644, 16
        %v8019 = vrot.slane %v8017, 4
        %v8020 = vshll.u32 %v7644, 16
        %v8022 = vrot.slane %v8020, 5
        %v8023 = vor.u32 %v8019, %v8022
        %v8024 = vrot.slane %v8023, 4
        %v8026 = vshll.u32 %v7645, 16
        %v8028 = vrot.slane %v8026, 5
        %v8029 = vsel %vm1138, %v8024, %v8028
        %v8030 = vshrl.u32 %v7645, 16
        %v8032 = vrot.slane %v8030, 4
        %v8033 = vor.u32 %v8032, %v8028
        %v8034 = vrot.slane %v8033, 4
        %v8036 = vshll.u32 %v7678, 16
        %v8038 = vrot.slane %v8036, 5
        %v8039 = vsel %vm1138, %v8034, %v8038
        %v8041 = vshrl.u32 %v7646, 16
        %v8043 = vrot.slane %v8041, 4
        %v8044 = vshll.u32 %v7646, 16
        %v8046 = vrot.slane %v8044, 5
        %v8047 = vor.u32 %v8043, %v8046
        %v8048 = vrot.slane %v8047, 4
        %v8050 = vshll.u32 %v7647, 16
        %v8052 = vrot.slane %v8050, 5
        %v8053 = vsel %vm1138, %v8048, %v8052
        %v8054 = vshrl.u32 %v7647, 16
        %v8056 = vrot.slane %v8054, 4
        %v8057 = vor.u32 %v8056, %v8052
        %v8058 = vrot.slane %v8057, 4
        %v8060 = vshll.u32 %v7679, 16
        %v8062 = vrot.slane %v8060, 5
        %v8063 = vsel %vm1138, %v8058, %v8062
        %s8064 = scalar_lea.vmem [#allocation9], 64
        %v8065 = vld [vmem:[%s8064] sm:$0xf]
        %v8066 = vld [vmem:[%s8064 + $0x4] sm:$0xf]
        %v8067 = vld [vmem:[%s8064 + $0x8] sm:$0xf]
        %v8068 = vld [vmem:[%s8064 + $0xc] sm:$0xf]
        %v8069 = vld [vmem:[%s8064 + $0x10] sm:$0xf]
        %v8070 = vld [vmem:[%s8064 + $0x14] sm:$0xf]
        %v8071 = vld [vmem:[%s8064 + $0x18] sm:$0xf]
        %v8072 = vld [vmem:[%s8064 + $0x1c] sm:$0xf]
        %v8073 = vld [vmem:[%s8064 + $0x20] sm:$0xf]
        %v8074 = vld [vmem:[%s8064 + $0x24] sm:$0xf]
        %v8075 = vld [vmem:[%s8064 + $0x28] sm:$0xf]
        %v8076 = vld [vmem:[%s8064 + $0x2c] sm:$0xf]
        %v8077 = vld [vmem:[%s8064 + $0x30] sm:$0xf]
        %v8078 = vld [vmem:[%s8064 + $0x34] sm:$0xf]
        %v8079 = vld [vmem:[%s8064 + $0x38] sm:$0xf]
        %v8080 = vld [vmem:[%s8064 + $0x3c] sm:$0xf]
        %v8081 = vunpack.c.l.b16 %v7693
        %v8082 = vunpack.c.l.b16 %v7703
        %v8083 = vunpack.c.l.b16 %v7717
        %v8084 = vunpack.c.l.b16 %v7727
        %v8085 = vunpack.c.l.b16 %v7741
        %v8086 = vunpack.c.l.b16 %v7751
        %v8087 = vunpack.c.l.b16 %v7765
        %v8088 = vunpack.c.l.b16 %v7775
        %v8089 = vunpack.c.l.b16 %v7789
        %v8090 = vunpack.c.l.b16 %v7799
        %v8091 = vunpack.c.l.b16 %v7813
        %v8092 = vunpack.c.l.b16 %v7823
        %v8093 = vunpack.c.l.b16 %v7837
        %v8094 = vunpack.c.l.b16 %v7847
        %v8095 = vunpack.c.l.b16 %v7861
        %v8096 = vunpack.c.l.b16 %v7871
        %v8097 = vunpack.c.l.b16 %v7885
        %v8098 = vunpack.c.l.b16 %v7895
        %v8099 = vunpack.c.l.b16 %v7909
        %v8100 = vunpack.c.l.b16 %v7919
        %v8101 = vunpack.c.l.b16 %v7933
        %v8102 = vunpack.c.l.b16 %v7943
        %v8103 = vunpack.c.l.b16 %v7957
        %v8104 = vunpack.c.l.b16 %v7967
        %v8105 = vunpack.c.l.b16 %v7981
        %v8106 = vunpack.c.l.b16 %v7991
        %v8107 = vunpack.c.l.b16 %v8005
        %v8108 = vunpack.c.l.b16 %v8015
        %v8109 = vunpack.c.l.b16 %v8029
        %v8110 = vunpack.c.l.b16 %v8039
        %v8111 = vunpack.c.l.b16 %v8053
        %v8112 = vunpack.c.l.b16 %v8063
        %v8113 = vpack.c.b16 %v8082, %v8081
        %v8114 = vpack.c.b16 %v8084, %v8083
        %v8115 = vpack.c.b16 %v8086, %v8085
        %v8116 = vpack.c.b16 %v8088, %v8087
        %v8117 = vpack.c.b16 %v8090, %v8089
        %v8118 = vpack.c.b16 %v8092, %v8091
        %v8119 = vpack.c.b16 %v8094, %v8093
        %v8120 = vpack.c.b16 %v8096, %v8095
        %v8121 = vpack.c.b16 %v8098, %v8097
        %v8122 = vpack.c.b16 %v8100, %v8099
        %v8123 = vpack.c.b16 %v8102, %v8101
        %v8124 = vpack.c.b16 %v8104, %v8103
        %v8125 = vpack.c.b16 %v8106, %v8105
        %v8126 = vpack.c.b16 %v8108, %v8107
        %v8127 = vpack.c.b16 %v8110, %v8109
        %v8128 = vpack.c.b16 %v8112, %v8111
        %v8161 = vunpack.c.l.b16 %v8065
        %v8162 = vunpack.c.l.b16 %v8066
        %v8163 = vunpack.c.l.b16 %v8067
        %v8164 = vunpack.c.l.b16 %v8068
        %v8165 = vunpack.c.l.b16 %v8069
        %v8166 = vunpack.c.l.b16 %v8070
        %v8167 = vunpack.c.l.b16 %v8071
        %v8168 = vunpack.c.l.b16 %v8072
        %v8169 = vunpack.c.l.b16 %v8073
        %v8170 = vunpack.c.l.b16 %v8074
        %v8171 = vunpack.c.l.b16 %v8075
        %v8172 = vunpack.c.l.b16 %v8076
        %v8173 = vunpack.c.l.b16 %v8077
        %v8174 = vunpack.c.l.b16 %v8078
        %v8175 = vunpack.c.l.b16 %v8079
        %v8176 = vunpack.c.l.b16 %v8080
        %v8177 = vpack.c.b16 %v8162, %v8161
        %v8178 = vpack.c.b16 %v8164, %v8163
        %v8179 = vpack.c.b16 %v8166, %v8165
        %v8180 = vpack.c.b16 %v8168, %v8167
        %v8181 = vpack.c.b16 %v8170, %v8169
        %v8182 = vpack.c.b16 %v8172, %v8171
        %v8183 = vpack.c.b16 %v8174, %v8173
        %v8184 = vpack.c.b16 %v8176, %v8175
        %8193 = vmatprep.subr.bf16.mxu0 0
        %8194 = vmatpush1.bf16.msra.mxu0 %v8177
        %8195 = vmatprep.subr.bf16.mxu0 0
        %8196 = vmatpush1.bf16.msra.mxu0 %v8178
        %8197 = vmatprep.subr.bf16.mxu0 0
        %8198 = vmatpush1.bf16.msra.mxu0 %v8179
        %8199 = vmatprep.subr.bf16.mxu0 0
        %8200 = vmatpush1.bf16.msra.mxu0 %v8180
        %8201 = vmatprep.subr.bf16.mxu0 0
        %8202 = vmatpush1.bf16.msra.mxu0 %v8181
        %8203 = vmatprep.subr.bf16.mxu0 0
        %8204 = vmatpush1.bf16.msra.mxu0 %v8182
        %8205 = vmatprep.subr.bf16.mxu0 0
        %8206 = vmatpush1.bf16.msra.mxu0 %v8183
        %8207 = vmatprep.subr.bf16.mxu0 0
        %8208 = vmatpush1.bf16.msra.mxu0 %v8184
        %8209 = vmatprep.subr.bf16.mxu0 0
        %8210 = vmatpush1.bf16.msra.mxu0 0
        %8211 = vmatprep.subr.bf16.mxu0 0
        %8212 = vmatpush1.bf16.msra.mxu0 0
        %8213 = vmatprep.subr.bf16.mxu0 0
        %8214 = vmatpush1.bf16.msra.mxu0 0
        %8215 = vmatprep.subr.bf16.mxu0 0
        %8216 = vmatpush1.bf16.msra.mxu0 0
        %8217 = vmatprep.subr.bf16.mxu0 0
        %8218 = vmatpush1.bf16.msra.mxu0 0
        %8219 = vmatprep.subr.bf16.mxu0 0
        %8220 = vmatpush1.bf16.msra.mxu0 0
        %8221 = vmatprep.subr.bf16.mxu0 0
        %8222 = vmatpush1.bf16.msra.mxu0 0
        %8223 = vmatprep.subr.bf16.mxu0 0
        %8224 = vmatpush1.bf16.msra.mxu0 0
        %8225 = vmatprep.mubr.bf16.mxu0 0
        %8226 = vmatmul.mubr.bf16.gmra.mrb[0].mxu0 %v8113
        %v8227 = vpop.f32.mrb[0].mxu0
        %v8228 = vadd.f32 0.0, %v8227
        %v8229 = vpop.f32.mrb[0].mxu0
        %v8230 = vpop.f32.mrb[0].mxu0
        %v8231 = vadd.f32 0.0, %v8230
        %v8232 = vpop.f32.mrb[0].mxu0
        %8233 = vmatprep.mubr.bf16.mxu0 0
        %8234 = vmatmul.mubr.bf16.gmra.mrb[0].mxu0 %v8114
        %v8235 = vpop.f32.mrb[0].mxu0
        %v8236 = vadd.f32 0.0, %v8235
        %v8237 = vpop.f32.mrb[0].mxu0
        %v8238 = vpop.f32.mrb[0].mxu0
        %v8239 = vadd.f32 0.0, %v8238
        %v8240 = vpop.f32.mrb[0].mxu0
        %8241 = vmatprep.mubr.bf16.mxu0 0
        %8242 = vmatmul.mubr.bf16.gmra.mrb[0].mxu0 %v8115
        %v8243 = vpop.f32.mrb[0].mxu0
        %v8244 = vadd.f32 0.0, %v8243
        %v8245 = vpop.f32.mrb[0].mxu0
        %v8246 = vpop.f32.mrb[0].mxu0
        %v8247 = vadd.f32 0.0, %v8246
        %v8248 = vpop.f32.mrb[0].mxu0
        %8249 = vmatprep.mubr.bf16.mxu0 0
        %8250 = vmatmul.mubr.bf16.gmra.mrb[0].mxu0 %v8116
        %v8251 = vpop.f32.mrb[0].mxu0
        %v8252 = vadd.f32 0.0, %v8251
        %v8253 = vpop.f32.mrb[0].mxu0
        %v8254 = vpop.f32.mrb[0].mxu0
        %v8255 = vadd.f32 0.0, %v8254
        %v8256 = vpop.f32.mrb[0].mxu0
        %8257 = vmatprep.mubr.bf16.mxu0 0
        %8258 = vmatmul.mubr.bf16.gmra.mrb[0].mxu0 %v8117
        %v8259 = vpop.f32.mrb[0].mxu0
        %v8260 = vadd.f32 0.0, %v8259
        %v8261 = vpop.f32.mrb[0].mxu0
        %v8262 = vpop.f32.mrb[0].mxu0
        %v8263 = vadd.f32 0.0, %v8262
        %v8264 = vpop.f32.mrb[0].mxu0
        %8265 = vmatprep.mubr.bf16.mxu0 0
        %8266 = vmatmul.mubr.bf16.gmra.mrb[0].mxu0 %v8118
        %v8267 = vpop.f32.mrb[0].mxu0
        %v8268 = vadd.f32 0.0, %v8267
        %v8269 = vpop.f32.mrb[0].mxu0
        %v8270 = vpop.f32.mrb[0].mxu0
        %v8271 = vadd.f32 0.0, %v8270
        %v8272 = vpop.f32.mrb[0].mxu0
        %8273 = vmatprep.mubr.bf16.mxu0 0
        %8274 = vmatmul.mubr.bf16.gmra.mrb[0].mxu0 %v8119
        %v8275 = vpop.f32.mrb[0].mxu0
        %v8276 = vadd.f32 0.0, %v8275
        %v8277 = vpop.f32.mrb[0].mxu0
        %v8278 = vpop.f32.mrb[0].mxu0
        %v8279 = vadd.f32 0.0, %v8278
        %v8280 = vpop.f32.mrb[0].mxu0
        %8281 = vmatprep.mubr.bf16.mxu0 0
        %8282 = vmatmul.mubr.bf16.gmra.mrb[0].mxu0 %v8120
        %v8283 = vpop.f32.mrb[0].mxu0
        %v8284 = vadd.f32 0.0, %v8283
        %v8285 = vpop.f32.mrb[0].mxu0
        %v8286 = vpop.f32.mrb[0].mxu0
        %v8287 = vadd.f32 0.0, %v8286
        %v8288 = vpop.f32.mrb[0].mxu0
        %8289 = vmatprep.mubr.bf16.mxu0 0
        %8290 = vmatmul.mubr.bf16.gmra.mrb[0].mxu0 %v8121
        %v8291 = vpop.f32.mrb[0].mxu0
        %v8292 = vadd.f32 0.0, %v8291
        %v8293 = vpop.f32.mrb[0].mxu0
        %v8294 = vpop.f32.mrb[0].mxu0
        %v8295 = vadd.f32 0.0, %v8294
        %v8296 = vpop.f32.mrb[0].mxu0
        %8297 = vmatprep.mubr.bf16.mxu0 0
        %8298 = vmatmul.mubr.bf16.gmra.mrb[0].mxu0 %v8122
        %v8299 = vpop.f32.mrb[0].mxu0
        %v8300 = vadd.f32 0.0, %v8299
        %v8301 = vpop.f32.mrb[0].mxu0
        %v8302 = vpop.f32.mrb[0].mxu0
        %v8303 = vadd.f32 0.0, %v8302
        %v8304 = vpop.f32.mrb[0].mxu0
        %8305 = vmatprep.mubr.bf16.mxu0 0
        %8306 = vmatmul.mubr.bf16.gmra.mrb[0].mxu0 %v8123
        %v8307 = vpop.f32.mrb[0].mxu0
        %v8308 = vadd.f32 0.0, %v8307
        %v8309 = vpop.f32.mrb[0].mxu0
        %v8310 = vpop.f32.mrb[0].mxu0
        %v8311 = vadd.f32 0.0, %v8310
        %v8312 = vpop.f32.mrb[0].mxu0
        %8313 = vmatprep.mubr.bf16.mxu0 0
        %8314 = vmatmul.mubr.bf16.gmra.mrb[0].mxu0 %v8124
        %v8315 = vpop.f32.mrb[0].mxu0
        %v8316 = vadd.f32 0.0, %v8315
        %v8317 = vpop.f32.mrb[0].mxu0
        %v8318 = vpop.f32.mrb[0].mxu0
        %v8319 = vadd.f32 0.0, %v8318
        %v8320 = vpop.f32.mrb[0].mxu0
        %8321 = vmatprep.mubr.bf16.mxu0 0
        %8322 = vmatmul.mubr.bf16.gmra.mrb[0].mxu0 %v8125
        %v8323 = vpop.f32.mrb[0].mxu0
        %v8324 = vadd.f32 0.0, %v8323
        %v8325 = vpop.f32.mrb[0].mxu0
        %v8326 = vpop.f32.mrb[0].mxu0
        %v8327 = vadd.f32 0.0, %v8326
        %v8328 = vpop.f32.mrb[0].mxu0
        %8329 = vmatprep.mubr.bf16.mxu0 0
        %8330 = vmatmul.mubr.bf16.gmra.mrb[0].mxu0 %v8126
        %v8331 = vpop.f32.mrb[0].mxu0
        %v8332 = vadd.f32 0.0, %v8331
        %v8333 = vpop.f32.mrb[0].mxu0
        %v8334 = vpop.f32.mrb[0].mxu0
        %v8335 = vadd.f32 0.0, %v8334
        %v8336 = vpop.f32.mrb[0].mxu0
        %8337 = vmatprep.mubr.bf16.mxu0 0
        %8338 = vmatmul.mubr.bf16.gmra.mrb[0].mxu0 %v8127
        %v8339 = vpop.f32.mrb[0].mxu0
        %v8340 = vadd.f32 0.0, %v8339
        %v8341 = vpop.f32.mrb[0].mxu0
        %v8342 = vpop.f32.mrb[0].mxu0
        %v8343 = vadd.f32 0.0, %v8342
        %v8344 = vpop.f32.mrb[0].mxu0
        %8345 = vmatprep.mubr.bf16.mxu0 0
        %8346 = vmatmul.mubr.bf16.gmra.mrb[0].mxu0 %v8128
        %v8347 = vpop.f32.mrb[0].mxu0
        %v8348 = vadd.f32 0.0, %v8347
        %v8349 = vpop.f32.mrb[0].mxu0
        %v8350 = vpop.f32.mrb[0].mxu0
        %v8351 = vadd.f32 0.0, %v8350
        %v8352 = vpop.f32.mrb[0].mxu0
        %8353 = vdwg.mxu0
        %v8386 = vunpack.c.l.b16 %v7616
        %v8387 = vunpack.c.l.b16 %v7617
        %v8388 = vunpack.c.l.b16 %v7618
        %v8389 = vunpack.c.l.b16 %v7619
        %v8390 = vunpack.c.l.b16 %v7620
        %v8391 = vunpack.c.l.b16 %v7621
        %v8392 = vunpack.c.l.b16 %v7622
        %v8393 = vunpack.c.l.b16 %v7623
        %v8394 = vunpack.c.l.b16 %v7624
        %v8395 = vunpack.c.l.b16 %v7625
        %v8396 = vunpack.c.l.b16 %v7626
        %v8397 = vunpack.c.l.b16 %v7627
        %v8398 = vunpack.c.l.b16 %v7628
        %v8399 = vunpack.c.l.b16 %v7629
        %v8400 = vunpack.c.l.b16 %v7630
        %v8401 = vunpack.c.l.b16 %v7631
        %v8402 = vunpack.c.l.b16 %v7632
        %v8403 = vunpack.c.l.b16 %v7633
        %v8404 = vunpack.c.l.b16 %v7634
        %v8405 = vunpack.c.l.b16 %v7635
        %v8406 = vunpack.c.l.b16 %v7636
        %v8407 = vunpack.c.l.b16 %v7637
        %v8408 = vunpack.c.l.b16 %v7638
        %v8409 = vunpack.c.l.b16 %v7639
        %v8410 = vunpack.c.l.b16 %v7640
        %v8411 = vunpack.c.l.b16 %v7641
        %v8412 = vunpack.c.l.b16 %v7642
        %v8413 = vunpack.c.l.b16 %v7643
        %v8414 = vunpack.c.l.b16 %v7644
        %v8415 = vunpack.c.l.b16 %v7645
        %v8416 = vunpack.c.l.b16 %v7646
        %v8417 = vunpack.c.l.b16 %v7647
        %v8418 = vpack.c.b16 %v8387, %v8386
        %v8419 = vpack.c.b16 %v8389, %v8388
        %v8420 = vpack.c.b16 %v8391, %v8390
        %v8421 = vpack.c.b16 %v8393, %v8392
        %v8422 = vpack.c.b16 %v8395, %v8394
        %v8423 = vpack.c.b16 %v8397, %v8396
        %v8424 = vpack.c.b16 %v8399, %v8398
        %v8425 = vpack.c.b16 %v8401, %v8400
        %v8426 = vpack.c.b16 %v8403, %v8402
        %v8427 = vpack.c.b16 %v8405, %v8404
        %v8428 = vpack.c.b16 %v8407, %v8406
        %v8429 = vpack.c.b16 %v8409, %v8408
        %v8430 = vpack.c.b16 %v8411, %v8410
        %v8431 = vpack.c.b16 %v8413, %v8412
        %v8432 = vpack.c.b16 %v8415, %v8414
        %v8433 = vpack.c.b16 %v8417, %v8416
        %v8466 = vunpack.c.l.b16 %v7648
        %v8467 = vunpack.c.l.b16 %v7649
        %v8468 = vunpack.c.l.b16 %v7650
        %v8469 = vunpack.c.l.b16 %v7651
        %v8470 = vunpack.c.l.b16 %v7652
        %v8471 = vunpack.c.l.b16 %v7653
        %v8472 = vunpack.c.l.b16 %v7654
        %v8473 = vunpack.c.l.b16 %v7655
        %v8474 = vunpack.c.l.b16 %v7656
        %v8475 = vunpack.c.l.b16 %v7657
        %v8476 = vunpack.c.l.b16 %v7658
        %v8477 = vunpack.c.l.b16 %v7659
        %v8478 = vunpack.c.l.b16 %v7660
        %v8479 = vunpack.c.l.b16 %v7661
        %v8480 = vunpack.c.l.b16 %v7662
        %v8481 = vunpack.c.l.b16 %v7663
        %v8482 = vpack.c.b16 %v8467, %v8466
        %v8483 = vpack.c.b16 %v8469, %v8468
        %v8484 = vpack.c.b16 %v8471, %v8470
        %v8485 = vpack.c.b16 %v8473, %v8472
        %v8486 = vpack.c.b16 %v8475, %v8474
        %v8487 = vpack.c.b16 %v8477, %v8476
        %v8488 = vpack.c.b16 %v8479, %v8478
        %v8489 = vpack.c.b16 %v8481, %v8480
        %8498 = vmatprep.subr.bf16.mxu0 0
        %8499 = vmatpush1.bf16.msra.mxu0 %v8482
        %8500 = vmatprep.subr.bf16.mxu0 0
        %8501 = vmatpush1.bf16.msra.mxu0 %v8483
        %8502 = vmatprep.subr.bf16.mxu0 0
        %8503 = vmatpush1.bf16.msra.mxu0 %v8484
        %8504 = vmatprep.subr.bf16.mxu0 0
        %8505 = vmatpush1.bf16.msra.mxu0 %v8485
        %8506 = vmatprep.subr.bf16.mxu0 0
        %8507 = vmatpush1.bf16.msra.mxu0 %v8486
        %8508 = vmatprep.subr.bf16.mxu0 0
        %8509 = vmatpush1.bf16.msra.mxu0 %v8487
        %8510 = vmatprep.subr.bf16.mxu0 0
        %8511 = vmatpush1.bf16.msra.mxu0 %v8488
        %8512 = vmatprep.subr.bf16.mxu0 0
        %8513 = vmatpush1.bf16.msra.mxu0 %v8489
        %8514 = vmatprep.subr.bf16.mxu0 0
        %8515 = vmatpush1.bf16.msra.mxu0 0
        %8516 = vmatprep.subr.bf16.mxu0 0
        %8517 = vmatpush1.bf16.msra.mxu0 0
        %8518 = vmatprep.subr.bf16.mxu0 0
        %8519 = vmatpush1.bf16.msra.mxu0 0
        %8520 = vmatprep.subr.bf16.mxu0 0
        %8521 = vmatpush1.bf16.msra.mxu0 0
        %8522 = vmatprep.subr.bf16.mxu0 0
        %8523 = vmatpush1.bf16.msra.mxu0 0
        %8524 = vmatprep.subr.bf16.mxu0 0
        %8525 = vmatpush1.bf16.msra.mxu0 0
        %8526 = vmatprep.subr.bf16.mxu0 0
        %8527 = vmatpush1.bf16.msra.mxu0 0
        %8528 = vmatprep.subr.bf16.mxu0 0
        %8529 = vmatpush1.bf16.msra.mxu0 0
        %8530 = vmatprep.mubr.bf16.mxu0 0
        %8531 = vmatmul.mubr.bf16.gmra.mrb[0].mxu0 %v8418
        %v8532 = vpop.f32.mrb[0].mxu0
        %v8533 = vadd.f32 %v8228, %v8532
        %v8534 = vpop.f32.mrb[0].mxu0
        %v8535 = vpop.f32.mrb[0].mxu0
        %v8536 = vadd.f32 %v8231, %v8535
        %v8537 = vpop.f32.mrb[0].mxu0
        %8538 = vmatprep.mubr.bf16.mxu0 0
        %8539 = vmatmul.mubr.bf16.gmra.mrb[0].mxu0 %v8419
        %v8540 = vpop.f32.mrb[0].mxu0
        %v8541 = vadd.f32 %v8236, %v8540
        %v8542 = vpop.f32.mrb[0].mxu0
        %v8543 = vpop.f32.mrb[0].mxu0
        %v8544 = vadd.f32 %v8239, %v8543
        %v8545 = vpop.f32.mrb[0].mxu0
        %8546 = vmatprep.mubr.bf16.mxu0 0
        %8547 = vmatmul.mubr.bf16.gmra.mrb[0].mxu0 %v8420
        %v8548 = vpop.f32.mrb[0].mxu0
        %v8549 = vadd.f32 %v8244, %v8548
        %v8550 = vpop.f32.mrb[0].mxu0
        %v8551 = vpop.f32.mrb[0].mxu0
        %v8552 = vadd.f32 %v8247, %v8551
        %v8553 = vpop.f32.mrb[0].mxu0
        %8554 = vmatprep.mubr.bf16.mxu0 0
        %8555 = vmatmul.mubr.bf16.gmra.mrb[0].mxu0 %v8421
        %v8556 = vpop.f32.mrb[0].mxu0
        %v8557 = vadd.f32 %v8252, %v8556
        %v8558 = vpop.f32.mrb[0].mxu0
        %v8559 = vpop.f32.mrb[0].mxu0
        %v8560 = vadd.f32 %v8255, %v8559
        %v8561 = vpop.f32.mrb[0].mxu0
        %8562 = vmatprep.mubr.bf16.mxu0 0
        %8563 = vmatmul.mubr.bf16.gmra.mrb[0].mxu0 %v8422
        %v8564 = vpop.f32.mrb[0].mxu0
        %v8565 = vadd.f32 %v8260, %v8564
        %v8566 = vpop.f32.mrb[0].mxu0
        %v8567 = vpop.f32.mrb[0].mxu0
        %v8568 = vadd.f32 %v8263, %v8567
        %v8569 = vpop.f32.mrb[0].mxu0
        %8570 = vmatprep.mubr.bf16.mxu0 0
        %8571 = vmatmul.mubr.bf16.gmra.mrb[0].mxu0 %v8423
        %v8572 = vpop.f32.mrb[0].mxu0
        %v8573 = vadd.f32 %v8268, %v8572
        %v8574 = vpop.f32.mrb[0].mxu0
        %v8575 = vpop.f32.mrb[0].mxu0
        %v8576 = vadd.f32 %v8271, %v8575
        %v8577 = vpop.f32.mrb[0].mxu0
        %8578 = vmatprep.mubr.bf16.mxu0 0
        %8579 = vmatmul.mubr.bf16.gmra.mrb[0].mxu0 %v8424
        %v8580 = vpop.f32.mrb[0].mxu0
        %v8581 = vadd.f32 %v8276, %v8580
        %v8582 = vpop.f32.mrb[0].mxu0
        %v8583 = vpop.f32.mrb[0].mxu0
        %v8584 = vadd.f32 %v8279, %v8583
        %v8585 = vpop.f32.mrb[0].mxu0
        %8586 = vmatprep.mubr.bf16.mxu0 0
        %8587 = vmatmul.mubr.bf16.gmra.mrb[0].mxu0 %v8425
        %v8588 = vpop.f32.mrb[0].mxu0
        %v8589 = vadd.f32 %v8284, %v8588
        %v8590 = vpop.f32.mrb[0].mxu0
        %v8591 = vpop.f32.mrb[0].mxu0
        %v8592 = vadd.f32 %v8287, %v8591
        %v8593 = vpop.f32.mrb[0].mxu0
        %8594 = vmatprep.mubr.bf16.mxu0 0
        %8595 = vmatmul.mubr.bf16.gmra.mrb[0].mxu0 %v8426
        %v8596 = vpop.f32.mrb[0].mxu0
        %v8597 = vadd.f32 %v8292, %v8596
        %v8598 = vpop.f32.mrb[0].mxu0
        %v8599 = vpop.f32.mrb[0].mxu0
        %v8600 = vadd.f32 %v8295, %v8599
        %v8601 = vpop.f32.mrb[0].mxu0
        %8602 = vmatprep.mubr.bf16.mxu0 0
        %8603 = vmatmul.mubr.bf16.gmra.mrb[0].mxu0 %v8427
        %v8604 = vpop.f32.mrb[0].mxu0
        %v8605 = vadd.f32 %v8300, %v8604
        %v8606 = vpop.f32.mrb[0].mxu0
        %v8607 = vpop.f32.mrb[0].mxu0
        %v8608 = vadd.f32 %v8303, %v8607
        %v8609 = vpop.f32.mrb[0].mxu0
        %8610 = vmatprep.mubr.bf16.mxu0 0
        %8611 = vmatmul.mubr.bf16.gmra.mrb[0].mxu0 %v8428
        %v8612 = vpop.f32.mrb[0].mxu0
        %v8613 = vadd.f32 %v8308, %v8612
        %v8614 = vpop.f32.mrb[0].mxu0
        %v8615 = vpop.f32.mrb[0].mxu0
        %v8616 = vadd.f32 %v8311, %v8615
        %v8617 = vpop.f32.mrb[0].mxu0
        %8618 = vmatprep.mubr.bf16.mxu0 0
        %8619 = vmatmul.mubr.bf16.gmra.mrb[0].mxu0 %v8429
        %v8620 = vpop.f32.mrb[0].mxu0
        %v8621 = vadd.f32 %v8316, %v8620
        %v8622 = vpop.f32.mrb[0].mxu0
        %v8623 = vpop.f32.mrb[0].mxu0
        %v8624 = vadd.f32 %v8319, %v8623
        %v8625 = vpop.f32.mrb[0].mxu0
        %8626 = vmatprep.mubr.bf16.mxu0 0
        %8627 = vmatmul.mubr.bf16.gmra.mrb[0].mxu0 %v8430
        %v8628 = vpop.f32.mrb[0].mxu0
        %v8629 = vadd.f32 %v8324, %v8628
        %v8630 = vpop.f32.mrb[0].mxu0
        %v8631 = vpop.f32.mrb[0].mxu0
        %v8632 = vadd.f32 %v8327, %v8631
        %v8633 = vpop.f32.mrb[0].mxu0
        %8634 = vmatprep.mubr.bf16.mxu0 0
        %8635 = vmatmul.mubr.bf16.gmra.mrb[0].mxu0 %v8431
        %v8636 = vpop.f32.mrb[0].mxu0
        %v8637 = vadd.f32 %v8332, %v8636
        %v8638 = vpop.f32.mrb[0].mxu0
        %v8639 = vpop.f32.mrb[0].mxu0
        %v8640 = vadd.f32 %v8335, %v8639
        %v8641 = vpop.f32.mrb[0].mxu0
        %8642 = vmatprep.mubr.bf16.mxu0 0
        %8643 = vmatmul.mubr.bf16.gmra.mrb[0].mxu0 %v8432
        %v8644 = vpop.f32.mrb[0].mxu0
        %v8645 = vadd.f32 %v8340, %v8644
        %v8646 = vpop.f32.mrb[0].mxu0
        %v8647 = vpop.f32.mrb[0].mxu0
        %v8648 = vadd.f32 %v8343, %v8647
        %v8649 = vpop.f32.mrb[0].mxu0
        %8650 = vmatprep.mubr.bf16.mxu0 0
        %8651 = vmatmul.mubr.bf16.gmra.mrb[0].mxu0 %v8433
        %v8652 = vpop.f32.mrb[0].mxu0
        %v8653 = vadd.f32 %v8348, %v8652
        %v8654 = vpop.f32.mrb[0].mxu0
        %v8655 = vpop.f32.mrb[0].mxu0
        %v8656 = vadd.f32 %v8351, %v8655
        %v8657 = vpop.f32.mrb[0].mxu0
        %8658 = vdwg.mxu0
        %v8659 = vld [vmem:[#allocation3] sm:$0xe]
        %v8660 = vld [vmem:[#allocation3 + $0xc] sm:$0xe]
        %v8661 = vld [vmem:[#allocation3 + $0x18] sm:$0xe]
        %v8662 = vld [vmem:[#allocation3 + $0x24] sm:$0xe]
        %v8663 = vld [vmem:[#allocation3 + $0x30] sm:$0xe]
        %v8664 = vld [vmem:[#allocation3 + $0x3c] sm:$0xe]
        %v8665 = vld [vmem:[#allocation3 + $0x48] sm:$0xe]
        %v8666 = vld [vmem:[#allocation3 + $0x54] sm:$0xe]
        %v8667 = vld [vmem:[#allocation3 + $0x60] sm:$0xe]
        %v8668 = vld [vmem:[#allocation3 + $0x6c] sm:$0xe]
        %v8669 = vld [vmem:[#allocation3 + $0x78] sm:$0xe]
        %v8670 = vld [vmem:[#allocation3 + $0x84] sm:$0xe]
        %v8671 = vld [vmem:[#allocation3 + $0x90] sm:$0xe]
        %v8672 = vld [vmem:[#allocation3 + $0x9c] sm:$0xe]
        %v8673 = vld [vmem:[#allocation3 + $0xa8] sm:$0xe]
        %v8674 = vld [vmem:[#allocation3 + $0xb4] sm:$0xe]
        %v8707 = vrot.slane %v8659, 5
        %v8708 = vrot.slane %v8707, 4
        %v8709 = vrot.slane %v7617, 5
        %v8710 = vsel %vm2408, %v8708, %v8709
        %v8711 = vrot.slane %v8709, 4
        %v8712 = vrot.slane %v7664, 5
        %v8713 = vsel %vm2408, %v8711, %v8712
        %v8714 = vrot.slane %v8660, 5
        %v8715 = vrot.slane %v8714, 4
        %v8716 = vrot.slane %v7619, 5
        %v8717 = vsel %vm2408, %v8715, %v8716
        %v8718 = vrot.slane %v8716, 4
        %v8719 = vrot.slane %v7665, 5
        %v8720 = vsel %vm2408, %v8718, %v8719
        %v8721 = vrot.slane %v8661, 5
        %v8722 = vrot.slane %v8721, 4
        %v8723 = vrot.slane %v7621, 5
        %v8724 = vsel %vm2408, %v8722, %v8723
        %v8725 = vrot.slane %v8723, 4
        %v8726 = vrot.slane %v7666, 5
        %v8727 = vsel %vm2408, %v8725, %v8726
        %v8728 = vrot.slane %v8662, 5
        %v8729 = vrot.slane %v8728, 4
        %v8730 = vrot.slane %v7623, 5
        %v8731 = vsel %vm2408, %v8729, %v8730
        %v8732 = vrot.slane %v8730, 4
        %v8733 = vrot.slane %v7667, 5
        %v8734 = vsel %vm2408, %v8732, %v8733
        %v8735 = vrot.slane %v8663, 5
        %v8736 = vrot.slane %v8735, 4
        %v8737 = vrot.slane %v7625, 5
        %v8738 = vsel %vm2408, %v8736, %v8737
        %v8739 = vrot.slane %v8737, 4
        %v8740 = vrot.slane %v7668, 5
        %v8741 = vsel %vm2408, %v8739, %v8740
        %v8742 = vrot.slane %v8664, 5
        %v8743 = vrot.slane %v8742, 4
        %v8744 = vrot.slane %v7627, 5
        %v8745 = vsel %vm2408, %v8743, %v8744
        %v8746 = vrot.slane %v8744, 4
        %v8747 = vrot.slane %v7669, 5
        %v8748 = vsel %vm2408, %v8746, %v8747
        %v8749 = vrot.slane %v8665, 5
        %v8750 = vrot.slane %v8749, 4
        %v8751 = vrot.slane %v7629, 5
        %v8752 = vsel %vm2408, %v8750, %v8751
        %v8753 = vrot.slane %v8751, 4
        %v8754 = vrot.slane %v7670, 5
        %v8755 = vsel %vm2408, %v8753, %v8754
        %v8756 = vrot.slane %v8666, 5
        %v8757 = vrot.slane %v8756, 4
        %v8758 = vrot.slane %v7631, 5
        %v8759 = vsel %vm2408, %v8757, %v8758
        %v8760 = vrot.slane %v8758, 4
        %v8761 = vrot.slane %v7671, 5
        %v8762 = vsel %vm2408, %v8760, %v8761
        %v8763 = vrot.slane %v8667, 5
        %v8764 = vrot.slane %v8763, 4
        %v8765 = vrot.slane %v7633, 5
        %v8766 = vsel %vm2408, %v8764, %v8765
        %v8767 = vrot.slane %v8765, 4
        %v8768 = vrot.slane %v7672, 5
        %v8769 = vsel %vm2408, %v8767, %v8768
        %v8770 = vrot.slane %v8668, 5
        %v8771 = vrot.slane %v8770, 4
        %v8772 = vrot.slane %v7635, 5
        %v8773 = vsel %vm2408, %v8771, %v8772
        %v8774 = vrot.slane %v8772, 4
        %v8775 = vrot.slane %v7673, 5
        %v8776 = vsel %vm2408, %v8774, %v8775
        %v8777 = vrot.slane %v8669, 5
        %v8778 = vrot.slane %v8777, 4
        %v8779 = vrot.slane %v7637, 5
        %v8780 = vsel %vm2408, %v8778, %v8779
        %v8781 = vrot.slane %v8779, 4
        %v8782 = vrot.slane %v7674, 5
        %v8783 = vsel %vm2408, %v8781, %v8782
        %v8784 = vrot.slane %v8670, 5
        %v8785 = vrot.slane %v8784, 4
        %v8786 = vrot.slane %v7639, 5
        %v8787 = vsel %vm2408, %v8785, %v8786
        %v8788 = vrot.slane %v8786, 4
        %v8789 = vrot.slane %v7675, 5
        %v8790 = vsel %vm2408, %v8788, %v8789
        %v8791 = vrot.slane %v8671, 5
        %v8792 = vrot.slane %v8791, 4
        %v8793 = vrot.slane %v7641, 5
        %v8794 = vsel %vm2408, %v8792, %v8793
        %v8795 = vrot.slane %v8793, 4
        %v8796 = vrot.slane %v7676, 5
        %v8797 = vsel %vm2408, %v8795, %v8796
        %v8798 = vrot.slane %v8672, 5
        %v8799 = vrot.slane %v8798, 4
        %v8800 = vrot.slane %v7643, 5
        %v8801 = vsel %vm2408, %v8799, %v8800
        %v8802 = vrot.slane %v8800, 4
        %v8803 = vrot.slane %v7677, 5
        %v8804 = vsel %vm2408, %v8802, %v8803
        %v8805 = vrot.slane %v8673, 5
        %v8806 = vrot.slane %v8805, 4
        %v8807 = vrot.slane %v7645, 5
        %v8808 = vsel %vm2408, %v8806, %v8807
        %v8809 = vrot.slane %v8807, 4
        %v8810 = vrot.slane %v7678, 5
        %v8811 = vsel %vm2408, %v8809, %v8810
        %v8812 = vrot.slane %v8674, 5
        %v8813 = vrot.slane %v8812, 4
        %v8814 = vrot.slane %v7647, 5
        %v8815 = vsel %vm2408, %v8813, %v8814
        %v8816 = vrot.slane %v8814, 4
        %v8817 = vrot.slane %v7679, 5
        %v8818 = vsel %vm2408, %v8816, %v8817
        %s8819 = scalar_lea.vmem [#allocation9], 128
        %v8820 = vld [vmem:[%s8819] sm:$0xf]
        %v8821 = vld [vmem:[%s8819 + $0x4] sm:$0xf]
        %v8822 = vld [vmem:[%s8819 + $0x8] sm:$0xf]
        %v8823 = vld [vmem:[%s8819 + $0xc] sm:$0xf]
        %v8824 = vld [vmem:[%s8819 + $0x10] sm:$0xf]
        %v8825 = vld [vmem:[%s8819 + $0x14] sm:$0xf]
        %v8826 = vld [vmem:[%s8819 + $0x18] sm:$0xf]
        %v8827 = vld [vmem:[%s8819 + $0x1c] sm:$0xf]
        %v8828 = vld [vmem:[%s8819 + $0x20] sm:$0xf]
        %v8829 = vld [vmem:[%s8819 + $0x24] sm:$0xf]
        %v8830 = vld [vmem:[%s8819 + $0x28] sm:$0xf]
        %v8831 = vld [vmem:[%s8819 + $0x2c] sm:$0xf]
        %v8832 = vld [vmem:[%s8819 + $0x30] sm:$0xf]
        %v8833 = vld [vmem:[%s8819 + $0x34] sm:$0xf]
        %v8834 = vld [vmem:[%s8819 + $0x38] sm:$0xf]
        %v8835 = vld [vmem:[%s8819 + $0x3c] sm:$0xf]
        %v8836 = vunpack.c.l.b16 %v8710
        %v8837 = vunpack.c.l.b16 %v8713
        %v8838 = vunpack.c.l.b16 %v8717
        %v8839 = vunpack.c.l.b16 %v8720
        %v8840 = vunpack.c.l.b16 %v8724
        %v8841 = vunpack.c.l.b16 %v8727
        %v8842 = vunpack.c.l.b16 %v8731
        %v8843 = vunpack.c.l.b16 %v8734
        %v8844 = vunpack.c.l.b16 %v8738
        %v8845 = vunpack.c.l.b16 %v8741
        %v8846 = vunpack.c.l.b16 %v8745
        %v8847 = vunpack.c.l.b16 %v8748
        %v8848 = vunpack.c.l.b16 %v8752
        %v8849 = vunpack.c.l.b16 %v8755
        %v8850 = vunpack.c.l.b16 %v8759
        %v8851 = vunpack.c.l.b16 %v8762
        %v8852 = vunpack.c.l.b16 %v8766
        %v8853 = vunpack.c.l.b16 %v8769
        %v8854 = vunpack.c.l.b16 %v8773
        %v8855 = vunpack.c.l.b16 %v8776
        %v8856 = vunpack.c.l.b16 %v8780
        %v8857 = vunpack.c.l.b16 %v8783
        %v8858 = vunpack.c.l.b16 %v8787
        %v8859 = vunpack.c.l.b16 %v8790
        %v8860 = vunpack.c.l.b16 %v8794
        %v8861 = vunpack.c.l.b16 %v8797
        %v8862 = vunpack.c.l.b16 %v8801
        %v8863 = vunpack.c.l.b16 %v8804
        %v8864 = vunpack.c.l.b16 %v8808
        %v8865 = vunpack.c.l.b16 %v8811
        %v8866 = vunpack.c.l.b16 %v8815
        %v8867 = vunpack.c.l.b16 %v8818
        %v8868 = vpack.c.b16 %v8837, %v8836
        %v8869 = vpack.c.b16 %v8839, %v8838
        %v8870 = vpack.c.b16 %v8841, %v8840
        %v8871 = vpack.c.b16 %v8843, %v8842
        %v8872 = vpack.c.b16 %v8845, %v8844
        %v8873 = vpack.c.b16 %v8847, %v8846
        %v8874 = vpack.c.b16 %v8849, %v8848
        %v8875 = vpack.c.b16 %v8851, %v8850
        %v8876 = vpack.c.b16 %v8853, %v8852
        %v8877 = vpack.c.b16 %v8855, %v8854
        %v8878 = vpack.c.b16 %v8857, %v8856
        %v8879 = vpack.c.b16 %v8859, %v8858
        %v8880 = vpack.c.b16 %v8861, %v8860
        %v8881 = vpack.c.b16 %v8863, %v8862
        %v8882 = vpack.c.b16 %v8865, %v8864
        %v8883 = vpack.c.b16 %v8867, %v8866
        %v8916 = vunpack.c.l.b16 %v8820
        %v8917 = vunpack.c.l.b16 %v8821
        %v8918 = vunpack.c.l.b16 %v8822
        %v8919 = vunpack.c.l.b16 %v8823
        %v8920 = vunpack.c.l.b16 %v8824
        %v8921 = vunpack.c.l.b16 %v8825
        %v8922 = vunpack.c.l.b16 %v8826
        %v8923 = vunpack.c.l.b16 %v8827
        %v8924 = vunpack.c.l.b16 %v8828
        %v8925 = vunpack.c.l.b16 %v8829
        %v8926 = vunpack.c.l.b16 %v8830
        %v8927 = vunpack.c.l.b16 %v8831
        %v8928 = vunpack.c.l.b16 %v8832
        %v8929 = vunpack.c.l.b16 %v8833
        %v8930 = vunpack.c.l.b16 %v8834
        %v8931 = vunpack.c.l.b16 %v8835
        %v8932 = vpack.c.b16 %v8917, %v8916
        %v8933 = vpack.c.b16 %v8919, %v8918
        %v8934 = vpack.c.b16 %v8921, %v8920
        %v8935 = vpack.c.b16 %v8923, %v8922
        %v8936 = vpack.c.b16 %v8925, %v8924
        %v8937 = vpack.c.b16 %v8927, %v8926
        %v8938 = vpack.c.b16 %v8929, %v8928
        %v8939 = vpack.c.b16 %v8931, %v8930
        %8948 = vmatprep.subr.bf16.mxu0 0
        %8949 = vmatpush1.bf16.msra.mxu0 %v8932
        %8950 = vmatprep.subr.bf16.mxu0 0
        %8951 = vmatpush1.bf16.msra.mxu0 %v8933
        %8952 = vmatprep.subr.bf16.mxu0 0
        %8953 = vmatpush1.bf16.msra.mxu0 %v8934
        %8954 = vmatprep.subr.bf16.mxu0 0
        %8955 = vmatpush1.bf16.msra.mxu0 %v8935
        %8956 = vmatprep.subr.bf16.mxu0 0
        %8957 = vmatpush1.bf16.msra.mxu0 %v8936
        %8958 = vmatprep.subr.bf16.mxu0 0
        %8959 = vmatpush1.bf16.msra.mxu0 %v8937
        %8960 = vmatprep.subr.bf16.mxu0 0
        %8961 = vmatpush1.bf16.msra.mxu0 %v8938
        %8962 = vmatprep.subr.bf16.mxu0 0
        %8963 = vmatpush1.bf16.msra.mxu0 %v8939
        %8964 = vmatprep.subr.bf16.mxu0 0
        %8965 = vmatpush1.bf16.msra.mxu0 0
        %8966 = vmatprep.subr.bf16.mxu0 0
        %8967 = vmatpush1.bf16.msra.mxu0 0
        %8968 = vmatprep.subr.bf16.mxu0 0
        %8969 = vmatpush1.bf16.msra.mxu0 0
        %8970 = vmatprep.subr.bf16.mxu0 0
        %8971 = vmatpush1.bf16.msra.mxu0 0
        %8972 = vmatprep.subr.bf16.mxu0 0
        %8973 = vmatpush1.bf16.msra.mxu0 0
        %8974 = vmatprep.subr.bf16.mxu0 0
        %8975 = vmatpush1.bf16.msra.mxu0 0
        %8976 = vmatprep.subr.bf16.mxu0 0
        %8977 = vmatpush1.bf16.msra.mxu0 0
        %8978 = vmatprep.subr.bf16.mxu0 0
        %8979 = vmatpush1.bf16.msra.mxu0 0
        %8980 = vmatprep.mubr.bf16.mxu0 0
        %8981 = vmatmul.mubr.bf16.gmra.mrb[0].mxu0 %v8868
        %v8982 = vpop.f32.mrb[0].mxu0
        %v8983 = vadd.f32 0.0, %v8982
        %v8984 = vpop.f32.mrb[0].mxu0
        %v8985 = vpop.f32.mrb[0].mxu0
        %v8986 = vadd.f32 0.0, %v8985
        %v8987 = vpop.f32.mrb[0].mxu0
        %8988 = vmatprep.mubr.bf16.mxu0 0
        %8989 = vmatmul.mubr.bf16.gmra.mrb[0].mxu0 %v8869
        %v8990 = vpop.f32.mrb[0].mxu0
        %v8991 = vadd.f32 0.0, %v8990
        %v8992 = vpop.f32.mrb[0].mxu0
        %v8993 = vpop.f32.mrb[0].mxu0
        %v8994 = vadd.f32 0.0, %v8993
        %v8995 = vpop.f32.mrb[0].mxu0
        %8996 = vmatprep.mubr.bf16.mxu0 0
        %8997 = vmatmul.mubr.bf16.gmra.mrb[0].mxu0 %v8870
        %v8998 = vpop.f32.mrb[0].mxu0
        %v8999 = vadd.f32 0.0, %v8998
        %v9000 = vpop.f32.mrb[0].mxu0
        %v9001 = vpop.f32.mrb[0].mxu0
        %v9002 = vadd.f32 0.0, %v9001
        %v9003 = vpop.f32.mrb[0].mxu0
        %9004 = vmatprep.mubr.bf16.mxu0 0
        %9005 = vmatmul.mubr.bf16.gmra.mrb[0].mxu0 %v8871
        %v9006 = vpop.f32.mrb[0].mxu0
        %v9007 = vadd.f32 0.0, %v9006
        %v9008 = vpop.f32.mrb[0].mxu0
        %v9009 = vpop.f32.mrb[0].mxu0
        %v9010 = vadd.f32 0.0, %v9009
        %v9011 = vpop.f32.mrb[0].mxu0
        %9012 = vmatprep.mubr.bf16.mxu0 0
        %9013 = vmatmul.mubr.bf16.gmra.mrb[0].mxu0 %v8872
        %v9014 = vpop.f32.mrb[0].mxu0
        %v9015 = vadd.f32 0.0, %v9014
        %v9016 = vpop.f32.mrb[0].mxu0
        %v9017 = vpop.f32.mrb[0].mxu0
        %v9018 = vadd.f32 0.0, %v9017
        %v9019 = vpop.f32.mrb[0].mxu0
        %9020 = vmatprep.mubr.bf16.mxu0 0
        %9021 = vmatmul.mubr.bf16.gmra.mrb[0].mxu0 %v8873
        %v9022 = vpop.f32.mrb[0].mxu0
        %v9023 = vadd.f32 0.0, %v9022
        %v9024 = vpop.f32.mrb[0].mxu0
        %v9025 = vpop.f32.mrb[0].mxu0
        %v9026 = vadd.f32 0.0, %v9025
        %v9027 = vpop.f32.mrb[0].mxu0
        %9028 = vmatprep.mubr.bf16.mxu0 0
        %9029 = vmatmul.mubr.bf16.gmra.mrb[0].mxu0 %v8874
        %v9030 = vpop.f32.mrb[0].mxu0
        %v9031 = vadd.f32 0.0, %v9030
        %v9032 = vpop.f32.mrb[0].mxu0
        %v9033 = vpop.f32.mrb[0].mxu0
        %v9034 = vadd.f32 0.0, %v9033
        %v9035 = vpop.f32.mrb[0].mxu0
        %9036 = vmatprep.mubr.bf16.mxu0 0
        %9037 = vmatmul.mubr.bf16.gmra.mrb[0].mxu0 %v8875
        %v9038 = vpop.f32.mrb[0].mxu0
        %v9039 = vadd.f32 0.0, %v9038
        %v9040 = vpop.f32.mrb[0].mxu0
        %v9041 = vpop.f32.mrb[0].mxu0
        %v9042 = vadd.f32 0.0, %v9041
        %v9043 = vpop.f32.mrb[0].mxu0
        %9044 = vmatprep.mubr.bf16.mxu0 0
        %9045 = vmatmul.mubr.bf16.gmra.mrb[0].mxu0 %v8876
        %v9046 = vpop.f32.mrb[0].mxu0
        %v9047 = vadd.f32 0.0, %v9046
        %v9048 = vpop.f32.mrb[0].mxu0
        %v9049 = vpop.f32.mrb[0].mxu0
        %v9050 = vadd.f32 0.0, %v9049
        %v9051 = vpop.f32.mrb[0].mxu0
        %9052 = vmatprep.mubr.bf16.mxu0 0
        %9053 = vmatmul.mubr.bf16.gmra.mrb[0].mxu0 %v8877
        %v9054 = vpop.f32.mrb[0].mxu0
        %v9055 = vadd.f32 0.0, %v9054
        %v9056 = vpop.f32.mrb[0].mxu0
        %v9057 = vpop.f32.mrb[0].mxu0
        %v9058 = vadd.f32 0.0, %v9057
        %v9059 = vpop.f32.mrb[0].mxu0
        %9060 = vmatprep.mubr.bf16.mxu0 0
        %9061 = vmatmul.mubr.bf16.gmra.mrb[0].mxu0 %v8878
        %v9062 = vpop.f32.mrb[0].mxu0
        %v9063 = vadd.f32 0.0, %v9062
        %v9064 = vpop.f32.mrb[0].mxu0
        %v9065 = vpop.f32.mrb[0].mxu0
        %v9066 = vadd.f32 0.0, %v9065
        %v9067 = vpop.f32.mrb[0].mxu0
        %9068 = vmatprep.mubr.bf16.mxu0 0
        %9069 = vmatmul.mubr.bf16.gmra.mrb[0].mxu0 %v8879
        %v9070 = vpop.f32.mrb[0].mxu0
        %v9071 = vadd.f32 0.0, %v9070
        %v9072 = vpop.f32.mrb[0].mxu0
        %v9073 = vpop.f32.mrb[0].mxu0
        %v9074 = vadd.f32 0.0, %v9073
        %v9075 = vpop.f32.mrb[0].mxu0
        %9076 = vmatprep.mubr.bf16.mxu0 0
        %9077 = vmatmul.mubr.bf16.gmra.mrb[0].mxu0 %v8880
        %v9078 = vpop.f32.mrb[0].mxu0
        %v9079 = vadd.f32 0.0, %v9078
        %v9080 = vpop.f32.mrb[0].mxu0
        %v9081 = vpop.f32.mrb[0].mxu0
        %v9082 = vadd.f32 0.0, %v9081
        %v9083 = vpop.f32.mrb[0].mxu0
        %9084 = vmatprep.mubr.bf16.mxu0 0
        %9085 = vmatmul.mubr.bf16.gmra.mrb[0].mxu0 %v8881
        %v9086 = vpop.f32.mrb[0].mxu0
        %v9087 = vadd.f32 0.0, %v9086
        %v9088 = vpop.f32.mrb[0].mxu0
        %v9089 = vpop.f32.mrb[0].mxu0
        %v9090 = vadd.f32 0.0, %v9089
        %v9091 = vpop.f32.mrb[0].mxu0
        %9092 = vmatprep.mubr.bf16.mxu0 0
        %9093 = vmatmul.mubr.bf16.gmra.mrb[0].mxu0 %v8882
        %v9094 = vpop.f32.mrb[0].mxu0
        %v9095 = vadd.f32 0.0, %v9094
        %v9096 = vpop.f32.mrb[0].mxu0
        %v9097 = vpop.f32.mrb[0].mxu0
        %v9098 = vadd.f32 0.0, %v9097
        %v9099 = vpop.f32.mrb[0].mxu0
        %9100 = vmatprep.mubr.bf16.mxu0 0
        %9101 = vmatmul.mubr.bf16.gmra.mrb[0].mxu0 %v8883
        %v9102 = vpop.f32.mrb[0].mxu0
        %v9103 = vadd.f32 0.0, %v9102
        %v9104 = vpop.f32.mrb[0].mxu0
        %v9105 = vpop.f32.mrb[0].mxu0
        %v9106 = vadd.f32 0.0, %v9105
        %v9107 = vpop.f32.mrb[0].mxu0
        %9108 = vdwg.mxu0
        %v9109 = vadd.f32 %v8533, %v8983
        %v9110 = vadd.f32 %v8536, %v8986
        %v9111 = vadd.f32 %v8541, %v8991
        %v9112 = vadd.f32 %v8544, %v8994
        %v9113 = vadd.f32 %v8549, %v8999
        %v9114 = vadd.f32 %v8552, %v9002
        %v9115 = vadd.f32 %v8557, %v9007
        %v9116 = vadd.f32 %v8560, %v9010
        %v9117 = vadd.f32 %v8565, %v9015
        %v9118 = vadd.f32 %v8568, %v9018
        %v9119 = vadd.f32 %v8573, %v9023
        %v9120 = vadd.f32 %v8576, %v9026
        %v9121 = vadd.f32 %v8581, %v9031
        %v9122 = vadd.f32 %v8584, %v9034
        %v9123 = vadd.f32 %v8589, %v9039
        %v9124 = vadd.f32 %v8592, %v9042
        %v9125 = vadd.f32 %v8597, %v9047
        %v9126 = vadd.f32 %v8600, %v9050
        %v9127 = vadd.f32 %v8605, %v9055
        %v9128 = vadd.f32 %v8608, %v9058
        %v9129 = vadd.f32 %v8613, %v9063
        %v9130 = vadd.f32 %v8616, %v9066
        %v9131 = vadd.f32 %v8621, %v9071
        %v9132 = vadd.f32 %v8624, %v9074
        %v9133 = vadd.f32 %v8629, %v9079
        %v9134 = vadd.f32 %v8632, %v9082
        %v9135 = vadd.f32 %v8637, %v9087
        %v9136 = vadd.f32 %v8640, %v9090
        %v9137 = vadd.f32 %v8645, %v9095
        %v9138 = vadd.f32 %v8648, %v9098
        %v9139 = vadd.f32 %v8653, %v9103
        %v9140 = vadd.f32 %v8656, %v9106
        %v9141 = vld [vmem:[%s7503] sm:$0xf]
        %v9142 = vld [vmem:[%s7503 + $0x4] sm:$0xf]
        %v9143 = vld [vmem:[%s7503 + $0xc] sm:$0xf]
        %v9144 = vld [vmem:[%s7503 + $0x10] sm:$0xf]
        %v9145 = vld [vmem:[%s7503 + $0x18] sm:$0xf]
        %v9146 = vld [vmem:[%s7503 + $0x1c] sm:$0xf]
        %v9147 = vld [vmem:[%s7503 + $0x24] sm:$0xf]
        %v9148 = vld [vmem:[%s7503 + $0x28] sm:$0xf]
        %v9149 = vld [vmem:[%s7503 + $0x30] sm:$0xf]
        %v9150 = vld [vmem:[%s7503 + $0x34] sm:$0xf]
        %v9151 = vld [vmem:[%s7503 + $0x3c] sm:$0xf]
        %v9152 = vld [vmem:[%s7503 + $0x40] sm:$0xf]
        %v9153 = vld [vmem:[%s7503 + $0x48] sm:$0xf]
        %v9154 = vld [vmem:[%s7503 + $0x4c] sm:$0xf]
        %v9155 = vld [vmem:[%s7503 + $0x54] sm:$0xf]
        %v9156 = vld [vmem:[%s7503 + $0x58] sm:$0xf]
        %v9157 = vld [vmem:[%s7503 + $0x60] sm:$0xf]
        %v9158 = vld [vmem:[%s7503 + $0x64] sm:$0xf]
        %v9159 = vld [vmem:[%s7503 + $0x6c] sm:$0xf]
        %v9160 = vld [vmem:[%s7503 + $0x70] sm:$0xf]
        %v9161 = vld [vmem:[%s7503 + $0x78] sm:$0xf]
        %v9162 = vld [vmem:[%s7503 + $0x7c] sm:$0xf]
        %v9163 = vld [vmem:[%s7503 + $0x84] sm:$0xf]
        %v9164 = vld [vmem:[%s7503 + $0x88] sm:$0xf]
        %v9165 = vld [vmem:[%s7503 + $0x90] sm:$0xf]
        %v9166 = vld [vmem:[%s7503 + $0x94] sm:$0xf]
        %v9167 = vld [vmem:[%s7503 + $0x9c] sm:$0xf]
        %v9168 = vld [vmem:[%s7503 + $0xa0] sm:$0xf]
        %v9169 = vld [vmem:[%s7503 + $0xa8] sm:$0xf]
        %v9170 = vld [vmem:[%s7503 + $0xac] sm:$0xf]
        %v9171 = vld [vmem:[%s7503 + $0xb4] sm:$0xf]
        %v9172 = vld [vmem:[%s7503 + $0xb8] sm:$0xf]
        %s9173 = scalar_lea.vmem [#allocation9], 192
        %v9174 = vld [vmem:[%s9173] sm:$0xf]
        %v9175 = vld [vmem:[%s9173 + $0x4] sm:$0xf]
        %v9176 = vld [vmem:[%s9173 + $0x8] sm:$0xf]
        %v9177 = vld [vmem:[%s9173 + $0xc] sm:$0xf]
        %v9178 = vld [vmem:[%s9173 + $0x10] sm:$0xf]
        %v9179 = vld [vmem:[%s9173 + $0x14] sm:$0xf]
        %v9180 = vld [vmem:[%s9173 + $0x18] sm:$0xf]
        %v9181 = vld [vmem:[%s9173 + $0x1c] sm:$0xf]
        %v9182 = vld [vmem:[%s9173 + $0x20] sm:$0xf]
        %v9183 = vld [vmem:[%s9173 + $0x24] sm:$0xf]
        %v9184 = vld [vmem:[%s9173 + $0x28] sm:$0xf]
        %v9185 = vld [vmem:[%s9173 + $0x2c] sm:$0xf]
        %v9186 = vld [vmem:[%s9173 + $0x30] sm:$0xf]
        %v9187 = vld [vmem:[%s9173 + $0x34] sm:$0xf]
        %v9188 = vld [vmem:[%s9173 + $0x38] sm:$0xf]
        %v9189 = vld [vmem:[%s9173 + $0x3c] sm:$0xf]
        %v9222 = vunpack.c.l.b16 %v9141
        %v9223 = vunpack.c.l.b16 %v9142
        %v9224 = vunpack.c.l.b16 %v9143
        %v9225 = vunpack.c.l.b16 %v9144
        %v9226 = vunpack.c.l.b16 %v9145
        %v9227 = vunpack.c.l.b16 %v9146
        %v9228 = vunpack.c.l.b16 %v9147
        %v9229 = vunpack.c.l.b16 %v9148
        %v9230 = vunpack.c.l.b16 %v9149
        %v9231 = vunpack.c.l.b16 %v9150
        %v9232 = vunpack.c.l.b16 %v9151
        %v9233 = vunpack.c.l.b16 %v9152
        %v9234 = vunpack.c.l.b16 %v9153
        %v9235 = vunpack.c.l.b16 %v9154
        %v9236 = vunpack.c.l.b16 %v9155
        %v9237 = vunpack.c.l.b16 %v9156
        %v9238 = vunpack.c.l.b16 %v9157
        %v9239 = vunpack.c.l.b16 %v9158
        %v9240 = vunpack.c.l.b16 %v9159
        %v9241 = vunpack.c.l.b16 %v9160
        %v9242 = vunpack.c.l.b16 %v9161
        %v9243 = vunpack.c.l.b16 %v9162
        %v9244 = vunpack.c.l.b16 %v9163
        %v9245 = vunpack.c.l.b16 %v9164
        %v9246 = vunpack.c.l.b16 %v9165
        %v9247 = vunpack.c.l.b16 %v9166
        %v9248 = vunpack.c.l.b16 %v9167
        %v9249 = vunpack.c.l.b16 %v9168
        %v9250 = vunpack.c.l.b16 %v9169
        %v9251 = vunpack.c.l.b16 %v9170
        %v9252 = vunpack.c.l.b16 %v9171
        %v9253 = vunpack.c.l.b16 %v9172
        %v9254 = vpack.c.b16 %v9223, %v9222
        %v9255 = vpack.c.b16 %v9225, %v9224
        %v9256 = vpack.c.b16 %v9227, %v9226
        %v9257 = vpack.c.b16 %v9229, %v9228
        %v9258 = vpack.c.b16 %v9231, %v9230
        %v9259 = vpack.c.b16 %v9233, %v9232
        %v9260 = vpack.c.b16 %v9235, %v9234
        %v9261 = vpack.c.b16 %v9237, %v9236
        %v9262 = vpack.c.b16 %v9239, %v9238
        %v9263 = vpack.c.b16 %v9241, %v9240
        %v9264 = vpack.c.b16 %v9243, %v9242
        %v9265 = vpack.c.b16 %v9245, %v9244
        %v9266 = vpack.c.b16 %v9247, %v9246
        %v9267 = vpack.c.b16 %v9249, %v9248
        %v9268 = vpack.c.b16 %v9251, %v9250
        %v9269 = vpack.c.b16 %v9253, %v9252
        %v9302 = vunpack.c.l.b16 %v9174
        %v9303 = vunpack.c.l.b16 %v9175
        %v9304 = vunpack.c.l.b16 %v9176
        %v9305 = vunpack.c.l.b16 %v9177
        %v9306 = vunpack.c.l.b16 %v9178
        %v9307 = vunpack.c.l.b16 %v9179
        %v9308 = vunpack.c.l.b16 %v9180
        %v9309 = vunpack.c.l.b16 %v9181
        %v9310 = vunpack.c.l.b16 %v9182
        %v9311 = vunpack.c.l.b16 %v9183
        %v9312 = vunpack.c.l.b16 %v9184
        %v9313 = vunpack.c.l.b16 %v9185
        %v9314 = vunpack.c.l.b16 %v9186
        %v9315 = vunpack.c.l.b16 %v9187
        %v9316 = vunpack.c.l.b16 %v9188
        %v9317 = vunpack.c.l.b16 %v9189
        %v9318 = vpack.c.b16 %v9303, %v9302
        %v9319 = vpack.c.b16 %v9305, %v9304
        %v9320 = vpack.c.b16 %v9307, %v9306
        %v9321 = vpack.c.b16 %v9309, %v9308
        %v9322 = vpack.c.b16 %v9311, %v9310
        %v9323 = vpack.c.b16 %v9313, %v9312
        %v9324 = vpack.c.b16 %v9315, %v9314
        %v9325 = vpack.c.b16 %v9317, %v9316
        %9334 = vmatprep.subr.bf16.mxu0 0
        %9335 = vmatpush1.bf16.msra.mxu0 %v9318
        %9336 = vmatprep.subr.bf16.mxu0 0
        %9337 = vmatpush1.bf16.msra.mxu0 %v9319
        %9338 = vmatprep.subr.bf16.mxu0 0
        %9339 = vmatpush1.bf16.msra.mxu0 %v9320
        %9340 = vmatprep.subr.bf16.mxu0 0
        %9341 = vmatpush1.bf16.msra.mxu0 %v9321
        %9342 = vmatprep.subr.bf16.mxu0 0
        %9343 = vmatpush1.bf16.msra.mxu0 %v9322
        %9344 = vmatprep.subr.bf16.mxu0 0
        %9345 = vmatpush1.bf16.msra.mxu0 %v9323
        %9346 = vmatprep.subr.bf16.mxu0 0
        %9347 = vmatpush1.bf16.msra.mxu0 %v9324
        %9348 = vmatprep.subr.bf16.mxu0 0
        %9349 = vmatpush1.bf16.msra.mxu0 %v9325
        %9350 = vmatprep.subr.bf16.mxu0 0
        %9351 = vmatpush1.bf16.msra.mxu0 0
        %9352 = vmatprep.subr.bf16.mxu0 0
        %9353 = vmatpush1.bf16.msra.mxu0 0
        %9354 = vmatprep.subr.bf16.mxu0 0
        %9355 = vmatpush1.bf16.msra.mxu0 0
        %9356 = vmatprep.subr.bf16.mxu0 0
        %9357 = vmatpush1.bf16.msra.mxu0 0
        %9358 = vmatprep.subr.bf16.mxu0 0
        %9359 = vmatpush1.bf16.msra.mxu0 0
        %9360 = vmatprep.subr.bf16.mxu0 0
        %9361 = vmatpush1.bf16.msra.mxu0 0
        %9362 = vmatprep.subr.bf16.mxu0 0
        %9363 = vmatpush1.bf16.msra.mxu0 0
        %9364 = vmatprep.subr.bf16.mxu0 0
        %9365 = vmatpush1.bf16.msra.mxu0 0
        %9366 = vmatprep.mubr.bf16.mxu0 0
        %9367 = vmatmul.mubr.bf16.gmra.mrb[0].mxu0 %v9254
        %v9368 = vpop.f32.mrb[0].mxu0
        %v9369 = vadd.f32 0.0, %v9368
        %v9370 = vpop.f32.mrb[0].mxu0
        %v9371 = vpop.f32.mrb[0].mxu0
        %v9372 = vadd.f32 0.0, %v9371
        %v9373 = vpop.f32.mrb[0].mxu0
        %9374 = vmatprep.mubr.bf16.mxu0 0
        %9375 = vmatmul.mubr.bf16.gmra.mrb[0].mxu0 %v9255
        %v9376 = vpop.f32.mrb[0].mxu0
        %v9377 = vadd.f32 0.0, %v9376
        %v9378 = vpop.f32.mrb[0].mxu0
        %v9379 = vpop.f32.mrb[0].mxu0
        %v9380 = vadd.f32 0.0, %v9379
        %v9381 = vpop.f32.mrb[0].mxu0
        %9382 = vmatprep.mubr.bf16.mxu0 0
        %9383 = vmatmul.mubr.bf16.gmra.mrb[0].mxu0 %v9256
        %v9384 = vpop.f32.mrb[0].mxu0
        %v9385 = vadd.f32 0.0, %v9384
        %v9386 = vpop.f32.mrb[0].mxu0
        %v9387 = vpop.f32.mrb[0].mxu0
        %v9388 = vadd.f32 0.0, %v9387
        %v9389 = vpop.f32.mrb[0].mxu0
        %9390 = vmatprep.mubr.bf16.mxu0 0
        %9391 = vmatmul.mubr.bf16.gmra.mrb[0].mxu0 %v9257
        %v9392 = vpop.f32.mrb[0].mxu0
        %v9393 = vadd.f32 0.0, %v9392
        %v9394 = vpop.f32.mrb[0].mxu0
        %v9395 = vpop.f32.mrb[0].mxu0
        %v9396 = vadd.f32 0.0, %v9395
        %v9397 = vpop.f32.mrb[0].mxu0
        %9398 = vmatprep.mubr.bf16.mxu0 0
        %9399 = vmatmul.mubr.bf16.gmra.mrb[0].mxu0 %v9258
        %v9400 = vpop.f32.mrb[0].mxu0
        %v9401 = vadd.f32 0.0, %v9400
        %v9402 = vpop.f32.mrb[0].mxu0
        %v9403 = vpop.f32.mrb[0].mxu0
        %v9404 = vadd.f32 0.0, %v9403
        %v9405 = vpop.f32.mrb[0].mxu0
        %9406 = vmatprep.mubr.bf16.mxu0 0
        %9407 = vmatmul.mubr.bf16.gmra.mrb[0].mxu0 %v9259
        %v9408 = vpop.f32.mrb[0].mxu0
        %v9409 = vadd.f32 0.0, %v9408
        %v9410 = vpop.f32.mrb[0].mxu0
        %v9411 = vpop.f32.mrb[0].mxu0
        %v9412 = vadd.f32 0.0, %v9411
        %v9413 = vpop.f32.mrb[0].mxu0
        %9414 = vmatprep.mubr.bf16.mxu0 0
        %9415 = vmatmul.mubr.bf16.gmra.mrb[0].mxu0 %v9260
        %v9416 = vpop.f32.mrb[0].mxu0
        %v9417 = vadd.f32 0.0, %v9416
        %v9418 = vpop.f32.mrb[0].mxu0
        %v9419 = vpop.f32.mrb[0].mxu0
        %v9420 = vadd.f32 0.0, %v9419
        %v9421 = vpop.f32.mrb[0].mxu0
        %9422 = vmatprep.mubr.bf16.mxu0 0
        %9423 = vmatmul.mubr.bf16.gmra.mrb[0].mxu0 %v9261
        %v9424 = vpop.f32.mrb[0].mxu0
        %v9425 = vadd.f32 0.0, %v9424
        %v9426 = vpop.f32.mrb[0].mxu0
        %v9427 = vpop.f32.mrb[0].mxu0
        %v9428 = vadd.f32 0.0, %v9427
        %v9429 = vpop.f32.mrb[0].mxu0
        %9430 = vmatprep.mubr.bf16.mxu0 0
        %9431 = vmatmul.mubr.bf16.gmra.mrb[0].mxu0 %v9262
        %v9432 = vpop.f32.mrb[0].mxu0
        %v9433 = vadd.f32 0.0, %v9432
        %v9434 = vpop.f32.mrb[0].mxu0
        %v9435 = vpop.f32.mrb[0].mxu0
        %v9436 = vadd.f32 0.0, %v9435
        %v9437 = vpop.f32.mrb[0].mxu0
        %9438 = vmatprep.mubr.bf16.mxu0 0
        %9439 = vmatmul.mubr.bf16.gmra.mrb[0].mxu0 %v9263
        %v9440 = vpop.f32.mrb[0].mxu0
        %v9441 = vadd.f32 0.0, %v9440
        %v9442 = vpop.f32.mrb[0].mxu0
        %v9443 = vpop.f32.mrb[0].mxu0
        %v9444 = vadd.f32 0.0, %v9443
        %v9445 = vpop.f32.mrb[0].mxu0
        %9446 = vmatprep.mubr.bf16.mxu0 0
        %9447 = vmatmul.mubr.bf16.gmra.mrb[0].mxu0 %v9264
        %v9448 = vpop.f32.mrb[0].mxu0
        %v9449 = vadd.f32 0.0, %v9448
        %v9450 = vpop.f32.mrb[0].mxu0
        %v9451 = vpop.f32.mrb[0].mxu0
        %v9452 = vadd.f32 0.0, %v9451
        %v9453 = vpop.f32.mrb[0].mxu0
        %9454 = vmatprep.mubr.bf16.mxu0 0
        %9455 = vmatmul.mubr.bf16.gmra.mrb[0].mxu0 %v9265
        %v9456 = vpop.f32.mrb[0].mxu0
        %v9457 = vadd.f32 0.0, %v9456
        %v9458 = vpop.f32.mrb[0].mxu0
        %v9459 = vpop.f32.mrb[0].mxu0
        %v9460 = vadd.f32 0.0, %v9459
        %v9461 = vpop.f32.mrb[0].mxu0
        %9462 = vmatprep.mubr.bf16.mxu0 0
        %9463 = vmatmul.mubr.bf16.gmra.mrb[0].mxu0 %v9266
        %v9464 = vpop.f32.mrb[0].mxu0
        %v9465 = vadd.f32 0.0, %v9464
        %v9466 = vpop.f32.mrb[0].mxu0
        %v9467 = vpop.f32.mrb[0].mxu0
        %v9468 = vadd.f32 0.0, %v9467
        %v9469 = vpop.f32.mrb[0].mxu0
        %9470 = vmatprep.mubr.bf16.mxu0 0
        %9471 = vmatmul.mubr.bf16.gmra.mrb[0].mxu0 %v9267
        %v9472 = vpop.f32.mrb[0].mxu0
        %v9473 = vadd.f32 0.0, %v9472
        %v9474 = vpop.f32.mrb[0].mxu0
        %v9475 = vpop.f32.mrb[0].mxu0
        %v9476 = vadd.f32 0.0, %v9475
        %v9477 = vpop.f32.mrb[0].mxu0
        %9478 = vmatprep.mubr.bf16.mxu0 0
        %9479 = vmatmul.mubr.bf16.gmra.mrb[0].mxu0 %v9268
        %v9480 = vpop.f32.mrb[0].mxu0
        %v9481 = vadd.f32 0.0, %v9480
        %v9482 = vpop.f32.mrb[0].mxu0
        %v9483 = vpop.f32.mrb[0].mxu0
        %v9484 = vadd.f32 0.0, %v9483
        %v9485 = vpop.f32.mrb[0].mxu0
        %9486 = vmatprep.mubr.bf16.mxu0 0
        %9487 = vmatmul.mubr.bf16.gmra.mrb[0].mxu0 %v9269
        %v9488 = vpop.f32.mrb[0].mxu0
        %v9489 = vadd.f32 0.0, %v9488
        %v9490 = vpop.f32.mrb[0].mxu0
        %v9491 = vpop.f32.mrb[0].mxu0
        %v9492 = vadd.f32 0.0, %v9491
        %v9493 = vpop.f32.mrb[0].mxu0
        %9494 = vdwg.mxu0
        %v9495 = vadd.f32 %v9109, %v9369
        %v9496 = vadd.f32 %v9110, %v9372
        %v9497 = vadd.f32 %v9111, %v9377
        %v9498 = vadd.f32 %v9112, %v9380
        %v9499 = vadd.f32 %v9113, %v9385
        %v9500 = vadd.f32 %v9114, %v9388
        %v9501 = vadd.f32 %v9115, %v9393
        %v9502 = vadd.f32 %v9116, %v9396
        %v9503 = vadd.f32 %v9117, %v9401
        %v9504 = vadd.f32 %v9118, %v9404
        %v9505 = vadd.f32 %v9119, %v9409
        %v9506 = vadd.f32 %v9120, %v9412
        %v9507 = vadd.f32 %v9121, %v9417
        %v9508 = vadd.f32 %v9122, %v9420
        %v9509 = vadd.f32 %v9123, %v9425
        %v9510 = vadd.f32 %v9124, %v9428
        %v9511 = vadd.f32 %v9125, %v9433
        %v9512 = vadd.f32 %v9126, %v9436
        %v9513 = vadd.f32 %v9127, %v9441
        %v9514 = vadd.f32 %v9128, %v9444
        %v9515 = vadd.f32 %v9129, %v9449
        %v9516 = vadd.f32 %v9130, %v9452
        %v9517 = vadd.f32 %v9131, %v9457
        %v9518 = vadd.f32 %v9132, %v9460
        %v9519 = vadd.f32 %v9133, %v9465
        %v9520 = vadd.f32 %v9134, %v9468
        %v9521 = vadd.f32 %v9135, %v9473
        %v9522 = vadd.f32 %v9136, %v9476
        %v9523 = vadd.f32 %v9137, %v9481
        %v9524 = vadd.f32 %v9138, %v9484
        %v9525 = vadd.f32 %v9139, %v9489
        %v9526 = vadd.f32 %v9140, %v9492
        %v9527 = vld [vmem:[%s7503] sm:$0xf]
        %v9528 = vld [vmem:[%s7503 + $0x4] sm:$0xf]
        %v9529 = vld [vmem:[%s7503 + $0x8] sm:$0x1]
        %v9530 = vld [vmem:[%s7503 + $0xc] sm:$0xf]
        %v9531 = vld [vmem:[%s7503 + $0x10] sm:$0xf]
        %v9532 = vld [vmem:[%s7503 + $0x14] sm:$0x1]
        %v9533 = vld [vmem:[%s7503 + $0x18] sm:$0xf]
        %v9534 = vld [vmem:[%s7503 + $0x1c] sm:$0xf]
        %v9535 = vld [vmem:[%s7503 + $0x20] sm:$0x1]
        %v9536 = vld [vmem:[%s7503 + $0x24] sm:$0xf]
        %v9537 = vld [vmem:[%s7503 + $0x28] sm:$0xf]
        %v9538 = vld [vmem:[%s7503 + $0x2c] sm:$0x1]
        %v9539 = vld [vmem:[%s7503 + $0x30] sm:$0xf]
        %v9540 = vld [vmem:[%s7503 + $0x34] sm:$0xf]
        %v9541 = vld [vmem:[%s7503 + $0x38] sm:$0x1]
        %v9542 = vld [vmem:[%s7503 + $0x3c] sm:$0xf]
        %v9543 = vld [vmem:[%s7503 + $0x40] sm:$0xf]
        %v9544 = vld [vmem:[%s7503 + $0x44] sm:$0x1]
        %v9545 = vld [vmem:[%s7503 + $0x48] sm:$0xf]
        %v9546 = vld [vmem:[%s7503 + $0x4c] sm:$0xf]
        %v9547 = vld [vmem:[%s7503 + $0x50] sm:$0x1]
        %v9548 = vld [vmem:[%s7503 + $0x54] sm:$0xf]
        %v9549 = vld [vmem:[%s7503 + $0x58] sm:$0xf]
        %v9550 = vld [vmem:[%s7503 + $0x5c] sm:$0x1]
        %v9551 = vld [vmem:[%s7503 + $0x60] sm:$0xf]
        %v9552 = vld [vmem:[%s7503 + $0x64] sm:$0xf]
        %v9553 = vld [vmem:[%s7503 + $0x68] sm:$0x1]
        %v9554 = vld [vmem:[%s7503 + $0x6c] sm:$0xf]
        %v9555 = vld [vmem:[%s7503 + $0x70] sm:$0xf]
        %v9556 = vld [vmem:[%s7503 + $0x74] sm:$0x1]
        %v9557 = vld [vmem:[%s7503 + $0x78] sm:$0xf]
        %v9558 = vld [vmem:[%s7503 + $0x7c] sm:$0xf]
        %v9559 = vld [vmem:[%s7503 + $0x80] sm:$0x1]
        %v9560 = vld [vmem:[%s7503 + $0x84] sm:$0xf]
        %v9561 = vld [vmem:[%s7503 + $0x88] sm:$0xf]
        %v9562 = vld [vmem:[%s7503 + $0x8c] sm:$0x1]
        %v9563 = vld [vmem:[%s7503 + $0x90] sm:$0xf]
        %v9564 = vld [vmem:[%s7503 + $0x94] sm:$0xf]
        %v9565 = vld [vmem:[%s7503 + $0x98] sm:$0x1]
        %v9566 = vld [vmem:[%s7503 + $0x9c] sm:$0xf]
        %v9567 = vld [vmem:[%s7503 + $0xa0] sm:$0xf]
        %v9568 = vld [vmem:[%s7503 + $0xa4] sm:$0x1]
        %v9569 = vld [vmem:[%s7503 + $0xa8] sm:$0xf]
        %v9570 = vld [vmem:[%s7503 + $0xac] sm:$0xf]
        %v9571 = vld [vmem:[%s7503 + $0xb0] sm:$0x1]
        %v9572 = vld [vmem:[%s7503 + $0xb4] sm:$0xf]
        %v9573 = vld [vmem:[%s7503 + $0xb8] sm:$0xf]
        %v9574 = vld [vmem:[%s7503 + $0xbc] sm:$0x1]
        %v9576 = vshrl.u32 %v9527, 16
        %v9578 = vrot.slane %v9576, 4
        %v9579 = vshll.u32 %v9527, 16
        %v9581 = vrot.slane %v9579, 5
        %v9582 = vor.u32 %v9578, %v9581
        %v9583 = vrot.slane %v9582, 4
        %v9585 = vshll.u32 %v9528, 16
        %v9587 = vrot.slane %v9585, 5
        %v9588 = vsel %vm1138, %v9583, %v9587
        %v9589 = vshrl.u32 %v9528, 16
        %v9591 = vrot.slane %v9589, 4
        %v9592 = vor.u32 %v9591, %v9587
        %v9593 = vrot.slane %v9592, 4
        %v9595 = vshll.u32 %v9529, 16
        %v9597 = vrot.slane %v9595, 5
        %v9598 = vsel %vm1138, %v9593, %v9597
        %v9600 = vshrl.u32 %v9530, 16
        %v9602 = vrot.slane %v9600, 4
        %v9603 = vshll.u32 %v9530, 16
        %v9605 = vrot.slane %v9603, 5
        %v9606 = vor.u32 %v9602, %v9605
        %v9607 = vrot.slane %v9606, 4
        %v9609 = vshll.u32 %v9531, 16
        %v9611 = vrot.slane %v9609, 5
        %v9612 = vsel %vm1138, %v9607, %v9611
        %v9613 = vshrl.u32 %v9531, 16
        %v9615 = vrot.slane %v9613, 4
        %v9616 = vor.u32 %v9615, %v9611
        %v9617 = vrot.slane %v9616, 4
        %v9619 = vshll.u32 %v9532, 16
        %v9621 = vrot.slane %v9619, 5
        %v9622 = vsel %vm1138, %v9617, %v9621
        %v9624 = vshrl.u32 %v9533, 16
        %v9626 = vrot.slane %v9624, 4
        %v9627 = vshll.u32 %v9533, 16
        %v9629 = vrot.slane %v9627, 5
        %v9630 = vor.u32 %v9626, %v9629
        %v9631 = vrot.slane %v9630, 4
        %v9633 = vshll.u32 %v9534, 16
        %v9635 = vrot.slane %v9633, 5
        %v9636 = vsel %vm1138, %v9631, %v9635
        %v9637 = vshrl.u32 %v9534, 16
        %v9639 = vrot.slane %v9637, 4
        %v9640 = vor.u32 %v9639, %v9635
        %v9641 = vrot.slane %v9640, 4
        %v9643 = vshll.u32 %v9535, 16
        %v9645 = vrot.slane %v9643, 5
        %v9646 = vsel %vm1138, %v9641, %v9645
        %v9648 = vshrl.u32 %v9536, 16
        %v9650 = vrot.slane %v9648, 4
        %v9651 = vshll.u32 %v9536, 16
        %v9653 = vrot.slane %v9651, 5
        %v9654 = vor.u32 %v9650, %v9653
        %v9655 = vrot.slane %v9654, 4
        %v9657 = vshll.u32 %v9537, 16
        %v9659 = vrot.slane %v9657, 5
        %v9660 = vsel %vm1138, %v9655, %v9659
        %v9661 = vshrl.u32 %v9537, 16
        %v9663 = vrot.slane %v9661, 4
        %v9664 = vor.u32 %v9663, %v9659
        %v9665 = vrot.slane %v9664, 4
        %v9667 = vshll.u32 %v9538, 16
        %v9669 = vrot.slane %v9667, 5
        %v9670 = vsel %vm1138, %v9665, %v9669
        %v9672 = vshrl.u32 %v9539, 16
        %v9674 = vrot.slane %v9672, 4
        %v9675 = vshll.u32 %v9539, 16
        %v9677 = vrot.slane %v9675, 5
        %v9678 = vor.u32 %v9674, %v9677
        %v9679 = vrot.slane %v9678, 4
        %v9681 = vshll.u32 %v9540, 16
        %v9683 = vrot.slane %v9681, 5
        %v9684 = vsel %vm1138, %v9679, %v9683
        %v9685 = vshrl.u32 %v9540, 16
        %v9687 = vrot.slane %v9685, 4
        %v9688 = vor.u32 %v9687, %v9683
        %v9689 = vrot.slane %v9688, 4
        %v9691 = vshll.u32 %v9541, 16
        %v9693 = vrot.slane %v9691, 5
        %v9694 = vsel %vm1138, %v9689, %v9693
        %v9696 = vshrl.u32 %v9542, 16
        %v9698 = vrot.slane %v9696, 4
        %v9699 = vshll.u32 %v9542, 16
        %v9701 = vrot.slane %v9699, 5
        %v9702 = vor.u32 %v9698, %v9701
        %v9703 = vrot.slane %v9702, 4
        %v9705 = vshll.u32 %v9543, 16
        %v9707 = vrot.slane %v9705, 5
        %v9708 = vsel %vm1138, %v9703, %v9707
        %v9709 = vshrl.u32 %v9543, 16
        %v9711 = vrot.slane %v9709, 4
        %v9712 = vor.u32 %v9711, %v9707
        %v9713 = vrot.slane %v9712, 4
        %v9715 = vshll.u32 %v9544, 16
        %v9717 = vrot.slane %v9715, 5
        %v9718 = vsel %vm1138, %v9713, %v9717
        %v9720 = vshrl.u32 %v9545, 16
        %v9722 = vrot.slane %v9720, 4
        %v9723 = vshll.u32 %v9545, 16
        %v9725 = vrot.slane %v9723, 5
        %v9726 = vor.u32 %v9722, %v9725
        %v9727 = vrot.slane %v9726, 4
        %v9729 = vshll.u32 %v9546, 16
        %v9731 = vrot.slane %v9729, 5
        %v9732 = vsel %vm1138, %v9727, %v9731
        %v9733 = vshrl.u32 %v9546, 16
        %v9735 = vrot.slane %v9733, 4
        %v9736 = vor.u32 %v9735, %v9731
        %v9737 = vrot.slane %v9736, 4
        %v9739 = vshll.u32 %v9547, 16
        %v9741 = vrot.slane %v9739, 5
        %v9742 = vsel %vm1138, %v9737, %v9741
        %v9744 = vshrl.u32 %v9548, 16
        %v9746 = vrot.slane %v9744, 4
        %v9747 = vshll.u32 %v9548, 16
        %v9749 = vrot.slane %v9747, 5
        %v9750 = vor.u32 %v9746, %v9749
        %v9751 = vrot.slane %v9750, 4
        %v9753 = vshll.u32 %v9549, 16
        %v9755 = vrot.slane %v9753, 5
        %v9756 = vsel %vm1138, %v9751, %v9755
        %v9757 = vshrl.u32 %v9549, 16
        %v9759 = vrot.slane %v9757, 4
        %v9760 = vor.u32 %v9759, %v9755
        %v9761 = vrot.slane %v9760, 4
        %v9763 = vshll.u32 %v9550, 16
        %v9765 = vrot.slane %v9763, 5
        %v9766 = vsel %vm1138, %v9761, %v9765
        %v9768 = vshrl.u32 %v9551, 16
        %v9770 = vrot.slane %v9768, 4
        %v9771 = vshll.u32 %v9551, 16
        %v9773 = vrot.slane %v9771, 5
        %v9774 = vor.u32 %v9770, %v9773
        %v9775 = vrot.slane %v9774, 4
        %v9777 = vshll.u32 %v9552, 16
        %v9779 = vrot.slane %v9777, 5
        %v9780 = vsel %vm1138, %v9775, %v9779
        %v9781 = vshrl.u32 %v9552, 16
        %v9783 = vrot.slane %v9781, 4
        %v9784 = vor.u32 %v9783, %v9779
        %v9785 = vrot.slane %v9784, 4
        %v9787 = vshll.u32 %v9553, 16
        %v9789 = vrot.slane %v9787, 5
        %v9790 = vsel %vm1138, %v9785, %v9789
        %v9792 = vshrl.u32 %v9554, 16
        %v9794 = vrot.slane %v9792, 4
        %v9795 = vshll.u32 %v9554, 16
        %v9797 = vrot.slane %v9795, 5
        %v9798 = vor.u32 %v9794, %v9797
        %v9799 = vrot.slane %v9798, 4
        %v9801 = vshll.u32 %v9555, 16
        %v9803 = vrot.slane %v9801, 5
        %v9804 = vsel %vm1138, %v9799, %v9803
        %v9805 = vshrl.u32 %v9555, 16
        %v9807 = vrot.slane %v9805, 4
        %v9808 = vor.u32 %v9807, %v9803
        %v9809 = vrot.slane %v9808, 4
        %v9811 = vshll.u32 %v9556, 16
        %v9813 = vrot.slane %v9811, 5
        %v9814 = vsel %vm1138, %v9809, %v9813
        %v9816 = vshrl.u32 %v9557, 16
        %v9818 = vrot.slane %v9816, 4
        %v9819 = vshll.u32 %v9557, 16
        %v9821 = vrot.slane %v9819, 5
        %v9822 = vor.u32 %v9818, %v9821
        %v9823 = vrot.slane %v9822, 4
        %v9825 = vshll.u32 %v9558, 16
        %v9827 = vrot.slane %v9825, 5
        %v9828 = vsel %vm1138, %v9823, %v9827
        %v9829 = vshrl.u32 %v9558, 16
        %v9831 = vrot.slane %v9829, 4
        %v9832 = vor.u32 %v9831, %v9827
        %v9833 = vrot.slane %v9832, 4
        %v9835 = vshll.u32 %v9559, 16
        %v9837 = vrot.slane %v9835, 5
        %v9838 = vsel %vm1138, %v9833, %v9837
        %v9840 = vshrl.u32 %v9560, 16
        %v9842 = vrot.slane %v9840, 4
        %v9843 = vshll.u32 %v9560, 16
        %v9845 = vrot.slane %v9843, 5
        %v9846 = vor.u32 %v9842, %v9845
        %v9847 = vrot.slane %v9846, 4
        %v9849 = vshll.u32 %v9561, 16
        %v9851 = vrot.slane %v9849, 5
        %v9852 = vsel %vm1138, %v9847, %v9851
        %v9853 = vshrl.u32 %v9561, 16
        %v9855 = vrot.slane %v9853, 4
        %v9856 = vor.u32 %v9855, %v9851
        %v9857 = vrot.slane %v9856, 4
        %v9859 = vshll.u32 %v9562, 16
        %v9861 = vrot.slane %v9859, 5
        %v9862 = vsel %vm1138, %v9857, %v9861
        %v9864 = vshrl.u32 %v9563, 16
        %v9866 = vrot.slane %v9864, 4
        %v9867 = vshll.u32 %v9563, 16
        %v9869 = vrot.slane %v9867, 5
        %v9870 = vor.u32 %v9866, %v9869
        %v9871 = vrot.slane %v9870, 4
        %v9873 = vshll.u32 %v9564, 16
        %v9875 = vrot.slane %v9873, 5
        %v9876 = vsel %vm1138, %v9871, %v9875
        %v9877 = vshrl.u32 %v9564, 16
        %v9879 = vrot.slane %v9877, 4
        %v9880 = vor.u32 %v9879, %v9875
        %v9881 = vrot.slane %v9880, 4
        %v9883 = vshll.u32 %v9565, 16
        %v9885 = vrot.slane %v9883, 5
        %v9886 = vsel %vm1138, %v9881, %v9885
        %v9888 = vshrl.u32 %v9566, 16
        %v9890 = vrot.slane %v9888, 4
        %v9891 = vshll.u32 %v9566, 16
        %v9893 = vrot.slane %v9891, 5
        %v9894 = vor.u32 %v9890, %v9893
        %v9895 = vrot.slane %v9894, 4
        %v9897 = vshll.u32 %v9567, 16
        %v9899 = vrot.slane %v9897, 5
        %v9900 = vsel %vm1138, %v9895, %v9899
        %v9901 = vshrl.u32 %v9567, 16
        %v9903 = vrot.slane %v9901, 4
        %v9904 = vor.u32 %v9903, %v9899
        %v9905 = vrot.slane %v9904, 4
        %v9907 = vshll.u32 %v9568, 16
        %v9909 = vrot.slane %v9907, 5
        %v9910 = vsel %vm1138, %v9905, %v9909
        %v9912 = vshrl.u32 %v9569, 16
        %v9914 = vrot.slane %v9912, 4
        %v9915 = vshll.u32 %v9569, 16
        %v9917 = vrot.slane %v9915, 5
        %v9918 = vor.u32 %v9914, %v9917
        %v9919 = vrot.slane %v9918, 4
        %v9921 = vshll.u32 %v9570, 16
        %v9923 = vrot.slane %v9921, 5
        %v9924 = vsel %vm1138, %v9919, %v9923
        %v9925 = vshrl.u32 %v9570, 16
        %v9927 = vrot.slane %v9925, 4
        %v9928 = vor.u32 %v9927, %v9923
        %v9929 = vrot.slane %v9928, 4
        %v9931 = vshll.u32 %v9571, 16
        %v9933 = vrot.slane %v9931, 5
        %v9934 = vsel %vm1138, %v9929, %v9933
        %v9936 = vshrl.u32 %v9572, 16
        %v9938 = vrot.slane %v9936, 4
        %v9939 = vshll.u32 %v9572, 16
        %v9941 = vrot.slane %v9939, 5
        %v9942 = vor.u32 %v9938, %v9941
        %v9943 = vrot.slane %v9942, 4
        %v9945 = vshll.u32 %v9573, 16
        %v9947 = vrot.slane %v9945, 5
        %v9948 = vsel %vm1138, %v9943, %v9947
        %v9949 = vshrl.u32 %v9573, 16
        %v9951 = vrot.slane %v9949, 4
        %v9952 = vor.u32 %v9951, %v9947
        %v9953 = vrot.slane %v9952, 4
        %v9955 = vshll.u32 %v9574, 16
        %v9957 = vrot.slane %v9955, 5
        %v9958 = vsel %vm1138, %v9953, %v9957
        %s9959 = scalar_lea.vmem [#allocation9], 256
        %v9960 = vld [vmem:[%s9959] sm:$0xf]
        %v9961 = vld [vmem:[%s9959 + $0x4] sm:$0xf]
        %v9962 = vld [vmem:[%s9959 + $0x8] sm:$0xf]
        %v9963 = vld [vmem:[%s9959 + $0xc] sm:$0xf]
        %v9964 = vld [vmem:[%s9959 + $0x10] sm:$0xf]
        %v9965 = vld [vmem:[%s9959 + $0x14] sm:$0xf]
        %v9966 = vld [vmem:[%s9959 + $0x18] sm:$0xf]
        %v9967 = vld [vmem:[%s9959 + $0x1c] sm:$0xf]
        %v9968 = vld [vmem:[%s9959 + $0x20] sm:$0xf]
        %v9969 = vld [vmem:[%s9959 + $0x24] sm:$0xf]
        %v9970 = vld [vmem:[%s9959 + $0x28] sm:$0xf]
        %v9971 = vld [vmem:[%s9959 + $0x2c] sm:$0xf]
        %v9972 = vld [vmem:[%s9959 + $0x30] sm:$0xf]
        %v9973 = vld [vmem:[%s9959 + $0x34] sm:$0xf]
        %v9974 = vld [vmem:[%s9959 + $0x38] sm:$0xf]
        %v9975 = vld [vmem:[%s9959 + $0x3c] sm:$0xf]
        %v9976 = vunpack.c.l.b16 %v9588
        %v9977 = vunpack.c.l.b16 %v9598
        %v9978 = vunpack.c.l.b16 %v9612
        %v9979 = vunpack.c.l.b16 %v9622
        %v9980 = vunpack.c.l.b16 %v9636
        %v9981 = vunpack.c.l.b16 %v9646
        %v9982 = vunpack.c.l.b16 %v9660
        %v9983 = vunpack.c.l.b16 %v9670
        %v9984 = vunpack.c.l.b16 %v9684
        %v9985 = vunpack.c.l.b16 %v9694
        %v9986 = vunpack.c.l.b16 %v9708
        %v9987 = vunpack.c.l.b16 %v9718
        %v9988 = vunpack.c.l.b16 %v9732
        %v9989 = vunpack.c.l.b16 %v9742
        %v9990 = vunpack.c.l.b16 %v9756
        %v9991 = vunpack.c.l.b16 %v9766
        %v9992 = vunpack.c.l.b16 %v9780
        %v9993 = vunpack.c.l.b16 %v9790
        %v9994 = vunpack.c.l.b16 %v9804
        %v9995 = vunpack.c.l.b16 %v9814
        %v9996 = vunpack.c.l.b16 %v9828
        %v9997 = vunpack.c.l.b16 %v9838
        %v9998 = vunpack.c.l.b16 %v9852
        %v9999 = vunpack.c.l.b16 %v9862
        %v10000 = vunpack.c.l.b16 %v9876
        %v10001 = vunpack.c.l.b16 %v9886
        %v10002 = vunpack.c.l.b16 %v9900
        %v10003 = vunpack.c.l.b16 %v9910
        %v10004 = vunpack.c.l.b16 %v9924
        %v10005 = vunpack.c.l.b16 %v9934
        %v10006 = vunpack.c.l.b16 %v9948
        %v10007 = vunpack.c.l.b16 %v9958
        %v10008 = vpack.c.b16 %v9977, %v9976
        %v10009 = vpack.c.b16 %v9979, %v9978
        %v10010 = vpack.c.b16 %v9981, %v9980
        %v10011 = vpack.c.b16 %v9983, %v9982
        %v10012 = vpack.c.b16 %v9985, %v9984
        %v10013 = vpack.c.b16 %v9987, %v9986
        %v10014 = vpack.c.b16 %v9989, %v9988
        %v10015 = vpack.c.b16 %v9991, %v9990
        %v10016 = vpack.c.b16 %v9993, %v9992
        %v10017 = vpack.c.b16 %v9995, %v9994
        %v10018 = vpack.c.b16 %v9997, %v9996
        %v10019 = vpack.c.b16 %v9999, %v9998
        %v10020 = vpack.c.b16 %v10001, %v10000
        %v10021 = vpack.c.b16 %v10003, %v10002
        %v10022 = vpack.c.b16 %v10005, %v10004
        %v10023 = vpack.c.b16 %v10007, %v10006
        %v10056 = vunpack.c.l.b16 %v9960
        %v10057 = vunpack.c.l.b16 %v9961
        %v10058 = vunpack.c.l.b16 %v9962
        %v10059 = vunpack.c.l.b16 %v9963
        %v10060 = vunpack.c.l.b16 %v9964
        %v10061 = vunpack.c.l.b16 %v9965
        %v10062 = vunpack.c.l.b16 %v9966
        %v10063 = vunpack.c.l.b16 %v9967
        %v10064 = vunpack.c.l.b16 %v9968
        %v10065 = vunpack.c.l.b16 %v9969
        %v10066 = vunpack.c.l.b16 %v9970
        %v10067 = vunpack.c.l.b16 %v9971
        %v10068 = vunpack.c.l.b16 %v9972
        %v10069 = vunpack.c.l.b16 %v9973
        %v10070 = vunpack.c.l.b16 %v9974
        %v10071 = vunpack.c.l.b16 %v9975
        %v10072 = vpack.c.b16 %v10057, %v10056
        %v10073 = vpack.c.b16 %v10059, %v10058
        %v10074 = vpack.c.b16 %v10061, %v10060
        %v10075 = vpack.c.b16 %v10063, %v10062
        %v10076 = vpack.c.b16 %v10065, %v10064
        %v10077 = vpack.c.b16 %v10067, %v10066
        %v10078 = vpack.c.b16 %v10069, %v10068
        %v10079 = vpack.c.b16 %v10071, %v10070
        %10088 = vmatprep.subr.bf16.mxu0 0
        %10089 = vmatpush1.bf16.msra.mxu0 %v10072
        %10090 = vmatprep.subr.bf16.mxu0 0
        %10091 = vmatpush1.bf16.msra.mxu0 %v10073
        %10092 = vmatprep.subr.bf16.mxu0 0
        %10093 = vmatpush1.bf16.msra.mxu0 %v10074
        %10094 = vmatprep.subr.bf16.mxu0 0
        %10095 = vmatpush1.bf16.msra.mxu0 %v10075
        %10096 = vmatprep.subr.bf16.mxu0 0
        %10097 = vmatpush1.bf16.msra.mxu0 %v10076
        %10098 = vmatprep.subr.bf16.mxu0 0
        %10099 = vmatpush1.bf16.msra.mxu0 %v10077
        %10100 = vmatprep.subr.bf16.mxu0 0
        %10101 = vmatpush1.bf16.msra.mxu0 %v10078
        %10102 = vmatprep.subr.bf16.mxu0 0
        %10103 = vmatpush1.bf16.msra.mxu0 %v10079
        %10104 = vmatprep.subr.bf16.mxu0 0
        %10105 = vmatpush1.bf16.msra.mxu0 0
        %10106 = vmatprep.subr.bf16.mxu0 0
        %10107 = vmatpush1.bf16.msra.mxu0 0
        %10108 = vmatprep.subr.bf16.mxu0 0
        %10109 = vmatpush1.bf16.msra.mxu0 0
        %10110 = vmatprep.subr.bf16.mxu0 0
        %10111 = vmatpush1.bf16.msra.mxu0 0
        %10112 = vmatprep.subr.bf16.mxu0 0
        %10113 = vmatpush1.bf16.msra.mxu0 0
        %10114 = vmatprep.subr.bf16.mxu0 0
        %10115 = vmatpush1.bf16.msra.mxu0 0
        %10116 = vmatprep.subr.bf16.mxu0 0
        %10117 = vmatpush1.bf16.msra.mxu0 0
        %10118 = vmatprep.subr.bf16.mxu0 0
        %10119 = vmatpush1.bf16.msra.mxu0 0
        %10120 = vmatprep.mubr.bf16.mxu0 0
        %10121 = vmatmul.mubr.bf16.gmra.mrb[0].mxu0 %v10008
        %v10122 = vpop.f32.mrb[0].mxu0
        %v10123 = vadd.f32 0.0, %v10122
        %v10124 = vpop.f32.mrb[0].mxu0
        %v10125 = vpop.f32.mrb[0].mxu0
        %v10126 = vadd.f32 0.0, %v10125
        %v10127 = vpop.f32.mrb[0].mxu0
        %10128 = vmatprep.mubr.bf16.mxu0 0
        %10129 = vmatmul.mubr.bf16.gmra.mrb[0].mxu0 %v10009
        %v10130 = vpop.f32.mrb[0].mxu0
        %v10131 = vadd.f32 0.0, %v10130
        %v10132 = vpop.f32.mrb[0].mxu0
        %v10133 = vpop.f32.mrb[0].mxu0
        %v10134 = vadd.f32 0.0, %v10133
        %v10135 = vpop.f32.mrb[0].mxu0
        %10136 = vmatprep.mubr.bf16.mxu0 0
        %10137 = vmatmul.mubr.bf16.gmra.mrb[0].mxu0 %v10010
        %v10138 = vpop.f32.mrb[0].mxu0
        %v10139 = vadd.f32 0.0, %v10138
        %v10140 = vpop.f32.mrb[0].mxu0
        %v10141 = vpop.f32.mrb[0].mxu0
        %v10142 = vadd.f32 0.0, %v10141
        %v10143 = vpop.f32.mrb[0].mxu0
        %10144 = vmatprep.mubr.bf16.mxu0 0
        %10145 = vmatmul.mubr.bf16.gmra.mrb[0].mxu0 %v10011
        %v10146 = vpop.f32.mrb[0].mxu0
        %v10147 = vadd.f32 0.0, %v10146
        %v10148 = vpop.f32.mrb[0].mxu0
        %v10149 = vpop.f32.mrb[0].mxu0
        %v10150 = vadd.f32 0.0, %v10149
        %v10151 = vpop.f32.mrb[0].mxu0
        %10152 = vmatprep.mubr.bf16.mxu0 0
        %10153 = vmatmul.mubr.bf16.gmra.mrb[0].mxu0 %v10012
        %v10154 = vpop.f32.mrb[0].mxu0
        %v10155 = vadd.f32 0.0, %v10154
        %v10156 = vpop.f32.mrb[0].mxu0
        %v10157 = vpop.f32.mrb[0].mxu0
        %v10158 = vadd.f32 0.0, %v10157
        %v10159 = vpop.f32.mrb[0].mxu0
        %10160 = vmatprep.mubr.bf16.mxu0 0
        %10161 = vmatmul.mubr.bf16.gmra.mrb[0].mxu0 %v10013
        %v10162 = vpop.f32.mrb[0].mxu0
        %v10163 = vadd.f32 0.0, %v10162
        %v10164 = vpop.f32.mrb[0].mxu0
        %v10165 = vpop.f32.mrb[0].mxu0
        %v10166 = vadd.f32 0.0, %v10165
        %v10167 = vpop.f32.mrb[0].mxu0
        %10168 = vmatprep.mubr.bf16.mxu0 0
        %10169 = vmatmul.mubr.bf16.gmra.mrb[0].mxu0 %v10014
        %v10170 = vpop.f32.mrb[0].mxu0
        %v10171 = vadd.f32 0.0, %v10170
        %v10172 = vpop.f32.mrb[0].mxu0
        %v10173 = vpop.f32.mrb[0].mxu0
        %v10174 = vadd.f32 0.0, %v10173
        %v10175 = vpop.f32.mrb[0].mxu0
        %10176 = vmatprep.mubr.bf16.mxu0 0
        %10177 = vmatmul.mubr.bf16.gmra.mrb[0].mxu0 %v10015
        %v10178 = vpop.f32.mrb[0].mxu0
        %v10179 = vadd.f32 0.0, %v10178
        %v10180 = vpop.f32.mrb[0].mxu0
        %v10181 = vpop.f32.mrb[0].mxu0
        %v10182 = vadd.f32 0.0, %v10181
        %v10183 = vpop.f32.mrb[0].mxu0
        %10184 = vmatprep.mubr.bf16.mxu0 0
        %10185 = vmatmul.mubr.bf16.gmra.mrb[0].mxu0 %v10016
        %v10186 = vpop.f32.mrb[0].mxu0
        %v10187 = vadd.f32 0.0, %v10186
        %v10188 = vpop.f32.mrb[0].mxu0
        %v10189 = vpop.f32.mrb[0].mxu0
        %v10190 = vadd.f32 0.0, %v10189
        %v10191 = vpop.f32.mrb[0].mxu0
        %10192 = vmatprep.mubr.bf16.mxu0 0
        %10193 = vmatmul.mubr.bf16.gmra.mrb[0].mxu0 %v10017
        %v10194 = vpop.f32.mrb[0].mxu0
        %v10195 = vadd.f32 0.0, %v10194
        %v10196 = vpop.f32.mrb[0].mxu0
        %v10197 = vpop.f32.mrb[0].mxu0
        %v10198 = vadd.f32 0.0, %v10197
        %v10199 = vpop.f32.mrb[0].mxu0
        %10200 = vmatprep.mubr.bf16.mxu0 0
        %10201 = vmatmul.mubr.bf16.gmra.mrb[0].mxu0 %v10018
        %v10202 = vpop.f32.mrb[0].mxu0
        %v10203 = vadd.f32 0.0, %v10202
        %v10204 = vpop.f32.mrb[0].mxu0
        %v10205 = vpop.f32.mrb[0].mxu0
        %v10206 = vadd.f32 0.0, %v10205
        %v10207 = vpop.f32.mrb[0].mxu0
        %10208 = vmatprep.mubr.bf16.mxu0 0
        %10209 = vmatmul.mubr.bf16.gmra.mrb[0].mxu0 %v10019
        %v10210 = vpop.f32.mrb[0].mxu0
        %v10211 = vadd.f32 0.0, %v10210
        %v10212 = vpop.f32.mrb[0].mxu0
        %v10213 = vpop.f32.mrb[0].mxu0
        %v10214 = vadd.f32 0.0, %v10213
        %v10215 = vpop.f32.mrb[0].mxu0
        %10216 = vmatprep.mubr.bf16.mxu0 0
        %10217 = vmatmul.mubr.bf16.gmra.mrb[0].mxu0 %v10020
        %v10218 = vpop.f32.mrb[0].mxu0
        %v10219 = vadd.f32 0.0, %v10218
        %v10220 = vpop.f32.mrb[0].mxu0
        %v10221 = vpop.f32.mrb[0].mxu0
        %v10222 = vadd.f32 0.0, %v10221
        %v10223 = vpop.f32.mrb[0].mxu0
        %10224 = vmatprep.mubr.bf16.mxu0 0
        %10225 = vmatmul.mubr.bf16.gmra.mrb[0].mxu0 %v10021
        %v10226 = vpop.f32.mrb[0].mxu0
        %v10227 = vadd.f32 0.0, %v10226
        %v10228 = vpop.f32.mrb[0].mxu0
        %v10229 = vpop.f32.mrb[0].mxu0
        %v10230 = vadd.f32 0.0, %v10229
        %v10231 = vpop.f32.mrb[0].mxu0
        %10232 = vmatprep.mubr.bf16.mxu0 0
        %10233 = vmatmul.mubr.bf16.gmra.mrb[0].mxu0 %v10022
        %v10234 = vpop.f32.mrb[0].mxu0
        %v10235 = vadd.f32 0.0, %v10234
        %v10236 = vpop.f32.mrb[0].mxu0
        %v10237 = vpop.f32.mrb[0].mxu0
        %v10238 = vadd.f32 0.0, %v10237
        %v10239 = vpop.f32.mrb[0].mxu0
        %10240 = vmatprep.mubr.bf16.mxu0 0
        %10241 = vmatmul.mubr.bf16.gmra.mrb[0].mxu0 %v10023
        %v10242 = vpop.f32.mrb[0].mxu0
        %v10243 = vadd.f32 0.0, %v10242
        %v10244 = vpop.f32.mrb[0].mxu0
        %v10245 = vpop.f32.mrb[0].mxu0
        %v10246 = vadd.f32 0.0, %v10245
        %v10247 = vpop.f32.mrb[0].mxu0
        %10248 = vdwg.mxu0
        %v10249 = vadd.f32 %v9495, %v10123
        %v10250 = vadd.f32 %v9496, %v10126
        %v10251 = vadd.f32 %v9497, %v10131
        %v10252 = vadd.f32 %v9498, %v10134
        %v10253 = vadd.f32 %v9499, %v10139
        %v10254 = vadd.f32 %v9500, %v10142
        %v10255 = vadd.f32 %v9501, %v10147
        %v10256 = vadd.f32 %v9502, %v10150
        %v10257 = vadd.f32 %v9503, %v10155
        %v10258 = vadd.f32 %v9504, %v10158
        %v10259 = vadd.f32 %v9505, %v10163
        %v10260 = vadd.f32 %v9506, %v10166
        %v10261 = vadd.f32 %v9507, %v10171
        %v10262 = vadd.f32 %v9508, %v10174
        %v10263 = vadd.f32 %v9509, %v10179
        %v10264 = vadd.f32 %v9510, %v10182
        %v10265 = vadd.f32 %v9511, %v10187
        %v10266 = vadd.f32 %v9512, %v10190
        %v10267 = vadd.f32 %v9513, %v10195
        %v10268 = vadd.f32 %v9514, %v10198
        %v10269 = vadd.f32 %v9515, %v10203
        %v10270 = vadd.f32 %v9516, %v10206
        %v10271 = vadd.f32 %v9517, %v10211
        %v10272 = vadd.f32 %v9518, %v10214
        %v10273 = vadd.f32 %v9519, %v10219
        %v10274 = vadd.f32 %v9520, %v10222
        %v10275 = vadd.f32 %v9521, %v10227
        %v10276 = vadd.f32 %v9522, %v10230
        %v10277 = vadd.f32 %v9523, %v10235
        %v10278 = vadd.f32 %v9524, %v10238
        %v10279 = vadd.f32 %v9525, %v10243
        %v10280 = vadd.f32 %v9526, %v10246
        %v10281 = vld [vmem:[%s7503] sm:$0xe]
        %v10282 = vld [vmem:[%s7503 + $0xc] sm:$0xe]
        %v10283 = vld [vmem:[%s7503 + $0x18] sm:$0xe]
        %v10284 = vld [vmem:[%s7503 + $0x24] sm:$0xe]
        %v10285 = vld [vmem:[%s7503 + $0x30] sm:$0xe]
        %v10286 = vld [vmem:[%s7503 + $0x3c] sm:$0xe]
        %v10287 = vld [vmem:[%s7503 + $0x48] sm:$0xe]
        %v10288 = vld [vmem:[%s7503 + $0x54] sm:$0xe]
        %v10289 = vld [vmem:[%s7503 + $0x60] sm:$0xe]
        %v10290 = vld [vmem:[%s7503 + $0x6c] sm:$0xe]
        %v10291 = vld [vmem:[%s7503 + $0x78] sm:$0xe]
        %v10292 = vld [vmem:[%s7503 + $0x84] sm:$0xe]
        %v10293 = vld [vmem:[%s7503 + $0x90] sm:$0xe]
        %v10294 = vld [vmem:[%s7503 + $0x9c] sm:$0xe]
        %v10295 = vld [vmem:[%s7503 + $0xa8] sm:$0xe]
        %v10296 = vld [vmem:[%s7503 + $0xb4] sm:$0xe]
        %v10345 = vrot.slane %v10281, 5
        %v10346 = vrot.slane %v10345, 4
        %v10347 = vrot.slane %v9528, 5
        %v10348 = vsel %vm2408, %v10346, %v10347
        %v10349 = vrot.slane %v10347, 4
        %v10350 = vrot.slane %v9529, 5
        %v10351 = vsel %vm2408, %v10349, %v10350
        %v10352 = vrot.slane %v10282, 5
        %v10353 = vrot.slane %v10352, 4
        %v10354 = vrot.slane %v9531, 5
        %v10355 = vsel %vm2408, %v10353, %v10354
        %v10356 = vrot.slane %v10354, 4
        %v10357 = vrot.slane %v9532, 5
        %v10358 = vsel %vm2408, %v10356, %v10357
        %v10359 = vrot.slane %v10283, 5
        %v10360 = vrot.slane %v10359, 4
        %v10361 = vrot.slane %v9534, 5
        %v10362 = vsel %vm2408, %v10360, %v10361
        %v10363 = vrot.slane %v10361, 4
        %v10364 = vrot.slane %v9535, 5
        %v10365 = vsel %vm2408, %v10363, %v10364
        %v10366 = vrot.slane %v10284, 5
        %v10367 = vrot.slane %v10366, 4
        %v10368 = vrot.slane %v9537, 5
        %v10369 = vsel %vm2408, %v10367, %v10368
        %v10370 = vrot.slane %v10368, 4
        %v10371 = vrot.slane %v9538, 5
        %v10372 = vsel %vm2408, %v10370, %v10371
        %v10373 = vrot.slane %v10285, 5
        %v10374 = vrot.slane %v10373, 4
        %v10375 = vrot.slane %v9540, 5
        %v10376 = vsel %vm2408, %v10374, %v10375
        %v10377 = vrot.slane %v10375, 4
        %v10378 = vrot.slane %v9541, 5
        %v10379 = vsel %vm2408, %v10377, %v10378
        %v10380 = vrot.slane %v10286, 5
        %v10381 = vrot.slane %v10380, 4
        %v10382 = vrot.slane %v9543, 5
        %v10383 = vsel %vm2408, %v10381, %v10382
        %v10384 = vrot.slane %v10382, 4
        %v10385 = vrot.slane %v9544, 5
        %v10386 = vsel %vm2408, %v10384, %v10385
        %v10387 = vrot.slane %v10287, 5
        %v10388 = vrot.slane %v10387, 4
        %v10389 = vrot.slane %v9546, 5
        %v10390 = vsel %vm2408, %v10388, %v10389
        %v10391 = vrot.slane %v10389, 4
        %v10392 = vrot.slane %v9547, 5
        %v10393 = vsel %vm2408, %v10391, %v10392
        %v10394 = vrot.slane %v10288, 5
        %v10395 = vrot.slane %v10394, 4
        %v10396 = vrot.slane %v9549, 5
        %v10397 = vsel %vm2408, %v10395, %v10396
        %v10398 = vrot.slane %v10396, 4
        %v10399 = vrot.slane %v9550, 5
        %v10400 = vsel %vm2408, %v10398, %v10399
        %v10401 = vrot.slane %v10289, 5
        %v10402 = vrot.slane %v10401, 4
        %v10403 = vrot.slane %v9552, 5
        %v10404 = vsel %vm2408, %v10402, %v10403
        %v10405 = vrot.slane %v10403, 4
        %v10406 = vrot.slane %v9553, 5
        %v10407 = vsel %vm2408, %v10405, %v10406
        %v10408 = vrot.slane %v10290, 5
        %v10409 = vrot.slane %v10408, 4
        %v10410 = vrot.slane %v9555, 5
        %v10411 = vsel %vm2408, %v10409, %v10410
        %v10412 = vrot.slane %v10410, 4
        %v10413 = vrot.slane %v9556, 5
        %v10414 = vsel %vm2408, %v10412, %v10413
        %v10415 = vrot.slane %v10291, 5
        %v10416 = vrot.slane %v10415, 4
        %v10417 = vrot.slane %v9558, 5
        %v10418 = vsel %vm2408, %v10416, %v10417
        %v10419 = vrot.slane %v10417, 4
        %v10420 = vrot.slane %v9559, 5
        %v10421 = vsel %vm2408, %v10419, %v10420
        %v10422 = vrot.slane %v10292, 5
        %v10423 = vrot.slane %v10422, 4
        %v10424 = vrot.slane %v9561, 5
        %v10425 = vsel %vm2408, %v10423, %v10424
        %v10426 = vrot.slane %v10424, 4
        %v10427 = vrot.slane %v9562, 5
        %v10428 = vsel %vm2408, %v10426, %v10427
        %v10429 = vrot.slane %v10293, 5
        %v10430 = vrot.slane %v10429, 4
        %v10431 = vrot.slane %v9564, 5
        %v10432 = vsel %vm2408, %v10430, %v10431
        %v10433 = vrot.slane %v10431, 4
        %v10434 = vrot.slane %v9565, 5
        %v10435 = vsel %vm2408, %v10433, %v10434
        %v10436 = vrot.slane %v10294, 5
        %v10437 = vrot.slane %v10436, 4
        %v10438 = vrot.slane %v9567, 5
        %v10439 = vsel %vm2408, %v10437, %v10438
        %v10440 = vrot.slane %v10438, 4
        %v10441 = vrot.slane %v9568, 5
        %v10442 = vsel %vm2408, %v10440, %v10441
        %v10443 = vrot.slane %v10295, 5
        %v10444 = vrot.slane %v10443, 4
        %v10445 = vrot.slane %v9570, 5
        %v10446 = vsel %vm2408, %v10444, %v10445
        %v10447 = vrot.slane %v10445, 4
        %v10448 = vrot.slane %v9571, 5
        %v10449 = vsel %vm2408, %v10447, %v10448
        %v10450 = vrot.slane %v10296, 5
        %v10451 = vrot.slane %v10450, 4
        %v10452 = vrot.slane %v9573, 5
        %v10453 = vsel %vm2408, %v10451, %v10452
        %v10454 = vrot.slane %v10452, 4
        %v10455 = vrot.slane %v9574, 5
        %v10456 = vsel %vm2408, %v10454, %v10455
        %s10457 = scalar_lea.vmem [#allocation9], 320
        %v10458 = vld [vmem:[%s10457] sm:$0xf]
        %v10459 = vld [vmem:[%s10457 + $0x4] sm:$0xf]
        %v10460 = vld [vmem:[%s10457 + $0x8] sm:$0xf]
        %v10461 = vld [vmem:[%s10457 + $0xc] sm:$0xf]
        %v10462 = vld [vmem:[%s10457 + $0x10] sm:$0xf]
        %v10463 = vld [vmem:[%s10457 + $0x14] sm:$0xf]
        %v10464 = vld [vmem:[%s10457 + $0x18] sm:$0xf]
        %v10465 = vld [vmem:[%s10457 + $0x1c] sm:$0xf]
        %v10466 = vld [vmem:[%s10457 + $0x20] sm:$0xf]
        %v10467 = vld [vmem:[%s10457 + $0x24] sm:$0xf]
        %v10468 = vld [vmem:[%s10457 + $0x28] sm:$0xf]
        %v10469 = vld [vmem:[%s10457 + $0x2c] sm:$0xf]
        %v10470 = vld [vmem:[%s10457 + $0x30] sm:$0xf]
        %v10471 = vld [vmem:[%s10457 + $0x34] sm:$0xf]
        %v10472 = vld [vmem:[%s10457 + $0x38] sm:$0xf]
        %v10473 = vld [vmem:[%s10457 + $0x3c] sm:$0xf]
        %v10474 = vunpack.c.l.b16 %v10348
        %v10475 = vunpack.c.l.b16 %v10351
        %v10476 = vunpack.c.l.b16 %v10355
        %v10477 = vunpack.c.l.b16 %v10358
        %v10478 = vunpack.c.l.b16 %v10362
        %v10479 = vunpack.c.l.b16 %v10365
        %v10480 = vunpack.c.l.b16 %v10369
        %v10481 = vunpack.c.l.b16 %v10372
        %v10482 = vunpack.c.l.b16 %v10376
        %v10483 = vunpack.c.l.b16 %v10379
        %v10484 = vunpack.c.l.b16 %v10383
        %v10485 = vunpack.c.l.b16 %v10386
        %v10486 = vunpack.c.l.b16 %v10390
        %v10487 = vunpack.c.l.b16 %v10393
        %v10488 = vunpack.c.l.b16 %v10397
        %v10489 = vunpack.c.l.b16 %v10400
        %v10490 = vunpack.c.l.b16 %v10404
        %v10491 = vunpack.c.l.b16 %v10407
        %v10492 = vunpack.c.l.b16 %v10411
        %v10493 = vunpack.c.l.b16 %v10414
        %v10494 = vunpack.c.l.b16 %v10418
        %v10495 = vunpack.c.l.b16 %v10421
        %v10496 = vunpack.c.l.b16 %v10425
        %v10497 = vunpack.c.l.b16 %v10428
        %v10498 = vunpack.c.l.b16 %v10432
        %v10499 = vunpack.c.l.b16 %v10435
        %v10500 = vunpack.c.l.b16 %v10439
        %v10501 = vunpack.c.l.b16 %v10442
        %v10502 = vunpack.c.l.b16 %v10446
        %v10503 = vunpack.c.l.b16 %v10449
        %v10504 = vunpack.c.l.b16 %v10453
        %v10505 = vunpack.c.l.b16 %v10456
        %v10506 = vpack.c.b16 %v10475, %v10474
        %v10507 = vpack.c.b16 %v10477, %v10476
        %v10508 = vpack.c.b16 %v10479, %v10478
        %v10509 = vpack.c.b16 %v10481, %v10480
        %v10510 = vpack.c.b16 %v10483, %v10482
        %v10511 = vpack.c.b16 %v10485, %v10484
        %v10512 = vpack.c.b16 %v10487, %v10486
        %v10513 = vpack.c.b16 %v10489, %v10488
        %v10514 = vpack.c.b16 %v10491, %v10490
        %v10515 = vpack.c.b16 %v10493, %v10492
        %v10516 = vpack.c.b16 %v10495, %v10494
        %v10517 = vpack.c.b16 %v10497, %v10496
        %v10518 = vpack.c.b16 %v10499, %v10498
        %v10519 = vpack.c.b16 %v10501, %v10500
        %v10520 = vpack.c.b16 %v10503, %v10502
        %v10521 = vpack.c.b16 %v10505, %v10504
        %v10554 = vunpack.c.l.b16 %v10458
        %v10555 = vunpack.c.l.b16 %v10459
        %v10556 = vunpack.c.l.b16 %v10460
        %v10557 = vunpack.c.l.b16 %v10461
        %v10558 = vunpack.c.l.b16 %v10462
        %v10559 = vunpack.c.l.b16 %v10463
        %v10560 = vunpack.c.l.b16 %v10464
        %v10561 = vunpack.c.l.b16 %v10465
        %v10562 = vunpack.c.l.b16 %v10466
        %v10563 = vunpack.c.l.b16 %v10467
        %v10564 = vunpack.c.l.b16 %v10468
        %v10565 = vunpack.c.l.b16 %v10469
        %v10566 = vunpack.c.l.b16 %v10470
        %v10567 = vunpack.c.l.b16 %v10471
        %v10568 = vunpack.c.l.b16 %v10472
        %v10569 = vunpack.c.l.b16 %v10473
        %v10570 = vpack.c.b16 %v10555, %v10554
        %v10571 = vpack.c.b16 %v10557, %v10556
        %v10572 = vpack.c.b16 %v10559, %v10558
        %v10573 = vpack.c.b16 %v10561, %v10560
        %v10574 = vpack.c.b16 %v10563, %v10562
        %v10575 = vpack.c.b16 %v10565, %v10564
        %v10576 = vpack.c.b16 %v10567, %v10566
        %v10577 = vpack.c.b16 %v10569, %v10568
        %10586 = vmatprep.subr.bf16.mxu0 0
        %10587 = vmatpush1.bf16.msra.mxu0 %v10570
        %10588 = vmatprep.subr.bf16.mxu0 0
        %10589 = vmatpush1.bf16.msra.mxu0 %v10571
        %10590 = vmatprep.subr.bf16.mxu0 0
        %10591 = vmatpush1.bf16.msra.mxu0 %v10572
        %10592 = vmatprep.subr.bf16.mxu0 0
        %10593 = vmatpush1.bf16.msra.mxu0 %v10573
        %10594 = vmatprep.subr.bf16.mxu0 0
        %10595 = vmatpush1.bf16.msra.mxu0 %v10574
        %10596 = vmatprep.subr.bf16.mxu0 0
        %10597 = vmatpush1.bf16.msra.mxu0 %v10575
        %10598 = vmatprep.subr.bf16.mxu0 0
        %10599 = vmatpush1.bf16.msra.mxu0 %v10576
        %10600 = vmatprep.subr.bf16.mxu0 0
        %10601 = vmatpush1.bf16.msra.mxu0 %v10577
        %10602 = vmatprep.subr.bf16.mxu0 0
        %10603 = vmatpush1.bf16.msra.mxu0 0
        %10604 = vmatprep.subr.bf16.mxu0 0
        %10605 = vmatpush1.bf16.msra.mxu0 0
        %10606 = vmatprep.subr.bf16.mxu0 0
        %10607 = vmatpush1.bf16.msra.mxu0 0
        %10608 = vmatprep.subr.bf16.mxu0 0
        %10609 = vmatpush1.bf16.msra.mxu0 0
        %10610 = vmatprep.subr.bf16.mxu0 0
        %10611 = vmatpush1.bf16.msra.mxu0 0
        %10612 = vmatprep.subr.bf16.mxu0 0
        %10613 = vmatpush1.bf16.msra.mxu0 0
        %10614 = vmatprep.subr.bf16.mxu0 0
        %10615 = vmatpush1.bf16.msra.mxu0 0
        %10616 = vmatprep.subr.bf16.mxu0 0
        %10617 = vmatpush1.bf16.msra.mxu0 0
        %10618 = vmatprep.mubr.bf16.mxu0 0
        %10619 = vmatmul.mubr.bf16.gmra.mrb[0].mxu0 %v10506
        %v10620 = vpop.f32.mrb[0].mxu0
        %v10621 = vadd.f32 0.0, %v10620
        %v10622 = vpop.f32.mrb[0].mxu0
        %v10623 = vpop.f32.mrb[0].mxu0
        %v10624 = vadd.f32 0.0, %v10623
        %v10625 = vpop.f32.mrb[0].mxu0
        %10626 = vmatprep.mubr.bf16.mxu0 0
        %10627 = vmatmul.mubr.bf16.gmra.mrb[0].mxu0 %v10507
        %v10628 = vpop.f32.mrb[0].mxu0
        %v10629 = vadd.f32 0.0, %v10628
        %v10630 = vpop.f32.mrb[0].mxu0
        %v10631 = vpop.f32.mrb[0].mxu0
        %v10632 = vadd.f32 0.0, %v10631
        %v10633 = vpop.f32.mrb[0].mxu0
        %10634 = vmatprep.mubr.bf16.mxu0 0
        %10635 = vmatmul.mubr.bf16.gmra.mrb[0].mxu0 %v10508
        %v10636 = vpop.f32.mrb[0].mxu0
        %v10637 = vadd.f32 0.0, %v10636
        %v10638 = vpop.f32.mrb[0].mxu0
        %v10639 = vpop.f32.mrb[0].mxu0
        %v10640 = vadd.f32 0.0, %v10639
        %v10641 = vpop.f32.mrb[0].mxu0
        %10642 = vmatprep.mubr.bf16.mxu0 0
        %10643 = vmatmul.mubr.bf16.gmra.mrb[0].mxu0 %v10509
        %v10644 = vpop.f32.mrb[0].mxu0
        %v10645 = vadd.f32 0.0, %v10644
        %v10646 = vpop.f32.mrb[0].mxu0
        %v10647 = vpop.f32.mrb[0].mxu0
        %v10648 = vadd.f32 0.0, %v10647
        %v10649 = vpop.f32.mrb[0].mxu0
        %10650 = vmatprep.mubr.bf16.mxu0 0
        %10651 = vmatmul.mubr.bf16.gmra.mrb[0].mxu0 %v10510
        %v10652 = vpop.f32.mrb[0].mxu0
        %v10653 = vadd.f32 0.0, %v10652
        %v10654 = vpop.f32.mrb[0].mxu0
        %v10655 = vpop.f32.mrb[0].mxu0
        %v10656 = vadd.f32 0.0, %v10655
        %v10657 = vpop.f32.mrb[0].mxu0
        %10658 = vmatprep.mubr.bf16.mxu0 0
        %10659 = vmatmul.mubr.bf16.gmra.mrb[0].mxu0 %v10511
        %v10660 = vpop.f32.mrb[0].mxu0
        %v10661 = vadd.f32 0.0, %v10660
        %v10662 = vpop.f32.mrb[0].mxu0
        %v10663 = vpop.f32.mrb[0].mxu0
        %v10664 = vadd.f32 0.0, %v10663
        %v10665 = vpop.f32.mrb[0].mxu0
        %10666 = vmatprep.mubr.bf16.mxu0 0
        %10667 = vmatmul.mubr.bf16.gmra.mrb[0].mxu0 %v10512
        %v10668 = vpop.f32.mrb[0].mxu0
        %v10669 = vadd.f32 0.0, %v10668
        %v10670 = vpop.f32.mrb[0].mxu0
        %v10671 = vpop.f32.mrb[0].mxu0
        %v10672 = vadd.f32 0.0, %v10671
        %v10673 = vpop.f32.mrb[0].mxu0
        %10674 = vmatprep.mubr.bf16.mxu0 0
        %10675 = vmatmul.mubr.bf16.gmra.mrb[0].mxu0 %v10513
        %v10676 = vpop.f32.mrb[0].mxu0
        %v10677 = vadd.f32 0.0, %v10676
        %v10678 = vpop.f32.mrb[0].mxu0
        %v10679 = vpop.f32.mrb[0].mxu0
        %v10680 = vadd.f32 0.0, %v10679
        %v10681 = vpop.f32.mrb[0].mxu0
        %10682 = vmatprep.mubr.bf16.mxu0 0
        %10683 = vmatmul.mubr.bf16.gmra.mrb[0].mxu0 %v10514
        %v10684 = vpop.f32.mrb[0].mxu0
        %v10685 = vadd.f32 0.0, %v10684
        %v10686 = vpop.f32.mrb[0].mxu0
        %v10687 = vpop.f32.mrb[0].mxu0
        %v10688 = vadd.f32 0.0, %v10687
        %v10689 = vpop.f32.mrb[0].mxu0
        %10690 = vmatprep.mubr.bf16.mxu0 0
        %10691 = vmatmul.mubr.bf16.gmra.mrb[0].mxu0 %v10515
        %v10692 = vpop.f32.mrb[0].mxu0
        %v10693 = vadd.f32 0.0, %v10692
        %v10694 = vpop.f32.mrb[0].mxu0
        %v10695 = vpop.f32.mrb[0].mxu0
        %v10696 = vadd.f32 0.0, %v10695
        %v10697 = vpop.f32.mrb[0].mxu0
        %10698 = vmatprep.mubr.bf16.mxu0 0
        %10699 = vmatmul.mubr.bf16.gmra.mrb[0].mxu0 %v10516
        %v10700 = vpop.f32.mrb[0].mxu0
        %v10701 = vadd.f32 0.0, %v10700
        %v10702 = vpop.f32.mrb[0].mxu0
        %v10703 = vpop.f32.mrb[0].mxu0
        %v10704 = vadd.f32 0.0, %v10703
        %v10705 = vpop.f32.mrb[0].mxu0
        %10706 = vmatprep.mubr.bf16.mxu0 0
        %10707 = vmatmul.mubr.bf16.gmra.mrb[0].mxu0 %v10517
        %v10708 = vpop.f32.mrb[0].mxu0
        %v10709 = vadd.f32 0.0, %v10708
        %v10710 = vpop.f32.mrb[0].mxu0
        %v10711 = vpop.f32.mrb[0].mxu0
        %v10712 = vadd.f32 0.0, %v10711
        %v10713 = vpop.f32.mrb[0].mxu0
        %10714 = vmatprep.mubr.bf16.mxu0 0
        %10715 = vmatmul.mubr.bf16.gmra.mrb[0].mxu0 %v10518
        %v10716 = vpop.f32.mrb[0].mxu0
        %v10717 = vadd.f32 0.0, %v10716
        %v10718 = vpop.f32.mrb[0].mxu0
        %v10719 = vpop.f32.mrb[0].mxu0
        %v10720 = vadd.f32 0.0, %v10719
        %v10721 = vpop.f32.mrb[0].mxu0
        %10722 = vmatprep.mubr.bf16.mxu0 0
        %10723 = vmatmul.mubr.bf16.gmra.mrb[0].mxu0 %v10519
        %v10724 = vpop.f32.mrb[0].mxu0
        %v10725 = vadd.f32 0.0, %v10724
        %v10726 = vpop.f32.mrb[0].mxu0
        %v10727 = vpop.f32.mrb[0].mxu0
        %v10728 = vadd.f32 0.0, %v10727
        %v10729 = vpop.f32.mrb[0].mxu0
        %10730 = vmatprep.mubr.bf16.mxu0 0
        %10731 = vmatmul.mubr.bf16.gmra.mrb[0].mxu0 %v10520
        %v10732 = vpop.f32.mrb[0].mxu0
        %v10733 = vadd.f32 0.0, %v10732
        %v10734 = vpop.f32.mrb[0].mxu0
        %v10735 = vpop.f32.mrb[0].mxu0
        %v10736 = vadd.f32 0.0, %v10735
        %v10737 = vpop.f32.mrb[0].mxu0
        %10738 = vmatprep.mubr.bf16.mxu0 0
        %10739 = vmatmul.mubr.bf16.gmra.mrb[0].mxu0 %v10521
        %v10740 = vpop.f32.mrb[0].mxu0
        %v10741 = vadd.f32 0.0, %v10740
        %v10742 = vpop.f32.mrb[0].mxu0
        %v10743 = vpop.f32.mrb[0].mxu0
        %v10744 = vadd.f32 0.0, %v10743
        %v10745 = vpop.f32.mrb[0].mxu0
        %10746 = vdwg.mxu0
        %v10747 = vadd.f32 %v10249, %v10621
        %v10748 = vadd.f32 %v10250, %v10624
        %v10749 = vadd.f32 %v10251, %v10629
        %v10750 = vadd.f32 %v10252, %v10632
        %v10751 = vadd.f32 %v10253, %v10637
        %v10752 = vadd.f32 %v10254, %v10640
        %v10753 = vadd.f32 %v10255, %v10645
        %v10754 = vadd.f32 %v10256, %v10648
        %v10755 = vadd.f32 %v10257, %v10653
        %v10756 = vadd.f32 %v10258, %v10656
        %v10757 = vadd.f32 %v10259, %v10661
        %v10758 = vadd.f32 %v10260, %v10664
        %v10759 = vadd.f32 %v10261, %v10669
        %v10760 = vadd.f32 %v10262, %v10672
        %v10761 = vadd.f32 %v10263, %v10677
        %v10762 = vadd.f32 %v10264, %v10680
        %v10763 = vadd.f32 %v10265, %v10685
        %v10764 = vadd.f32 %v10266, %v10688
        %v10765 = vadd.f32 %v10267, %v10693
        %v10766 = vadd.f32 %v10268, %v10696
        %v10767 = vadd.f32 %v10269, %v10701
        %v10768 = vadd.f32 %v10270, %v10704
        %v10769 = vadd.f32 %v10271, %v10709
        %v10770 = vadd.f32 %v10272, %v10712
        %v10771 = vadd.f32 %v10273, %v10717
        %v10772 = vadd.f32 %v10274, %v10720
        %v10773 = vadd.f32 %v10275, %v10725
        %v10774 = vadd.f32 %v10276, %v10728
        %v10775 = vadd.f32 %v10277, %v10733
        %v10776 = vadd.f32 %v10278, %v10736
        %v10777 = vadd.f32 %v10279, %v10741
        %v10778 = vadd.f32 %v10280, %v10744
        %s10779 = scalar_lea.vmem [#allocation3], 24
        %v10780 = vld [vmem:[%s10779] sm:$0xf]
        %v10781 = vld [vmem:[%s10779 + $0x4] sm:$0xf]
        %v10782 = vld [vmem:[%s10779 + $0xc] sm:$0xf]
        %v10783 = vld [vmem:[%s10779 + $0x10] sm:$0xf]
        %v10784 = vld [vmem:[%s10779 + $0x18] sm:$0xf]
        %v10785 = vld [vmem:[%s10779 + $0x1c] sm:$0xf]
        %v10786 = vld [vmem:[%s10779 + $0x24] sm:$0xf]
        %v10787 = vld [vmem:[%s10779 + $0x28] sm:$0xf]
        %v10788 = vld [vmem:[%s10779 + $0x30] sm:$0xf]
        %v10789 = vld [vmem:[%s10779 + $0x34] sm:$0xf]
        %v10790 = vld [vmem:[%s10779 + $0x3c] sm:$0xf]
        %v10791 = vld [vmem:[%s10779 + $0x40] sm:$0xf]
        %v10792 = vld [vmem:[%s10779 + $0x48] sm:$0xf]
        %v10793 = vld [vmem:[%s10779 + $0x4c] sm:$0xf]
        %v10794 = vld [vmem:[%s10779 + $0x54] sm:$0xf]
        %v10795 = vld [vmem:[%s10779 + $0x58] sm:$0xf]
        %v10796 = vld [vmem:[%s10779 + $0x60] sm:$0xf]
        %v10797 = vld [vmem:[%s10779 + $0x64] sm:$0xf]
        %v10798 = vld [vmem:[%s10779 + $0x6c] sm:$0xf]
        %v10799 = vld [vmem:[%s10779 + $0x70] sm:$0xf]
        %v10800 = vld [vmem:[%s10779 + $0x78] sm:$0xf]
        %v10801 = vld [vmem:[%s10779 + $0x7c] sm:$0xf]
        %v10802 = vld [vmem:[%s10779 + $0x84] sm:$0xf]
        %v10803 = vld [vmem:[%s10779 + $0x88] sm:$0xf]
        %v10804 = vld [vmem:[%s10779 + $0x90] sm:$0xf]
        %v10805 = vld [vmem:[%s10779 + $0x94] sm:$0xf]
        %v10806 = vld [vmem:[%s10779 + $0x9c] sm:$0xf]
        %v10807 = vld [vmem:[%s10779 + $0xa0] sm:$0xf]
        %v10808 = vld [vmem:[%s10779 + $0xa8] sm:$0xf]
        %v10809 = vld [vmem:[%s10779 + $0xac] sm:$0xf]
        %v10810 = vld [vmem:[%s10779 + $0xb4] sm:$0xf]
        %v10811 = vld [vmem:[%s10779 + $0xb8] sm:$0xf]
        %s10812 = scalar_lea.vmem [#allocation9], 384
        %v10813 = vld [vmem:[%s10812] sm:$0xf]
        %v10814 = vld [vmem:[%s10812 + $0x4] sm:$0xf]
        %v10815 = vld [vmem:[%s10812 + $0x8] sm:$0xf]
        %v10816 = vld [vmem:[%s10812 + $0xc] sm:$0xf]
        %v10817 = vld [vmem:[%s10812 + $0x10] sm:$0xf]
        %v10818 = vld [vmem:[%s10812 + $0x14] sm:$0xf]
        %v10819 = vld [vmem:[%s10812 + $0x18] sm:$0xf]
        %v10820 = vld [vmem:[%s10812 + $0x1c] sm:$0xf]
        %v10821 = vld [vmem:[%s10812 + $0x20] sm:$0xf]
        %v10822 = vld [vmem:[%s10812 + $0x24] sm:$0xf]
        %v10823 = vld [vmem:[%s10812 + $0x28] sm:$0xf]
        %v10824 = vld [vmem:[%s10812 + $0x2c] sm:$0xf]
        %v10825 = vld [vmem:[%s10812 + $0x30] sm:$0xf]
        %v10826 = vld [vmem:[%s10812 + $0x34] sm:$0xf]
        %v10827 = vld [vmem:[%s10812 + $0x38] sm:$0xf]
        %v10828 = vld [vmem:[%s10812 + $0x3c] sm:$0xf]
        %v10861 = vunpack.c.l.b16 %v10780
        %v10862 = vunpack.c.l.b16 %v10781
        %v10863 = vunpack.c.l.b16 %v10782
        %v10864 = vunpack.c.l.b16 %v10783
        %v10865 = vunpack.c.l.b16 %v10784
        %v10866 = vunpack.c.l.b16 %v10785
        %v10867 = vunpack.c.l.b16 %v10786
        %v10868 = vunpack.c.l.b16 %v10787
        %v10869 = vunpack.c.l.b16 %v10788
        %v10870 = vunpack.c.l.b16 %v10789
        %v10871 = vunpack.c.l.b16 %v10790
        %v10872 = vunpack.c.l.b16 %v10791
        %v10873 = vunpack.c.l.b16 %v10792
        %v10874 = vunpack.c.l.b16 %v10793
        %v10875 = vunpack.c.l.b16 %v10794
        %v10876 = vunpack.c.l.b16 %v10795
        %v10877 = vunpack.c.l.b16 %v10796
        %v10878 = vunpack.c.l.b16 %v10797
        %v10879 = vunpack.c.l.b16 %v10798
        %v10880 = vunpack.c.l.b16 %v10799
        %v10881 = vunpack.c.l.b16 %v10800
        %v10882 = vunpack.c.l.b16 %v10801
        %v10883 = vunpack.c.l.b16 %v10802
        %v10884 = vunpack.c.l.b16 %v10803
        %v10885 = vunpack.c.l.b16 %v10804
        %v10886 = vunpack.c.l.b16 %v10805
        %v10887 = vunpack.c.l.b16 %v10806
        %v10888 = vunpack.c.l.b16 %v10807
        %v10889 = vunpack.c.l.b16 %v10808
        %v10890 = vunpack.c.l.b16 %v10809
        %v10891 = vunpack.c.l.b16 %v10810
        %v10892 = vunpack.c.l.b16 %v10811
        %v10893 = vpack.c.b16 %v10862, %v10861
        %v10894 = vpack.c.b16 %v10864, %v10863
        %v10895 = vpack.c.b16 %v10866, %v10865
        %v10896 = vpack.c.b16 %v10868, %v10867
        %v10897 = vpack.c.b16 %v10870, %v10869
        %v10898 = vpack.c.b16 %v10872, %v10871
        %v10899 = vpack.c.b16 %v10874, %v10873
        %v10900 = vpack.c.b16 %v10876, %v10875
        %v10901 = vpack.c.b16 %v10878, %v10877
        %v10902 = vpack.c.b16 %v10880, %v10879
        %v10903 = vpack.c.b16 %v10882, %v10881
        %v10904 = vpack.c.b16 %v10884, %v10883
        %v10905 = vpack.c.b16 %v10886, %v10885
        %v10906 = vpack.c.b16 %v10888, %v10887
        %v10907 = vpack.c.b16 %v10890, %v10889
        %v10908 = vpack.c.b16 %v10892, %v10891
        %v10941 = vunpack.c.l.b16 %v10813
        %v10942 = vunpack.c.l.b16 %v10814
        %v10943 = vunpack.c.l.b16 %v10815
        %v10944 = vunpack.c.l.b16 %v10816
        %v10945 = vunpack.c.l.b16 %v10817
        %v10946 = vunpack.c.l.b16 %v10818
        %v10947 = vunpack.c.l.b16 %v10819
        %v10948 = vunpack.c.l.b16 %v10820
        %v10949 = vunpack.c.l.b16 %v10821
        %v10950 = vunpack.c.l.b16 %v10822
        %v10951 = vunpack.c.l.b16 %v10823
        %v10952 = vunpack.c.l.b16 %v10824
        %v10953 = vunpack.c.l.b16 %v10825
        %v10954 = vunpack.c.l.b16 %v10826
        %v10955 = vunpack.c.l.b16 %v10827
        %v10956 = vunpack.c.l.b16 %v10828
        %v10957 = vpack.c.b16 %v10942, %v10941
        %v10958 = vpack.c.b16 %v10944, %v10943
        %v10959 = vpack.c.b16 %v10946, %v10945
        %v10960 = vpack.c.b16 %v10948, %v10947
        %v10961 = vpack.c.b16 %v10950, %v10949
        %v10962 = vpack.c.b16 %v10952, %v10951
        %v10963 = vpack.c.b16 %v10954, %v10953
        %v10964 = vpack.c.b16 %v10956, %v10955
        %10973 = vmatprep.subr.bf16.mxu0 0
        %10974 = vmatpush1.bf16.msra.mxu0 %v10957
        %10975 = vmatprep.subr.bf16.mxu0 0
        %10976 = vmatpush1.bf16.msra.mxu0 %v10958
        %10977 = vmatprep.subr.bf16.mxu0 0
        %10978 = vmatpush1.bf16.msra.mxu0 %v10959
        %10979 = vmatprep.subr.bf16.mxu0 0
        %10980 = vmatpush1.bf16.msra.mxu0 %v10960
        %10981 = vmatprep.subr.bf16.mxu0 0
        %10982 = vmatpush1.bf16.msra.mxu0 %v10961
        %10983 = vmatprep.subr.bf16.mxu0 0
        %10984 = vmatpush1.bf16.msra.mxu0 %v10962
        %10985 = vmatprep.subr.bf16.mxu0 0
        %10986 = vmatpush1.bf16.msra.mxu0 %v10963
        %10987 = vmatprep.subr.bf16.mxu0 0
        %10988 = vmatpush1.bf16.msra.mxu0 %v10964
        %10989 = vmatprep.subr.bf16.mxu0 0
        %10990 = vmatpush1.bf16.msra.mxu0 0
        %10991 = vmatprep.subr.bf16.mxu0 0
        %10992 = vmatpush1.bf16.msra.mxu0 0
        %10993 = vmatprep.subr.bf16.mxu0 0
        %10994 = vmatpush1.bf16.msra.mxu0 0
        %10995 = vmatprep.subr.bf16.mxu0 0
        %10996 = vmatpush1.bf16.msra.mxu0 0
        %10997 = vmatprep.subr.bf16.mxu0 0
        %10998 = vmatpush1.bf16.msra.mxu0 0
        %10999 = vmatprep.subr.bf16.mxu0 0
        %11000 = vmatpush1.bf16.msra.mxu0 0
        %11001 = vmatprep.subr.bf16.mxu0 0
        %11002 = vmatpush1.bf16.msra.mxu0 0
        %11003 = vmatprep.subr.bf16.mxu0 0
        %11004 = vmatpush1.bf16.msra.mxu0 0
        %11005 = vmatprep.mubr.bf16.mxu0 0
        %11006 = vmatmul.mubr.bf16.gmra.mrb[0].mxu0 %v10893
        %v11007 = vpop.f32.mrb[0].mxu0
        %v11008 = vadd.f32 0.0, %v11007
        %v11009 = vpop.f32.mrb[0].mxu0
        %v11010 = vpop.f32.mrb[0].mxu0
        %v11011 = vadd.f32 0.0, %v11010
        %v11012 = vpop.f32.mrb[0].mxu0
        %11013 = vmatprep.mubr.bf16.mxu0 0
        %11014 = vmatmul.mubr.bf16.gmra.mrb[0].mxu0 %v10894
        %v11015 = vpop.f32.mrb[0].mxu0
        %v11016 = vadd.f32 0.0, %v11015
        %v11017 = vpop.f32.mrb[0].mxu0
        %v11018 = vpop.f32.mrb[0].mxu0
        %v11019 = vadd.f32 0.0, %v11018
        %v11020 = vpop.f32.mrb[0].mxu0
        %11021 = vmatprep.mubr.bf16.mxu0 0
        %11022 = vmatmul.mubr.bf16.gmra.mrb[0].mxu0 %v10895
        %v11023 = vpop.f32.mrb[0].mxu0
        %v11024 = vadd.f32 0.0, %v11023
        %v11025 = vpop.f32.mrb[0].mxu0
        %v11026 = vpop.f32.mrb[0].mxu0
        %v11027 = vadd.f32 0.0, %v11026
        %v11028 = vpop.f32.mrb[0].mxu0
        %11029 = vmatprep.mubr.bf16.mxu0 0
        %11030 = vmatmul.mubr.bf16.gmra.mrb[0].mxu0 %v10896
        %v11031 = vpop.f32.mrb[0].mxu0
        %v11032 = vadd.f32 0.0, %v11031
        %v11033 = vpop.f32.mrb[0].mxu0
        %v11034 = vpop.f32.mrb[0].mxu0
        %v11035 = vadd.f32 0.0, %v11034
        %v11036 = vpop.f32.mrb[0].mxu0
        %11037 = vmatprep.mubr.bf16.mxu0 0
        %11038 = vmatmul.mubr.bf16.gmra.mrb[0].mxu0 %v10897
        %v11039 = vpop.f32.mrb[0].mxu0
        %v11040 = vadd.f32 0.0, %v11039
        %v11041 = vpop.f32.mrb[0].mxu0
        %v11042 = vpop.f32.mrb[0].mxu0
        %v11043 = vadd.f32 0.0, %v11042
        %v11044 = vpop.f32.mrb[0].mxu0
        %11045 = vmatprep.mubr.bf16.mxu0 0
        %11046 = vmatmul.mubr.bf16.gmra.mrb[0].mxu0 %v10898
        %v11047 = vpop.f32.mrb[0].mxu0
        %v11048 = vadd.f32 0.0, %v11047
        %v11049 = vpop.f32.mrb[0].mxu0
        %v11050 = vpop.f32.mrb[0].mxu0
        %v11051 = vadd.f32 0.0, %v11050
        %v11052 = vpop.f32.mrb[0].mxu0
        %11053 = vmatprep.mubr.bf16.mxu0 0
        %11054 = vmatmul.mubr.bf16.gmra.mrb[0].mxu0 %v10899
        %v11055 = vpop.f32.mrb[0].mxu0
        %v11056 = vadd.f32 0.0, %v11055
        %v11057 = vpop.f32.mrb[0].mxu0
        %v11058 = vpop.f32.mrb[0].mxu0
        %v11059 = vadd.f32 0.0, %v11058
        %v11060 = vpop.f32.mrb[0].mxu0
        %11061 = vmatprep.mubr.bf16.mxu0 0
        %11062 = vmatmul.mubr.bf16.gmra.mrb[0].mxu0 %v10900
        %v11063 = vpop.f32.mrb[0].mxu0
        %v11064 = vadd.f32 0.0, %v11063
        %v11065 = vpop.f32.mrb[0].mxu0
        %v11066 = vpop.f32.mrb[0].mxu0
        %v11067 = vadd.f32 0.0, %v11066
        %v11068 = vpop.f32.mrb[0].mxu0
        %11069 = vmatprep.mubr.bf16.mxu0 0
        %11070 = vmatmul.mubr.bf16.gmra.mrb[0].mxu0 %v10901
        %v11071 = vpop.f32.mrb[0].mxu0
        %v11072 = vadd.f32 0.0, %v11071
        %v11073 = vpop.f32.mrb[0].mxu0
        %v11074 = vpop.f32.mrb[0].mxu0
        %v11075 = vadd.f32 0.0, %v11074
        %v11076 = vpop.f32.mrb[0].mxu0
        %11077 = vmatprep.mubr.bf16.mxu0 0
        %11078 = vmatmul.mubr.bf16.gmra.mrb[0].mxu0 %v10902
        %v11079 = vpop.f32.mrb[0].mxu0
        %v11080 = vadd.f32 0.0, %v11079
        %v11081 = vpop.f32.mrb[0].mxu0
        %v11082 = vpop.f32.mrb[0].mxu0
        %v11083 = vadd.f32 0.0, %v11082
        %v11084 = vpop.f32.mrb[0].mxu0
        %11085 = vmatprep.mubr.bf16.mxu0 0
        %11086 = vmatmul.mubr.bf16.gmra.mrb[0].mxu0 %v10903
        %v11087 = vpop.f32.mrb[0].mxu0
        %v11088 = vadd.f32 0.0, %v11087
        %v11089 = vpop.f32.mrb[0].mxu0
        %v11090 = vpop.f32.mrb[0].mxu0
        %v11091 = vadd.f32 0.0, %v11090
        %v11092 = vpop.f32.mrb[0].mxu0
        %11093 = vmatprep.mubr.bf16.mxu0 0
        %11094 = vmatmul.mubr.bf16.gmra.mrb[0].mxu0 %v10904
        %v11095 = vpop.f32.mrb[0].mxu0
        %v11096 = vadd.f32 0.0, %v11095
        %v11097 = vpop.f32.mrb[0].mxu0
        %v11098 = vpop.f32.mrb[0].mxu0
        %v11099 = vadd.f32 0.0, %v11098
        %v11100 = vpop.f32.mrb[0].mxu0
        %11101 = vmatprep.mubr.bf16.mxu0 0
        %11102 = vmatmul.mubr.bf16.gmra.mrb[0].mxu0 %v10905
        %v11103 = vpop.f32.mrb[0].mxu0
        %v11104 = vadd.f32 0.0, %v11103
        %v11105 = vpop.f32.mrb[0].mxu0
        %v11106 = vpop.f32.mrb[0].mxu0
        %v11107 = vadd.f32 0.0, %v11106
        %v11108 = vpop.f32.mrb[0].mxu0
        %11109 = vmatprep.mubr.bf16.mxu0 0
        %11110 = vmatmul.mubr.bf16.gmra.mrb[0].mxu0 %v10906
        %v11111 = vpop.f32.mrb[0].mxu0
        %v11112 = vadd.f32 0.0, %v11111
        %v11113 = vpop.f32.mrb[0].mxu0
        %v11114 = vpop.f32.mrb[0].mxu0
        %v11115 = vadd.f32 0.0, %v11114
        %v11116 = vpop.f32.mrb[0].mxu0
        %11117 = vmatprep.mubr.bf16.mxu0 0
        %11118 = vmatmul.mubr.bf16.gmra.mrb[0].mxu0 %v10907
        %v11119 = vpop.f32.mrb[0].mxu0
        %v11120 = vadd.f32 0.0, %v11119
        %v11121 = vpop.f32.mrb[0].mxu0
        %v11122 = vpop.f32.mrb[0].mxu0
        %v11123 = vadd.f32 0.0, %v11122
        %v11124 = vpop.f32.mrb[0].mxu0
        %11125 = vmatprep.mubr.bf16.mxu0 0
        %11126 = vmatmul.mubr.bf16.gmra.mrb[0].mxu0 %v10908
        %v11127 = vpop.f32.mrb[0].mxu0
        %v11128 = vadd.f32 0.0, %v11127
        %v11129 = vpop.f32.mrb[0].mxu0
        %v11130 = vpop.f32.mrb[0].mxu0
        %v11131 = vadd.f32 0.0, %v11130
        %v11132 = vpop.f32.mrb[0].mxu0
        %11133 = vdwg.mxu0
        %v11134 = vadd.f32 %v10747, %v11008
        %v11135 = vadd.f32 %v10748, %v11011
        %v11136 = vadd.f32 %v10749, %v11016
        %v11137 = vadd.f32 %v10750, %v11019
        %v11138 = vadd.f32 %v10751, %v11024
        %v11139 = vadd.f32 %v10752, %v11027
        %v11140 = vadd.f32 %v10753, %v11032
        %v11141 = vadd.f32 %v10754, %v11035
        %v11142 = vadd.f32 %v10755, %v11040
        %v11143 = vadd.f32 %v10756, %v11043
        %v11144 = vadd.f32 %v10757, %v11048
        %v11145 = vadd.f32 %v10758, %v11051
        %v11146 = vadd.f32 %v10759, %v11056
        %v11147 = vadd.f32 %v10760, %v11059
        %v11148 = vadd.f32 %v10761, %v11064
        %v11149 = vadd.f32 %v10762, %v11067
        %v11150 = vadd.f32 %v10763, %v11072
        %v11151 = vadd.f32 %v10764, %v11075
        %v11152 = vadd.f32 %v10765, %v11080
        %v11153 = vadd.f32 %v10766, %v11083
        %v11154 = vadd.f32 %v10767, %v11088
        %v11155 = vadd.f32 %v10768, %v11091
        %v11156 = vadd.f32 %v10769, %v11096
        %v11157 = vadd.f32 %v10770, %v11099
        %v11158 = vadd.f32 %v10771, %v11104
        %v11159 = vadd.f32 %v10772, %v11107
        %v11160 = vadd.f32 %v10773, %v11112
        %v11161 = vadd.f32 %v10774, %v11115
        %v11162 = vadd.f32 %v10775, %v11120
        %v11163 = vadd.f32 %v10776, %v11123
        %v11164 = vadd.f32 %v10777, %v11128
        %v11165 = vadd.f32 %v10778, %v11131
        %v11166 = vld [vmem:[%s10779] sm:$0xf]
        %v11167 = vld [vmem:[%s10779 + $0x4] sm:$0xf]
        %v11168 = vld [vmem:[%s10779 + $0x8] sm:$0x1]
        %v11169 = vld [vmem:[%s10779 + $0xc] sm:$0xf]
        %v11170 = vld [vmem:[%s10779 + $0x10] sm:$0xf]
        %v11171 = vld [vmem:[%s10779 + $0x14] sm:$0x1]
        %v11172 = vld [vmem:[%s10779 + $0x18] sm:$0xf]
        %v11173 = vld [vmem:[%s10779 + $0x1c] sm:$0xf]
        %v11174 = vld [vmem:[%s10779 + $0x20] sm:$0x1]
        %v11175 = vld [vmem:[%s10779 + $0x24] sm:$0xf]
        %v11176 = vld [vmem:[%s10779 + $0x28] sm:$0xf]
        %v11177 = vld [vmem:[%s10779 + $0x2c] sm:$0x1]
        %v11178 = vld [vmem:[%s10779 + $0x30] sm:$0xf]
        %v11179 = vld [vmem:[%s10779 + $0x34] sm:$0xf]
        %v11180 = vld [vmem:[%s10779 + $0x38] sm:$0x1]
        %v11181 = vld [vmem:[%s10779 + $0x3c] sm:$0xf]
        %v11182 = vld [vmem:[%s10779 + $0x40] sm:$0xf]
        %v11183 = vld [vmem:[%s10779 + $0x44] sm:$0x1]
        %v11184 = vld [vmem:[%s10779 + $0x48] sm:$0xf]
        %v11185 = vld [vmem:[%s10779 + $0x4c] sm:$0xf]
        %v11186 = vld [vmem:[%s10779 + $0x50] sm:$0x1]
        %v11187 = vld [vmem:[%s10779 + $0x54] sm:$0xf]
        %v11188 = vld [vmem:[%s10779 + $0x58] sm:$0xf]
        %v11189 = vld [vmem:[%s10779 + $0x5c] sm:$0x1]
        %v11190 = vld [vmem:[%s10779 + $0x60] sm:$0xf]
        %v11191 = vld [vmem:[%s10779 + $0x64] sm:$0xf]
        %v11192 = vld [vmem:[%s10779 + $0x68] sm:$0x1]
        %v11193 = vld [vmem:[%s10779 + $0x6c] sm:$0xf]
        %v11194 = vld [vmem:[%s10779 + $0x70] sm:$0xf]
        %v11195 = vld [vmem:[%s10779 + $0x74] sm:$0x1]
        %v11196 = vld [vmem:[%s10779 + $0x78] sm:$0xf]
        %v11197 = vld [vmem:[%s10779 + $0x7c] sm:$0xf]
        %v11198 = vld [vmem:[%s10779 + $0x80] sm:$0x1]
        %v11199 = vld [vmem:[%s10779 + $0x84] sm:$0xf]
        %v11200 = vld [vmem:[%s10779 + $0x88] sm:$0xf]
        %v11201 = vld [vmem:[%s10779 + $0x8c] sm:$0x1]
        %v11202 = vld [vmem:[%s10779 + $0x90] sm:$0xf]
        %v11203 = vld [vmem:[%s10779 + $0x94] sm:$0xf]
        %v11204 = vld [vmem:[%s10779 + $0x98] sm:$0x1]
        %v11205 = vld [vmem:[%s10779 + $0x9c] sm:$0xf]
        %v11206 = vld [vmem:[%s10779 + $0xa0] sm:$0xf]
        %v11207 = vld [vmem:[%s10779 + $0xa4] sm:$0x1]
        %v11208 = vld [vmem:[%s10779 + $0xa8] sm:$0xf]
        %v11209 = vld [vmem:[%s10779 + $0xac] sm:$0xf]
        %v11210 = vld [vmem:[%s10779 + $0xb0] sm:$0x1]
        %v11211 = vld [vmem:[%s10779 + $0xb4] sm:$0xf]
        %v11212 = vld [vmem:[%s10779 + $0xb8] sm:$0xf]
        %v11213 = vld [vmem:[%s10779 + $0xbc] sm:$0x1]
        %v11215 = vshrl.u32 %v11166, 16
        %v11217 = vrot.slane %v11215, 4
        %v11218 = vshll.u32 %v11166, 16
        %v11220 = vrot.slane %v11218, 5
        %v11221 = vor.u32 %v11217, %v11220
        %v11222 = vrot.slane %v11221, 4
        %v11224 = vshll.u32 %v11167, 16
        %v11226 = vrot.slane %v11224, 5
        %v11227 = vsel %vm1138, %v11222, %v11226
        %v11228 = vshrl.u32 %v11167, 16
        %v11230 = vrot.slane %v11228, 4
        %v11231 = vor.u32 %v11230, %v11226
        %v11232 = vrot.slane %v11231, 4
        %v11234 = vshll.u32 %v11168, 16
        %v11236 = vrot.slane %v11234, 5
        %v11237 = vsel %vm1138, %v11232, %v11236
        %v11239 = vshrl.u32 %v11169, 16
        %v11241 = vrot.slane %v11239, 4
        %v11242 = vshll.u32 %v11169, 16
        %v11244 = vrot.slane %v11242, 5
        %v11245 = vor.u32 %v11241, %v11244
        %v11246 = vrot.slane %v11245, 4
        %v11248 = vshll.u32 %v11170, 16
        %v11250 = vrot.slane %v11248, 5
        %v11251 = vsel %vm1138, %v11246, %v11250
        %v11252 = vshrl.u32 %v11170, 16
        %v11254 = vrot.slane %v11252, 4
        %v11255 = vor.u32 %v11254, %v11250
        %v11256 = vrot.slane %v11255, 4
        %v11258 = vshll.u32 %v11171, 16
        %v11260 = vrot.slane %v11258, 5
        %v11261 = vsel %vm1138, %v11256, %v11260
        %v11263 = vshrl.u32 %v11172, 16
        %v11265 = vrot.slane %v11263, 4
        %v11266 = vshll.u32 %v11172, 16
        %v11268 = vrot.slane %v11266, 5
        %v11269 = vor.u32 %v11265, %v11268
        %v11270 = vrot.slane %v11269, 4
        %v11272 = vshll.u32 %v11173, 16
        %v11274 = vrot.slane %v11272, 5
        %v11275 = vsel %vm1138, %v11270, %v11274
        %v11276 = vshrl.u32 %v11173, 16
        %v11278 = vrot.slane %v11276, 4
        %v11279 = vor.u32 %v11278, %v11274
        %v11280 = vrot.slane %v11279, 4
        %v11282 = vshll.u32 %v11174, 16
        %v11284 = vrot.slane %v11282, 5
        %v11285 = vsel %vm1138, %v11280, %v11284
        %v11287 = vshrl.u32 %v11175, 16
        %v11289 = vrot.slane %v11287, 4
        %v11290 = vshll.u32 %v11175, 16
        %v11292 = vrot.slane %v11290, 5
        %v11293 = vor.u32 %v11289, %v11292
        %v11294 = vrot.slane %v11293, 4
        %v11296 = vshll.u32 %v11176, 16
        %v11298 = vrot.slane %v11296, 5
        %v11299 = vsel %vm1138, %v11294, %v11298
        %v11300 = vshrl.u32 %v11176, 16
        %v11302 = vrot.slane %v11300, 4
        %v11303 = vor.u32 %v11302, %v11298
        %v11304 = vrot.slane %v11303, 4
        %v11306 = vshll.u32 %v11177, 16
        %v11308 = vrot.slane %v11306, 5
        %v11309 = vsel %vm1138, %v11304, %v11308
        %v11311 = vshrl.u32 %v11178, 16
        %v11313 = vrot.slane %v11311, 4
        %v11314 = vshll.u32 %v11178, 16
        %v11316 = vrot.slane %v11314, 5
        %v11317 = vor.u32 %v11313, %v11316
        %v11318 = vrot.slane %v11317, 4
        %v11320 = vshll.u32 %v11179, 16
        %v11322 = vrot.slane %v11320, 5
        %v11323 = vsel %vm1138, %v11318, %v11322
        %v11324 = vshrl.u32 %v11179, 16
        %v11326 = vrot.slane %v11324, 4
        %v11327 = vor.u32 %v11326, %v11322
        %v11328 = vrot.slane %v11327, 4
        %v11330 = vshll.u32 %v11180, 16
        %v11332 = vrot.slane %v11330, 5
        %v11333 = vsel %vm1138, %v11328, %v11332
        %v11335 = vshrl.u32 %v11181, 16
        %v11337 = vrot.slane %v11335, 4
        %v11338 = vshll.u32 %v11181, 16
        %v11340 = vrot.slane %v11338, 5
        %v11341 = vor.u32 %v11337, %v11340
        %v11342 = vrot.slane %v11341, 4
        %v11344 = vshll.u32 %v11182, 16
        %v11346 = vrot.slane %v11344, 5
        %v11347 = vsel %vm1138, %v11342, %v11346
        %v11348 = vshrl.u32 %v11182, 16
        %v11350 = vrot.slane %v11348, 4
        %v11351 = vor.u32 %v11350, %v11346
        %v11352 = vrot.slane %v11351, 4
        %v11354 = vshll.u32 %v11183, 16
        %v11356 = vrot.slane %v11354, 5
        %v11357 = vsel %vm1138, %v11352, %v11356
        %v11359 = vshrl.u32 %v11184, 16
        %v11361 = vrot.slane %v11359, 4
        %v11362 = vshll.u32 %v11184, 16
        %v11364 = vrot.slane %v11362, 5
        %v11365 = vor.u32 %v11361, %v11364
        %v11366 = vrot.slane %v11365, 4
        %v11368 = vshll.u32 %v11185, 16
        %v11370 = vrot.slane %v11368, 5
        %v11371 = vsel %vm1138, %v11366, %v11370
        %v11372 = vshrl.u32 %v11185, 16
        %v11374 = vrot.slane %v11372, 4
        %v11375 = vor.u32 %v11374, %v11370
        %v11376 = vrot.slane %v11375, 4
        %v11378 = vshll.u32 %v11186, 16
        %v11380 = vrot.slane %v11378, 5
        %v11381 = vsel %vm1138, %v11376, %v11380
        %v11383 = vshrl.u32 %v11187, 16
        %v11385 = vrot.slane %v11383, 4
        %v11386 = vshll.u32 %v11187, 16
        %v11388 = vrot.slane %v11386, 5
        %v11389 = vor.u32 %v11385, %v11388
        %v11390 = vrot.slane %v11389, 4
        %v11392 = vshll.u32 %v11188, 16
        %v11394 = vrot.slane %v11392, 5
        %v11395 = vsel %vm1138, %v11390, %v11394
        %v11396 = vshrl.u32 %v11188, 16
        %v11398 = vrot.slane %v11396, 4
        %v11399 = vor.u32 %v11398, %v11394
        %v11400 = vrot.slane %v11399, 4
        %v11402 = vshll.u32 %v11189, 16
        %v11404 = vrot.slane %v11402, 5
        %v11405 = vsel %vm1138, %v11400, %v11404
        %v11407 = vshrl.u32 %v11190, 16
        %v11409 = vrot.slane %v11407, 4
        %v11410 = vshll.u32 %v11190, 16
        %v11412 = vrot.slane %v11410, 5
        %v11413 = vor.u32 %v11409, %v11412
        %v11414 = vrot.slane %v11413, 4
        %v11416 = vshll.u32 %v11191, 16
        %v11418 = vrot.slane %v11416, 5
        %v11419 = vsel %vm1138, %v11414, %v11418
        %v11420 = vshrl.u32 %v11191, 16
        %v11422 = vrot.slane %v11420, 4
        %v11423 = vor.u32 %v11422, %v11418
        %v11424 = vrot.slane %v11423, 4
        %v11426 = vshll.u32 %v11192, 16
        %v11428 = vrot.slane %v11426, 5
        %v11429 = vsel %vm1138, %v11424, %v11428
        %v11431 = vshrl.u32 %v11193, 16
        %v11433 = vrot.slane %v11431, 4
        %v11434 = vshll.u32 %v11193, 16
        %v11436 = vrot.slane %v11434, 5
        %v11437 = vor.u32 %v11433, %v11436
        %v11438 = vrot.slane %v11437, 4
        %v11440 = vshll.u32 %v11194, 16
        %v11442 = vrot.slane %v11440, 5
        %v11443 = vsel %vm1138, %v11438, %v11442
        %v11444 = vshrl.u32 %v11194, 16
        %v11446 = vrot.slane %v11444, 4
        %v11447 = vor.u32 %v11446, %v11442
        %v11448 = vrot.slane %v11447, 4
        %v11450 = vshll.u32 %v11195, 16
        %v11452 = vrot.slane %v11450, 5
        %v11453 = vsel %vm1138, %v11448, %v11452
        %v11455 = vshrl.u32 %v11196, 16
        %v11457 = vrot.slane %v11455, 4
        %v11458 = vshll.u32 %v11196, 16
        %v11460 = vrot.slane %v11458, 5
        %v11461 = vor.u32 %v11457, %v11460
        %v11462 = vrot.slane %v11461, 4
        %v11464 = vshll.u32 %v11197, 16
        %v11466 = vrot.slane %v11464, 5
        %v11467 = vsel %vm1138, %v11462, %v11466
        %v11468 = vshrl.u32 %v11197, 16
        %v11470 = vrot.slane %v11468, 4
        %v11471 = vor.u32 %v11470, %v11466
        %v11472 = vrot.slane %v11471, 4
        %v11474 = vshll.u32 %v11198, 16
        %v11476 = vrot.slane %v11474, 5
        %v11477 = vsel %vm1138, %v11472, %v11476
        %v11479 = vshrl.u32 %v11199, 16
        %v11481 = vrot.slane %v11479, 4
        %v11482 = vshll.u32 %v11199, 16
        %v11484 = vrot.slane %v11482, 5
        %v11485 = vor.u32 %v11481, %v11484
        %v11486 = vrot.slane %v11485, 4
        %v11488 = vshll.u32 %v11200, 16
        %v11490 = vrot.slane %v11488, 5
        %v11491 = vsel %vm1138, %v11486, %v11490
        %v11492 = vshrl.u32 %v11200, 16
        %v11494 = vrot.slane %v11492, 4
        %v11495 = vor.u32 %v11494, %v11490
        %v11496 = vrot.slane %v11495, 4
        %v11498 = vshll.u32 %v11201, 16
        %v11500 = vrot.slane %v11498, 5
        %v11501 = vsel %vm1138, %v11496, %v11500
        %v11503 = vshrl.u32 %v11202, 16
        %v11505 = vrot.slane %v11503, 4
        %v11506 = vshll.u32 %v11202, 16
        %v11508 = vrot.slane %v11506, 5
        %v11509 = vor.u32 %v11505, %v11508
        %v11510 = vrot.slane %v11509, 4
        %v11512 = vshll.u32 %v11203, 16
        %v11514 = vrot.slane %v11512, 5
        %v11515 = vsel %vm1138, %v11510, %v11514
        %v11516 = vshrl.u32 %v11203, 16
        %v11518 = vrot.slane %v11516, 4
        %v11519 = vor.u32 %v11518, %v11514
        %v11520 = vrot.slane %v11519, 4
        %v11522 = vshll.u32 %v11204, 16
        %v11524 = vrot.slane %v11522, 5
        %v11525 = vsel %vm1138, %v11520, %v11524
        %v11527 = vshrl.u32 %v11205, 16
        %v11529 = vrot.slane %v11527, 4
        %v11530 = vshll.u32 %v11205, 16
        %v11532 = vrot.slane %v11530, 5
        %v11533 = vor.u32 %v11529, %v11532
        %v11534 = vrot.slane %v11533, 4
        %v11536 = vshll.u32 %v11206, 16
        %v11538 = vrot.slane %v11536, 5
        %v11539 = vsel %vm1138, %v11534, %v11538
        %v11540 = vshrl.u32 %v11206, 16
        %v11542 = vrot.slane %v11540, 4
        %v11543 = vor.u32 %v11542, %v11538
        %v11544 = vrot.slane %v11543, 4
        %v11546 = vshll.u32 %v11207, 16
        %v11548 = vrot.slane %v11546, 5
        %v11549 = vsel %vm1138, %v11544, %v11548
        %v11551 = vshrl.u32 %v11208, 16
        %v11553 = vrot.slane %v11551, 4
        %v11554 = vshll.u32 %v11208, 16
        %v11556 = vrot.slane %v11554, 5
        %v11557 = vor.u32 %v11553, %v11556
        %v11558 = vrot.slane %v11557, 4
        %v11560 = vshll.u32 %v11209, 16
        %v11562 = vrot.slane %v11560, 5
        %v11563 = vsel %vm1138, %v11558, %v11562
        %v11564 = vshrl.u32 %v11209, 16
        %v11566 = vrot.slane %v11564, 4
        %v11567 = vor.u32 %v11566, %v11562
        %v11568 = vrot.slane %v11567, 4
        %v11570 = vshll.u32 %v11210, 16
        %v11572 = vrot.slane %v11570, 5
        %v11573 = vsel %vm1138, %v11568, %v11572
        %v11575 = vshrl.u32 %v11211, 16
        %v11577 = vrot.slane %v11575, 4
        %v11578 = vshll.u32 %v11211, 16
        %v11580 = vrot.slane %v11578, 5
        %v11581 = vor.u32 %v11577, %v11580
        %v11582 = vrot.slane %v11581, 4
        %v11584 = vshll.u32 %v11212, 16
        %v11586 = vrot.slane %v11584, 5
        %v11587 = vsel %vm1138, %v11582, %v11586
        %v11588 = vshrl.u32 %v11212, 16
        %v11590 = vrot.slane %v11588, 4
        %v11591 = vor.u32 %v11590, %v11586
        %v11592 = vrot.slane %v11591, 4
        %v11594 = vshll.u32 %v11213, 16
        %v11596 = vrot.slane %v11594, 5
        %v11597 = vsel %vm1138, %v11592, %v11596
        %s11598 = scalar_lea.vmem [#allocation9], 448
        %v11599 = vld [vmem:[%s11598] sm:$0xf]
        %v11600 = vld [vmem:[%s11598 + $0x4] sm:$0xf]
        %v11601 = vld [vmem:[%s11598 + $0x8] sm:$0xf]
        %v11602 = vld [vmem:[%s11598 + $0xc] sm:$0xf]
        %v11603 = vld [vmem:[%s11598 + $0x10] sm:$0xf]
        %v11604 = vld [vmem:[%s11598 + $0x14] sm:$0xf]
        %v11605 = vld [vmem:[%s11598 + $0x18] sm:$0xf]
        %v11606 = vld [vmem:[%s11598 + $0x1c] sm:$0xf]
        %v11607 = vld [vmem:[%s11598 + $0x20] sm:$0xf]
        %v11608 = vld [vmem:[%s11598 + $0x24] sm:$0xf]
        %v11609 = vld [vmem:[%s11598 + $0x28] sm:$0xf]
        %v11610 = vld [vmem:[%s11598 + $0x2c] sm:$0xf]
        %v11611 = vld [vmem:[%s11598 + $0x30] sm:$0xf]
        %v11612 = vld [vmem:[%s11598 + $0x34] sm:$0xf]
        %v11613 = vld [vmem:[%s11598 + $0x38] sm:$0xf]
        %v11614 = vld [vmem:[%s11598 + $0x3c] sm:$0xf]
        %v11615 = vunpack.c.l.b16 %v11227
        %v11616 = vunpack.c.l.b16 %v11237
        %v11617 = vunpack.c.l.b16 %v11251
        %v11618 = vunpack.c.l.b16 %v11261
        %v11619 = vunpack.c.l.b16 %v11275
        %v11620 = vunpack.c.l.b16 %v11285
        %v11621 = vunpack.c.l.b16 %v11299
        %v11622 = vunpack.c.l.b16 %v11309
        %v11623 = vunpack.c.l.b16 %v11323
        %v11624 = vunpack.c.l.b16 %v11333
        %v11625 = vunpack.c.l.b16 %v11347
        %v11626 = vunpack.c.l.b16 %v11357
        %v11627 = vunpack.c.l.b16 %v11371
        %v11628 = vunpack.c.l.b16 %v11381
        %v11629 = vunpack.c.l.b16 %v11395
        %v11630 = vunpack.c.l.b16 %v11405
        %v11631 = vunpack.c.l.b16 %v11419
        %v11632 = vunpack.c.l.b16 %v11429
        %v11633 = vunpack.c.l.b16 %v11443
        %v11634 = vunpack.c.l.b16 %v11453
        %v11635 = vunpack.c.l.b16 %v11467
        %v11636 = vunpack.c.l.b16 %v11477
        %v11637 = vunpack.c.l.b16 %v11491
        %v11638 = vunpack.c.l.b16 %v11501
        %v11639 = vunpack.c.l.b16 %v11515
        %v11640 = vunpack.c.l.b16 %v11525
        %v11641 = vunpack.c.l.b16 %v11539
        %v11642 = vunpack.c.l.b16 %v11549
        %v11643 = vunpack.c.l.b16 %v11563
        %v11644 = vunpack.c.l.b16 %v11573
        %v11645 = vunpack.c.l.b16 %v11587
        %v11646 = vunpack.c.l.b16 %v11597
        %v11647 = vpack.c.b16 %v11616, %v11615
        %v11648 = vpack.c.b16 %v11618, %v11617
        %v11649 = vpack.c.b16 %v11620, %v11619
        %v11650 = vpack.c.b16 %v11622, %v11621
        %v11651 = vpack.c.b16 %v11624, %v11623
        %v11652 = vpack.c.b16 %v11626, %v11625
        %v11653 = vpack.c.b16 %v11628, %v11627
        %v11654 = vpack.c.b16 %v11630, %v11629
        %v11655 = vpack.c.b16 %v11632, %v11631
        %v11656 = vpack.c.b16 %v11634, %v11633
        %v11657 = vpack.c.b16 %v11636, %v11635
        %v11658 = vpack.c.b16 %v11638, %v11637
        %v11659 = vpack.c.b16 %v11640, %v11639
        %v11660 = vpack.c.b16 %v11642, %v11641
        %v11661 = vpack.c.b16 %v11644, %v11643
        %v11662 = vpack.c.b16 %v11646, %v11645
        %v11695 = vunpack.c.l.b16 %v11599
        %v11696 = vunpack.c.l.b16 %v11600
        %v11697 = vunpack.c.l.b16 %v11601
        %v11698 = vunpack.c.l.b16 %v11602
        %v11699 = vunpack.c.l.b16 %v11603
        %v11700 = vunpack.c.l.b16 %v11604
        %v11701 = vunpack.c.l.b16 %v11605
        %v11702 = vunpack.c.l.b16 %v11606
        %v11703 = vunpack.c.l.b16 %v11607
        %v11704 = vunpack.c.l.b16 %v11608
        %v11705 = vunpack.c.l.b16 %v11609
        %v11706 = vunpack.c.l.b16 %v11610
        %v11707 = vunpack.c.l.b16 %v11611
        %v11708 = vunpack.c.l.b16 %v11612
        %v11709 = vunpack.c.l.b16 %v11613
        %v11710 = vunpack.c.l.b16 %v11614
        %v11711 = vpack.c.b16 %v11696, %v11695
        %v11712 = vpack.c.b16 %v11698, %v11697
        %v11713 = vpack.c.b16 %v11700, %v11699
        %v11714 = vpack.c.b16 %v11702, %v11701
        %v11715 = vpack.c.b16 %v11704, %v11703
        %v11716 = vpack.c.b16 %v11706, %v11705
        %v11717 = vpack.c.b16 %v11708, %v11707
        %v11718 = vpack.c.b16 %v11710, %v11709
        %11727 = vmatprep.subr.bf16.mxu0 0
        %11728 = vmatpush1.bf16.msra.mxu0 %v11711
        %11729 = vmatprep.subr.bf16.mxu0 0
        %11730 = vmatpush1.bf16.msra.mxu0 %v11712
        %11731 = vmatprep.subr.bf16.mxu0 0
        %11732 = vmatpush1.bf16.msra.mxu0 %v11713
        %11733 = vmatprep.subr.bf16.mxu0 0
        %11734 = vmatpush1.bf16.msra.mxu0 %v11714
        %11735 = vmatprep.subr.bf16.mxu0 0
        %11736 = vmatpush1.bf16.msra.mxu0 %v11715
        %11737 = vmatprep.subr.bf16.mxu0 0
        %11738 = vmatpush1.bf16.msra.mxu0 %v11716
        %11739 = vmatprep.subr.bf16.mxu0 0
        %11740 = vmatpush1.bf16.msra.mxu0 %v11717
        %11741 = vmatprep.subr.bf16.mxu0 0
        %11742 = vmatpush1.bf16.msra.mxu0 %v11718
        %11743 = vmatprep.subr.bf16.mxu0 0
        %11744 = vmatpush1.bf16.msra.mxu0 0
        %11745 = vmatprep.subr.bf16.mxu0 0
        %11746 = vmatpush1.bf16.msra.mxu0 0
        %11747 = vmatprep.subr.bf16.mxu0 0
        %11748 = vmatpush1.bf16.msra.mxu0 0
        %11749 = vmatprep.subr.bf16.mxu0 0
        %11750 = vmatpush1.bf16.msra.mxu0 0
        %11751 = vmatprep.subr.bf16.mxu0 0
        %11752 = vmatpush1.bf16.msra.mxu0 0
        %11753 = vmatprep.subr.bf16.mxu0 0
        %11754 = vmatpush1.bf16.msra.mxu0 0
        %11755 = vmatprep.subr.bf16.mxu0 0
        %11756 = vmatpush1.bf16.msra.mxu0 0
        %11757 = vmatprep.subr.bf16.mxu0 0
        %11758 = vmatpush1.bf16.msra.mxu0 0
        %11759 = vmatprep.mubr.bf16.mxu0 0
        %11760 = vmatmul.mubr.bf16.gmra.mrb[0].mxu0 %v11647
        %v11761 = vpop.f32.mrb[0].mxu0
        %v11762 = vadd.f32 0.0, %v11761
        %v11763 = vpop.f32.mrb[0].mxu0
        %v11764 = vpop.f32.mrb[0].mxu0
        %v11765 = vadd.f32 0.0, %v11764
        %v11766 = vpop.f32.mrb[0].mxu0
        %11767 = vmatprep.mubr.bf16.mxu0 0
        %11768 = vmatmul.mubr.bf16.gmra.mrb[0].mxu0 %v11648
        %v11769 = vpop.f32.mrb[0].mxu0
        %v11770 = vadd.f32 0.0, %v11769
        %v11771 = vpop.f32.mrb[0].mxu0
        %v11772 = vpop.f32.mrb[0].mxu0
        %v11773 = vadd.f32 0.0, %v11772
        %v11774 = vpop.f32.mrb[0].mxu0
        %11775 = vmatprep.mubr.bf16.mxu0 0
        %11776 = vmatmul.mubr.bf16.gmra.mrb[0].mxu0 %v11649
        %v11777 = vpop.f32.mrb[0].mxu0
        %v11778 = vadd.f32 0.0, %v11777
        %v11779 = vpop.f32.mrb[0].mxu0
        %v11780 = vpop.f32.mrb[0].mxu0
        %v11781 = vadd.f32 0.0, %v11780
        %v11782 = vpop.f32.mrb[0].mxu0
        %11783 = vmatprep.mubr.bf16.mxu0 0
        %11784 = vmatmul.mubr.bf16.gmra.mrb[0].mxu0 %v11650
        %v11785 = vpop.f32.mrb[0].mxu0
        %v11786 = vadd.f32 0.0, %v11785
        %v11787 = vpop.f32.mrb[0].mxu0
        %v11788 = vpop.f32.mrb[0].mxu0
        %v11789 = vadd.f32 0.0, %v11788
        %v11790 = vpop.f32.mrb[0].mxu0
        %11791 = vmatprep.mubr.bf16.mxu0 0
        %11792 = vmatmul.mubr.bf16.gmra.mrb[0].mxu0 %v11651
        %v11793 = vpop.f32.mrb[0].mxu0
        %v11794 = vadd.f32 0.0, %v11793
        %v11795 = vpop.f32.mrb[0].mxu0
        %v11796 = vpop.f32.mrb[0].mxu0
        %v11797 = vadd.f32 0.0, %v11796
        %v11798 = vpop.f32.mrb[0].mxu0
        %11799 = vmatprep.mubr.bf16.mxu0 0
        %11800 = vmatmul.mubr.bf16.gmra.mrb[0].mxu0 %v11652
        %v11801 = vpop.f32.mrb[0].mxu0
        %v11802 = vadd.f32 0.0, %v11801
        %v11803 = vpop.f32.mrb[0].mxu0
        %v11804 = vpop.f32.mrb[0].mxu0
        %v11805 = vadd.f32 0.0, %v11804
        %v11806 = vpop.f32.mrb[0].mxu0
        %11807 = vmatprep.mubr.bf16.mxu0 0
        %11808 = vmatmul.mubr.bf16.gmra.mrb[0].mxu0 %v11653
        %v11809 = vpop.f32.mrb[0].mxu0
        %v11810 = vadd.f32 0.0, %v11809
        %v11811 = vpop.f32.mrb[0].mxu0
        %v11812 = vpop.f32.mrb[0].mxu0
        %v11813 = vadd.f32 0.0, %v11812
        %v11814 = vpop.f32.mrb[0].mxu0
        %11815 = vmatprep.mubr.bf16.mxu0 0
        %11816 = vmatmul.mubr.bf16.gmra.mrb[0].mxu0 %v11654
        %v11817 = vpop.f32.mrb[0].mxu0
        %v11818 = vadd.f32 0.0, %v11817
        %v11819 = vpop.f32.mrb[0].mxu0
        %v11820 = vpop.f32.mrb[0].mxu0
        %v11821 = vadd.f32 0.0, %v11820
        %v11822 = vpop.f32.mrb[0].mxu0
        %11823 = vmatprep.mubr.bf16.mxu0 0
        %11824 = vmatmul.mubr.bf16.gmra.mrb[0].mxu0 %v11655
        %v11825 = vpop.f32.mrb[0].mxu0
        %v11826 = vadd.f32 0.0, %v11825
        %v11827 = vpop.f32.mrb[0].mxu0
        %v11828 = vpop.f32.mrb[0].mxu0
        %v11829 = vadd.f32 0.0, %v11828
        %v11830 = vpop.f32.mrb[0].mxu0
        %11831 = vmatprep.mubr.bf16.mxu0 0
        %11832 = vmatmul.mubr.bf16.gmra.mrb[0].mxu0 %v11656
        %v11833 = vpop.f32.mrb[0].mxu0
        %v11834 = vadd.f32 0.0, %v11833
        %v11835 = vpop.f32.mrb[0].mxu0
        %v11836 = vpop.f32.mrb[0].mxu0
        %v11837 = vadd.f32 0.0, %v11836
        %v11838 = vpop.f32.mrb[0].mxu0
        %11839 = vmatprep.mubr.bf16.mxu0 0
        %11840 = vmatmul.mubr.bf16.gmra.mrb[0].mxu0 %v11657
        %v11841 = vpop.f32.mrb[0].mxu0
        %v11842 = vadd.f32 0.0, %v11841
        %v11843 = vpop.f32.mrb[0].mxu0
        %v11844 = vpop.f32.mrb[0].mxu0
        %v11845 = vadd.f32 0.0, %v11844
        %v11846 = vpop.f32.mrb[0].mxu0
        %11847 = vmatprep.mubr.bf16.mxu0 0
        %11848 = vmatmul.mubr.bf16.gmra.mrb[0].mxu0 %v11658
        %v11849 = vpop.f32.mrb[0].mxu0
        %v11850 = vadd.f32 0.0, %v11849
        %v11851 = vpop.f32.mrb[0].mxu0
        %v11852 = vpop.f32.mrb[0].mxu0
        %v11853 = vadd.f32 0.0, %v11852
        %v11854 = vpop.f32.mrb[0].mxu0
        %11855 = vmatprep.mubr.bf16.mxu0 0
        %11856 = vmatmul.mubr.bf16.gmra.mrb[0].mxu0 %v11659
        %v11857 = vpop.f32.mrb[0].mxu0
        %v11858 = vadd.f32 0.0, %v11857
        %v11859 = vpop.f32.mrb[0].mxu0
        %v11860 = vpop.f32.mrb[0].mxu0
        %v11861 = vadd.f32 0.0, %v11860
        %v11862 = vpop.f32.mrb[0].mxu0
        %11863 = vmatprep.mubr.bf16.mxu0 0
        %11864 = vmatmul.mubr.bf16.gmra.mrb[0].mxu0 %v11660
        %v11865 = vpop.f32.mrb[0].mxu0
        %v11866 = vadd.f32 0.0, %v11865
        %v11867 = vpop.f32.mrb[0].mxu0
        %v11868 = vpop.f32.mrb[0].mxu0
        %v11869 = vadd.f32 0.0, %v11868
        %v11870 = vpop.f32.mrb[0].mxu0
        %11871 = vmatprep.mubr.bf16.mxu0 0
        %11872 = vmatmul.mubr.bf16.gmra.mrb[0].mxu0 %v11661
        %v11873 = vpop.f32.mrb[0].mxu0
        %v11874 = vadd.f32 0.0, %v11873
        %v11875 = vpop.f32.mrb[0].mxu0
        %v11876 = vpop.f32.mrb[0].mxu0
        %v11877 = vadd.f32 0.0, %v11876
        %v11878 = vpop.f32.mrb[0].mxu0
        %11879 = vmatprep.mubr.bf16.mxu0 0
        %11880 = vmatmul.mubr.bf16.gmra.mrb[0].mxu0 %v11662
        %v11881 = vpop.f32.mrb[0].mxu0
        %v11882 = vadd.f32 0.0, %v11881
        %v11883 = vpop.f32.mrb[0].mxu0
        %v11884 = vpop.f32.mrb[0].mxu0
        %v11885 = vadd.f32 0.0, %v11884
        %v11886 = vpop.f32.mrb[0].mxu0
        %11887 = vdwg.mxu0
        %v11888 = vadd.f32 %v11134, %v11762
        %v11889 = vadd.f32 %v11135, %v11765
        %v11890 = vadd.f32 %v11136, %v11770
        %v11891 = vadd.f32 %v11137, %v11773
        %v11892 = vadd.f32 %v11138, %v11778
        %v11893 = vadd.f32 %v11139, %v11781
        %v11894 = vadd.f32 %v11140, %v11786
        %v11895 = vadd.f32 %v11141, %v11789
        %v11896 = vadd.f32 %v11142, %v11794
        %v11897 = vadd.f32 %v11143, %v11797
        %v11898 = vadd.f32 %v11144, %v11802
        %v11899 = vadd.f32 %v11145, %v11805
        %v11900 = vadd.f32 %v11146, %v11810
        %v11901 = vadd.f32 %v11147, %v11813
        %v11902 = vadd.f32 %v11148, %v11818
        %v11903 = vadd.f32 %v11149, %v11821
        %v11904 = vadd.f32 %v11150, %v11826
        %v11905 = vadd.f32 %v11151, %v11829
        %v11906 = vadd.f32 %v11152, %v11834
        %v11907 = vadd.f32 %v11153, %v11837
        %v11908 = vadd.f32 %v11154, %v11842
        %v11909 = vadd.f32 %v11155, %v11845
        %v11910 = vadd.f32 %v11156, %v11850
        %v11911 = vadd.f32 %v11157, %v11853
        %v11912 = vadd.f32 %v11158, %v11858
        %v11913 = vadd.f32 %v11159, %v11861
        %v11914 = vadd.f32 %v11160, %v11866
        %v11915 = vadd.f32 %v11161, %v11869
        %v11916 = vadd.f32 %v11162, %v11874
        %v11917 = vadd.f32 %v11163, %v11877
        %v11918 = vadd.f32 %v11164, %v11882
        %v11919 = vadd.f32 %v11165, %v11885
        %v11920 = vld [vmem:[%s10779] sm:$0xe]
        %v11921 = vld [vmem:[%s10779 + $0xc] sm:$0xe]
        %v11922 = vld [vmem:[%s10779 + $0x18] sm:$0xe]
        %v11923 = vld [vmem:[%s10779 + $0x24] sm:$0xe]
        %v11924 = vld [vmem:[%s10779 + $0x30] sm:$0xe]
        %v11925 = vld [vmem:[%s10779 + $0x3c] sm:$0xe]
        %v11926 = vld [vmem:[%s10779 + $0x48] sm:$0xe]
        %v11927 = vld [vmem:[%s10779 + $0x54] sm:$0xe]
        %v11928 = vld [vmem:[%s10779 + $0x60] sm:$0xe]
        %v11929 = vld [vmem:[%s10779 + $0x6c] sm:$0xe]
        %v11930 = vld [vmem:[%s10779 + $0x78] sm:$0xe]
        %v11931 = vld [vmem:[%s10779 + $0x84] sm:$0xe]
        %v11932 = vld [vmem:[%s10779 + $0x90] sm:$0xe]
        %v11933 = vld [vmem:[%s10779 + $0x9c] sm:$0xe]
        %v11934 = vld [vmem:[%s10779 + $0xa8] sm:$0xe]
        %v11935 = vld [vmem:[%s10779 + $0xb4] sm:$0xe]
        %v11984 = vrot.slane %v11920, 5
        %v11985 = vrot.slane %v11984, 4
        %v11986 = vrot.slane %v11167, 5
        %v11987 = vsel %vm2408, %v11985, %v11986
        %v11988 = vrot.slane %v11986, 4
        %v11989 = vrot.slane %v11168, 5
        %v11990 = vsel %vm2408, %v11988, %v11989
        %v11991 = vrot.slane %v11921, 5
        %v11992 = vrot.slane %v11991, 4
        %v11993 = vrot.slane %v11170, 5
        %v11994 = vsel %vm2408, %v11992, %v11993
        %v11995 = vrot.slane %v11993, 4
        %v11996 = vrot.slane %v11171, 5
        %v11997 = vsel %vm2408, %v11995, %v11996
        %v11998 = vrot.slane %v11922, 5
        %v11999 = vrot.slane %v11998, 4
        %v12000 = vrot.slane %v11173, 5
        %v12001 = vsel %vm2408, %v11999, %v12000
        %v12002 = vrot.slane %v12000, 4
        %v12003 = vrot.slane %v11174, 5
        %v12004 = vsel %vm2408, %v12002, %v12003
        %v12005 = vrot.slane %v11923, 5
        %v12006 = vrot.slane %v12005, 4
        %v12007 = vrot.slane %v11176, 5
        %v12008 = vsel %vm2408, %v12006, %v12007
        %v12009 = vrot.slane %v12007, 4
        %v12010 = vrot.slane %v11177, 5
        %v12011 = vsel %vm2408, %v12009, %v12010
        %v12012 = vrot.slane %v11924, 5
        %v12013 = vrot.slane %v12012, 4
        %v12014 = vrot.slane %v11179, 5
        %v12015 = vsel %vm2408, %v12013, %v12014
        %v12016 = vrot.slane %v12014, 4
        %v12017 = vrot.slane %v11180, 5
        %v12018 = vsel %vm2408, %v12016, %v12017
        %v12019 = vrot.slane %v11925, 5
        %v12020 = vrot.slane %v12019, 4
        %v12021 = vrot.slane %v11182, 5
        %v12022 = vsel %vm2408, %v12020, %v12021
        %v12023 = vrot.slane %v12021, 4
        %v12024 = vrot.slane %v11183, 5
        %v12025 = vsel %vm2408, %v12023, %v12024
        %v12026 = vrot.slane %v11926, 5
        %v12027 = vrot.slane %v12026, 4
        %v12028 = vrot.slane %v11185, 5
        %v12029 = vsel %vm2408, %v12027, %v12028
        %v12030 = vrot.slane %v12028, 4
        %v12031 = vrot.slane %v11186, 5
        %v12032 = vsel %vm2408, %v12030, %v12031
        %v12033 = vrot.slane %v11927, 5
        %v12034 = vrot.slane %v12033, 4
        %v12035 = vrot.slane %v11188, 5
        %v12036 = vsel %vm2408, %v12034, %v12035
        %v12037 = vrot.slane %v12035, 4
        %v12038 = vrot.slane %v11189, 5
        %v12039 = vsel %vm2408, %v12037, %v12038
        %v12040 = vrot.slane %v11928, 5
        %v12041 = vrot.slane %v12040, 4
        %v12042 = vrot.slane %v11191, 5
        %v12043 = vsel %vm2408, %v12041, %v12042
        %v12044 = vrot.slane %v12042, 4
        %v12045 = vrot.slane %v11192, 5
        %v12046 = vsel %vm2408, %v12044, %v12045
        %v12047 = vrot.slane %v11929, 5
        %v12048 = vrot.slane %v12047, 4
        %v12049 = vrot.slane %v11194, 5
        %v12050 = vsel %vm2408, %v12048, %v12049
        %v12051 = vrot.slane %v12049, 4
        %v12052 = vrot.slane %v11195, 5
        %v12053 = vsel %vm2408, %v12051, %v12052
        %v12054 = vrot.slane %v11930, 5
        %v12055 = vrot.slane %v12054, 4
        %v12056 = vrot.slane %v11197, 5
        %v12057 = vsel %vm2408, %v12055, %v12056
        %v12058 = vrot.slane %v12056, 4
        %v12059 = vrot.slane %v11198, 5
        %v12060 = vsel %vm2408, %v12058, %v12059
        %v12061 = vrot.slane %v11931, 5
        %v12062 = vrot.slane %v12061, 4
        %v12063 = vrot.slane %v11200, 5
        %v12064 = vsel %vm2408, %v12062, %v12063
        %v12065 = vrot.slane %v12063, 4
        %v12066 = vrot.slane %v11201, 5
        %v12067 = vsel %vm2408, %v12065, %v12066
        %v12068 = vrot.slane %v11932, 5
        %v12069 = vrot.slane %v12068, 4
        %v12070 = vrot.slane %v11203, 5
        %v12071 = vsel %vm2408, %v12069, %v12070
        %v12072 = vrot.slane %v12070, 4
        %v12073 = vrot.slane %v11204, 5
        %v12074 = vsel %vm2408, %v12072, %v12073
        %v12075 = vrot.slane %v11933, 5
        %v12076 = vrot.slane %v12075, 4
        %v12077 = vrot.slane %v11206, 5
        %v12078 = vsel %vm2408, %v12076, %v12077
        %v12079 = vrot.slane %v12077, 4
        %v12080 = vrot.slane %v11207, 5
        %v12081 = vsel %vm2408, %v12079, %v12080
        %v12082 = vrot.slane %v11934, 5
        %v12083 = vrot.slane %v12082, 4
        %v12084 = vrot.slane %v11209, 5
        %v12085 = vsel %vm2408, %v12083, %v12084
        %v12086 = vrot.slane %v12084, 4
        %v12087 = vrot.slane %v11210, 5
        %v12088 = vsel %vm2408, %v12086, %v12087
        %v12089 = vrot.slane %v11935, 5
        %v12090 = vrot.slane %v12089, 4
        %v12091 = vrot.slane %v11212, 5
        %v12092 = vsel %vm2408, %v12090, %v12091
        %v12093 = vrot.slane %v12091, 4
        %v12094 = vrot.slane %v11213, 5
        %v12095 = vsel %vm2408, %v12093, %v12094
        %s12096 = scalar_lea.vmem [#allocation9], 512
        %v12097 = vld [vmem:[%s12096] sm:$0xf]
        %v12098 = vld [vmem:[%s12096 + $0x4] sm:$0xf]
        %v12099 = vld [vmem:[%s12096 + $0x8] sm:$0xf]
        %v12100 = vld [vmem:[%s12096 + $0xc] sm:$0xf]
        %v12101 = vld [vmem:[%s12096 + $0x10] sm:$0xf]
        %v12102 = vld [vmem:[%s12096 + $0x14] sm:$0xf]
        %v12103 = vld [vmem:[%s12096 + $0x18] sm:$0xf]
        %v12104 = vld [vmem:[%s12096 + $0x1c] sm:$0xf]
        %v12105 = vld [vmem:[%s12096 + $0x20] sm:$0xf]
        %v12106 = vld [vmem:[%s12096 + $0x24] sm:$0xf]
        %v12107 = vld [vmem:[%s12096 + $0x28] sm:$0xf]
        %v12108 = vld [vmem:[%s12096 + $0x2c] sm:$0xf]
        %v12109 = vld [vmem:[%s12096 + $0x30] sm:$0xf]
        %v12110 = vld [vmem:[%s12096 + $0x34] sm:$0xf]
        %v12111 = vld [vmem:[%s12096 + $0x38] sm:$0xf]
        %v12112 = vld [vmem:[%s12096 + $0x3c] sm:$0xf]
        %v12113 = vunpack.c.l.b16 %v11987
        %v12114 = vunpack.c.l.b16 %v11990
        %v12115 = vunpack.c.l.b16 %v11994
        %v12116 = vunpack.c.l.b16 %v11997
        %v12117 = vunpack.c.l.b16 %v12001
        %v12118 = vunpack.c.l.b16 %v12004
        %v12119 = vunpack.c.l.b16 %v12008
        %v12120 = vunpack.c.l.b16 %v12011
        %v12121 = vunpack.c.l.b16 %v12015
        %v12122 = vunpack.c.l.b16 %v12018
        %v12123 = vunpack.c.l.b16 %v12022
        %v12124 = vunpack.c.l.b16 %v12025
        %v12125 = vunpack.c.l.b16 %v12029
        %v12126 = vunpack.c.l.b16 %v12032
        %v12127 = vunpack.c.l.b16 %v12036
        %v12128 = vunpack.c.l.b16 %v12039
        %v12129 = vunpack.c.l.b16 %v12043
        %v12130 = vunpack.c.l.b16 %v12046
        %v12131 = vunpack.c.l.b16 %v12050
        %v12132 = vunpack.c.l.b16 %v12053
        %v12133 = vunpack.c.l.b16 %v12057
        %v12134 = vunpack.c.l.b16 %v12060
        %v12135 = vunpack.c.l.b16 %v12064
        %v12136 = vunpack.c.l.b16 %v12067
        %v12137 = vunpack.c.l.b16 %v12071
        %v12138 = vunpack.c.l.b16 %v12074
        %v12139 = vunpack.c.l.b16 %v12078
        %v12140 = vunpack.c.l.b16 %v12081
        %v12141 = vunpack.c.l.b16 %v12085
        %v12142 = vunpack.c.l.b16 %v12088
        %v12143 = vunpack.c.l.b16 %v12092
        %v12144 = vunpack.c.l.b16 %v12095
        %v12145 = vpack.c.b16 %v12114, %v12113
        %v12146 = vpack.c.b16 %v12116, %v12115
        %v12147 = vpack.c.b16 %v12118, %v12117
        %v12148 = vpack.c.b16 %v12120, %v12119
        %v12149 = vpack.c.b16 %v12122, %v12121
        %v12150 = vpack.c.b16 %v12124, %v12123
        %v12151 = vpack.c.b16 %v12126, %v12125
        %v12152 = vpack.c.b16 %v12128, %v12127
        %v12153 = vpack.c.b16 %v12130, %v12129
        %v12154 = vpack.c.b16 %v12132, %v12131
        %v12155 = vpack.c.b16 %v12134, %v12133
        %v12156 = vpack.c.b16 %v12136, %v12135
        %v12157 = vpack.c.b16 %v12138, %v12137
        %v12158 = vpack.c.b16 %v12140, %v12139
        %v12159 = vpack.c.b16 %v12142, %v12141
        %v12160 = vpack.c.b16 %v12144, %v12143
        %v12193 = vunpack.c.l.b16 %v12097
        %v12194 = vunpack.c.l.b16 %v12098
        %v12195 = vunpack.c.l.b16 %v12099
        %v12196 = vunpack.c.l.b16 %v12100
        %v12197 = vunpack.c.l.b16 %v12101
        %v12198 = vunpack.c.l.b16 %v12102
        %v12199 = vunpack.c.l.b16 %v12103
        %v12200 = vunpack.c.l.b16 %v12104
        %v12201 = vunpack.c.l.b16 %v12105
        %v12202 = vunpack.c.l.b16 %v12106
        %v12203 = vunpack.c.l.b16 %v12107
        %v12204 = vunpack.c.l.b16 %v12108
        %v12205 = vunpack.c.l.b16 %v12109
        %v12206 = vunpack.c.l.b16 %v12110
        %v12207 = vunpack.c.l.b16 %v12111
        %v12208 = vunpack.c.l.b16 %v12112
        %v12209 = vpack.c.b16 %v12194, %v12193
        %v12210 = vpack.c.b16 %v12196, %v12195
        %v12211 = vpack.c.b16 %v12198, %v12197
        %v12212 = vpack.c.b16 %v12200, %v12199
        %v12213 = vpack.c.b16 %v12202, %v12201
        %v12214 = vpack.c.b16 %v12204, %v12203
        %v12215 = vpack.c.b16 %v12206, %v12205
        %v12216 = vpack.c.b16 %v12208, %v12207
        %12225 = vmatprep.subr.bf16.mxu0 0
        %12226 = vmatpush1.bf16.msra.mxu0 %v12209
        %12227 = vmatprep.subr.bf16.mxu0 0
        %12228 = vmatpush1.bf16.msra.mxu0 %v12210
        %12229 = vmatprep.subr.bf16.mxu0 0
        %12230 = vmatpush1.bf16.msra.mxu0 %v12211
        %12231 = vmatprep.subr.bf16.mxu0 0
        %12232 = vmatpush1.bf16.msra.mxu0 %v12212
        %12233 = vmatprep.subr.bf16.mxu0 0
        %12234 = vmatpush1.bf16.msra.mxu0 %v12213
        %12235 = vmatprep.subr.bf16.mxu0 0
        %12236 = vmatpush1.bf16.msra.mxu0 %v12214
        %12237 = vmatprep.subr.bf16.mxu0 0
        %12238 = vmatpush1.bf16.msra.mxu0 %v12215
        %12239 = vmatprep.subr.bf16.mxu0 0
        %12240 = vmatpush1.bf16.msra.mxu0 %v12216
        %12241 = vmatprep.subr.bf16.mxu0 0
        %12242 = vmatpush1.bf16.msra.mxu0 0
        %12243 = vmatprep.subr.bf16.mxu0 0
        %12244 = vmatpush1.bf16.msra.mxu0 0
        %12245 = vmatprep.subr.bf16.mxu0 0
        %12246 = vmatpush1.bf16.msra.mxu0 0
        %12247 = vmatprep.subr.bf16.mxu0 0
        %12248 = vmatpush1.bf16.msra.mxu0 0
        %12249 = vmatprep.subr.bf16.mxu0 0
        %12250 = vmatpush1.bf16.msra.mxu0 0
        %12251 = vmatprep.subr.bf16.mxu0 0
        %12252 = vmatpush1.bf16.msra.mxu0 0
        %12253 = vmatprep.subr.bf16.mxu0 0
        %12254 = vmatpush1.bf16.msra.mxu0 0
        %12255 = vmatprep.subr.bf16.mxu0 0
        %12256 = vmatpush1.bf16.msra.mxu0 0
        %12257 = vmatprep.mubr.bf16.mxu0 0
        %12258 = vmatmul.mubr.bf16.gmra.mrb[0].mxu0 %v12145
        %v12259 = vpop.f32.mrb[0].mxu0
        %v12260 = vadd.f32 0.0, %v12259
        %v12261 = vpop.f32.mrb[0].mxu0
        %v12262 = vpop.f32.mrb[0].mxu0
        %v12263 = vadd.f32 0.0, %v12262
        %v12264 = vpop.f32.mrb[0].mxu0
        %12265 = vmatprep.mubr.bf16.mxu0 0
        %12266 = vmatmul.mubr.bf16.gmra.mrb[0].mxu0 %v12146
        %v12267 = vpop.f32.mrb[0].mxu0
        %v12268 = vadd.f32 0.0, %v12267
        %v12269 = vpop.f32.mrb[0].mxu0
        %v12270 = vpop.f32.mrb[0].mxu0
        %v12271 = vadd.f32 0.0, %v12270
        %v12272 = vpop.f32.mrb[0].mxu0
        %12273 = vmatprep.mubr.bf16.mxu0 0
        %12274 = vmatmul.mubr.bf16.gmra.mrb[0].mxu0 %v12147
        %v12275 = vpop.f32.mrb[0].mxu0
        %v12276 = vadd.f32 0.0, %v12275
        %v12277 = vpop.f32.mrb[0].mxu0
        %v12278 = vpop.f32.mrb[0].mxu0
        %v12279 = vadd.f32 0.0, %v12278
        %v12280 = vpop.f32.mrb[0].mxu0
        %12281 = vmatprep.mubr.bf16.mxu0 0
        %12282 = vmatmul.mubr.bf16.gmra.mrb[0].mxu0 %v12148
        %v12283 = vpop.f32.mrb[0].mxu0
        %v12284 = vadd.f32 0.0, %v12283
        %v12285 = vpop.f32.mrb[0].mxu0
        %v12286 = vpop.f32.mrb[0].mxu0
        %v12287 = vadd.f32 0.0, %v12286
        %v12288 = vpop.f32.mrb[0].mxu0
        %12289 = vmatprep.mubr.bf16.mxu0 0
        %12290 = vmatmul.mubr.bf16.gmra.mrb[0].mxu0 %v12149
        %v12291 = vpop.f32.mrb[0].mxu0
        %v12292 = vadd.f32 0.0, %v12291
        %v12293 = vpop.f32.mrb[0].mxu0
        %v12294 = vpop.f32.mrb[0].mxu0
        %v12295 = vadd.f32 0.0, %v12294
        %v12296 = vpop.f32.mrb[0].mxu0
        %12297 = vmatprep.mubr.bf16.mxu0 0
        %12298 = vmatmul.mubr.bf16.gmra.mrb[0].mxu0 %v12150
        %v12299 = vpop.f32.mrb[0].mxu0
        %v12300 = vadd.f32 0.0, %v12299
        %v12301 = vpop.f32.mrb[0].mxu0
        %v12302 = vpop.f32.mrb[0].mxu0
        %v12303 = vadd.f32 0.0, %v12302
        %v12304 = vpop.f32.mrb[0].mxu0
        %12305 = vmatprep.mubr.bf16.mxu0 0
        %12306 = vmatmul.mubr.bf16.gmra.mrb[0].mxu0 %v12151
        %v12307 = vpop.f32.mrb[0].mxu0
        %v12308 = vadd.f32 0.0, %v12307
        %v12309 = vpop.f32.mrb[0].mxu0
        %v12310 = vpop.f32.mrb[0].mxu0
        %v12311 = vadd.f32 0.0, %v12310
        %v12312 = vpop.f32.mrb[0].mxu0
        %12313 = vmatprep.mubr.bf16.mxu0 0
        %12314 = vmatmul.mubr.bf16.gmra.mrb[0].mxu0 %v12152
        %v12315 = vpop.f32.mrb[0].mxu0
        %v12316 = vadd.f32 0.0, %v12315
        %v12317 = vpop.f32.mrb[0].mxu0
        %v12318 = vpop.f32.mrb[0].mxu0
        %v12319 = vadd.f32 0.0, %v12318
        %v12320 = vpop.f32.mrb[0].mxu0
        %12321 = vmatprep.mubr.bf16.mxu0 0
        %12322 = vmatmul.mubr.bf16.gmra.mrb[0].mxu0 %v12153
        %v12323 = vpop.f32.mrb[0].mxu0
        %v12324 = vadd.f32 0.0, %v12323
        %v12325 = vpop.f32.mrb[0].mxu0
        %v12326 = vpop.f32.mrb[0].mxu0
        %v12327 = vadd.f32 0.0, %v12326
        %v12328 = vpop.f32.mrb[0].mxu0
        %12329 = vmatprep.mubr.bf16.mxu0 0
        %12330 = vmatmul.mubr.bf16.gmra.mrb[0].mxu0 %v12154
        %v12331 = vpop.f32.mrb[0].mxu0
        %v12332 = vadd.f32 0.0, %v12331
        %v12333 = vpop.f32.mrb[0].mxu0
        %v12334 = vpop.f32.mrb[0].mxu0
        %v12335 = vadd.f32 0.0, %v12334
        %v12336 = vpop.f32.mrb[0].mxu0
        %12337 = vmatprep.mubr.bf16.mxu0 0
        %12338 = vmatmul.mubr.bf16.gmra.mrb[0].mxu0 %v12155
        %v12339 = vpop.f32.mrb[0].mxu0
        %v12340 = vadd.f32 0.0, %v12339
        %v12341 = vpop.f32.mrb[0].mxu0
        %v12342 = vpop.f32.mrb[0].mxu0
        %v12343 = vadd.f32 0.0, %v12342
        %v12344 = vpop.f32.mrb[0].mxu0
        %12345 = vmatprep.mubr.bf16.mxu0 0
        %12346 = vmatmul.mubr.bf16.gmra.mrb[0].mxu0 %v12156
        %v12347 = vpop.f32.mrb[0].mxu0
        %v12348 = vadd.f32 0.0, %v12347
        %v12349 = vpop.f32.mrb[0].mxu0
        %v12350 = vpop.f32.mrb[0].mxu0
        %v12351 = vadd.f32 0.0, %v12350
        %v12352 = vpop.f32.mrb[0].mxu0
        %12353 = vmatprep.mubr.bf16.mxu0 0
        %12354 = vmatmul.mubr.bf16.gmra.mrb[0].mxu0 %v12157
        %v12355 = vpop.f32.mrb[0].mxu0
        %v12356 = vadd.f32 0.0, %v12355
        %v12357 = vpop.f32.mrb[0].mxu0
        %v12358 = vpop.f32.mrb[0].mxu0
        %v12359 = vadd.f32 0.0, %v12358
        %v12360 = vpop.f32.mrb[0].mxu0
        %12361 = vmatprep.mubr.bf16.mxu0 0
        %12362 = vmatmul.mubr.bf16.gmra.mrb[0].mxu0 %v12158
        %v12363 = vpop.f32.mrb[0].mxu0
        %v12364 = vadd.f32 0.0, %v12363
        %v12365 = vpop.f32.mrb[0].mxu0
        %v12366 = vpop.f32.mrb[0].mxu0
        %v12367 = vadd.f32 0.0, %v12366
        %v12368 = vpop.f32.mrb[0].mxu0
        %12369 = vmatprep.mubr.bf16.mxu0 0
        %12370 = vmatmul.mubr.bf16.gmra.mrb[0].mxu0 %v12159
        %v12371 = vpop.f32.mrb[0].mxu0
        %v12372 = vadd.f32 0.0, %v12371
        %v12373 = vpop.f32.mrb[0].mxu0
        %v12374 = vpop.f32.mrb[0].mxu0
        %v12375 = vadd.f32 0.0, %v12374
        %v12376 = vpop.f32.mrb[0].mxu0
        %12377 = vmatprep.mubr.bf16.mxu0 0
        %12378 = vmatmul.mubr.bf16.gmra.mrb[0].mxu0 %v12160
        %v12379 = vpop.f32.mrb[0].mxu0
        %v12380 = vadd.f32 0.0, %v12379
        %v12381 = vpop.f32.mrb[0].mxu0
        %v12382 = vpop.f32.mrb[0].mxu0
        %v12383 = vadd.f32 0.0, %v12382
        %v12384 = vpop.f32.mrb[0].mxu0
        %12385 = vdwg.mxu0
        %v12386 = vadd.f32 %v11888, %v12260
        %v12387 = vadd.f32 %v11889, %v12263
        %v12388 = vadd.f32 %v11890, %v12268
        %v12389 = vadd.f32 %v11891, %v12271
        %v12390 = vadd.f32 %v11892, %v12276
        %v12391 = vadd.f32 %v11893, %v12279
        %v12392 = vadd.f32 %v11894, %v12284
        %v12393 = vadd.f32 %v11895, %v12287
        %v12394 = vadd.f32 %v11896, %v12292
        %v12395 = vadd.f32 %v11897, %v12295
        %v12396 = vadd.f32 %v11898, %v12300
        %v12397 = vadd.f32 %v11899, %v12303
        %v12398 = vadd.f32 %v11900, %v12308
        %v12399 = vadd.f32 %v11901, %v12311
        %v12400 = vadd.f32 %v11902, %v12316
        %v12401 = vadd.f32 %v11903, %v12319
        %v12402 = vadd.f32 %v11904, %v12324
        %v12403 = vadd.f32 %v11905, %v12327
        %v12404 = vadd.f32 %v11906, %v12332
        %v12405 = vadd.f32 %v11907, %v12335
        %v12406 = vadd.f32 %v11908, %v12340
        %v12407 = vadd.f32 %v11909, %v12343
        %v12408 = vadd.f32 %v11910, %v12348
        %v12409 = vadd.f32 %v11911, %v12351
        %v12410 = vadd.f32 %v11912, %v12356
        %v12411 = vadd.f32 %v11913, %v12359
        %v12412 = vadd.f32 %v11914, %v12364
        %v12413 = vadd.f32 %v11915, %v12367
        %v12414 = vadd.f32 %v11916, %v12372
        %v12415 = vadd.f32 %v11917, %v12375
        %v12416 = vadd.f32 %v11918, %v12380
        %v12417 = vadd.f32 %v11919, %v12383
        %v12418 = vld [vmem:[%s4] sm:$0x1]
        %v12420 = vlaneseq
        %v12421 = vshrl.u32 %v12420, 7
        %v12422 = vsub.s32 0, %v12421
        %v12423 = vrot.slane %v12418, %v12422
        %v12425 = vadd.f32 %v12386, %v12423
        %v12426 = vadd.f32 %v12387, %v12423
        %v12427 = vadd.f32 %v12388, %v12423
        %v12428 = vadd.f32 %v12389, %v12423
        %v12429 = vadd.f32 %v12390, %v12423
        %v12430 = vadd.f32 %v12391, %v12423
        %v12431 = vadd.f32 %v12392, %v12423
        %v12432 = vadd.f32 %v12393, %v12423
        %v12433 = vadd.f32 %v12394, %v12423
        %v12434 = vadd.f32 %v12395, %v12423
        %v12435 = vadd.f32 %v12396, %v12423
        %v12436 = vadd.f32 %v12397, %v12423
        %v12437 = vadd.f32 %v12398, %v12423
        %v12438 = vadd.f32 %v12399, %v12423
        %v12439 = vadd.f32 %v12400, %v12423
        %v12440 = vadd.f32 %v12401, %v12423
        %v12441 = vadd.f32 %v12402, %v12423
        %v12442 = vadd.f32 %v12403, %v12423
        %v12443 = vadd.f32 %v12404, %v12423
        %v12444 = vadd.f32 %v12405, %v12423
        %v12445 = vadd.f32 %v12406, %v12423
        %v12446 = vadd.f32 %v12407, %v12423
        %v12447 = vadd.f32 %v12408, %v12423
        %v12448 = vadd.f32 %v12409, %v12423
        %v12449 = vadd.f32 %v12410, %v12423
        %v12450 = vadd.f32 %v12411, %v12423
        %v12451 = vadd.f32 %v12412, %v12423
        %v12452 = vadd.f32 %v12413, %v12423
        %v12453 = vadd.f32 %v12414, %v12423
        %v12454 = vadd.f32 %v12415, %v12423
        %v12455 = vadd.f32 %v12416, %v12423
        %v12456 = vadd.f32 %v12417, %v12423
        %v12457 = vmax.f32 %v12425, 0.0
        %v12458 = vmax.f32 %v12426, 0.0
        %v12459 = vmax.f32 %v12427, 0.0
        %v12460 = vmax.f32 %v12428, 0.0
        %v12461 = vmax.f32 %v12429, 0.0
        %v12462 = vmax.f32 %v12430, 0.0
        %v12463 = vmax.f32 %v12431, 0.0
        %v12464 = vmax.f32 %v12432, 0.0
        %v12465 = vmax.f32 %v12433, 0.0
        %v12466 = vmax.f32 %v12434, 0.0
        %v12467 = vmax.f32 %v12435, 0.0
        %v12468 = vmax.f32 %v12436, 0.0
        %v12469 = vmax.f32 %v12437, 0.0
        %v12470 = vmax.f32 %v12438, 0.0
        %v12471 = vmax.f32 %v12439, 0.0
        %v12472 = vmax.f32 %v12440, 0.0
        %v12473 = vmax.f32 %v12441, 0.0
        %v12474 = vmax.f32 %v12442, 0.0
        %v12475 = vmax.f32 %v12443, 0.0
        %v12476 = vmax.f32 %v12444, 0.0
        %v12477 = vmax.f32 %v12445, 0.0
        %v12478 = vmax.f32 %v12446, 0.0
        %v12479 = vmax.f32 %v12447, 0.0
        %v12480 = vmax.f32 %v12448, 0.0
        %v12481 = vmax.f32 %v12449, 0.0
        %v12482 = vmax.f32 %v12450, 0.0
        %v12483 = vmax.f32 %v12451, 0.0
        %v12484 = vmax.f32 %v12452, 0.0
        %v12485 = vmax.f32 %v12453, 0.0
        %v12486 = vmax.f32 %v12454, 0.0
        %v12487 = vmax.f32 %v12455, 0.0
        %v12488 = vmax.f32 %v12456, 0.0
        %v12489 = vpack.c.bf16 %v12458, %v12457
        %v12490 = vpack.c.bf16 %v12460, %v12459
        %v12491 = vpack.c.bf16 %v12462, %v12461
        %v12492 = vpack.c.bf16 %v12464, %v12463
        %v12493 = vpack.c.bf16 %v12466, %v12465
        %v12494 = vpack.c.bf16 %v12468, %v12467
        %v12495 = vpack.c.bf16 %v12470, %v12469
        %v12496 = vpack.c.bf16 %v12472, %v12471
        %v12497 = vpack.c.bf16 %v12474, %v12473
        %v12498 = vpack.c.bf16 %v12476, %v12475
        %v12499 = vpack.c.bf16 %v12478, %v12477
        %v12500 = vpack.c.bf16 %v12480, %v12479
        %v12501 = vpack.c.bf16 %v12482, %v12481
        %v12502 = vpack.c.bf16 %v12484, %v12483
        %v12503 = vpack.c.bf16 %v12486, %v12485
        %v12504 = vpack.c.bf16 %v12488, %v12487
        %v12505 = vld [vmem:[#allocation10] sm:$0xf]
        %v12506 = vld [vmem:[#allocation10 + $0x4] sm:$0xf]
        %v12507 = vld [vmem:[#allocation10 + $0x8] sm:$0xf]
        %v12508 = vld [vmem:[#allocation10 + $0xc] sm:$0xf]
        %v12509 = vld [vmem:[#allocation10 + $0x10] sm:$0xf]
        %v12510 = vld [vmem:[#allocation10 + $0x14] sm:$0xf]
        %v12511 = vld [vmem:[#allocation10 + $0x18] sm:$0xf]
        %v12512 = vld [vmem:[#allocation10 + $0x1c] sm:$0xf]
        %v12513 = vld [vmem:[#allocation10 + $0x20] sm:$0xf]
        %v12514 = vld [vmem:[#allocation10 + $0x24] sm:$0xf]
        %v12515 = vld [vmem:[#allocation10 + $0x28] sm:$0xf]
        %v12516 = vld [vmem:[#allocation10 + $0x2c] sm:$0xf]
        %v12517 = vld [vmem:[#allocation10 + $0x30] sm:$0xf]
        %v12518 = vld [vmem:[#allocation10 + $0x34] sm:$0xf]
        %v12519 = vld [vmem:[#allocation10 + $0x38] sm:$0xf]
        %v12520 = vld [vmem:[#allocation10 + $0x3c] sm:$0xf]
        %v12521 = vld [vmem:[%s6] sm:$0x1]
        %v12523 = vlaneseq
        %v12524 = vshrl.u32 %v12523, 7
        %v12525 = vsub.s32 0, %v12524
        %v12526 = vrot.slane %v12521, %v12525
        %v12544 = vunpack.c.l.b16 %v12505
        %v12545 = vunpack.c.l.b16 %v12506
        %v12546 = vunpack.c.l.b16 %v12507
        %v12547 = vunpack.c.l.b16 %v12508
        %v12548 = vunpack.c.l.b16 %v12509
        %v12549 = vunpack.c.l.b16 %v12510
        %v12550 = vunpack.c.l.b16 %v12511
        %v12551 = vunpack.c.l.b16 %v12512
        %v12552 = vunpack.c.l.b16 %v12513
        %v12553 = vunpack.c.l.b16 %v12514
        %v12554 = vunpack.c.l.b16 %v12515
        %v12555 = vunpack.c.l.b16 %v12516
        %v12556 = vunpack.c.l.b16 %v12517
        %v12557 = vunpack.c.l.b16 %v12518
        %v12558 = vunpack.c.l.b16 %v12519
        %v12559 = vunpack.c.l.b16 %v12520
        %v12560 = vpack.c.b16 %v12545, %v12544
        %v12561 = vpack.c.b16 %v12547, %v12546
        %v12562 = vpack.c.b16 %v12549, %v12548
        %v12563 = vpack.c.b16 %v12551, %v12550
        %v12564 = vpack.c.b16 %v12553, %v12552
        %v12565 = vpack.c.b16 %v12555, %v12554
        %v12566 = vpack.c.b16 %v12557, %v12556
        %v12567 = vpack.c.b16 %v12559, %v12558
        %12576 = vmatprep.subr.bf16.mxu0 0
        %12577 = vmatpush1.bf16.msra.mxu0 %v12560
        %12578 = vmatprep.subr.bf16.mxu0 0
        %12579 = vmatpush1.bf16.msra.mxu0 %v12561
        %12580 = vmatprep.subr.bf16.mxu0 0
        %12581 = vmatpush1.bf16.msra.mxu0 %v12562
        %12582 = vmatprep.subr.bf16.mxu0 0
        %12583 = vmatpush1.bf16.msra.mxu0 %v12563
        %12584 = vmatprep.subr.bf16.mxu0 0
        %12585 = vmatpush1.bf16.msra.mxu0 %v12564
        %12586 = vmatprep.subr.bf16.mxu0 0
        %12587 = vmatpush1.bf16.msra.mxu0 %v12565
        %12588 = vmatprep.subr.bf16.mxu0 0
        %12589 = vmatpush1.bf16.msra.mxu0 %v12566
        %12590 = vmatprep.subr.bf16.mxu0 0
        %12591 = vmatpush1.bf16.msra.mxu0 %v12567
        %12592 = vmatprep.subr.bf16.mxu0 0
        %12593 = vmatpush1.bf16.msra.mxu0 0
        %12594 = vmatprep.subr.bf16.mxu0 0
        %12595 = vmatpush1.bf16.msra.mxu0 0
        %12596 = vmatprep.subr.bf16.mxu0 0
        %12597 = vmatpush1.bf16.msra.mxu0 0
        %12598 = vmatprep.subr.bf16.mxu0 0
        %12599 = vmatpush1.bf16.msra.mxu0 0
        %12600 = vmatprep.subr.bf16.mxu0 0
        %12601 = vmatpush1.bf16.msra.mxu0 0
        %12602 = vmatprep.subr.bf16.mxu0 0
        %12603 = vmatpush1.bf16.msra.mxu0 0
        %12604 = vmatprep.subr.bf16.mxu0 0
        %12605 = vmatpush1.bf16.msra.mxu0 0
        %12606 = vmatprep.subr.bf16.mxu0 0
        %12607 = vmatpush1.bf16.msra.mxu0 0
        %12608 = vmatprep.mubr.bf16.mxu0 0
        %12609 = vmatmul.mubr.bf16.gmra.mrb[0].mxu0 %v12489
        %v12610 = vpop.f32.mrb[0].mxu0
        %v12611 = vadd.f32 %v12526, %v12610
        %v12612 = vpop.f32.mrb[0].mxu0
        %v12613 = vpop.f32.mrb[0].mxu0
        %v12614 = vadd.f32 %v12526, %v12613
        %v12615 = vpop.f32.mrb[0].mxu0
        %12616 = vmatprep.mubr.bf16.mxu0 0
        %12617 = vmatmul.mubr.bf16.gmra.mrb[0].mxu0 %v12490
        %v12618 = vpop.f32.mrb[0].mxu0
        %v12619 = vadd.f32 %v12526, %v12618
        %v12620 = vpop.f32.mrb[0].mxu0
        %v12621 = vpop.f32.mrb[0].mxu0
        %v12622 = vadd.f32 %v12526, %v12621
        %v12623 = vpop.f32.mrb[0].mxu0
        %12624 = vmatprep.mubr.bf16.mxu0 0
        %12625 = vmatmul.mubr.bf16.gmra.mrb[0].mxu0 %v12491
        %v12626 = vpop.f32.mrb[0].mxu0
        %v12627 = vadd.f32 %v12526, %v12626
        %v12628 = vpop.f32.mrb[0].mxu0
        %v12629 = vpop.f32.mrb[0].mxu0
        %v12630 = vadd.f32 %v12526, %v12629
        %v12631 = vpop.f32.mrb[0].mxu0
        %12632 = vmatprep.mubr.bf16.mxu0 0
        %12633 = vmatmul.mubr.bf16.gmra.mrb[0].mxu0 %v12492
        %v12634 = vpop.f32.mrb[0].mxu0
        %v12635 = vadd.f32 %v12526, %v12634
        %v12636 = vpop.f32.mrb[0].mxu0
        %v12637 = vpop.f32.mrb[0].mxu0
        %v12638 = vadd.f32 %v12526, %v12637
        %v12639 = vpop.f32.mrb[0].mxu0
        %12640 = vmatprep.mubr.bf16.mxu0 0
        %12641 = vmatmul.mubr.bf16.gmra.mrb[0].mxu0 %v12493
        %v12642 = vpop.f32.mrb[0].mxu0
        %v12643 = vadd.f32 %v12526, %v12642
        %v12644 = vpop.f32.mrb[0].mxu0
        %v12645 = vpop.f32.mrb[0].mxu0
        %v12646 = vadd.f32 %v12526, %v12645
        %v12647 = vpop.f32.mrb[0].mxu0
        %12648 = vmatprep.mubr.bf16.mxu0 0
        %12649 = vmatmul.mubr.bf16.gmra.mrb[0].mxu0 %v12494
        %v12650 = vpop.f32.mrb[0].mxu0
        %v12651 = vadd.f32 %v12526, %v12650
        %v12652 = vpop.f32.mrb[0].mxu0
        %v12653 = vpop.f32.mrb[0].mxu0
        %v12654 = vadd.f32 %v12526, %v12653
        %v12655 = vpop.f32.mrb[0].mxu0
        %12656 = vmatprep.mubr.bf16.mxu0 0
        %12657 = vmatmul.mubr.bf16.gmra.mrb[0].mxu0 %v12495
        %v12658 = vpop.f32.mrb[0].mxu0
        %v12659 = vadd.f32 %v12526, %v12658
        %v12660 = vpop.f32.mrb[0].mxu0
        %v12661 = vpop.f32.mrb[0].mxu0
        %v12662 = vadd.f32 %v12526, %v12661
        %v12663 = vpop.f32.mrb[0].mxu0
        %12664 = vmatprep.mubr.bf16.mxu0 0
        %12665 = vmatmul.mubr.bf16.gmra.mrb[0].mxu0 %v12496
        %v12666 = vpop.f32.mrb[0].mxu0
        %v12667 = vadd.f32 %v12526, %v12666
        %v12668 = vpop.f32.mrb[0].mxu0
        %v12669 = vpop.f32.mrb[0].mxu0
        %v12670 = vadd.f32 %v12526, %v12669
        %v12671 = vpop.f32.mrb[0].mxu0
        %12672 = vmatprep.mubr.bf16.mxu0 0
        %12673 = vmatmul.mubr.bf16.gmra.mrb[0].mxu0 %v12497
        %v12674 = vpop.f32.mrb[0].mxu0
        %v12675 = vadd.f32 %v12526, %v12674
        %v12676 = vpop.f32.mrb[0].mxu0
        %v12677 = vpop.f32.mrb[0].mxu0
        %v12678 = vadd.f32 %v12526, %v12677
        %v12679 = vpop.f32.mrb[0].mxu0
        %12680 = vmatprep.mubr.bf16.mxu0 0
        %12681 = vmatmul.mubr.bf16.gmra.mrb[0].mxu0 %v12498
        %v12682 = vpop.f32.mrb[0].mxu0
        %v12683 = vadd.f32 %v12526, %v12682
        %v12684 = vpop.f32.mrb[0].mxu0
        %v12685 = vpop.f32.mrb[0].mxu0
        %v12686 = vadd.f32 %v12526, %v12685
        %v12687 = vpop.f32.mrb[0].mxu0
        %12688 = vmatprep.mubr.bf16.mxu0 0
        %12689 = vmatmul.mubr.bf16.gmra.mrb[0].mxu0 %v12499
        %v12690 = vpop.f32.mrb[0].mxu0
        %v12691 = vadd.f32 %v12526, %v12690
        %v12692 = vpop.f32.mrb[0].mxu0
        %v12693 = vpop.f32.mrb[0].mxu0
        %v12694 = vadd.f32 %v12526, %v12693
        %v12695 = vpop.f32.mrb[0].mxu0
        %12696 = vmatprep.mubr.bf16.mxu0 0
        %12697 = vmatmul.mubr.bf16.gmra.mrb[0].mxu0 %v12500
        %v12698 = vpop.f32.mrb[0].mxu0
        %v12699 = vadd.f32 %v12526, %v12698
        %v12700 = vpop.f32.mrb[0].mxu0
        %v12701 = vpop.f32.mrb[0].mxu0
        %v12702 = vadd.f32 %v12526, %v12701
        %v12703 = vpop.f32.mrb[0].mxu0
        %12704 = vmatprep.mubr.bf16.mxu0 0
        %12705 = vmatmul.mubr.bf16.gmra.mrb[0].mxu0 %v12501
        %v12706 = vpop.f32.mrb[0].mxu0
        %v12707 = vadd.f32 %v12526, %v12706
        %v12708 = vpop.f32.mrb[0].mxu0
        %v12709 = vpop.f32.mrb[0].mxu0
        %v12710 = vadd.f32 %v12526, %v12709
        %v12711 = vpop.f32.mrb[0].mxu0
        %12712 = vmatprep.mubr.bf16.mxu0 0
        %12713 = vmatmul.mubr.bf16.gmra.mrb[0].mxu0 %v12502
        %v12714 = vpop.f32.mrb[0].mxu0
        %v12715 = vadd.f32 %v12526, %v12714
        %v12716 = vpop.f32.mrb[0].mxu0
        %v12717 = vpop.f32.mrb[0].mxu0
        %v12718 = vadd.f32 %v12526, %v12717
        %v12719 = vpop.f32.mrb[0].mxu0
        %12720 = vmatprep.mubr.bf16.mxu0 0
        %12721 = vmatmul.mubr.bf16.gmra.mrb[0].mxu0 %v12503
        %v12722 = vpop.f32.mrb[0].mxu0
        %v12723 = vadd.f32 %v12526, %v12722
        %v12724 = vpop.f32.mrb[0].mxu0
        %v12725 = vpop.f32.mrb[0].mxu0
        %v12726 = vadd.f32 %v12526, %v12725
        %v12727 = vpop.f32.mrb[0].mxu0
        %12728 = vmatprep.mubr.bf16.mxu0 0
        %12729 = vmatmul.mubr.bf16.gmra.mrb[0].mxu0 %v12504
        %v12730 = vpop.f32.mrb[0].mxu0
        %v12731 = vadd.f32 %v12526, %v12730
        %v12732 = vpop.f32.mrb[0].mxu0
        %v12733 = vpop.f32.mrb[0].mxu0
        %v12734 = vadd.f32 %v12526, %v12733
        %v12735 = vpop.f32.mrb[0].mxu0
        %12736 = vdwg.mxu0
        %12737 = vst [vmem:[%s340] sm:$0xff] %v12611
        %12738 = vst [vmem:[%s340 + $0x8] sm:$0xff] %v12614
        %12739 = vst [vmem:[%s340 + $0x10] sm:$0xff] %v12619
        %12740 = vst [vmem:[%s340 + $0x18] sm:$0xff] %v12622
        %12741 = vst [vmem:[%s340 + $0x20] sm:$0xff] %v12627
        %12742 = vst [vmem:[%s340 + $0x28] sm:$0xff] %v12630
        %12743 = vst [vmem:[%s340 + $0x30] sm:$0xff] %v12635
        %12744 = vst [vmem:[%s340 + $0x38] sm:$0xff] %v12638
        %12745 = vst [vmem:[%s340 + $0x40] sm:$0xff] %v12643
        %12746 = vst [vmem:[%s340 + $0x48] sm:$0xff] %v12646
        %12747 = vst [vmem:[%s340 + $0x50] sm:$0xff] %v12651
        %12748 = vst [vmem:[%s340 + $0x58] sm:$0xff] %v12654
        %12749 = vst [vmem:[%s340 + $0x60] sm:$0xff] %v12659
        %12750 = vst [vmem:[%s340 + $0x68] sm:$0xff] %v12662
        %12751 = vst [vmem:[%s340 + $0x70] sm:$0xff] %v12667
        %12752 = vst [vmem:[%s340 + $0x78] sm:$0xff] %v12670
        %12753 = vst [vmem:[%s340 + $0x80] sm:$0xff] %v12675
        %12754 = vst [vmem:[%s340 + $0x88] sm:$0xff] %v12678
        %12755 = vst [vmem:[%s340 + $0x90] sm:$0xff] %v12683
        %12756 = vst [vmem:[%s340 + $0x98] sm:$0xff] %v12686
        %12757 = vst [vmem:[%s340 + $0xa0] sm:$0xff] %v12691
        %12758 = vst [vmem:[%s340 + $0xa8] sm:$0xff] %v12694
        %12759 = vst [vmem:[%s340 + $0xb0] sm:$0xff] %v12699
        %12760 = vst [vmem:[%s340 + $0xb8] sm:$0xff] %v12702
        %12761 = vst [vmem:[%s340 + $0xc0] sm:$0xff] %v12707
        %12762 = vst [vmem:[%s340 + $0xc8] sm:$0xff] %v12710
        %12763 = vst [vmem:[%s340 + $0xd0] sm:$0xff] %v12715
        %12764 = vst [vmem:[%s340 + $0xd8] sm:$0xff] %v12718
        %12765 = vst [vmem:[%s340 + $0xe0] sm:$0xff] %v12723
        %12766 = vst [vmem:[%s340 + $0xe8] sm:$0xff] %v12726
        %12767 = vst [vmem:[%s340 + $0xf0] sm:$0xff] %v12731
        %12768 = vst [vmem:[%s340 + $0xf8] sm:$0xff] %v12734
        %s12769 = sand.u32 %s186, 1
        %s12770 = scalar_lea.sflag [#allocation6], %s12769
        %s12771 = sand.u32 %s186, 1
        %s12772 = smul.addr %s12771, 256
        %s12773 = scalar_lea.vmem [#allocation12], %s12772
        // Predicated region
        $region65: #{tpu_custom_call.1} parent=47 // pred_check
          %p12774 = pneg %p196
        $region66: #{tpu_custom_call.1} parent=47 // pred_check_branch
          %12776 = sbr.rel (%p12774) target = $region68
        $region67: #{tpu_custom_call.1} parent=47 // pred_region
          %s12778 = ssub.s32 4096, 4096
          %12779 = vsyncadd %s12770, %s12778
          %s12780 = smul.addr %s26, 32
          %s12781 = smul.addr %s12780, 128
          %s12782 = scalar_lea.hbm %s7, %s12781
          %s12783 = sshll.u32 %s12773, 4
          %s12784 = int_to_ptr.vmem [resolvable:$true] %s12783
          %12789 = dma.vmem_to_hbm [thread:$0]  %s12784, 4096, %s12782, %s12770, 128, 128, 8
        $region68: #{tpu_custom_call.1} parent=47 // pred_fallthru
          _
      $region48: #{tpu_custom_call.1} parent=5 // pred_fallthru
        _
      %p12790 = scmp.le.s32.totalorder 2, %s21
      // Predicated region
      $region69: #{tpu_custom_call.1} parent=5 // pred_check
        %p12791 = pneg %p12790
      $region70: #{tpu_custom_call.1} parent=5 // pred_check_branch
        %12793 = sbr.rel (%p12791) target = $region72
      $region71: #{tpu_custom_call.1} parent=5 // pred_region
        %s12794 = ssub.s32 %s21, 2
        // Predicated region
        $region73: #{tpu_custom_call.1} parent=71 // pred_check
          %p12795 = pneg %p202
        $region74: #{tpu_custom_call.1} parent=71 // pred_check_branch
          %12797 = sbr.rel (%p12795) target = $region76
        $region75: #{tpu_custom_call.1} parent=71 // pred_region
          %s12798 = sand.u32 %s187, 1
          %s12799 = scalar_lea.sflag [#allocation6], %s12798
          %s12800 = sand.u32 %s187, 1
          %s12801 = smul.addr %s12800, 256
          %s12802 = scalar_lea.vmem [#allocation12], %s12801
          %12803 = dma.done %s12799, 4096
        $region76: #{tpu_custom_call.1} parent=71 // pred_fallthru
          _
      $region72: #{tpu_custom_call.1} parent=5 // pred_fallthru
        _
    $region6: #{tpu_custom_call.1} parent=1 // loop_footer
      %s25 = sadd.s32 1, %s21
    $region7: #{tpu_custom_call.1} parent=1 // loop_footer_branch
      %20 = sbr.rel target = $region3
    $region8: #{tpu_custom_call.1} parent=1 // loop_exit
      _
    %12804 = vsyncpa [#allocation5], 1
    %s12805 = scalar_lea.sflag [#allocation5], 1
    %12806 = vsyncpa %s12805, 1
    %12807 = vsyncpa [#allocation8], 1
    %12808 = vsyncpa [#allocation11], 1
    %12809 = vsyncpa [#allocation6], 1
    %s12810 = scalar_lea.sflag [#allocation6], 1
    %12811 = vsyncpa %s12810, 1

</llo_original>
